<compile_context>
chip_gen: v5e
topology: v5e:2x2
jax: 0.10.0
libtpu: 0.0.40
codegen_flags: <defaults>
</compile_context>

<pallas_src>
import math
import numpy as np

import jax
import jax.numpy as jnp
from jax.experimental import pallas as pl
from jax.experimental.pallas import tpu as pltpu

# ----------------------------- hyper-parameters ------------------------------
NUM_CLASSES = 8
IN_CHANNELS = 4
EMBED_DIM = 32
NUM_LAYERS = 2
NUM_HEADS = 4
DIM_FF = 2048               # fixed to 2048 inside the PyTorch module
HEAD_DIM = EMBED_DIM // NUM_HEADS
POS_HW = 384                # positional-encoding spatial size fixed in __init__
LN_EPS = 1e-5
BN_EPS = 1e-5
FF_CHUNK = 512              # FFN tiled over dim_feedforward
OUT_PAD = 128               # lane-dense padded head output (sliced in wrapper)


# --------------------------------- kernel ------------------------------------
def _layernorm(y, w, b):
    mu = jnp.mean(y, axis=-1, keepdims=True)
    var = jnp.mean((y - mu) * (y - mu), axis=-1, keepdims=True)
    return (y - mu) * jax.lax.rsqrt(var + LN_EPS) * w + b


def ctran_kernel(x_ref, bbw3_ref, bbb3_ref,
                 wqkv_ref, bqkv_ref, wo_ref, bo_ref,
                 ln1w_ref, ln1b_ref, ln2w_ref, ln2b_ref,
                 w1_ref, b1_ref, w2_ref, b2_ref,
                 pw3_ref, pb_ref, bns_ref, bnb_ref,
                 m1w_ref, m1b_ref, m2w_ref, m2b_ref,
                 o_ref):
    NC, E, H, hd = NUM_CLASSES, EMBED_DIM, NUM_HEADS, HEAD_DIM
    B = x_ref.shape[0]
    NB = NC * B

    # ---- backbone stand-in: GAP over spatial + per-class-token linear map ----
    # (positional-encoding feature is pre-folded into bbb3 at init time.)
    gap = jnp.mean(x_ref[...], axis=-1)                              # (B, C)
    gap3 = jnp.broadcast_to(gap[None], (NC,) + gap.shape)            # (NC, B, C)
    tok = jnp.einsum('nbc,nce->nbe', gap3, bbw3_ref[...],
                     preferred_element_type=jnp.float32) + bbb3_ref[...]
    # transformer layout: (NC, B, E) = batch-major view of PyTorch's (B, NC, E)
    # (batch_first=False => dim0 (=B) is the attended sequence, dim1 (=NC) the
    # batch).  Row index of x2 is n*B + b.
    x2 = tok.reshape(NB, E)

    q_scale = 1.0 / math.sqrt(hd)
    for l in range(NUM_LAYERS):                      # post-LN encoder layers
        bqkv = bqkv_ref[l]
        bo = bo_ref[l]
        b2 = b2_ref[l]
        ln1w = ln1w_ref[l]; ln1b = ln1b_ref[l]
        ln2w = ln2w_ref[l]; ln2b = ln2b_ref[l]

        # --- self-attention, heads batched into the leading einsum dim -------
        qkv = jnp.dot(x2.astype(jnp.bfloat16), wqkv_ref[l],
                      preferred_element_type=jnp.float32) + bqkv     # (NB, 3E)
        q = qkv[:, 0:E] * q_scale                                    # PyTorch scales q
        k = qkv[:, E:2 * E]
        v = qkv[:, 2 * E:3 * E]
        q3 = q.reshape(NC, B, E)
        k3 = k.reshape(NC, B, E)
        v3 = v.reshape(NC, B, E)
        # stack heads along the (untiled) leading dim -> g = h*NC + n
        qg = jnp.concatenate([q3[:, :, h * hd:(h + 1) * hd] for h in range(H)], axis=0)
        kg = jnp.concatenate([k3[:, :, h * hd:(h + 1) * hd] for h in range(H)], axis=0)
        vg = jnp.concatenate([v3[:, :, h * hd:(h + 1) * hd] for h in range(H)], axis=0)

        s = jnp.einsum('gsd,gtd->gst', qg, kg,
                       preferred_element_type=jnp.float32)           # (H*NC, B, B)
        s = s - jnp.max(s, axis=-1, keepdims=True)
        e = jnp.exp(s)
        p = e * pl.reciprocal(jnp.sum(e, axis=-1, keepdims=True), approx=True)
        ctx = jnp.einsum('gst,gtd->gsd', p, vg,
                         preferred_element_type=jnp.float32)         # (H*NC, B, hd)

        # re-assemble heads along lanes and do a single output projection
        ctx_cat = jnp.concatenate([ctx[h * NC:(h + 1) * NC] for h in range(H)],
                                  axis=-1)                           # (NC, B, E)
        attn = jnp.dot(ctx_cat.reshape(NB, E).astype(jnp.bfloat16), wo_ref[l],
                       preferred_element_type=jnp.float32) + bo

        y = _layernorm(x2 + attn, ln1w, ln1b)                        # (NB, E)

        # --- FFN (relu), chunked over DIM_FF to bound live intermediates -----
        y_b = y.astype(jnp.bfloat16)
        ffn = jnp.zeros((NB, E), jnp.float32)
        for c0 in range(0, DIM_FF, FF_CHUNK):
            h1 = jnp.dot(y_b, w1_ref[l, :, c0:c0 + FF_CHUNK],
                         preferred_element_type=jnp.float32) \
                 + b1_ref[l, :, c0:c0 + FF_CHUNK]
            h1 = jnp.maximum(h1, 0.0)
            ffn = ffn + jnp.dot(h1.astype(jnp.bfloat16),
                                w2_ref[l, c0:c0 + FF_CHUNK, :],
                                preferred_element_type=jnp.float32)
        ffn = ffn + b2

        x2 = _layernorm(y + ffn, ln2w, ln2b)
        # Dropout layers are identity in eval mode.

    # ---- head: flatten+proj done per class token (no in-kernel transpose),
    #      eval BatchNorm folded to scale/shift, Linear -> GELU -> Linear ------
    z3 = x2.reshape(NC, B, E)
    projp = jnp.einsum('nbe,nef->nbf', z3, pw3_ref[...],
                       preferred_element_type=jnp.float32)           # (NC, B, 2E)
    proj = jnp.sum(projp, axis=0) + pb_ref[...]                      # (B, 2E)
    ybn = proj * bns_ref[...] + bnb_ref[...]                         # BN (eval)
    hm = jnp.dot(ybn, m1w_ref[...],
                 preferred_element_type=jnp.float32) + m1b_ref[...]
    hm = 0.5 * hm * (1.0 + jax.lax.erf(hm * 0.7071067811865476))     # exact GELU
    o_ref[...] = jnp.dot(hm, m2w_ref[...],
                         preferred_element_type=jnp.float32) + m2b_ref[...]  # (B, 128)
    # F.dropout(training=False) is the identity.


# --------------------------- parameter construction ---------------------------
def positionalencoding2d(d_model, height, width):
    pe = np.zeros((d_model, height, width), np.float32)
    dm = d_model // 2
    div_term = np.exp(np.arange(0.0, dm, 2) * -(math.log(10000.0) / dm))
    pos_w = np.arange(0.0, width)[:, None]
    pos_h = np.arange(0.0, height)[:, None]
    pe[0:dm:2, :, :] = np.repeat(np.sin(pos_w * div_term).T[:, None, :], height, axis=1)
    pe[1:dm:2, :, :] = np.repeat(np.cos(pos_w * div_term).T[:, None, :], height, axis=1)
    pe[dm::2, :, :] = np.repeat(np.sin(pos_h * div_term).T[:, :, None], width, axis=2)
    pe[dm + 1::2, :, :] = np.repeat(np.cos(pos_h * div_term).T[:, :, None], width, axis=2)
    return pe


def init_params(key):
    keys = iter(jax.random.split(key, 64))

    def rnd(shape, scale=0.05):
        return scale * jax.random.normal(next(keys), shape, dtype=jnp.float32)

    C, NC, E = IN_CHANNELS, NUM_CLASSES, EMBED_DIM
    params = {}

    # synthetic backbone (stand-in for the injected nn.Module): GAP + linear
    bb_w = rnd((C, NC * E), 0.5)
    bb_b = rnd((1, NC * E), 0.1)

    # fixed (requires_grad=False) positional-encoding buffer exactly as in
    # __init__; pos_feat = backbone(posenc) is precomputed once here and folded
    # into the backbone bias (perf: no per-forward posenc backbone pass).
    pe = positionalencoding2d(E, POS_HW, POS_HW)                     # (E, 384, 384)
    pe = pe.mean(axis=0, keepdims=True)[None]                        # (1, 1, 384, 384)
    pe = np.ascontiguousarray(np.broadcast_to(pe, (1, C, POS_HW, POS_HW)))
    pos_gap = jnp.asarray(pe.reshape(1, C, -1).mean(axis=-1), jnp.float32)   # (1, C)
    pos_feat = jnp.dot(pos_gap, bb_w) + bb_b                         # backbone(posenc)
    bb_bias = bb_b + pos_feat                                        # x + posenc folded

    # reshape backbone weights so the kernel produces the (NC, B, E) token
    # layout directly (no in-kernel transpose / lane-splitting reshape).
    params["bbw3"] = jnp.transpose(bb_w.reshape(C, NC, E), (1, 0, 2))  # (NC, C, E)
    params["bbb3"] = bb_bias.reshape(NC, E)[:, None, :]                # (NC, 1, E)

    layers = []
    for _ in range(NUM_LAYERS):
        layers.append(dict(
            wqkv=rnd((E, 3 * E)),            # in_proj_weight, pre-transposed (in, out)
            bqkv=rnd((1, 3 * E), 0.02),
            wo=rnd((E, E)),                  # out_proj.weight, pre-transposed
            bo=rnd((1, E), 0.02),
            ln1w=jnp.ones((1, E), jnp.float32), ln1b=jnp.zeros((1, E), jnp.float32),
            ln2w=jnp.ones((1, E), jnp.float32), ln2b=jnp.zeros((1, E), jnp.float32),
            w1=rnd((E, DIM_FF)),             # linear1.weight, pre-transposed
            b1=rnd((1, DIM_FF), 0.02),
            w2=rnd((DIM_FF, E)),             # linear2.weight, pre-transposed
            b2=rnd((1, E), 0.02)))

    def stack(name, dtype=jnp.float32):
        return jnp.stack([lp[name] for lp in layers]).astype(dtype)

    # matmul weights stored bf16 (fp32 accumulation in-kernel); everything else fp32
    params["wqkv"] = stack("wqkv", jnp.bfloat16)
    params["wo"] = stack("wo", jnp.bfloat16)
    params["w1"] = stack("w1", jnp.bfloat16)
    params["w2"] = stack("w2", jnp.bfloat16)
    for name in ("bqkv", "bo", "ln1w", "ln1b", "ln2w", "ln2b", "b1", "b2"):
        params[name] = stack(name)

    # head: proj -> BN(eval, folded) -> Linear -> GELU -> Linear
    proj_w = rnd((NC * E, 2 * E))
    params["pw3"] = proj_w.reshape(NC, E, 2 * E)   # per-class-token slices of proj_w
    params["pb"] = rnd((1, 2 * E), 0.02)
    bn_g = jnp.ones((1, 2 * E), jnp.float32)
    bn_b = jnp.zeros((1, 2 * E), jnp.float32)
    bn_m = rnd((1, 2 * E), 0.1)                    # running_mean
    bn_v = 1.0 + jnp.abs(rnd((1, 2 * E), 0.1))     # running_var
    bn_scale = bn_g * jax.lax.rsqrt(bn_v + BN_EPS)
    params["bn_scale"] = bn_scale
    params["bn_shift"] = bn_b - bn_m * bn_scale
    params["m1w"] = rnd((2 * E, E))
    params["m1b"] = rnd((1, E), 0.02)
    m2_w = rnd((E, NC))
    m2_b = rnd((1, NC), 0.02)
    # zero-pad the final projection to 128 lanes -> lane-dense output store
    params["m2w"] = jnp.pad(m2_w, ((0, 0), (0, OUT_PAD - NC)))
    params["m2b"] = jnp.pad(m2_b, ((0, 0), (0, OUT_PAD - NC)))
    return params


# --------------------------------- forward ------------------------------------
def ctran_forward(x_nchw, params):
    B, C, H, W = x_nchw.shape
    x3 = x_nchw.reshape(B, C, H * W)
    args = (x3, params["bbw3"], params["bbb3"],
            params["wqkv"], params["bqkv"], params["wo"], params["bo"],
            params["ln1w"], params["ln1b"], params["ln2w"], params["ln2b"],
            params["w1"], params["b1"], params["w2"], params["b2"],
            params["pw3"], params["pb"], params["bn_scale"], params["bn_shift"],
            params["m1w"], params["m1b"], params["m2w"], params["m2b"])
    out_pad = pl.pallas_call(
        ctran_kernel,
        out_shape=jax.ShapeDtypeStruct((B, OUT_PAD), jnp.float32),
        in_specs=[pl.BlockSpec(memory_space=pltpu.MemorySpace.VMEM)
                  for _ in range(len(args))],
        out_specs=pl.BlockSpec(memory_space=pltpu.MemorySpace.VMEM),
    )(*args)
    return out_pad[:, :NUM_CLASSES]


# ----------------------------------- main --------------------------------------
if __name__ == "__main__":
    key = jax.random.PRNGKey(0)
    kp, kx = jax.random.split(key)
    params = init_params(kp)
    x = jax.random.normal(kx, (2, IN_CHANNELS, 16, 16), dtype=jnp.float32)  # NCHW
    out = jax.jit(ctran_forward)(x, params)
    out = jax.block_until_ready(out)
    assert out.shape == (2, NUM_CLASSES) and out.dtype == jnp.float32
    assert bool(jnp.all(jnp.isfinite(out)))
    print("KERNEL_OK")
</pallas_src>

<mosaic_0001>
module attributes {stable_mosaic.version = 11 : i64} {
  func.func @ctran_kernel(%arg0: memref<2x4x256xf32, #tpu.memory_space<vmem>>, %arg1: memref<8x4x32xf32, #tpu.memory_space<vmem>>, %arg2: memref<8x1x32xf32, #tpu.memory_space<vmem>>, %arg3: memref<2x32x96xbf16, #tpu.memory_space<vmem>>, %arg4: memref<2x1x96xf32, #tpu.memory_space<vmem>>, %arg5: memref<2x32x32xbf16, #tpu.memory_space<vmem>>, %arg6: memref<2x1x32xf32, #tpu.memory_space<vmem>>, %arg7: memref<2x1x32xf32, #tpu.memory_space<vmem>>, %arg8: memref<2x1x32xf32, #tpu.memory_space<vmem>>, %arg9: memref<2x1x32xf32, #tpu.memory_space<vmem>>, %arg10: memref<2x1x32xf32, #tpu.memory_space<vmem>>, %arg11: memref<2x32x2048xbf16, #tpu.memory_space<vmem>>, %arg12: memref<2x1x2048xf32, #tpu.memory_space<vmem>>, %arg13: memref<2x2048x32xbf16, #tpu.memory_space<vmem>>, %arg14: memref<2x1x32xf32, #tpu.memory_space<vmem>>, %arg15: memref<8x32x64xf32, #tpu.memory_space<vmem>>, %arg16: memref<1x64xf32, #tpu.memory_space<vmem>>, %arg17: memref<1x64xf32, #tpu.memory_space<vmem>>, %arg18: memref<1x64xf32, #tpu.memory_space<vmem>>, %arg19: memref<64x32xf32, #tpu.memory_space<vmem>>, %arg20: memref<1x32xf32, #tpu.memory_space<vmem>>, %arg21: memref<32x128xf32, #tpu.memory_space<vmem>>, %arg22: memref<1x128xf32, #tpu.memory_space<vmem>>, %arg23: memref<2x128xf32, #tpu.memory_space<vmem>>) attributes {dimension_semantics = [], scalar_prefetch = 0 : i64, scratch_operands = 0 : i64, tpu.core_type = #tpu.core_type<tc>} {
    %c0 = arith.constant 0 : index
    %c0_0 = arith.constant 0 : index
    %c0_1 = arith.constant 0 : index
    %0 = vector.load %arg0[%c0, %c0_0, %c0_1] : memref<2x4x256xf32, #tpu.memory_space<vmem>>, vector<2x4x256xf32>
    %cst = arith.constant dense<0.000000e+00> : vector<2x4xf32>
    %1 = vector.multi_reduction <add>, %0, %cst [2] : vector<2x4x256xf32> to vector<2x4xf32>
    %cst_2 = arith.constant 2.560000e+02 : f32
    %2 = vector.broadcast %cst_2 : f32 to vector<2x4xf32>
    %3 = arith.divf %1, %2 : vector<2x4xf32>
    %4 = vector.shape_cast %3 : vector<2x4xf32> to vector<1x2x4xf32>
    %5 = vector.shape_cast %4 : vector<1x2x4xf32> to vector<1x2x4xf32>
    %6 = vector.broadcast %5 : vector<1x2x4xf32> to vector<8x2x4xf32>
    %c0_3 = arith.constant 0 : index
    %c0_4 = arith.constant 0 : index
    %c0_5 = arith.constant 0 : index
    %7 = vector.load %arg1[%c0_3, %c0_4, %c0_5] : memref<8x4x32xf32, #tpu.memory_space<vmem>>, vector<8x4x32xf32>
    "tpu.trace_start"() <{level = 10 : i32, message = "nbc,nce->nbe"}> : () -> ()
    %cst_6 = arith.constant dense<0.000000e+00> : vector<8x2x32xf32>
    %8 = tpu.matmul %6, %7, %cst_6 {dimension_numbers = #tpu.dot_dimension_numbers<[2], [1], [1], [2], [0, 0, 0, 1, 1, 2], [0], [0]>} : vector<8x2x4xf32>, vector<8x4x32xf32>, vector<8x2x32xf32> -> vector<8x2x32xf32>
    "tpu.trace_stop"() : () -> ()
    %c0_7 = arith.constant 0 : index
    %c0_8 = arith.constant 0 : index
    %c0_9 = arith.constant 0 : index
    %9 = vector.load %arg2[%c0_7, %c0_8, %c0_9] : memref<8x1x32xf32, #tpu.memory_space<vmem>>, vector<8x1x32xf32>
    %10 = vector.broadcast %9 : vector<8x1x32xf32> to vector<8x2x32xf32>
    %11 = arith.addf %8, %10 : vector<8x2x32xf32>
    %12 = vector.shape_cast %11 : vector<8x2x32xf32> to vector<16x32xf32>
    %c0_10 = arith.constant 0 : index
    %c0_11 = arith.constant 0 : index
    %c0_12 = arith.constant 0 : index
    %13 = vector.load %arg4[%c0_10, %c0_11, %c0_12] : memref<2x1x96xf32, #tpu.memory_space<vmem>>, vector<1x1x96xf32>
    %14 = vector.shape_cast %13 : vector<1x1x96xf32> to vector<1x96xf32>
    %c0_13 = arith.constant 0 : index
    %c0_14 = arith.constant 0 : index
    %c0_15 = arith.constant 0 : index
    %15 = vector.load %arg6[%c0_13, %c0_14, %c0_15] : memref<2x1x32xf32, #tpu.memory_space<vmem>>, vector<1x1x32xf32>
    %16 = vector.shape_cast %15 : vector<1x1x32xf32> to vector<1x32xf32>
    %c0_16 = arith.constant 0 : index
    %c0_17 = arith.constant 0 : index
    %c0_18 = arith.constant 0 : index
    %17 = vector.load %arg14[%c0_16, %c0_17, %c0_18] : memref<2x1x32xf32, #tpu.memory_space<vmem>>, vector<1x1x32xf32>
    %18 = vector.shape_cast %17 : vector<1x1x32xf32> to vector<1x32xf32>
    %c0_19 = arith.constant 0 : index
    %c0_20 = arith.constant 0 : index
    %c0_21 = arith.constant 0 : index
    %19 = vector.load %arg7[%c0_19, %c0_20, %c0_21] : memref<2x1x32xf32, #tpu.memory_space<vmem>>, vector<1x1x32xf32>
    %20 = vector.shape_cast %19 : vector<1x1x32xf32> to vector<1x32xf32>
    %c0_22 = arith.constant 0 : index
    %c0_23 = arith.constant 0 : index
    %c0_24 = arith.constant 0 : index
    %21 = vector.load %arg8[%c0_22, %c0_23, %c0_24] : memref<2x1x32xf32, #tpu.memory_space<vmem>>, vector<1x1x32xf32>
    %22 = vector.shape_cast %21 : vector<1x1x32xf32> to vector<1x32xf32>
    %c0_25 = arith.constant 0 : index
    %c0_26 = arith.constant 0 : index
    %c0_27 = arith.constant 0 : index
    %23 = vector.load %arg9[%c0_25, %c0_26, %c0_27] : memref<2x1x32xf32, #tpu.memory_space<vmem>>, vector<1x1x32xf32>
    %24 = vector.shape_cast %23 : vector<1x1x32xf32> to vector<1x32xf32>
    %c0_28 = arith.constant 0 : index
    %c0_29 = arith.constant 0 : index
    %c0_30 = arith.constant 0 : index
    %25 = vector.load %arg10[%c0_28, %c0_29, %c0_30] : memref<2x1x32xf32, #tpu.memory_space<vmem>>, vector<1x1x32xf32>
    %26 = vector.shape_cast %25 : vector<1x1x32xf32> to vector<1x32xf32>
    %27 = arith.truncf %12 : vector<16x32xf32> to vector<16x32xbf16>
    %c0_31 = arith.constant 0 : index
    %c0_32 = arith.constant 0 : index
    %c0_33 = arith.constant 0 : index
    %28 = vector.load %arg3[%c0_31, %c0_32, %c0_33] : memref<2x32x96xbf16, #tpu.memory_space<vmem>>, vector<1x32x96xbf16>
    %29 = vector.shape_cast %28 : vector<1x32x96xbf16> to vector<32x96xbf16>
    %cst_34 = arith.constant dense<0.000000e+00> : vector<16x96xf32>
    %30 = tpu.matmul %27, %29, %cst_34 {dimension_numbers = #tpu.dot_dimension_numbers<[1], [0], [0], [1], [0, 0, 1, 1], [], []>} : vector<16x32xbf16>, vector<32x96xbf16>, vector<16x96xf32> -> vector<16x96xf32>
    %31 = vector.broadcast %14 : vector<1x96xf32> to vector<16x96xf32>
    %32 = arith.addf %30, %31 : vector<16x96xf32>
    %33 = vector.extract_strided_slice %32 {offsets = [0, 0], sizes = [16, 32], strides = [1, 1]} : vector<16x96xf32> to vector<16x32xf32>
    %cst_35 = arith.constant 0.353553385 : f32
    %34 = vector.broadcast %cst_35 : f32 to vector<16x32xf32>
    %35 = arith.mulf %33, %34 : vector<16x32xf32>
    %36 = vector.extract_strided_slice %32 {offsets = [0, 32], sizes = [16, 32], strides = [1, 1]} : vector<16x96xf32> to vector<16x32xf32>
    %37 = vector.extract_strided_slice %32 {offsets = [0, 64], sizes = [16, 32], strides = [1, 1]} : vector<16x96xf32> to vector<16x32xf32>
    %38 = vector.shape_cast %35 : vector<16x32xf32> to vector<8x2x32xf32>
    %39 = vector.shape_cast %36 : vector<16x32xf32> to vector<8x2x32xf32>
    %40 = vector.shape_cast %37 : vector<16x32xf32> to vector<8x2x32xf32>
    %41 = vector.extract_strided_slice %38 {offsets = [0, 0, 0], sizes = [8, 2, 8], strides = [1, 1, 1]} : vector<8x2x32xf32> to vector<8x2x8xf32>
    %42 = vector.extract_strided_slice %38 {offsets = [0, 0, 8], sizes = [8, 2, 8], strides = [1, 1, 1]} : vector<8x2x32xf32> to vector<8x2x8xf32>
    %43 = vector.extract_strided_slice %38 {offsets = [0, 0, 16], sizes = [8, 2, 8], strides = [1, 1, 1]} : vector<8x2x32xf32> to vector<8x2x8xf32>
    %44 = vector.extract_strided_slice %38 {offsets = [0, 0, 24], sizes = [8, 2, 8], strides = [1, 1, 1]} : vector<8x2x32xf32> to vector<8x2x8xf32>
    %45 = tpu.concatenate %41, %42, %43, %44 in 0 : vector<8x2x8xf32>, vector<8x2x8xf32>, vector<8x2x8xf32>, vector<8x2x8xf32> -> vector<32x2x8xf32>
    %46 = vector.extract_strided_slice %39 {offsets = [0, 0, 0], sizes = [8, 2, 8], strides = [1, 1, 1]} : vector<8x2x32xf32> to vector<8x2x8xf32>
    %47 = vector.extract_strided_slice %39 {offsets = [0, 0, 8], sizes = [8, 2, 8], strides = [1, 1, 1]} : vector<8x2x32xf32> to vector<8x2x8xf32>
    %48 = vector.extract_strided_slice %39 {offsets = [0, 0, 16], sizes = [8, 2, 8], strides = [1, 1, 1]} : vector<8x2x32xf32> to vector<8x2x8xf32>
    %49 = vector.extract_strided_slice %39 {offsets = [0, 0, 24], sizes = [8, 2, 8], strides = [1, 1, 1]} : vector<8x2x32xf32> to vector<8x2x8xf32>
    %50 = tpu.concatenate %46, %47, %48, %49 in 0 : vector<8x2x8xf32>, vector<8x2x8xf32>, vector<8x2x8xf32>, vector<8x2x8xf32> -> vector<32x2x8xf32>
    %51 = vector.extract_strided_slice %40 {offsets = [0, 0, 0], sizes = [8, 2, 8], strides = [1, 1, 1]} : vector<8x2x32xf32> to vector<8x2x8xf32>
    %52 = vector.extract_strided_slice %40 {offsets = [0, 0, 8], sizes = [8, 2, 8], strides = [1, 1, 1]} : vector<8x2x32xf32> to vector<8x2x8xf32>
    %53 = vector.extract_strided_slice %40 {offsets = [0, 0, 16], sizes = [8, 2, 8], strides = [1, 1, 1]} : vector<8x2x32xf32> to vector<8x2x8xf32>
    %54 = vector.extract_strided_slice %40 {offsets = [0, 0, 24], sizes = [8, 2, 8], strides = [1, 1, 1]} : vector<8x2x32xf32> to vector<8x2x8xf32>
    %55 = tpu.concatenate %51, %52, %53, %54 in 0 : vector<8x2x8xf32>, vector<8x2x8xf32>, vector<8x2x8xf32>, vector<8x2x8xf32> -> vector<32x2x8xf32>
    "tpu.trace_start"() <{level = 10 : i32, message = "gsd,gtd->gst"}> : () -> ()
    %cst_36 = arith.constant dense<0.000000e+00> : vector<32x2x2xf32>
    %56 = tpu.matmul %45, %50, %cst_36 {dimension_numbers = #tpu.dot_dimension_numbers<[2], [2], [1], [1], [0, 0, 0, 1, 1, 1], [0], [0]>} : vector<32x2x8xf32>, vector<32x2x8xf32>, vector<32x2x2xf32> -> vector<32x2x2xf32>
    "tpu.trace_stop"() : () -> ()
    %cst_37 = arith.constant dense<0xFF800000> : vector<32x2xf32>
    %57 = vector.multi_reduction <maximumf>, %56, %cst_37 [2] : vector<32x2x2xf32> to vector<32x2xf32>
    %58 = vector.shape_cast %57 : vector<32x2xf32> to vector<32x2x1xf32>
    %59 = vector.broadcast %58 : vector<32x2x1xf32> to vector<32x2x2xf32>
    %60 = arith.subf %56, %59 : vector<32x2x2xf32>
    %61 = math.exp %60 : vector<32x2x2xf32>
    %cst_38 = arith.constant dense<0.000000e+00> : vector<32x2xf32>
    %62 = vector.multi_reduction <add>, %61, %cst_38 [2] : vector<32x2x2xf32> to vector<32x2xf32>
    %63 = vector.shape_cast %62 : vector<32x2xf32> to vector<32x2x1xf32>
    %64 = tpu.reciprocal %63 {approx = true} : vector<32x2x1xf32> -> vector<32x2x1xf32>
    %65 = vector.broadcast %64 : vector<32x2x1xf32> to vector<32x2x2xf32>
    %66 = arith.mulf %61, %65 : vector<32x2x2xf32>
    "tpu.trace_start"() <{level = 10 : i32, message = "gst,gtd->gsd"}> : () -> ()
    %cst_39 = arith.constant dense<0.000000e+00> : vector<32x2x8xf32>
    %67 = tpu.matmul %66, %55, %cst_39 {dimension_numbers = #tpu.dot_dimension_numbers<[2], [1], [1], [2], [0, 0, 0, 1, 1, 2], [0], [0]>} : vector<32x2x2xf32>, vector<32x2x8xf32>, vector<32x2x8xf32> -> vector<32x2x8xf32>
    "tpu.trace_stop"() : () -> ()
    %68 = vector.extract_strided_slice %67 {offsets = [0, 0, 0], sizes = [8, 2, 8], strides = [1, 1, 1]} : vector<32x2x8xf32> to vector<8x2x8xf32>
    %69 = vector.extract_strided_slice %67 {offsets = [8, 0, 0], sizes = [8, 2, 8], strides = [1, 1, 1]} : vector<32x2x8xf32> to vector<8x2x8xf32>
    %70 = vector.extract_strided_slice %67 {offsets = [16, 0, 0], sizes = [8, 2, 8], strides = [1, 1, 1]} : vector<32x2x8xf32> to vector<8x2x8xf32>
    %71 = vector.extract_strided_slice %67 {offsets = [24, 0, 0], sizes = [8, 2, 8], strides = [1, 1, 1]} : vector<32x2x8xf32> to vector<8x2x8xf32>
    %72 = tpu.concatenate %68, %69, %70, %71 in 2 : vector<8x2x8xf32>, vector<8x2x8xf32>, vector<8x2x8xf32>, vector<8x2x8xf32> -> vector<8x2x32xf32>
    %73 = vector.shape_cast %72 : vector<8x2x32xf32> to vector<16x32xf32>
    %74 = arith.truncf %73 : vector<16x32xf32> to vector<16x32xbf16>
    %c0_40 = arith.constant 0 : index
    %c0_41 = arith.constant 0 : index
    %c0_42 = arith.constant 0 : index
    %75 = vector.load %arg5[%c0_40, %c0_41, %c0_42] : memref<2x32x32xbf16, #tpu.memory_space<vmem>>, vector<1x32x32xbf16>
    %76 = vector.shape_cast %75 : vector<1x32x32xbf16> to vector<32x32xbf16>
    %cst_43 = arith.constant dense<0.000000e+00> : vector<16x32xf32>
    %77 = tpu.matmul %74, %76, %cst_43 {dimension_numbers = #tpu.dot_dimension_numbers<[1], [0], [0], [1], [0, 0, 1, 1], [], []>} : vector<16x32xbf16>, vector<32x32xbf16>, vector<16x32xf32> -> vector<16x32xf32>
    %78 = vector.broadcast %16 : vector<1x32xf32> to vector<16x32xf32>
    %79 = arith.addf %77, %78 : vector<16x32xf32>
    %80 = arith.addf %12, %79 : vector<16x32xf32>
    %cst_44 = arith.constant dense<0.000000e+00> : vector<16xf32>
    %81 = vector.multi_reduction <add>, %80, %cst_44 [1] : vector<16x32xf32> to vector<16xf32>
    %82 = vector.shape_cast %81 : vector<16xf32> to vector<16x1xf32>
    %cst_45 = arith.constant 3.200000e+01 : f32
    %83 = vector.broadcast %cst_45 : f32 to vector<16x1xf32>
    %84 = arith.divf %82, %83 : vector<16x1xf32>
    %85 = vector.broadcast %84 : vector<16x1xf32> to vector<16x32xf32>
    %86 = arith.subf %80, %85 : vector<16x32xf32>
    %87 = vector.broadcast %84 : vector<16x1xf32> to vector<16x32xf32>
    %88 = arith.subf %80, %87 : vector<16x32xf32>
    %89 = arith.mulf %86, %88 : vector<16x32xf32>
    %cst_46 = arith.constant dense<0.000000e+00> : vector<16xf32>
    %90 = vector.multi_reduction <add>, %89, %cst_46 [1] : vector<16x32xf32> to vector<16xf32>
    %91 = vector.shape_cast %90 : vector<16xf32> to vector<16x1xf32>
    %cst_47 = arith.constant 3.200000e+01 : f32
    %92 = vector.broadcast %cst_47 : f32 to vector<16x1xf32>
    %93 = arith.divf %91, %92 : vector<16x1xf32>
    %94 = vector.broadcast %84 : vector<16x1xf32> to vector<16x32xf32>
    %95 = arith.subf %80, %94 : vector<16x32xf32>
    %cst_48 = arith.constant 9.99999974E-6 : f32
    %96 = vector.broadcast %cst_48 : f32 to vector<16x1xf32>
    %97 = arith.addf %93, %96 : vector<16x1xf32>
    %98 = math.rsqrt %97 : vector<16x1xf32>
    %99 = vector.broadcast %98 : vector<16x1xf32> to vector<16x32xf32>
    %100 = arith.mulf %95, %99 : vector<16x32xf32>
    %101 = vector.broadcast %20 : vector<1x32xf32> to vector<16x32xf32>
    %102 = arith.mulf %100, %101 : vector<16x32xf32>
    %103 = vector.broadcast %22 : vector<1x32xf32> to vector<16x32xf32>
    %104 = arith.addf %102, %103 : vector<16x32xf32>
    %105 = arith.truncf %104 : vector<16x32xf32> to vector<16x32xbf16>
    %cst_49 = arith.constant 0.000000e+00 : f32
    %106 = vector.broadcast %cst_49 : f32 to vector<16x32xf32>
    %c0_50 = arith.constant 0 : index
    %c0_51 = arith.constant 0 : index
    %c0_52 = arith.constant 0 : index
    %107 = vector.load %arg11[%c0_50, %c0_51, %c0_52] : memref<2x32x2048xbf16, #tpu.memory_space<vmem>>, vector<1x32x512xbf16>
    %108 = vector.shape_cast %107 : vector<1x32x512xbf16> to vector<32x512xbf16>
    %cst_53 = arith.constant dense<0.000000e+00> : vector<16x512xf32>
    %109 = tpu.matmul %105, %108, %cst_53 {dimension_numbers = #tpu.dot_dimension_numbers<[1], [0], [0], [1], [0, 0, 1, 1], [], []>} : vector<16x32xbf16>, vector<32x512xbf16>, vector<16x512xf32> -> vector<16x512xf32>
    %c0_54 = arith.constant 0 : index
    %c0_55 = arith.constant 0 : index
    %c0_56 = arith.constant 0 : index
    %110 = vector.load %arg12[%c0_54, %c0_55, %c0_56] : memref<2x1x2048xf32, #tpu.memory_space<vmem>>, vector<1x1x512xf32>
    %111 = vector.shape_cast %110 : vector<1x1x512xf32> to vector<1x512xf32>
    %112 = vector.broadcast %111 : vector<1x512xf32> to vector<16x512xf32>
    %113 = arith.addf %109, %112 : vector<16x512xf32>
    %cst_57 = arith.constant 0.000000e+00 : f32
    %114 = vector.broadcast %cst_57 : f32 to vector<16x512xf32>
    %115 = arith.maximumf %113, %114 : vector<16x512xf32>
    %116 = arith.truncf %115 : vector<16x512xf32> to vector<16x512xbf16>
    %c0_58 = arith.constant 0 : index
    %c0_59 = arith.constant 0 : index
    %c0_60 = arith.constant 0 : index
    %117 = vector.load %arg13[%c0_58, %c0_59, %c0_60] : memref<2x2048x32xbf16, #tpu.memory_space<vmem>>, vector<1x512x32xbf16>
    %118 = vector.shape_cast %117 : vector<1x512x32xbf16> to vector<512x32xbf16>
    %cst_61 = arith.constant dense<0.000000e+00> : vector<16x32xf32>
    %119 = tpu.matmul %116, %118, %cst_61 {dimension_numbers = #tpu.dot_dimension_numbers<[1], [0], [0], [1], [0, 0, 1, 1], [], []>} : vector<16x512xbf16>, vector<512x32xbf16>, vector<16x32xf32> -> vector<16x32xf32>
    %120 = arith.addf %106, %119 : vector<16x32xf32>
    %c0_62 = arith.constant 0 : index
    %c0_63 = arith.constant 0 : index
    %c512 = arith.constant 512 : index
    %121 = vector.load %arg11[%c0_62, %c0_63, %c512] : memref<2x32x2048xbf16, #tpu.memory_space<vmem>>, vector<1x32x512xbf16>
    %122 = vector.shape_cast %121 : vector<1x32x512xbf16> to vector<32x512xbf16>
    %cst_64 = arith.constant dense<0.000000e+00> : vector<16x512xf32>
    %123 = tpu.matmul %105, %122, %cst_64 {dimension_numbers = #tpu.dot_dimension_numbers<[1], [0], [0], [1], [0, 0, 1, 1], [], []>} : vector<16x32xbf16>, vector<32x512xbf16>, vector<16x512xf32> -> vector<16x512xf32>
    %c0_65 = arith.constant 0 : index
    %c0_66 = arith.constant 0 : index
    %c512_67 = arith.constant 512 : index
    %124 = vector.load %arg12[%c0_65, %c0_66, %c512_67] : memref<2x1x2048xf32, #tpu.memory_space<vmem>>, vector<1x1x512xf32>
    %125 = vector.shape_cast %124 : vector<1x1x512xf32> to vector<1x512xf32>
    %126 = vector.broadcast %125 : vector<1x512xf32> to vector<16x512xf32>
    %127 = arith.addf %123, %126 : vector<16x512xf32>
    %cst_68 = arith.constant 0.000000e+00 : f32
    %128 = vector.broadcast %cst_68 : f32 to vector<16x512xf32>
    %129 = arith.maximumf %127, %128 : vector<16x512xf32>
    %130 = arith.truncf %129 : vector<16x512xf32> to vector<16x512xbf16>
    %c0_69 = arith.constant 0 : index
    %c512_70 = arith.constant 512 : index
    %c0_71 = arith.constant 0 : index
    %131 = vector.load %arg13[%c0_69, %c512_70, %c0_71] : memref<2x2048x32xbf16, #tpu.memory_space<vmem>>, vector<1x512x32xbf16>
    %132 = vector.shape_cast %131 : vector<1x512x32xbf16> to vector<512x32xbf16>
    %cst_72 = arith.constant dense<0.000000e+00> : vector<16x32xf32>
    %133 = tpu.matmul %130, %132, %cst_72 {dimension_numbers = #tpu.dot_dimension_numbers<[1], [0], [0], [1], [0, 0, 1, 1], [], []>} : vector<16x512xbf16>, vector<512x32xbf16>, vector<16x32xf32> -> vector<16x32xf32>
    %134 = arith.addf %120, %133 : vector<16x32xf32>
    %c0_73 = arith.constant 0 : index
    %c0_74 = arith.constant 0 : index
    %c1024 = arith.constant 1024 : index
    %135 = vector.load %arg11[%c0_73, %c0_74, %c1024] : memref<2x32x2048xbf16, #tpu.memory_space<vmem>>, vector<1x32x512xbf16>
    %136 = vector.shape_cast %135 : vector<1x32x512xbf16> to vector<32x512xbf16>
    %cst_75 = arith.constant dense<0.000000e+00> : vector<16x512xf32>
    %137 = tpu.matmul %105, %136, %cst_75 {dimension_numbers = #tpu.dot_dimension_numbers<[1], [0], [0], [1], [0, 0, 1, 1], [], []>} : vector<16x32xbf16>, vector<32x512xbf16>, vector<16x512xf32> -> vector<16x512xf32>
    %c0_76 = arith.constant 0 : index
    %c0_77 = arith.constant 0 : index
    %c1024_78 = arith.constant 1024 : index
    %138 = vector.load %arg12[%c0_76, %c0_77, %c1024_78] : memref<2x1x2048xf32, #tpu.memory_space<vmem>>, vector<1x1x512xf32>
    %139 = vector.shape_cast %138 : vector<1x1x512xf32> to vector<1x512xf32>
    %140 = vector.broadcast %139 : vector<1x512xf32> to vector<16x512xf32>
    %141 = arith.addf %137, %140 : vector<16x512xf32>
    %cst_79 = arith.constant 0.000000e+00 : f32
    %142 = vector.broadcast %cst_79 : f32 to vector<16x512xf32>
    %143 = arith.maximumf %141, %142 : vector<16x512xf32>
    %144 = arith.truncf %143 : vector<16x512xf32> to vector<16x512xbf16>
    %c0_80 = arith.constant 0 : index
    %c1024_81 = arith.constant 1024 : index
    %c0_82 = arith.constant 0 : index
    %145 = vector.load %arg13[%c0_80, %c1024_81, %c0_82] : memref<2x2048x32xbf16, #tpu.memory_space<vmem>>, vector<1x512x32xbf16>
    %146 = vector.shape_cast %145 : vector<1x512x32xbf16> to vector<512x32xbf16>
    %cst_83 = arith.constant dense<0.000000e+00> : vector<16x32xf32>
    %147 = tpu.matmul %144, %146, %cst_83 {dimension_numbers = #tpu.dot_dimension_numbers<[1], [0], [0], [1], [0, 0, 1, 1], [], []>} : vector<16x512xbf16>, vector<512x32xbf16>, vector<16x32xf32> -> vector<16x32xf32>
    %148 = arith.addf %134, %147 : vector<16x32xf32>
    %c0_84 = arith.constant 0 : index
    %c0_85 = arith.constant 0 : index
    %c1536 = arith.constant 1536 : index
    %149 = vector.load %arg11[%c0_84, %c0_85, %c1536] : memref<2x32x2048xbf16, #tpu.memory_space<vmem>>, vector<1x32x512xbf16>
    %150 = vector.shape_cast %149 : vector<1x32x512xbf16> to vector<32x512xbf16>
    %cst_86 = arith.constant dense<0.000000e+00> : vector<16x512xf32>
    %151 = tpu.matmul %105, %150, %cst_86 {dimension_numbers = #tpu.dot_dimension_numbers<[1], [0], [0], [1], [0, 0, 1, 1], [], []>} : vector<16x32xbf16>, vector<32x512xbf16>, vector<16x512xf32> -> vector<16x512xf32>
    %c0_87 = arith.constant 0 : index
    %c0_88 = arith.constant 0 : index
    %c1536_89 = arith.constant 1536 : index
    %152 = vector.load %arg12[%c0_87, %c0_88, %c1536_89] : memref<2x1x2048xf32, #tpu.memory_space<vmem>>, vector<1x1x512xf32>
    %153 = vector.shape_cast %152 : vector<1x1x512xf32> to vector<1x512xf32>
    %154 = vector.broadcast %153 : vector<1x512xf32> to vector<16x512xf32>
    %155 = arith.addf %151, %154 : vector<16x512xf32>
    %cst_90 = arith.constant 0.000000e+00 : f32
    %156 = vector.broadcast %cst_90 : f32 to vector<16x512xf32>
    %157 = arith.maximumf %155, %156 : vector<16x512xf32>
    %158 = arith.truncf %157 : vector<16x512xf32> to vector<16x512xbf16>
    %c0_91 = arith.constant 0 : index
    %c1536_92 = arith.constant 1536 : index
    %c0_93 = arith.constant 0 : index
    %159 = vector.load %arg13[%c0_91, %c1536_92, %c0_93] : memref<2x2048x32xbf16, #tpu.memory_space<vmem>>, vector<1x512x32xbf16>
    %160 = vector.shape_cast %159 : vector<1x512x32xbf16> to vector<512x32xbf16>
    %cst_94 = arith.constant dense<0.000000e+00> : vector<16x32xf32>
    %161 = tpu.matmul %158, %160, %cst_94 {dimension_numbers = #tpu.dot_dimension_numbers<[1], [0], [0], [1], [0, 0, 1, 1], [], []>} : vector<16x512xbf16>, vector<512x32xbf16>, vector<16x32xf32> -> vector<16x32xf32>
    %162 = arith.addf %148, %161 : vector<16x32xf32>
    %163 = vector.broadcast %18 : vector<1x32xf32> to vector<16x32xf32>
    %164 = arith.addf %162, %163 : vector<16x32xf32>
    %165 = arith.addf %104, %164 : vector<16x32xf32>
    %cst_95 = arith.constant dense<0.000000e+00> : vector<16xf32>
    %166 = vector.multi_reduction <add>, %165, %cst_95 [1] : vector<16x32xf32> to vector<16xf32>
    %167 = vector.shape_cast %166 : vector<16xf32> to vector<16x1xf32>
    %cst_96 = arith.constant 3.200000e+01 : f32
    %168 = vector.broadcast %cst_96 : f32 to vector<16x1xf32>
    %169 = arith.divf %167, %168 : vector<16x1xf32>
    %170 = vector.broadcast %169 : vector<16x1xf32> to vector<16x32xf32>
    %171 = arith.subf %165, %170 : vector<16x32xf32>
    %172 = vector.broadcast %169 : vector<16x1xf32> to vector<16x32xf32>
    %173 = arith.subf %165, %172 : vector<16x32xf32>
    %174 = arith.mulf %171, %173 : vector<16x32xf32>
    %cst_97 = arith.constant dense<0.000000e+00> : vector<16xf32>
    %175 = vector.multi_reduction <add>, %174, %cst_97 [1] : vector<16x32xf32> to vector<16xf32>
    %176 = vector.shape_cast %175 : vector<16xf32> to vector<16x1xf32>
    %cst_98 = arith.constant 3.200000e+01 : f32
    %177 = vector.broadcast %cst_98 : f32 to vector<16x1xf32>
    %178 = arith.divf %176, %177 : vector<16x1xf32>
    %179 = vector.broadcast %169 : vector<16x1xf32> to vector<16x32xf32>
    %180 = arith.subf %165, %179 : vector<16x32xf32>
    %cst_99 = arith.constant 9.99999974E-6 : f32
    %181 = vector.broadcast %cst_99 : f32 to vector<16x1xf32>
    %182 = arith.addf %178, %181 : vector<16x1xf32>
    %183 = math.rsqrt %182 : vector<16x1xf32>
    %184 = vector.broadcast %183 : vector<16x1xf32> to vector<16x32xf32>
    %185 = arith.mulf %180, %184 : vector<16x32xf32>
    %186 = vector.broadcast %24 : vector<1x32xf32> to vector<16x32xf32>
    %187 = arith.mulf %185, %186 : vector<16x32xf32>
    %188 = vector.broadcast %26 : vector<1x32xf32> to vector<16x32xf32>
    %189 = arith.addf %187, %188 : vector<16x32xf32>
    %c1 = arith.constant 1 : index
    %c0_100 = arith.constant 0 : index
    %c0_101 = arith.constant 0 : index
    %190 = vector.load %arg4[%c1, %c0_100, %c0_101] : memref<2x1x96xf32, #tpu.memory_space<vmem>>, vector<1x1x96xf32>
    %191 = vector.shape_cast %190 : vector<1x1x96xf32> to vector<1x96xf32>
    %c1_102 = arith.constant 1 : index
    %c0_103 = arith.constant 0 : index
    %c0_104 = arith.constant 0 : index
    %192 = vector.load %arg6[%c1_102, %c0_103, %c0_104] : memref<2x1x32xf32, #tpu.memory_space<vmem>>, vector<1x1x32xf32>
    %193 = vector.shape_cast %192 : vector<1x1x32xf32> to vector<1x32xf32>
    %c1_105 = arith.constant 1 : index
    %c0_106 = arith.constant 0 : index
    %c0_107 = arith.constant 0 : index
    %194 = vector.load %arg14[%c1_105, %c0_106, %c0_107] : memref<2x1x32xf32, #tpu.memory_space<vmem>>, vector<1x1x32xf32>
    %195 = vector.shape_cast %194 : vector<1x1x32xf32> to vector<1x32xf32>
    %c1_108 = arith.constant 1 : index
    %c0_109 = arith.constant 0 : index
    %c0_110 = arith.constant 0 : index
    %196 = vector.load %arg7[%c1_108, %c0_109, %c0_110] : memref<2x1x32xf32, #tpu.memory_space<vmem>>, vector<1x1x32xf32>
    %197 = vector.shape_cast %196 : vector<1x1x32xf32> to vector<1x32xf32>
    %c1_111 = arith.constant 1 : index
    %c0_112 = arith.constant 0 : index
    %c0_113 = arith.constant 0 : index
    %198 = vector.load %arg8[%c1_111, %c0_112, %c0_113] : memref<2x1x32xf32, #tpu.memory_space<vmem>>, vector<1x1x32xf32>
    %199 = vector.shape_cast %198 : vector<1x1x32xf32> to vector<1x32xf32>
    %c1_114 = arith.constant 1 : index
    %c0_115 = arith.constant 0 : index
    %c0_116 = arith.constant 0 : index
    %200 = vector.load %arg9[%c1_114, %c0_115, %c0_116] : memref<2x1x32xf32, #tpu.memory_space<vmem>>, vector<1x1x32xf32>
    %201 = vector.shape_cast %200 : vector<1x1x32xf32> to vector<1x32xf32>
    %c1_117 = arith.constant 1 : index
    %c0_118 = arith.constant 0 : index
    %c0_119 = arith.constant 0 : index
    %202 = vector.load %arg10[%c1_117, %c0_118, %c0_119] : memref<2x1x32xf32, #tpu.memory_space<vmem>>, vector<1x1x32xf32>
    %203 = vector.shape_cast %202 : vector<1x1x32xf32> to vector<1x32xf32>
    %204 = arith.truncf %189 : vector<16x32xf32> to vector<16x32xbf16>
    %c1_120 = arith.constant 1 : index
    %c0_121 = arith.constant 0 : index
    %c0_122 = arith.constant 0 : index
    %205 = vector.load %arg3[%c1_120, %c0_121, %c0_122] : memref<2x32x96xbf16, #tpu.memory_space<vmem>>, vector<1x32x96xbf16>
    %206 = vector.shape_cast %205 : vector<1x32x96xbf16> to vector<32x96xbf16>
    %cst_123 = arith.constant dense<0.000000e+00> : vector<16x96xf32>
    %207 = tpu.matmul %204, %206, %cst_123 {dimension_numbers = #tpu.dot_dimension_numbers<[1], [0], [0], [1], [0, 0, 1, 1], [], []>} : vector<16x32xbf16>, vector<32x96xbf16>, vector<16x96xf32> -> vector<16x96xf32>
    %208 = vector.broadcast %191 : vector<1x96xf32> to vector<16x96xf32>
    %209 = arith.addf %207, %208 : vector<16x96xf32>
    %210 = vector.extract_strided_slice %209 {offsets = [0, 0], sizes = [16, 32], strides = [1, 1]} : vector<16x96xf32> to vector<16x32xf32>
    %cst_124 = arith.constant 0.353553385 : f32
    %211 = vector.broadcast %cst_124 : f32 to vector<16x32xf32>
    %212 = arith.mulf %210, %211 : vector<16x32xf32>
    %213 = vector.extract_strided_slice %209 {offsets = [0, 32], sizes = [16, 32], strides = [1, 1]} : vector<16x96xf32> to vector<16x32xf32>
    %214 = vector.extract_strided_slice %209 {offsets = [0, 64], sizes = [16, 32], strides = [1, 1]} : vector<16x96xf32> to vector<16x32xf32>
    %215 = vector.shape_cast %212 : vector<16x32xf32> to vector<8x2x32xf32>
    %216 = vector.shape_cast %213 : vector<16x32xf32> to vector<8x2x32xf32>
    %217 = vector.shape_cast %214 : vector<16x32xf32> to vector<8x2x32xf32>
    %218 = vector.extract_strided_slice %215 {offsets = [0, 0, 0], sizes = [8, 2, 8], strides = [1, 1, 1]} : vector<8x2x32xf32> to vector<8x2x8xf32>
    %219 = vector.extract_strided_slice %215 {offsets = [0, 0, 8], sizes = [8, 2, 8], strides = [1, 1, 1]} : vector<8x2x32xf32> to vector<8x2x8xf32>
    %220 = vector.extract_strided_slice %215 {offsets = [0, 0, 16], sizes = [8, 2, 8], strides = [1, 1, 1]} : vector<8x2x32xf32> to vector<8x2x8xf32>
    %221 = vector.extract_strided_slice %215 {offsets = [0, 0, 24], sizes = [8, 2, 8], strides = [1, 1, 1]} : vector<8x2x32xf32> to vector<8x2x8xf32>
    %222 = tpu.concatenate %218, %219, %220, %221 in 0 : vector<8x2x8xf32>, vector<8x2x8xf32>, vector<8x2x8xf32>, vector<8x2x8xf32> -> vector<32x2x8xf32>
    %223 = vector.extract_strided_slice %216 {offsets = [0, 0, 0], sizes = [8, 2, 8], strides = [1, 1, 1]} : vector<8x2x32xf32> to vector<8x2x8xf32>
    %224 = vector.extract_strided_slice %216 {offsets = [0, 0, 8], sizes = [8, 2, 8], strides = [1, 1, 1]} : vector<8x2x32xf32> to vector<8x2x8xf32>
    %225 = vector.extract_strided_slice %216 {offsets = [0, 0, 16], sizes = [8, 2, 8], strides = [1, 1, 1]} : vector<8x2x32xf32> to vector<8x2x8xf32>
    %226 = vector.extract_strided_slice %216 {offsets = [0, 0, 24], sizes = [8, 2, 8], strides = [1, 1, 1]} : vector<8x2x32xf32> to vector<8x2x8xf32>
    %227 = tpu.concatenate %223, %224, %225, %226 in 0 : vector<8x2x8xf32>, vector<8x2x8xf32>, vector<8x2x8xf32>, vector<8x2x8xf32> -> vector<32x2x8xf32>
    %228 = vector.extract_strided_slice %217 {offsets = [0, 0, 0], sizes = [8, 2, 8], strides = [1, 1, 1]} : vector<8x2x32xf32> to vector<8x2x8xf32>
    %229 = vector.extract_strided_slice %217 {offsets = [0, 0, 8], sizes = [8, 2, 8], strides = [1, 1, 1]} : vector<8x2x32xf32> to vector<8x2x8xf32>
    %230 = vector.extract_strided_slice %217 {offsets = [0, 0, 16], sizes = [8, 2, 8], strides = [1, 1, 1]} : vector<8x2x32xf32> to vector<8x2x8xf32>
    %231 = vector.extract_strided_slice %217 {offsets = [0, 0, 24], sizes = [8, 2, 8], strides = [1, 1, 1]} : vector<8x2x32xf32> to vector<8x2x8xf32>
    %232 = tpu.concatenate %228, %229, %230, %231 in 0 : vector<8x2x8xf32>, vector<8x2x8xf32>, vector<8x2x8xf32>, vector<8x2x8xf32> -> vector<32x2x8xf32>
    "tpu.trace_start"() <{level = 10 : i32, message = "gsd,gtd->gst"}> : () -> ()
    %cst_125 = arith.constant dense<0.000000e+00> : vector<32x2x2xf32>
    %233 = tpu.matmul %222, %227, %cst_125 {dimension_numbers = #tpu.dot_dimension_numbers<[2], [2], [1], [1], [0, 0, 0, 1, 1, 1], [0], [0]>} : vector<32x2x8xf32>, vector<32x2x8xf32>, vector<32x2x2xf32> -> vector<32x2x2xf32>
    "tpu.trace_stop"() : () -> ()
    %cst_126 = arith.constant dense<0xFF800000> : vector<32x2xf32>
    %234 = vector.multi_reduction <maximumf>, %233, %cst_126 [2] : vector<32x2x2xf32> to vector<32x2xf32>
    %235 = vector.shape_cast %234 : vector<32x2xf32> to vector<32x2x1xf32>
    %236 = vector.broadcast %235 : vector<32x2x1xf32> to vector<32x2x2xf32>
    %237 = arith.subf %233, %236 : vector<32x2x2xf32>
    %238 = math.exp %237 : vector<32x2x2xf32>
    %cst_127 = arith.constant dense<0.000000e+00> : vector<32x2xf32>
    %239 = vector.multi_reduction <add>, %238, %cst_127 [2] : vector<32x2x2xf32> to vector<32x2xf32>
    %240 = vector.shape_cast %239 : vector<32x2xf32> to vector<32x2x1xf32>
    %241 = tpu.reciprocal %240 {approx = true} : vector<32x2x1xf32> -> vector<32x2x1xf32>
    %242 = vector.broadcast %241 : vector<32x2x1xf32> to vector<32x2x2xf32>
    %243 = arith.mulf %238, %242 : vector<32x2x2xf32>
    "tpu.trace_start"() <{level = 10 : i32, message = "gst,gtd->gsd"}> : () -> ()
    %cst_128 = arith.constant dense<0.000000e+00> : vector<32x2x8xf32>
    %244 = tpu.matmul %243, %232, %cst_128 {dimension_numbers = #tpu.dot_dimension_numbers<[2], [1], [1], [2], [0, 0, 0, 1, 1, 2], [0], [0]>} : vector<32x2x2xf32>, vector<32x2x8xf32>, vector<32x2x8xf32> -> vector<32x2x8xf32>
    "tpu.trace_stop"() : () -> ()
    %245 = vector.extract_strided_slice %244 {offsets = [0, 0, 0], sizes = [8, 2, 8], strides = [1, 1, 1]} : vector<32x2x8xf32> to vector<8x2x8xf32>
    %246 = vector.extract_strided_slice %244 {offsets = [8, 0, 0], sizes = [8, 2, 8], strides = [1, 1, 1]} : vector<32x2x8xf32> to vector<8x2x8xf32>
    %247 = vector.extract_strided_slice %244 {offsets = [16, 0, 0], sizes = [8, 2, 8], strides = [1, 1, 1]} : vector<32x2x8xf32> to vector<8x2x8xf32>
    %248 = vector.extract_strided_slice %244 {offsets = [24, 0, 0], sizes = [8, 2, 8], strides = [1, 1, 1]} : vector<32x2x8xf32> to vector<8x2x8xf32>
    %249 = tpu.concatenate %245, %246, %247, %248 in 2 : vector<8x2x8xf32>, vector<8x2x8xf32>, vector<8x2x8xf32>, vector<8x2x8xf32> -> vector<8x2x32xf32>
    %250 = vector.shape_cast %249 : vector<8x2x32xf32> to vector<16x32xf32>
    %251 = arith.truncf %250 : vector<16x32xf32> to vector<16x32xbf16>
    %c1_129 = arith.constant 1 : index
    %c0_130 = arith.constant 0 : index
    %c0_131 = arith.constant 0 : index
    %252 = vector.load %arg5[%c1_129, %c0_130, %c0_131] : memref<2x32x32xbf16, #tpu.memory_space<vmem>>, vector<1x32x32xbf16>
    %253 = vector.shape_cast %252 : vector<1x32x32xbf16> to vector<32x32xbf16>
    %cst_132 = arith.constant dense<0.000000e+00> : vector<16x32xf32>
    %254 = tpu.matmul %251, %253, %cst_132 {dimension_numbers = #tpu.dot_dimension_numbers<[1], [0], [0], [1], [0, 0, 1, 1], [], []>} : vector<16x32xbf16>, vector<32x32xbf16>, vector<16x32xf32> -> vector<16x32xf32>
    %255 = vector.broadcast %193 : vector<1x32xf32> to vector<16x32xf32>
    %256 = arith.addf %254, %255 : vector<16x32xf32>
    %257 = arith.addf %189, %256 : vector<16x32xf32>
    %cst_133 = arith.constant dense<0.000000e+00> : vector<16xf32>
    %258 = vector.multi_reduction <add>, %257, %cst_133 [1] : vector<16x32xf32> to vector<16xf32>
    %259 = vector.shape_cast %258 : vector<16xf32> to vector<16x1xf32>
    %cst_134 = arith.constant 3.200000e+01 : f32
    %260 = vector.broadcast %cst_134 : f32 to vector<16x1xf32>
    %261 = arith.divf %259, %260 : vector<16x1xf32>
    %262 = vector.broadcast %261 : vector<16x1xf32> to vector<16x32xf32>
    %263 = arith.subf %257, %262 : vector<16x32xf32>
    %264 = vector.broadcast %261 : vector<16x1xf32> to vector<16x32xf32>
    %265 = arith.subf %257, %264 : vector<16x32xf32>
    %266 = arith.mulf %263, %265 : vector<16x32xf32>
    %cst_135 = arith.constant dense<0.000000e+00> : vector<16xf32>
    %267 = vector.multi_reduction <add>, %266, %cst_135 [1] : vector<16x32xf32> to vector<16xf32>
    %268 = vector.shape_cast %267 : vector<16xf32> to vector<16x1xf32>
    %cst_136 = arith.constant 3.200000e+01 : f32
    %269 = vector.broadcast %cst_136 : f32 to vector<16x1xf32>
    %270 = arith.divf %268, %269 : vector<16x1xf32>
    %271 = vector.broadcast %261 : vector<16x1xf32> to vector<16x32xf32>
    %272 = arith.subf %257, %271 : vector<16x32xf32>
    %cst_137 = arith.constant 9.99999974E-6 : f32
    %273 = vector.broadcast %cst_137 : f32 to vector<16x1xf32>
    %274 = arith.addf %270, %273 : vector<16x1xf32>
    %275 = math.rsqrt %274 : vector<16x1xf32>
    %276 = vector.broadcast %275 : vector<16x1xf32> to vector<16x32xf32>
    %277 = arith.mulf %272, %276 : vector<16x32xf32>
    %278 = vector.broadcast %197 : vector<1x32xf32> to vector<16x32xf32>
    %279 = arith.mulf %277, %278 : vector<16x32xf32>
    %280 = vector.broadcast %199 : vector<1x32xf32> to vector<16x32xf32>
    %281 = arith.addf %279, %280 : vector<16x32xf32>
    %282 = arith.truncf %281 : vector<16x32xf32> to vector<16x32xbf16>
    %cst_138 = arith.constant 0.000000e+00 : f32
    %283 = vector.broadcast %cst_138 : f32 to vector<16x32xf32>
    %c1_139 = arith.constant 1 : index
    %c0_140 = arith.constant 0 : index
    %c0_141 = arith.constant 0 : index
    %284 = vector.load %arg11[%c1_139, %c0_140, %c0_141] : memref<2x32x2048xbf16, #tpu.memory_space<vmem>>, vector<1x32x512xbf16>
    %285 = vector.shape_cast %284 : vector<1x32x512xbf16> to vector<32x512xbf16>
    %cst_142 = arith.constant dense<0.000000e+00> : vector<16x512xf32>
    %286 = tpu.matmul %282, %285, %cst_142 {dimension_numbers = #tpu.dot_dimension_numbers<[1], [0], [0], [1], [0, 0, 1, 1], [], []>} : vector<16x32xbf16>, vector<32x512xbf16>, vector<16x512xf32> -> vector<16x512xf32>
    %c1_143 = arith.constant 1 : index
    %c0_144 = arith.constant 0 : index
    %c0_145 = arith.constant 0 : index
    %287 = vector.load %arg12[%c1_143, %c0_144, %c0_145] : memref<2x1x2048xf32, #tpu.memory_space<vmem>>, vector<1x1x512xf32>
    %288 = vector.shape_cast %287 : vector<1x1x512xf32> to vector<1x512xf32>
    %289 = vector.broadcast %288 : vector<1x512xf32> to vector<16x512xf32>
    %290 = arith.addf %286, %289 : vector<16x512xf32>
    %cst_146 = arith.constant 0.000000e+00 : f32
    %291 = vector.broadcast %cst_146 : f32 to vector<16x512xf32>
    %292 = arith.maximumf %290, %291 : vector<16x512xf32>
    %293 = arith.truncf %292 : vector<16x512xf32> to vector<16x512xbf16>
    %c1_147 = arith.constant 1 : index
    %c0_148 = arith.constant 0 : index
    %c0_149 = arith.constant 0 : index
    %294 = vector.load %arg13[%c1_147, %c0_148, %c0_149] : memref<2x2048x32xbf16, #tpu.memory_space<vmem>>, vector<1x512x32xbf16>
    %295 = vector.shape_cast %294 : vector<1x512x32xbf16> to vector<512x32xbf16>
    %cst_150 = arith.constant dense<0.000000e+00> : vector<16x32xf32>
    %296 = tpu.matmul %293, %295, %cst_150 {dimension_numbers = #tpu.dot_dimension_numbers<[1], [0], [0], [1], [0, 0, 1, 1], [], []>} : vector<16x512xbf16>, vector<512x32xbf16>, vector<16x32xf32> -> vector<16x32xf32>
    %297 = arith.addf %283, %296 : vector<16x32xf32>
    %c1_151 = arith.constant 1 : index
    %c0_152 = arith.constant 0 : index
    %c512_153 = arith.constant 512 : index
    %298 = vector.load %arg11[%c1_151, %c0_152, %c512_153] : memref<2x32x2048xbf16, #tpu.memory_space<vmem>>, vector<1x32x512xbf16>
    %299 = vector.shape_cast %298 : vector<1x32x512xbf16> to vector<32x512xbf16>
    %cst_154 = arith.constant dense<0.000000e+00> : vector<16x512xf32>
    %300 = tpu.matmul %282, %299, %cst_154 {dimension_numbers = #tpu.dot_dimension_numbers<[1], [0], [0], [1], [0, 0, 1, 1], [], []>} : vector<16x32xbf16>, vector<32x512xbf16>, vector<16x512xf32> -> vector<16x512xf32>
    %c1_155 = arith.constant 1 : index
    %c0_156 = arith.constant 0 : index
    %c512_157 = arith.constant 512 : index
    %301 = vector.load %arg12[%c1_155, %c0_156, %c512_157] : memref<2x1x2048xf32, #tpu.memory_space<vmem>>, vector<1x1x512xf32>
    %302 = vector.shape_cast %301 : vector<1x1x512xf32> to vector<1x512xf32>
    %303 = vector.broadcast %302 : vector<1x512xf32> to vector<16x512xf32>
    %304 = arith.addf %300, %303 : vector<16x512xf32>
    %cst_158 = arith.constant 0.000000e+00 : f32
    %305 = vector.broadcast %cst_158 : f32 to vector<16x512xf32>
    %306 = arith.maximumf %304, %305 : vector<16x512xf32>
    %307 = arith.truncf %306 : vector<16x512xf32> to vector<16x512xbf16>
    %c1_159 = arith.constant 1 : index
    %c512_160 = arith.constant 512 : index
    %c0_161 = arith.constant 0 : index
    %308 = vector.load %arg13[%c1_159, %c512_160, %c0_161] : memref<2x2048x32xbf16, #tpu.memory_space<vmem>>, vector<1x512x32xbf16>
    %309 = vector.shape_cast %308 : vector<1x512x32xbf16> to vector<512x32xbf16>
    %cst_162 = arith.constant dense<0.000000e+00> : vector<16x32xf32>
    %310 = tpu.matmul %307, %309, %cst_162 {dimension_numbers = #tpu.dot_dimension_numbers<[1], [0], [0], [1], [0, 0, 1, 1], [], []>} : vector<16x512xbf16>, vector<512x32xbf16>, vector<16x32xf32> -> vector<16x32xf32>
    %311 = arith.addf %297, %310 : vector<16x32xf32>
    %c1_163 = arith.constant 1 : index
    %c0_164 = arith.constant 0 : index
    %c1024_165 = arith.constant 1024 : index
    %312 = vector.load %arg11[%c1_163, %c0_164, %c1024_165] : memref<2x32x2048xbf16, #tpu.memory_space<vmem>>, vector<1x32x512xbf16>
    %313 = vector.shape_cast %312 : vector<1x32x512xbf16> to vector<32x512xbf16>
    %cst_166 = arith.constant dense<0.000000e+00> : vector<16x512xf32>
    %314 = tpu.matmul %282, %313, %cst_166 {dimension_numbers = #tpu.dot_dimension_numbers<[1], [0], [0], [1], [0, 0, 1, 1], [], []>} : vector<16x32xbf16>, vector<32x512xbf16>, vector<16x512xf32> -> vector<16x512xf32>
    %c1_167 = arith.constant 1 : index
    %c0_168 = arith.constant 0 : index
    %c1024_169 = arith.constant 1024 : index
    %315 = vector.load %arg12[%c1_167, %c0_168, %c1024_169] : memref<2x1x2048xf32, #tpu.memory_space<vmem>>, vector<1x1x512xf32>
    %316 = vector.shape_cast %315 : vector<1x1x512xf32> to vector<1x512xf32>
    %317 = vector.broadcast %316 : vector<1x512xf32> to vector<16x512xf32>
    %318 = arith.addf %314, %317 : vector<16x512xf32>
    %cst_170 = arith.constant 0.000000e+00 : f32
    %319 = vector.broadcast %cst_170 : f32 to vector<16x512xf32>
    %320 = arith.maximumf %318, %319 : vector<16x512xf32>
    %321 = arith.truncf %320 : vector<16x512xf32> to vector<16x512xbf16>
    %c1_171 = arith.constant 1 : index
    %c1024_172 = arith.constant 1024 : index
    %c0_173 = arith.constant 0 : index
    %322 = vector.load %arg13[%c1_171, %c1024_172, %c0_173] : memref<2x2048x32xbf16, #tpu.memory_space<vmem>>, vector<1x512x32xbf16>
    %323 = vector.shape_cast %322 : vector<1x512x32xbf16> to vector<512x32xbf16>
    %cst_174 = arith.constant dense<0.000000e+00> : vector<16x32xf32>
    %324 = tpu.matmul %321, %323, %cst_174 {dimension_numbers = #tpu.dot_dimension_numbers<[1], [0], [0], [1], [0, 0, 1, 1], [], []>} : vector<16x512xbf16>, vector<512x32xbf16>, vector<16x32xf32> -> vector<16x32xf32>
    %325 = arith.addf %311, %324 : vector<16x32xf32>
    %c1_175 = arith.constant 1 : index
    %c0_176 = arith.constant 0 : index
    %c1536_177 = arith.constant 1536 : index
    %326 = vector.load %arg11[%c1_175, %c0_176, %c1536_177] : memref<2x32x2048xbf16, #tpu.memory_space<vmem>>, vector<1x32x512xbf16>
    %327 = vector.shape_cast %326 : vector<1x32x512xbf16> to vector<32x512xbf16>
    %cst_178 = arith.constant dense<0.000000e+00> : vector<16x512xf32>
    %328 = tpu.matmul %282, %327, %cst_178 {dimension_numbers = #tpu.dot_dimension_numbers<[1], [0], [0], [1], [0, 0, 1, 1], [], []>} : vector<16x32xbf16>, vector<32x512xbf16>, vector<16x512xf32> -> vector<16x512xf32>
    %c1_179 = arith.constant 1 : index
    %c0_180 = arith.constant 0 : index
    %c1536_181 = arith.constant 1536 : index
    %329 = vector.load %arg12[%c1_179, %c0_180, %c1536_181] : memref<2x1x2048xf32, #tpu.memory_space<vmem>>, vector<1x1x512xf32>
    %330 = vector.shape_cast %329 : vector<1x1x512xf32> to vector<1x512xf32>
    %331 = vector.broadcast %330 : vector<1x512xf32> to vector<16x512xf32>
    %332 = arith.addf %328, %331 : vector<16x512xf32>
    %cst_182 = arith.constant 0.000000e+00 : f32
    %333 = vector.broadcast %cst_182 : f32 to vector<16x512xf32>
    %334 = arith.maximumf %332, %333 : vector<16x512xf32>
    %335 = arith.truncf %334 : vector<16x512xf32> to vector<16x512xbf16>
    %c1_183 = arith.constant 1 : index
    %c1536_184 = arith.constant 1536 : index
    %c0_185 = arith.constant 0 : index
    %336 = vector.load %arg13[%c1_183, %c1536_184, %c0_185] : memref<2x2048x32xbf16, #tpu.memory_space<vmem>>, vector<1x512x32xbf16>
    %337 = vector.shape_cast %336 : vector<1x512x32xbf16> to vector<512x32xbf16>
    %cst_186 = arith.constant dense<0.000000e+00> : vector<16x32xf32>
    %338 = tpu.matmul %335, %337, %cst_186 {dimension_numbers = #tpu.dot_dimension_numbers<[1], [0], [0], [1], [0, 0, 1, 1], [], []>} : vector<16x512xbf16>, vector<512x32xbf16>, vector<16x32xf32> -> vector<16x32xf32>
    %339 = arith.addf %325, %338 : vector<16x32xf32>
    %340 = vector.broadcast %195 : vector<1x32xf32> to vector<16x32xf32>
    %341 = arith.addf %339, %340 : vector<16x32xf32>
    %342 = arith.addf %281, %341 : vector<16x32xf32>
    %cst_187 = arith.constant dense<0.000000e+00> : vector<16xf32>
    %343 = vector.multi_reduction <add>, %342, %cst_187 [1] : vector<16x32xf32> to vector<16xf32>
    %344 = vector.shape_cast %343 : vector<16xf32> to vector<16x1xf32>
    %cst_188 = arith.constant 3.200000e+01 : f32
    %345 = vector.broadcast %cst_188 : f32 to vector<16x1xf32>
    %346 = arith.divf %344, %345 : vector<16x1xf32>
    %347 = vector.broadcast %346 : vector<16x1xf32> to vector<16x32xf32>
    %348 = arith.subf %342, %347 : vector<16x32xf32>
    %349 = vector.broadcast %346 : vector<16x1xf32> to vector<16x32xf32>
    %350 = arith.subf %342, %349 : vector<16x32xf32>
    %351 = arith.mulf %348, %350 : vector<16x32xf32>
    %cst_189 = arith.constant dense<0.000000e+00> : vector<16xf32>
    %352 = vector.multi_reduction <add>, %351, %cst_189 [1] : vector<16x32xf32> to vector<16xf32>
    %353 = vector.shape_cast %352 : vector<16xf32> to vector<16x1xf32>
    %cst_190 = arith.constant 3.200000e+01 : f32
    %354 = vector.broadcast %cst_190 : f32 to vector<16x1xf32>
    %355 = arith.divf %353, %354 : vector<16x1xf32>
    %356 = vector.broadcast %346 : vector<16x1xf32> to vector<16x32xf32>
    %357 = arith.subf %342, %356 : vector<16x32xf32>
    %cst_191 = arith.constant 9.99999974E-6 : f32
    %358 = vector.broadcast %cst_191 : f32 to vector<16x1xf32>
    %359 = arith.addf %355, %358 : vector<16x1xf32>
    %360 = math.rsqrt %359 : vector<16x1xf32>
    %361 = vector.broadcast %360 : vector<16x1xf32> to vector<16x32xf32>
    %362 = arith.mulf %357, %361 : vector<16x32xf32>
    %363 = vector.broadcast %201 : vector<1x32xf32> to vector<16x32xf32>
    %364 = arith.mulf %362, %363 : vector<16x32xf32>
    %365 = vector.broadcast %203 : vector<1x32xf32> to vector<16x32xf32>
    %366 = arith.addf %364, %365 : vector<16x32xf32>
    %367 = vector.shape_cast %366 : vector<16x32xf32> to vector<8x2x32xf32>
    %c0_192 = arith.constant 0 : index
    %c0_193 = arith.constant 0 : index
    %c0_194 = arith.constant 0 : index
    %368 = vector.load %arg15[%c0_192, %c0_193, %c0_194] : memref<8x32x64xf32, #tpu.memory_space<vmem>>, vector<8x32x64xf32>
    "tpu.trace_start"() <{level = 10 : i32, message = "nbe,nef->nbf"}> : () -> ()
    %cst_195 = arith.constant dense<0.000000e+00> : vector<8x2x64xf32>
    %369 = tpu.matmul %367, %368, %cst_195 {dimension_numbers = #tpu.dot_dimension_numbers<[2], [1], [1], [2], [0, 0, 0, 1, 1, 2], [0], [0]>} : vector<8x2x32xf32>, vector<8x32x64xf32>, vector<8x2x64xf32> -> vector<8x2x64xf32>
    "tpu.trace_stop"() : () -> ()
    %cst_196 = arith.constant dense<0.000000e+00> : vector<2x64xf32>
    %370 = vector.multi_reduction <add>, %369, %cst_196 [0] : vector<8x2x64xf32> to vector<2x64xf32>
    %c0_197 = arith.constant 0 : index
    %c0_198 = arith.constant 0 : index
    %371 = vector.load %arg16[%c0_197, %c0_198] : memref<1x64xf32, #tpu.memory_space<vmem>>, vector<1x64xf32>
    %372 = vector.broadcast %371 : vector<1x64xf32> to vector<2x64xf32>
    %373 = arith.addf %370, %372 : vector<2x64xf32>
    %c0_199 = arith.constant 0 : index
    %c0_200 = arith.constant 0 : index
    %374 = vector.load %arg17[%c0_199, %c0_200] : memref<1x64xf32, #tpu.memory_space<vmem>>, vector<1x64xf32>
    %375 = vector.broadcast %374 : vector<1x64xf32> to vector<2x64xf32>
    %376 = arith.mulf %373, %375 : vector<2x64xf32>
    %c0_201 = arith.constant 0 : index
    %c0_202 = arith.constant 0 : index
    %377 = vector.load %arg18[%c0_201, %c0_202] : memref<1x64xf32, #tpu.memory_space<vmem>>, vector<1x64xf32>
    %378 = vector.broadcast %377 : vector<1x64xf32> to vector<2x64xf32>
    %379 = arith.addf %376, %378 : vector<2x64xf32>
    %c0_203 = arith.constant 0 : index
    %c0_204 = arith.constant 0 : index
    %380 = vector.load %arg19[%c0_203, %c0_204] : memref<64x32xf32, #tpu.memory_space<vmem>>, vector<64x32xf32>
    %cst_205 = arith.constant dense<0.000000e+00> : vector<2x32xf32>
    %381 = tpu.matmul %379, %380, %cst_205 {dimension_numbers = #tpu.dot_dimension_numbers<[1], [0], [0], [1], [0, 0, 1, 1], [], []>} : vector<2x64xf32>, vector<64x32xf32>, vector<2x32xf32> -> vector<2x32xf32>
    %c0_206 = arith.constant 0 : index
    %c0_207 = arith.constant 0 : index
    %382 = vector.load %arg20[%c0_206, %c0_207] : memref<1x32xf32, #tpu.memory_space<vmem>>, vector<1x32xf32>
    %383 = vector.broadcast %382 : vector<1x32xf32> to vector<2x32xf32>
    %384 = arith.addf %381, %383 : vector<2x32xf32>
    %cst_208 = arith.constant 5.000000e-01 : f32
    %385 = vector.broadcast %cst_208 : f32 to vector<2x32xf32>
    %386 = arith.mulf %385, %384 : vector<2x32xf32>
    %cst_209 = arith.constant 0.707106769 : f32
    %387 = vector.broadcast %cst_209 : f32 to vector<2x32xf32>
    %388 = arith.mulf %384, %387 : vector<2x32xf32>
    %389 = math.erf %388 : vector<2x32xf32>
    %cst_210 = arith.constant 1.000000e+00 : f32
    %390 = vector.broadcast %cst_210 : f32 to vector<2x32xf32>
    %391 = arith.addf %390, %389 : vector<2x32xf32>
    %392 = arith.mulf %386, %391 : vector<2x32xf32>
    %c0_211 = arith.constant 0 : index
    %c0_212 = arith.constant 0 : index
    %393 = vector.load %arg21[%c0_211, %c0_212] : memref<32x128xf32, #tpu.memory_space<vmem>>, vector<32x128xf32>
    %cst_213 = arith.constant dense<0.000000e+00> : vector<2x128xf32>
    %394 = tpu.matmul %392, %393, %cst_213 {dimension_numbers = #tpu.dot_dimension_numbers<[1], [0], [0], [1], [0, 0, 1, 1], [], []>} : vector<2x32xf32>, vector<32x128xf32>, vector<2x128xf32> -> vector<2x128xf32>
    %c0_214 = arith.constant 0 : index
    %c0_215 = arith.constant 0 : index
    %395 = vector.load %arg22[%c0_214, %c0_215] : memref<1x128xf32, #tpu.memory_space<vmem>>, vector<1x128xf32>
    %396 = vector.broadcast %395 : vector<1x128xf32> to vector<2x128xf32>
    %397 = arith.addf %394, %396 : vector<2x128xf32>
    %c0_216 = arith.constant 0 : index
    %c0_217 = arith.constant 0 : index
    %398 = vector.load %arg23[%c0_216, %c0_217] : memref<2x128xf32, #tpu.memory_space<vmem>>, vector<2x128xf32>
    tpu.vector_store %arg23[%c0_216, %c0_217], %397 {strides = array<i32>} : memref<2x128xf32, #tpu.memory_space<vmem>>, vector<2x128xf32>,
    return
  }
}

</mosaic_0001>

<llo_original>
// kernel: ctran_forward.1
$region0: #{ctran_forward.1}
  #allocation0 [shape = 'u32[]', space=smem, size = 0x4, offset = 0x4, fixed_abs, tag = 'smem constant byte address 0x4 - core index']
  #allocation1 [shape = 'u32[72,128]{1,0:T(1,128)}', space=vmem, size = 0x9000, scoped, tag = 'internal scratch']
  %s0 = inlined_call_operand.vmem [shape: f32[2,4,256], index: 0, kind: input, shape index: {}]
  %s1 = inlined_call_operand.vmem [shape: f32[8,4,32], index: 1, kind: input, shape index: {}]
  %s2 = inlined_call_operand.vmem [shape: f32[8,1,32], index: 2, kind: input, shape index: {}]
  %s3 = inlined_call_operand.vmem [shape: bf16[2,32,96], index: 3, kind: input, shape index: {}]
  %s4 = inlined_call_operand.vmem [shape: f32[2,1,96], index: 4, kind: input, shape index: {}]
  %s5 = inlined_call_operand.vmem [shape: bf16[2,32,32], index: 5, kind: input, shape index: {}]
  %s6 = inlined_call_operand.vmem [shape: f32[2,1,32], index: 6, kind: input, shape index: {}]
  %s7 = inlined_call_operand.vmem [shape: f32[2,1,32], index: 7, kind: input, shape index: {}]
  %s8 = inlined_call_operand.vmem [shape: f32[2,1,32], index: 8, kind: input, shape index: {}]
  %s9 = inlined_call_operand.vmem [shape: f32[2,1,32], index: 9, kind: input, shape index: {}]
  %s10 = inlined_call_operand.vmem [shape: f32[2,1,32], index: 10, kind: input, shape index: {}]
  %s11 = inlined_call_operand.vmem [shape: bf16[2,32,2048], index: 11, kind: input, shape index: {}]
  %s12 = inlined_call_operand.vmem [shape: f32[2,1,2048], index: 12, kind: input, shape index: {}]
  %s13 = inlined_call_operand.vmem [shape: bf16[2,2048,32], index: 13, kind: input, shape index: {}]
  %s14 = inlined_call_operand.vmem [shape: f32[2,1,32], index: 14, kind: input, shape index: {}]
  %s15 = inlined_call_operand.vmem [shape: f32[8,32,64], index: 15, kind: input, shape index: {}]
  %s16 = inlined_call_operand.vmem [shape: f32[1,64], index: 16, kind: input, shape index: {}]
  %s17 = inlined_call_operand.vmem [shape: f32[1,64], index: 17, kind: input, shape index: {}]
  %s18 = inlined_call_operand.vmem [shape: f32[1,64], index: 18, kind: input, shape index: {}]
  %s19 = inlined_call_operand.vmem [shape: f32[64,32], index: 19, kind: input, shape index: {}]
  %s20 = inlined_call_operand.vmem [shape: f32[1,32], index: 20, kind: input, shape index: {}]
  %s21 = inlined_call_operand.vmem [shape: f32[32,128], index: 21, kind: input, shape index: {}]
  %s22 = inlined_call_operand.vmem [shape: f32[1,128], index: 22, kind: input, shape index: {}]
  %s23 = inlined_call_operand.hbm [shape: f32[2,128], index: 23, kind: output, shape index: {}]
  %s24 = sld [smem:[#allocation0]]
  $region102: #{ctran_forward.1} parent=0
    _
  %s26 = ssub.s32 1, %s24
  %s27 = scalar_select 0, %s26, %s24
  $region1: #{ctran_forward.1} parent=0
    #allocation2 [shape = 'u8[1024]{0}', space=vmem, size = 0x400, scoped, tag = 'output window, operand 0, single buffered']
    #allocation3 [shape = 's32[1]{0}', space=sflag, size = 0x4, scoped, tag = 'scoped memory for ctran_forward.1']
    %28 = vsyncpa [#allocation3], 0
    // Predicated region
    $region2: #{ctran_forward.1} parent=1 // pred_check
      _
    $region3: #{ctran_forward.1} parent=1 // pred_check_branch
      %30 = sbr.rel (0) target = $region5
    $region4: #{ctran_forward.1} parent=1 // pred_region
      _
    $region5: #{ctran_forward.1} parent=1 // pred_fallthru
      _
    // Predicated region
    $region6: #{ctran_forward.1} parent=1 // pred_check
      _
    $region7: #{ctran_forward.1} parent=1 // pred_check_branch
      %32 = sbr.rel (0) target = $region9
    $region8: #{ctran_forward.1} parent=1 // pred_region
      _
    $region9: #{ctran_forward.1} parent=1 // pred_fallthru
      _
    // Predicated region
    $region10: #{ctran_forward.1} parent=1 // pred_check
      _
    $region11: #{ctran_forward.1} parent=1 // pred_check_branch
      %34 = sbr.rel (0) target = $region13
    $region12: #{ctran_forward.1} parent=1 // pred_region
      _
    $region13: #{ctran_forward.1} parent=1 // pred_fallthru
      _
    // Predicated region
    $region14: #{ctran_forward.1} parent=1 // pred_check
      _
    $region15: #{ctran_forward.1} parent=1 // pred_check_branch
      %36 = sbr.rel (0) target = $region17
    $region16: #{ctran_forward.1} parent=1 // pred_region
      _
    $region17: #{ctran_forward.1} parent=1 // pred_fallthru
      _
    // Predicated region
    $region18: #{ctran_forward.1} parent=1 // pred_check
      _
    $region19: #{ctran_forward.1} parent=1 // pred_check_branch
      %38 = sbr.rel (0) target = $region21
    $region20: #{ctran_forward.1} parent=1 // pred_region
      _
    $region21: #{ctran_forward.1} parent=1 // pred_fallthru
      _
    // Predicated region
    $region22: #{ctran_forward.1} parent=1 // pred_check
      _
    $region23: #{ctran_forward.1} parent=1 // pred_check_branch
      %40 = sbr.rel (0) target = $region25
    $region24: #{ctran_forward.1} parent=1 // pred_region
      _
    $region25: #{ctran_forward.1} parent=1 // pred_fallthru
      _
    // Predicated region
    $region26: #{ctran_forward.1} parent=1 // pred_check
      _
    $region27: #{ctran_forward.1} parent=1 // pred_check_branch
      %42 = sbr.rel (0) target = $region29
    $region28: #{ctran_forward.1} parent=1 // pred_region
      _
    $region29: #{ctran_forward.1} parent=1 // pred_fallthru
      _
    // Predicated region
    $region30: #{ctran_forward.1} parent=1 // pred_check
      _
    $region31: #{ctran_forward.1} parent=1 // pred_check_branch
      %44 = sbr.rel (0) target = $region33
    $region32: #{ctran_forward.1} parent=1 // pred_region
      _
    $region33: #{ctran_forward.1} parent=1 // pred_fallthru
      _
    // Predicated region
    $region34: #{ctran_forward.1} parent=1 // pred_check
      _
    $region35: #{ctran_forward.1} parent=1 // pred_check_branch
      %46 = sbr.rel (0) target = $region37
    $region36: #{ctran_forward.1} parent=1 // pred_region
      _
    $region37: #{ctran_forward.1} parent=1 // pred_fallthru
      _
    // Predicated region
    $region38: #{ctran_forward.1} parent=1 // pred_check
      _
    $region39: #{ctran_forward.1} parent=1 // pred_check_branch
      %48 = sbr.rel (0) target = $region41
    $region40: #{ctran_forward.1} parent=1 // pred_region
      _
    $region41: #{ctran_forward.1} parent=1 // pred_fallthru
      _
    // Predicated region
    $region42: #{ctran_forward.1} parent=1 // pred_check
      _
    $region43: #{ctran_forward.1} parent=1 // pred_check_branch
      %50 = sbr.rel (0) target = $region45
    $region44: #{ctran_forward.1} parent=1 // pred_region
      _
    $region45: #{ctran_forward.1} parent=1 // pred_fallthru
      _
    // Predicated region
    $region46: #{ctran_forward.1} parent=1 // pred_check
      _
    $region47: #{ctran_forward.1} parent=1 // pred_check_branch
      %52 = sbr.rel (0) target = $region49
    $region48: #{ctran_forward.1} parent=1 // pred_region
      _
    $region49: #{ctran_forward.1} parent=1 // pred_fallthru
      _
    // Predicated region
    $region50: #{ctran_forward.1} parent=1 // pred_check
      _
    $region51: #{ctran_forward.1} parent=1 // pred_check_branch
      %54 = sbr.rel (0) target = $region53
    $region52: #{ctran_forward.1} parent=1 // pred_region
      _
    $region53: #{ctran_forward.1} parent=1 // pred_fallthru
      _
    // Predicated region
    $region54: #{ctran_forward.1} parent=1 // pred_check
      _
    $region55: #{ctran_forward.1} parent=1 // pred_check_branch
      %56 = sbr.rel (0) target = $region57
    $region56: #{ctran_forward.1} parent=1 // pred_region
      _
    $region57: #{ctran_forward.1} parent=1 // pred_fallthru
      _
    // Predicated region
    $region58: #{ctran_forward.1} parent=1 // pred_check
      _
    $region59: #{ctran_forward.1} parent=1 // pred_check_branch
      %58 = sbr.rel (0) target = $region61
    $region60: #{ctran_forward.1} parent=1 // pred_region
      _
    $region61: #{ctran_forward.1} parent=1 // pred_fallthru
      _
    // Predicated region
    $region62: #{ctran_forward.1} parent=1 // pred_check
      _
    $region63: #{ctran_forward.1} parent=1 // pred_check_branch
      %60 = sbr.rel (0) target = $region65
    $region64: #{ctran_forward.1} parent=1 // pred_region
      _
    $region65: #{ctran_forward.1} parent=1 // pred_fallthru
      _
    // Predicated region
    $region66: #{ctran_forward.1} parent=1 // pred_check
      _
    $region67: #{ctran_forward.1} parent=1 // pred_check_branch
      %62 = sbr.rel (0) target = $region69
    $region68: #{ctran_forward.1} parent=1 // pred_region
      _
    $region69: #{ctran_forward.1} parent=1 // pred_fallthru
      _
    // Predicated region
    $region70: #{ctran_forward.1} parent=1 // pred_check
      _
    $region71: #{ctran_forward.1} parent=1 // pred_check_branch
      %64 = sbr.rel (0) target = $region73
    $region72: #{ctran_forward.1} parent=1 // pred_region
      _
    $region73: #{ctran_forward.1} parent=1 // pred_fallthru
      _
    // Predicated region
    $region74: #{ctran_forward.1} parent=1 // pred_check
      _
    $region75: #{ctran_forward.1} parent=1 // pred_check_branch
      %66 = sbr.rel (0) target = $region77
    $region76: #{ctran_forward.1} parent=1 // pred_region
      _
    $region77: #{ctran_forward.1} parent=1 // pred_fallthru
      _
    // Predicated region
    $region78: #{ctran_forward.1} parent=1 // pred_check
      _
    $region79: #{ctran_forward.1} parent=1 // pred_check_branch
      %68 = sbr.rel (0) target = $region81
    $region80: #{ctran_forward.1} parent=1 // pred_region
      _
    $region81: #{ctran_forward.1} parent=1 // pred_fallthru
      _
    // Predicated region
    $region82: #{ctran_forward.1} parent=1 // pred_check
      _
    $region83: #{ctran_forward.1} parent=1 // pred_check_branch
      %70 = sbr.rel (0) target = $region85
    $region84: #{ctran_forward.1} parent=1 // pred_region
      _
    $region85: #{ctran_forward.1} parent=1 // pred_fallthru
      _
    // Predicated region
    $region86: #{ctran_forward.1} parent=1 // pred_check
      _
    $region87: #{ctran_forward.1} parent=1 // pred_check_branch
      %72 = sbr.rel (0) target = $region89
    $region88: #{ctran_forward.1} parent=1 // pred_region
      _
    $region89: #{ctran_forward.1} parent=1 // pred_fallthru
      _
    // Predicated region
    $region90: #{ctran_forward.1} parent=1 // pred_check
      _
    $region91: #{ctran_forward.1} parent=1 // pred_check_branch
      %74 = sbr.rel (0) target = $region93
    $region92: #{ctran_forward.1} parent=1 // pred_region
      _
    $region93: #{ctran_forward.1} parent=1 // pred_fallthru
      _
    %v76 = vld [vmem:[%s0] sm:$0xff]
    %v77 = vld [vmem:[%s0 + $0x8] sm:$0xff]
    %80 = vst [vmem:[#allocation1] ss:$2 sm:$0xff] %v76
    %v81 = vld.sshfl [vmem:[#allocation1] sm:$0xff pattern:$0x75316420]
    %v82 = vld.sshfl [vmem:[#allocation1 + $0x8] sm:$0xff pattern:$0x75316420]
    %s83 = scalar_lea.vmem [#allocation1], 16
    %84 = vst [vmem:[%s83] ss:$2 sm:$0xff] %v77
    %v85 = vld.sshfl [vmem:[#allocation1 + $0x10] sm:$0xff pattern:$0x75316420]
    %v86 = vld.sshfl [vmem:[#allocation1 + $0x18] sm:$0xff pattern:$0x75316420]
    %vm91 = vcmask 1043456
    %v92 = vsel %vm91, %v81, 0.0
    %v93 = vsel %vm91, %v82, 0.0
    %v94 = vadd.f32 %v92, %v93
    %95 = vadd.xlane.f32.xlu0 %v94
    %v96 = vpop.xlane.xlu0 %95
    %v97 = vsel %vm91, %v85, 0.0
    %v98 = vsel %vm91, %v86, 0.0
    %v99 = vadd.f32 %v97, %v98
    %100 = vadd.xlane.f32.xlu0 %v99
    %v101 = vpop.xlane.xlu0 %100
    %v102 = vrcp.pop 256.0
    %v103 = vmul.f32 256.0, %v102
    %v104 = vsub.f32 1.0, %v103
    %v105 = vmul.f32 %v102, %v104
    %v106 = vadd.f32 %v102, %v105
    %vm107 = vweird.f32 %v102
    %v108 = vsel %vm107, %v102, %v106
    %v109 = vmul.f32 %v96, %v108
    %v110 = vmul.f32 %v101, %v108
    %v111 = vld [vmem:[%s1] sm:$0xf]
    %v112 = vld [vmem:[%s1 + $0x4] sm:$0xf]
    %v113 = vld [vmem:[%s1 + $0x8] sm:$0xf]
    %v114 = vld [vmem:[%s1 + $0xc] sm:$0xf]
    %v115 = vld [vmem:[%s1 + $0x10] sm:$0xf]
    %v116 = vld [vmem:[%s1 + $0x14] sm:$0xf]
    %v117 = vld [vmem:[%s1 + $0x18] sm:$0xf]
    %v118 = vld [vmem:[%s1 + $0x1c] sm:$0xf]
    %v119 = vld [vmem:[%s2] sm:$0x1]
    %v120 = vld [vmem:[%s2 + $0x1] sm:$0x1]
    %v121 = vld [vmem:[%s2 + $0x2] sm:$0x1]
    %v122 = vld [vmem:[%s2 + $0x3] sm:$0x1]
    %v123 = vld [vmem:[%s2 + $0x4] sm:$0x1]
    %v124 = vld [vmem:[%s2 + $0x5] sm:$0x1]
    %v125 = vld [vmem:[%s2 + $0x6] sm:$0x1]
    %v126 = vld [vmem:[%s2 + $0x7] sm:$0x1]
    %v135 = vperm.slane %v119, 0
    %v136 = vperm.slane %v120, 0
    %v137 = vperm.slane %v121, 0
    %v138 = vperm.slane %v122, 0
    %v139 = vperm.slane %v123, 0
    %v140 = vperm.slane %v124, 0
    %v141 = vperm.slane %v125, 0
    %v142 = vperm.slane %v126, 0
    %v153 = vlaneseq
    %v154 = vand.u32 %v153, 127
    %v155 = vperm.slane %v109, %v154
    %v156 = vperm.slane %v110, %v154
    %vm157 = vcmask 1041409
    %v158 = vsel %vm157, %v156, %v155
    %vm159 = vcmask 31744
    %v160 = vsel %vm159, %v158, 0
    %v163 = vsel %vm91, %v111, 0
    %165 = vmatpush.msra.mxu0 0.0
    %166 = vmatpush.msra.mxu0 0.0
    %167 = vmatpush.msra.mxu0 0.0
    %168 = vmatpush.msra.mxu0 0.0
    %169 = vmatpush.msra.mxu0 0.0
    %170 = vmatpush.msra.mxu0 0.0
    %171 = vmatpush.msra.mxu0 0.0
    %172 = vmatpush.msra.mxu0 0.0
    %173 = vmatpush.msra.mxu0 0.0
    %174 = vmatpush.msra.mxu0 0.0
    %175 = vmatpush.msra.mxu0 0.0
    %176 = vmatpush.msra.mxu0 0.0
    %177 = vmatpush.msra.mxu0 0.0
    %178 = vmatpush.msra.mxu0 0.0
    %179 = vmatpush.msra.mxu0 0.0
    %180 = vmatpush.msra.mxu0 %v163
    %181 = vmatmul.f32.gmra.mxu0 %v160
    %v182 = vpop.f32.mrf.mxu0
    %v183 = vadd.f32 %v135, %v182
    %184 = vdwg.mxu0
    %v186 = vsel %vm91, %v112, 0
    %188 = vmatpush.msra.mxu0 0.0
    %189 = vmatpush.msra.mxu0 0.0
    %190 = vmatpush.msra.mxu0 0.0
    %191 = vmatpush.msra.mxu0 0.0
    %192 = vmatpush.msra.mxu0 0.0
    %193 = vmatpush.msra.mxu0 0.0
    %194 = vmatpush.msra.mxu0 0.0
    %195 = vmatpush.msra.mxu0 0.0
    %196 = vmatpush.msra.mxu0 0.0
    %197 = vmatpush.msra.mxu0 0.0
    %198 = vmatpush.msra.mxu0 0.0
    %199 = vmatpush.msra.mxu0 0.0
    %200 = vmatpush.msra.mxu0 0.0
    %201 = vmatpush.msra.mxu0 0.0
    %202 = vmatpush.msra.mxu0 0.0
    %203 = vmatpush.msra.mxu0 %v186
    %204 = vmatmul.f32.gmra.mxu0 %v160
    %v205 = vpop.f32.mrf.mxu0
    %v206 = vadd.f32 %v136, %v205
    %207 = vdwg.mxu0
    %v209 = vsel %vm91, %v113, 0
    %211 = vmatpush.msra.mxu0 0.0
    %212 = vmatpush.msra.mxu0 0.0
    %213 = vmatpush.msra.mxu0 0.0
    %214 = vmatpush.msra.mxu0 0.0
    %215 = vmatpush.msra.mxu0 0.0
    %216 = vmatpush.msra.mxu0 0.0
    %217 = vmatpush.msra.mxu0 0.0
    %218 = vmatpush.msra.mxu0 0.0
    %219 = vmatpush.msra.mxu0 0.0
    %220 = vmatpush.msra.mxu0 0.0
    %221 = vmatpush.msra.mxu0 0.0
    %222 = vmatpush.msra.mxu0 0.0
    %223 = vmatpush.msra.mxu0 0.0
    %224 = vmatpush.msra.mxu0 0.0
    %225 = vmatpush.msra.mxu0 0.0
    %226 = vmatpush.msra.mxu0 %v209
    %227 = vmatmul.f32.gmra.mxu0 %v160
    %v228 = vpop.f32.mrf.mxu0
    %v229 = vadd.f32 %v137, %v228
    %230 = vdwg.mxu0
    %v232 = vsel %vm91, %v114, 0
    %234 = vmatpush.msra.mxu0 0.0
    %235 = vmatpush.msra.mxu0 0.0
    %236 = vmatpush.msra.mxu0 0.0
    %237 = vmatpush.msra.mxu0 0.0
    %238 = vmatpush.msra.mxu0 0.0
    %239 = vmatpush.msra.mxu0 0.0
    %240 = vmatpush.msra.mxu0 0.0
    %241 = vmatpush.msra.mxu0 0.0
    %242 = vmatpush.msra.mxu0 0.0
    %243 = vmatpush.msra.mxu0 0.0
    %244 = vmatpush.msra.mxu0 0.0
    %245 = vmatpush.msra.mxu0 0.0
    %246 = vmatpush.msra.mxu0 0.0
    %247 = vmatpush.msra.mxu0 0.0
    %248 = vmatpush.msra.mxu0 0.0
    %249 = vmatpush.msra.mxu0 %v232
    %250 = vmatmul.f32.gmra.mxu0 %v160
    %v251 = vpop.f32.mrf.mxu0
    %v252 = vadd.f32 %v138, %v251
    %253 = vdwg.mxu0
    %v255 = vsel %vm91, %v115, 0
    %257 = vmatpush.msra.mxu0 0.0
    %258 = vmatpush.msra.mxu0 0.0
    %259 = vmatpush.msra.mxu0 0.0
    %260 = vmatpush.msra.mxu0 0.0
    %261 = vmatpush.msra.mxu0 0.0
    %262 = vmatpush.msra.mxu0 0.0
    %263 = vmatpush.msra.mxu0 0.0
    %264 = vmatpush.msra.mxu0 0.0
    %265 = vmatpush.msra.mxu0 0.0
    %266 = vmatpush.msra.mxu0 0.0
    %267 = vmatpush.msra.mxu0 0.0
    %268 = vmatpush.msra.mxu0 0.0
    %269 = vmatpush.msra.mxu0 0.0
    %270 = vmatpush.msra.mxu0 0.0
    %271 = vmatpush.msra.mxu0 0.0
    %272 = vmatpush.msra.mxu0 %v255
    %273 = vmatmul.f32.gmra.mxu0 %v160
    %v274 = vpop.f32.mrf.mxu0
    %v275 = vadd.f32 %v139, %v274
    %276 = vdwg.mxu0
    %v278 = vsel %vm91, %v116, 0
    %280 = vmatpush.msra.mxu0 0.0
    %281 = vmatpush.msra.mxu0 0.0
    %282 = vmatpush.msra.mxu0 0.0
    %283 = vmatpush.msra.mxu0 0.0
    %284 = vmatpush.msra.mxu0 0.0
    %285 = vmatpush.msra.mxu0 0.0
    %286 = vmatpush.msra.mxu0 0.0
    %287 = vmatpush.msra.mxu0 0.0
    %288 = vmatpush.msra.mxu0 0.0
    %289 = vmatpush.msra.mxu0 0.0
    %290 = vmatpush.msra.mxu0 0.0
    %291 = vmatpush.msra.mxu0 0.0
    %292 = vmatpush.msra.mxu0 0.0
    %293 = vmatpush.msra.mxu0 0.0
    %294 = vmatpush.msra.mxu0 0.0
    %295 = vmatpush.msra.mxu0 %v278
    %296 = vmatmul.f32.gmra.mxu0 %v160
    %v297 = vpop.f32.mrf.mxu0
    %v298 = vadd.f32 %v140, %v297
    %299 = vdwg.mxu0
    %v301 = vsel %vm91, %v117, 0
    %303 = vmatpush.msra.mxu0 0.0
    %304 = vmatpush.msra.mxu0 0.0
    %305 = vmatpush.msra.mxu0 0.0
    %306 = vmatpush.msra.mxu0 0.0
    %307 = vmatpush.msra.mxu0 0.0
    %308 = vmatpush.msra.mxu0 0.0
    %309 = vmatpush.msra.mxu0 0.0
    %310 = vmatpush.msra.mxu0 0.0
    %311 = vmatpush.msra.mxu0 0.0
    %312 = vmatpush.msra.mxu0 0.0
    %313 = vmatpush.msra.mxu0 0.0
    %314 = vmatpush.msra.mxu0 0.0
    %315 = vmatpush.msra.mxu0 0.0
    %316 = vmatpush.msra.mxu0 0.0
    %317 = vmatpush.msra.mxu0 0.0
    %318 = vmatpush.msra.mxu0 %v301
    %319 = vmatmul.f32.gmra.mxu0 %v160
    %v320 = vpop.f32.mrf.mxu0
    %v321 = vadd.f32 %v141, %v320
    %322 = vdwg.mxu0
    %v324 = vsel %vm91, %v118, 0
    %326 = vmatpush.msra.mxu0 0.0
    %327 = vmatpush.msra.mxu0 0.0
    %328 = vmatpush.msra.mxu0 0.0
    %329 = vmatpush.msra.mxu0 0.0
    %330 = vmatpush.msra.mxu0 0.0
    %331 = vmatpush.msra.mxu0 0.0
    %332 = vmatpush.msra.mxu0 0.0
    %333 = vmatpush.msra.mxu0 0.0
    %334 = vmatpush.msra.mxu0 0.0
    %335 = vmatpush.msra.mxu0 0.0
    %336 = vmatpush.msra.mxu0 0.0
    %337 = vmatpush.msra.mxu0 0.0
    %338 = vmatpush.msra.mxu0 0.0
    %339 = vmatpush.msra.mxu0 0.0
    %340 = vmatpush.msra.mxu0 0.0
    %341 = vmatpush.msra.mxu0 %v324
    %342 = vmatmul.f32.gmra.mxu0 %v160
    %v343 = vpop.f32.mrf.mxu0
    %v344 = vadd.f32 %v142, %v343
    %345 = vdwg.mxu0
    %v346 = vld [vmem:[%s4] sm:$0x1]
    %v347 = vld [vmem:[%s6] sm:$0x1]
    %v348 = vld [vmem:[%s14] sm:$0x1]
    %v349 = vld [vmem:[%s7] sm:$0x1]
    %v350 = vld [vmem:[%s8] sm:$0x1]
    %v351 = vld [vmem:[%s9] sm:$0x1]
    %v352 = vld [vmem:[%s10] sm:$0x1]
    %361 = vst [vmem:[#allocation1] ss:$4 sm:$0xff] %v183
    %s362 = scalar_lea.vmem [#allocation1], 1
    %363 = vst [vmem:[%s362] ss:$4 sm:$0xff] %v206
    %s364 = scalar_lea.vmem [#allocation1], 2
    %365 = vst [vmem:[%s364] ss:$4 sm:$0xff] %v229
    %s366 = scalar_lea.vmem [#allocation1], 3
    %367 = vst [vmem:[%s366] ss:$4 sm:$0xff] %v252
    %s368 = scalar_lea.vmem [#allocation1], 32
    %369 = vst [vmem:[%s368] ss:$4 sm:$0xff] %v275
    %s370 = scalar_lea.vmem [#allocation1], 33
    %371 = vst [vmem:[%s370] ss:$4 sm:$0xff] %v298
    %s372 = scalar_lea.vmem [#allocation1], 34
    %373 = vst [vmem:[%s372] ss:$4 sm:$0xff] %v321
    %s374 = scalar_lea.vmem [#allocation1], 35
    %375 = vst [vmem:[%s374] ss:$4 sm:$0xff] %v344
    %v376 = vld.sshfl [vmem:[#allocation1] sm:$0xff pattern:$0x73625140]
    %v377 = vld.sshfl [vmem:[#allocation1 + $0x20] sm:$0xff pattern:$0x73625140]
    %v380 = vpack.c.bf16 %v377, %v376
    %v381 = vld [vmem:[%s3] sm:$0xf]
    %v382 = vld [vmem:[%s3 + $0x4] sm:$0xf]
    %v383 = vld [vmem:[%s3 + $0x8] sm:$0xf]
    %v384 = vld [vmem:[%s3 + $0xc] sm:$0xf]
    %v386 = vperm.slane %v346, 0
    %v392 = vunpack.c.l.b16 %v381
    %v393 = vunpack.c.l.b16 %v382
    %v394 = vunpack.c.l.b16 %v383
    %v395 = vunpack.c.l.b16 %v384
    %v396 = vpack.c.b16 %v393, %v392
    %v397 = vpack.c.b16 %v395, %v394
    %vm400 = vcmask 261120
    %v402 = vsel %vm400, %v380, 0
    %404 = vmatpush.bf16.msra.mxu0 0
    %405 = vmatpush.bf16.msra.mxu0 0
    %406 = vmatpush.bf16.msra.mxu0 0
    %407 = vmatpush.bf16.msra.mxu0 0
    %408 = vmatpush.bf16.msra.mxu0 0
    %409 = vmatpush.bf16.msra.mxu0 0
    %410 = vmatpush.bf16.msra.mxu0 %v397
    %411 = vmatpush.bf16.msra.mxu0 %v396
    %412 = vmatmul.bf16.gmra.mxu0 %v402
    %v413 = vpop.f32.mrf.mxu0
    %v414 = vadd.f32 %v386, %v413
    %v415 = vpop.f32.mrf.mxu0
    %v416 = vadd.f32 %v386, %v415
    %417 = vdwg.mxu0
    %v418 = vmul.f32 %v414, 0.35355338
    %v419 = vmul.f32 %v416, 0.35355338
    %v422 = vrot.slane %v418, 2
    %v423 = vrot.slane %v418, 4
    %v424 = vrot.slane %v418, 6
    %v425 = vrot.slane %v419, 2
    %v426 = vrot.slane %v419, 4
    %v427 = vrot.slane %v419, 6
    %v430 = vrot.slane %v414, 2
    %v431 = vrot.slane %v414, 4
    %v432 = vrot.slane %v414, 6
    %v433 = vrot.slane %v416, 2
    %v434 = vrot.slane %v416, 4
    %v435 = vrot.slane %v416, 6
    %436 = vrot.lane.b32.xlu0 %v418, 120
    %v437 = vpop.permute.xlu0 %436
    %438 = vrot.lane.b32.xlu0 %v422, 120
    %v439 = vpop.permute.xlu0 %438
    %440 = vrot.lane.b32.xlu0 %v423, 120
    %v441 = vpop.permute.xlu0 %440
    %442 = vrot.lane.b32.xlu0 %v424, 120
    %v443 = vpop.permute.xlu0 %442
    %444 = vrot.lane.b32.xlu0 %v419, 120
    %v445 = vpop.permute.xlu0 %444
    %446 = vrot.lane.b32.xlu0 %v425, 120
    %v447 = vpop.permute.xlu0 %446
    %448 = vrot.lane.b32.xlu0 %v426, 120
    %v449 = vpop.permute.xlu0 %448
    %450 = vrot.lane.b32.xlu0 %v427, 120
    %v451 = vpop.permute.xlu0 %450
    %452 = vrot.lane.b32.xlu0 %v418, 112
    %v453 = vpop.permute.xlu0 %452
    %454 = vrot.lane.b32.xlu0 %v422, 112
    %v455 = vpop.permute.xlu0 %454
    %456 = vrot.lane.b32.xlu0 %v423, 112
    %v457 = vpop.permute.xlu0 %456
    %458 = vrot.lane.b32.xlu0 %v424, 112
    %v459 = vpop.permute.xlu0 %458
    %460 = vrot.lane.b32.xlu0 %v419, 112
    %v461 = vpop.permute.xlu0 %460
    %462 = vrot.lane.b32.xlu0 %v425, 112
    %v463 = vpop.permute.xlu0 %462
    %464 = vrot.lane.b32.xlu0 %v426, 112
    %v465 = vpop.permute.xlu0 %464
    %466 = vrot.lane.b32.xlu0 %v427, 112
    %v467 = vpop.permute.xlu0 %466
    %468 = vrot.lane.b32.xlu0 %v418, 104
    %v469 = vpop.permute.xlu0 %468
    %470 = vrot.lane.b32.xlu0 %v422, 104
    %v471 = vpop.permute.xlu0 %470
    %472 = vrot.lane.b32.xlu0 %v423, 104
    %v473 = vpop.permute.xlu0 %472
    %474 = vrot.lane.b32.xlu0 %v424, 104
    %v475 = vpop.permute.xlu0 %474
    %476 = vrot.lane.b32.xlu0 %v419, 104
    %v477 = vpop.permute.xlu0 %476
    %478 = vrot.lane.b32.xlu0 %v425, 104
    %v479 = vpop.permute.xlu0 %478
    %480 = vrot.lane.b32.xlu0 %v426, 104
    %v481 = vpop.permute.xlu0 %480
    %482 = vrot.lane.b32.xlu0 %v427, 104
    %v483 = vpop.permute.xlu0 %482
    %484 = vrot.lane.b32.xlu0 %v414, 120
    %v485 = vpop.permute.xlu0 %484
    %486 = vrot.lane.b32.xlu0 %v430, 120
    %v487 = vpop.permute.xlu0 %486
    %488 = vrot.lane.b32.xlu0 %v431, 120
    %v489 = vpop.permute.xlu0 %488
    %490 = vrot.lane.b32.xlu0 %v432, 120
    %v491 = vpop.permute.xlu0 %490
    %492 = vrot.lane.b32.xlu0 %v416, 120
    %v493 = vpop.permute.xlu0 %492
    %494 = vrot.lane.b32.xlu0 %v433, 120
    %v495 = vpop.permute.xlu0 %494
    %496 = vrot.lane.b32.xlu0 %v434, 120
    %v497 = vpop.permute.xlu0 %496
    %498 = vrot.lane.b32.xlu0 %v435, 120
    %v499 = vpop.permute.xlu0 %498
    %500 = vrot.lane.b32.xlu0 %v414, 112
    %v501 = vpop.permute.xlu0 %500
    %502 = vrot.lane.b32.xlu0 %v430, 112
    %v503 = vpop.permute.xlu0 %502
    %504 = vrot.lane.b32.xlu0 %v431, 112
    %v505 = vpop.permute.xlu0 %504
    %506 = vrot.lane.b32.xlu0 %v432, 112
    %v507 = vpop.permute.xlu0 %506
    %508 = vrot.lane.b32.xlu0 %v416, 112
    %v509 = vpop.permute.xlu0 %508
    %510 = vrot.lane.b32.xlu0 %v433, 112
    %v511 = vpop.permute.xlu0 %510
    %512 = vrot.lane.b32.xlu0 %v434, 112
    %v513 = vpop.permute.xlu0 %512
    %514 = vrot.lane.b32.xlu0 %v435, 112
    %v515 = vpop.permute.xlu0 %514
    %516 = vrot.lane.b32.xlu0 %v414, 104
    %v517 = vpop.permute.xlu0 %516
    %518 = vrot.lane.b32.xlu0 %v430, 104
    %v519 = vpop.permute.xlu0 %518
    %520 = vrot.lane.b32.xlu0 %v431, 104
    %v521 = vpop.permute.xlu0 %520
    %522 = vrot.lane.b32.xlu0 %v432, 104
    %v523 = vpop.permute.xlu0 %522
    %524 = vrot.lane.b32.xlu0 %v416, 104
    %v525 = vpop.permute.xlu0 %524
    %526 = vrot.lane.b32.xlu0 %v433, 104
    %v527 = vpop.permute.xlu0 %526
    %528 = vrot.lane.b32.xlu0 %v434, 104
    %v529 = vpop.permute.xlu0 %528
    %530 = vrot.lane.b32.xlu0 %v435, 104
    %v531 = vpop.permute.xlu0 %530
    %532 = vst [vmem:[#allocation1] ss:$4 sm:$0xff] %v414
    %v533 = vld.sshfl [vmem:[#allocation1] sm:$0xff pattern:$0x73625140]
    %534 = vrot.lane.b32.xlu0 %v533, 96
    %v535 = vpop.permute.xlu0 %534
    %vm536 = vcmask 64512
    %v537 = vsel %vm536, %v418, 0
    %v539 = vsel %vm536, %v535, 0
    %541 = vmatpush.xpose.msra.mxu0 0.0
    %542 = vmatpush.xpose.msra.mxu0 0.0
    %543 = vmatpush.xpose.msra.mxu0 0.0
    %544 = vmatpush.xpose.msra.mxu0 0.0
    %545 = vmatpush.xpose.msra.mxu0 0.0
    %546 = vmatpush.xpose.msra.mxu0 0.0
    %547 = vmatpush.xpose.msra.mxu0 0.0
    %548 = vmatpush.xpose.msra.mxu0 0.0
    %549 = vmatpush.xpose.msra.mxu0 0.0
    %550 = vmatpush.xpose.msra.mxu0 0.0
    %551 = vmatpush.xpose.msra.mxu0 0.0
    %552 = vmatpush.xpose.msra.mxu0 0.0
    %553 = vmatpush.xpose.msra.mxu0 0.0
    %554 = vmatpush.xpose.msra.mxu0 0.0
    %555 = vmatpush.xpose.msra.mxu0 0.0
    %556 = vmatpush.xpose.msra.mxu0 %v539
    %557 = vmatmul.f32.gmra.mxu0 %v537
    %v558 = vpop.f32.mrf.mxu0
    %v559 = vadd.f32 0.0, %v558
    %560 = vdwg.mxu0
    %561 = vst [vmem:[#allocation1] ss:$4 sm:$0xff] %v430
    %v562 = vld.sshfl [vmem:[#allocation1] sm:$0xff pattern:$0x73625140]
    %563 = vrot.lane.b32.xlu0 %v562, 96
    %v564 = vpop.permute.xlu0 %563
    %v565 = vsel %vm536, %v422, 0
    %v567 = vsel %vm536, %v564, 0
    %569 = vmatpush.xpose.msra.mxu0 0.0
    %570 = vmatpush.xpose.msra.mxu0 0.0
    %571 = vmatpush.xpose.msra.mxu0 0.0
    %572 = vmatpush.xpose.msra.mxu0 0.0
    %573 = vmatpush.xpose.msra.mxu0 0.0
    %574 = vmatpush.xpose.msra.mxu0 0.0
    %575 = vmatpush.xpose.msra.mxu0 0.0
    %576 = vmatpush.xpose.msra.mxu0 0.0
    %577 = vmatpush.xpose.msra.mxu0 0.0
    %578 = vmatpush.xpose.msra.mxu0 0.0
    %579 = vmatpush.xpose.msra.mxu0 0.0
    %580 = vmatpush.xpose.msra.mxu0 0.0
    %581 = vmatpush.xpose.msra.mxu0 0.0
    %582 = vmatpush.xpose.msra.mxu0 0.0
    %583 = vmatpush.xpose.msra.mxu0 0.0
    %584 = vmatpush.xpose.msra.mxu0 %v567
    %585 = vmatmul.f32.gmra.mxu0 %v565
    %v586 = vpop.f32.mrf.mxu0
    %v587 = vadd.f32 0.0, %v586
    %588 = vdwg.mxu0
    %589 = vst [vmem:[#allocation1] ss:$4 sm:$0xff] %v431
    %v590 = vld.sshfl [vmem:[#allocation1] sm:$0xff pattern:$0x73625140]
    %591 = vrot.lane.b32.xlu0 %v590, 96
    %v592 = vpop.permute.xlu0 %591
    %v593 = vsel %vm536, %v423, 0
    %v595 = vsel %vm536, %v592, 0
    %597 = vmatpush.xpose.msra.mxu0 0.0
    %598 = vmatpush.xpose.msra.mxu0 0.0
    %599 = vmatpush.xpose.msra.mxu0 0.0
    %600 = vmatpush.xpose.msra.mxu0 0.0
    %601 = vmatpush.xpose.msra.mxu0 0.0
    %602 = vmatpush.xpose.msra.mxu0 0.0
    %603 = vmatpush.xpose.msra.mxu0 0.0
    %604 = vmatpush.xpose.msra.mxu0 0.0
    %605 = vmatpush.xpose.msra.mxu0 0.0
    %606 = vmatpush.xpose.msra.mxu0 0.0
    %607 = vmatpush.xpose.msra.mxu0 0.0
    %608 = vmatpush.xpose.msra.mxu0 0.0
    %609 = vmatpush.xpose.msra.mxu0 0.0
    %610 = vmatpush.xpose.msra.mxu0 0.0
    %611 = vmatpush.xpose.msra.mxu0 0.0
    %612 = vmatpush.xpose.msra.mxu0 %v595
    %613 = vmatmul.f32.gmra.mxu0 %v593
    %v614 = vpop.f32.mrf.mxu0
    %v615 = vadd.f32 0.0, %v614
    %616 = vdwg.mxu0
    %617 = vst [vmem:[#allocation1] ss:$4 sm:$0xff] %v432
    %v618 = vld.sshfl [vmem:[#allocation1] sm:$0xff pattern:$0x73625140]
    %619 = vrot.lane.b32.xlu0 %v618, 96
    %v620 = vpop.permute.xlu0 %619
    %v621 = vsel %vm536, %v424, 0
    %v623 = vsel %vm536, %v620, 0
    %625 = vmatpush.xpose.msra.mxu0 0.0
    %626 = vmatpush.xpose.msra.mxu0 0.0
    %627 = vmatpush.xpose.msra.mxu0 0.0
    %628 = vmatpush.xpose.msra.mxu0 0.0
    %629 = vmatpush.xpose.msra.mxu0 0.0
    %630 = vmatpush.xpose.msra.mxu0 0.0
    %631 = vmatpush.xpose.msra.mxu0 0.0
    %632 = vmatpush.xpose.msra.mxu0 0.0
    %633 = vmatpush.xpose.msra.mxu0 0.0
    %634 = vmatpush.xpose.msra.mxu0 0.0
    %635 = vmatpush.xpose.msra.mxu0 0.0
    %636 = vmatpush.xpose.msra.mxu0 0.0
    %637 = vmatpush.xpose.msra.mxu0 0.0
    %638 = vmatpush.xpose.msra.mxu0 0.0
    %639 = vmatpush.xpose.msra.mxu0 0.0
    %640 = vmatpush.xpose.msra.mxu0 %v623
    %641 = vmatmul.f32.gmra.mxu0 %v621
    %v642 = vpop.f32.mrf.mxu0
    %v643 = vadd.f32 0.0, %v642
    %644 = vdwg.mxu0
    %645 = vst [vmem:[#allocation1] ss:$4 sm:$0xff] %v416
    %v646 = vld.sshfl [vmem:[#allocation1] sm:$0xff pattern:$0x73625140]
    %647 = vrot.lane.b32.xlu0 %v646, 96
    %v648 = vpop.permute.xlu0 %647
    %v649 = vsel %vm536, %v419, 0
    %v651 = vsel %vm536, %v648, 0
    %653 = vmatpush.xpose.msra.mxu0 0.0
    %654 = vmatpush.xpose.msra.mxu0 0.0
    %655 = vmatpush.xpose.msra.mxu0 0.0
    %656 = vmatpush.xpose.msra.mxu0 0.0
    %657 = vmatpush.xpose.msra.mxu0 0.0
    %658 = vmatpush.xpose.msra.mxu0 0.0
    %659 = vmatpush.xpose.msra.mxu0 0.0
    %660 = vmatpush.xpose.msra.mxu0 0.0
    %661 = vmatpush.xpose.msra.mxu0 0.0
    %662 = vmatpush.xpose.msra.mxu0 0.0
    %663 = vmatpush.xpose.msra.mxu0 0.0
    %664 = vmatpush.xpose.msra.mxu0 0.0
    %665 = vmatpush.xpose.msra.mxu0 0.0
    %666 = vmatpush.xpose.msra.mxu0 0.0
    %667 = vmatpush.xpose.msra.mxu0 0.0
    %668 = vmatpush.xpose.msra.mxu0 %v651
    %669 = vmatmul.f32.gmra.mxu0 %v649
    %v670 = vpop.f32.mrf.mxu0
    %v671 = vadd.f32 0.0, %v670
    %672 = vdwg.mxu0
    %673 = vst [vmem:[#allocation1] ss:$4 sm:$0xff] %v433
    %v674 = vld.sshfl [vmem:[#allocation1] sm:$0xff pattern:$0x73625140]
    %675 = vrot.lane.b32.xlu0 %v674, 96
    %v676 = vpop.permute.xlu0 %675
    %v677 = vsel %vm536, %v425, 0
    %v679 = vsel %vm536, %v676, 0
    %681 = vmatpush.xpose.msra.mxu0 0.0
    %682 = vmatpush.xpose.msra.mxu0 0.0
    %683 = vmatpush.xpose.msra.mxu0 0.0
    %684 = vmatpush.xpose.msra.mxu0 0.0
    %685 = vmatpush.xpose.msra.mxu0 0.0
    %686 = vmatpush.xpose.msra.mxu0 0.0
    %687 = vmatpush.xpose.msra.mxu0 0.0
    %688 = vmatpush.xpose.msra.mxu0 0.0
    %689 = vmatpush.xpose.msra.mxu0 0.0
    %690 = vmatpush.xpose.msra.mxu0 0.0
    %691 = vmatpush.xpose.msra.mxu0 0.0
    %692 = vmatpush.xpose.msra.mxu0 0.0
    %693 = vmatpush.xpose.msra.mxu0 0.0
    %694 = vmatpush.xpose.msra.mxu0 0.0
    %695 = vmatpush.xpose.msra.mxu0 0.0
    %696 = vmatpush.xpose.msra.mxu0 %v679
    %697 = vmatmul.f32.gmra.mxu0 %v677
    %v698 = vpop.f32.mrf.mxu0
    %v699 = vadd.f32 0.0, %v698
    %700 = vdwg.mxu0
    %701 = vst [vmem:[#allocation1] ss:$4 sm:$0xff] %v434
    %v702 = vld.sshfl [vmem:[#allocation1] sm:$0xff pattern:$0x73625140]
    %703 = vrot.lane.b32.xlu0 %v702, 96
    %v704 = vpop.permute.xlu0 %703
    %v705 = vsel %vm536, %v426, 0
    %v707 = vsel %vm536, %v704, 0
    %709 = vmatpush.xpose.msra.mxu0 0.0
    %710 = vmatpush.xpose.msra.mxu0 0.0
    %711 = vmatpush.xpose.msra.mxu0 0.0
    %712 = vmatpush.xpose.msra.mxu0 0.0
    %713 = vmatpush.xpose.msra.mxu0 0.0
    %714 = vmatpush.xpose.msra.mxu0 0.0
    %715 = vmatpush.xpose.msra.mxu0 0.0
    %716 = vmatpush.xpose.msra.mxu0 0.0
    %717 = vmatpush.xpose.msra.mxu0 0.0
    %718 = vmatpush.xpose.msra.mxu0 0.0
    %719 = vmatpush.xpose.msra.mxu0 0.0
    %720 = vmatpush.xpose.msra.mxu0 0.0
    %721 = vmatpush.xpose.msra.mxu0 0.0
    %722 = vmatpush.xpose.msra.mxu0 0.0
    %723 = vmatpush.xpose.msra.mxu0 0.0
    %724 = vmatpush.xpose.msra.mxu0 %v707
    %725 = vmatmul.f32.gmra.mxu0 %v705
    %v726 = vpop.f32.mrf.mxu0
    %v727 = vadd.f32 0.0, %v726
    %728 = vdwg.mxu0
    %729 = vst [vmem:[#allocation1] ss:$4 sm:$0xff] %v435
    %v730 = vld.sshfl [vmem:[#allocation1] sm:$0xff pattern:$0x73625140]
    %731 = vrot.lane.b32.xlu0 %v730, 96
    %v732 = vpop.permute.xlu0 %731
    %v733 = vsel %vm536, %v427, 0
    %v735 = vsel %vm536, %v732, 0
    %737 = vmatpush.xpose.msra.mxu0 0.0
    %738 = vmatpush.xpose.msra.mxu0 0.0
    %739 = vmatpush.xpose.msra.mxu0 0.0
    %740 = vmatpush.xpose.msra.mxu0 0.0
    %741 = vmatpush.xpose.msra.mxu0 0.0
    %742 = vmatpush.xpose.msra.mxu0 0.0
    %743 = vmatpush.xpose.msra.mxu0 0.0
    %744 = vmatpush.xpose.msra.mxu0 0.0
    %745 = vmatpush.xpose.msra.mxu0 0.0
    %746 = vmatpush.xpose.msra.mxu0 0.0
    %747 = vmatpush.xpose.msra.mxu0 0.0
    %748 = vmatpush.xpose.msra.mxu0 0.0
    %749 = vmatpush.xpose.msra.mxu0 0.0
    %750 = vmatpush.xpose.msra.mxu0 0.0
    %751 = vmatpush.xpose.msra.mxu0 0.0
    %752 = vmatpush.xpose.msra.mxu0 %v735
    %753 = vmatmul.f32.gmra.mxu0 %v733
    %v754 = vpop.f32.mrf.mxu0
    %v755 = vadd.f32 0.0, %v754
    %756 = vdwg.mxu0
    %757 = vst [vmem:[#allocation1] ss:$4 sm:$0xff] %v485
    %v758 = vld.sshfl [vmem:[#allocation1] sm:$0xff pattern:$0x73625140]
    %759 = vrot.lane.b32.xlu0 %v758, 96
    %v760 = vpop.permute.xlu0 %759
    %v761 = vsel %vm536, %v437, 0
    %v763 = vsel %vm536, %v760, 0
    %765 = vmatpush.xpose.msra.mxu0 0.0
    %766 = vmatpush.xpose.msra.mxu0 0.0
    %767 = vmatpush.xpose.msra.mxu0 0.0
    %768 = vmatpush.xpose.msra.mxu0 0.0
    %769 = vmatpush.xpose.msra.mxu0 0.0
    %770 = vmatpush.xpose.msra.mxu0 0.0
    %771 = vmatpush.xpose.msra.mxu0 0.0
    %772 = vmatpush.xpose.msra.mxu0 0.0
    %773 = vmatpush.xpose.msra.mxu0 0.0
    %774 = vmatpush.xpose.msra.mxu0 0.0
    %775 = vmatpush.xpose.msra.mxu0 0.0
    %776 = vmatpush.xpose.msra.mxu0 0.0
    %777 = vmatpush.xpose.msra.mxu0 0.0
    %778 = vmatpush.xpose.msra.mxu0 0.0
    %779 = vmatpush.xpose.msra.mxu0 0.0
    %780 = vmatpush.xpose.msra.mxu0 %v763
    %781 = vmatmul.f32.gmra.mxu0 %v761
    %v782 = vpop.f32.mrf.mxu0
    %v783 = vadd.f32 0.0, %v782
    %784 = vdwg.mxu0
    %785 = vst [vmem:[#allocation1] ss:$4 sm:$0xff] %v487
    %v786 = vld.sshfl [vmem:[#allocation1] sm:$0xff pattern:$0x73625140]
    %787 = vrot.lane.b32.xlu0 %v786, 96
    %v788 = vpop.permute.xlu0 %787
    %v789 = vsel %vm536, %v439, 0
    %v791 = vsel %vm536, %v788, 0
    %793 = vmatpush.xpose.msra.mxu0 0.0
    %794 = vmatpush.xpose.msra.mxu0 0.0
    %795 = vmatpush.xpose.msra.mxu0 0.0
    %796 = vmatpush.xpose.msra.mxu0 0.0
    %797 = vmatpush.xpose.msra.mxu0 0.0
    %798 = vmatpush.xpose.msra.mxu0 0.0
    %799 = vmatpush.xpose.msra.mxu0 0.0
    %800 = vmatpush.xpose.msra.mxu0 0.0
    %801 = vmatpush.xpose.msra.mxu0 0.0
    %802 = vmatpush.xpose.msra.mxu0 0.0
    %803 = vmatpush.xpose.msra.mxu0 0.0
    %804 = vmatpush.xpose.msra.mxu0 0.0
    %805 = vmatpush.xpose.msra.mxu0 0.0
    %806 = vmatpush.xpose.msra.mxu0 0.0
    %807 = vmatpush.xpose.msra.mxu0 0.0
    %808 = vmatpush.xpose.msra.mxu0 %v791
    %809 = vmatmul.f32.gmra.mxu0 %v789
    %v810 = vpop.f32.mrf.mxu0
    %v811 = vadd.f32 0.0, %v810
    %812 = vdwg.mxu0
    %813 = vst [vmem:[#allocation1] ss:$4 sm:$0xff] %v489
    %v814 = vld.sshfl [vmem:[#allocation1] sm:$0xff pattern:$0x73625140]
    %815 = vrot.lane.b32.xlu0 %v814, 96
    %v816 = vpop.permute.xlu0 %815
    %v817 = vsel %vm536, %v441, 0
    %v819 = vsel %vm536, %v816, 0
    %821 = vmatpush.xpose.msra.mxu0 0.0
    %822 = vmatpush.xpose.msra.mxu0 0.0
    %823 = vmatpush.xpose.msra.mxu0 0.0
    %824 = vmatpush.xpose.msra.mxu0 0.0
    %825 = vmatpush.xpose.msra.mxu0 0.0
    %826 = vmatpush.xpose.msra.mxu0 0.0
    %827 = vmatpush.xpose.msra.mxu0 0.0
    %828 = vmatpush.xpose.msra.mxu0 0.0
    %829 = vmatpush.xpose.msra.mxu0 0.0
    %830 = vmatpush.xpose.msra.mxu0 0.0
    %831 = vmatpush.xpose.msra.mxu0 0.0
    %832 = vmatpush.xpose.msra.mxu0 0.0
    %833 = vmatpush.xpose.msra.mxu0 0.0
    %834 = vmatpush.xpose.msra.mxu0 0.0
    %835 = vmatpush.xpose.msra.mxu0 0.0
    %836 = vmatpush.xpose.msra.mxu0 %v819
    %837 = vmatmul.f32.gmra.mxu0 %v817
    %v838 = vpop.f32.mrf.mxu0
    %v839 = vadd.f32 0.0, %v838
    %840 = vdwg.mxu0
    %841 = vst [vmem:[#allocation1] ss:$4 sm:$0xff] %v491
    %v842 = vld.sshfl [vmem:[#allocation1] sm:$0xff pattern:$0x73625140]
    %843 = vrot.lane.b32.xlu0 %v842, 96
    %v844 = vpop.permute.xlu0 %843
    %v845 = vsel %vm536, %v443, 0
    %v847 = vsel %vm536, %v844, 0
    %849 = vmatpush.xpose.msra.mxu0 0.0
    %850 = vmatpush.xpose.msra.mxu0 0.0
    %851 = vmatpush.xpose.msra.mxu0 0.0
    %852 = vmatpush.xpose.msra.mxu0 0.0
    %853 = vmatpush.xpose.msra.mxu0 0.0
    %854 = vmatpush.xpose.msra.mxu0 0.0
    %855 = vmatpush.xpose.msra.mxu0 0.0
    %856 = vmatpush.xpose.msra.mxu0 0.0
    %857 = vmatpush.xpose.msra.mxu0 0.0
    %858 = vmatpush.xpose.msra.mxu0 0.0
    %859 = vmatpush.xpose.msra.mxu0 0.0
    %860 = vmatpush.xpose.msra.mxu0 0.0
    %861 = vmatpush.xpose.msra.mxu0 0.0
    %862 = vmatpush.xpose.msra.mxu0 0.0
    %863 = vmatpush.xpose.msra.mxu0 0.0
    %864 = vmatpush.xpose.msra.mxu0 %v847
    %865 = vmatmul.f32.gmra.mxu0 %v845
    %v866 = vpop.f32.mrf.mxu0
    %v867 = vadd.f32 0.0, %v866
    %868 = vdwg.mxu0
    %869 = vst [vmem:[#allocation1] ss:$4 sm:$0xff] %v493
    %v870 = vld.sshfl [vmem:[#allocation1] sm:$0xff pattern:$0x73625140]
    %871 = vrot.lane.b32.xlu0 %v870, 96
    %v872 = vpop.permute.xlu0 %871
    %v873 = vsel %vm536, %v445, 0
    %v875 = vsel %vm536, %v872, 0
    %877 = vmatpush.xpose.msra.mxu0 0.0
    %878 = vmatpush.xpose.msra.mxu0 0.0
    %879 = vmatpush.xpose.msra.mxu0 0.0
    %880 = vmatpush.xpose.msra.mxu0 0.0
    %881 = vmatpush.xpose.msra.mxu0 0.0
    %882 = vmatpush.xpose.msra.mxu0 0.0
    %883 = vmatpush.xpose.msra.mxu0 0.0
    %884 = vmatpush.xpose.msra.mxu0 0.0
    %885 = vmatpush.xpose.msra.mxu0 0.0
    %886 = vmatpush.xpose.msra.mxu0 0.0
    %887 = vmatpush.xpose.msra.mxu0 0.0
    %888 = vmatpush.xpose.msra.mxu0 0.0
    %889 = vmatpush.xpose.msra.mxu0 0.0
    %890 = vmatpush.xpose.msra.mxu0 0.0
    %891 = vmatpush.xpose.msra.mxu0 0.0
    %892 = vmatpush.xpose.msra.mxu0 %v875
    %893 = vmatmul.f32.gmra.mxu0 %v873
    %v894 = vpop.f32.mrf.mxu0
    %v895 = vadd.f32 0.0, %v894
    %896 = vdwg.mxu0
    %897 = vst [vmem:[#allocation1] ss:$4 sm:$0xff] %v495
    %v898 = vld.sshfl [vmem:[#allocation1] sm:$0xff pattern:$0x73625140]
    %899 = vrot.lane.b32.xlu0 %v898, 96
    %v900 = vpop.permute.xlu0 %899
    %v901 = vsel %vm536, %v447, 0
    %v903 = vsel %vm536, %v900, 0
    %905 = vmatpush.xpose.msra.mxu0 0.0
    %906 = vmatpush.xpose.msra.mxu0 0.0
    %907 = vmatpush.xpose.msra.mxu0 0.0
    %908 = vmatpush.xpose.msra.mxu0 0.0
    %909 = vmatpush.xpose.msra.mxu0 0.0
    %910 = vmatpush.xpose.msra.mxu0 0.0
    %911 = vmatpush.xpose.msra.mxu0 0.0
    %912 = vmatpush.xpose.msra.mxu0 0.0
    %913 = vmatpush.xpose.msra.mxu0 0.0
    %914 = vmatpush.xpose.msra.mxu0 0.0
    %915 = vmatpush.xpose.msra.mxu0 0.0
    %916 = vmatpush.xpose.msra.mxu0 0.0
    %917 = vmatpush.xpose.msra.mxu0 0.0
    %918 = vmatpush.xpose.msra.mxu0 0.0
    %919 = vmatpush.xpose.msra.mxu0 0.0
    %920 = vmatpush.xpose.msra.mxu0 %v903
    %921 = vmatmul.f32.gmra.mxu0 %v901
    %v922 = vpop.f32.mrf.mxu0
    %v923 = vadd.f32 0.0, %v922
    %924 = vdwg.mxu0
    %925 = vst [vmem:[#allocation1] ss:$4 sm:$0xff] %v497
    %v926 = vld.sshfl [vmem:[#allocation1] sm:$0xff pattern:$0x73625140]
    %927 = vrot.lane.b32.xlu0 %v926, 96
    %v928 = vpop.permute.xlu0 %927
    %v929 = vsel %vm536, %v449, 0
    %v931 = vsel %vm536, %v928, 0
    %933 = vmatpush.xpose.msra.mxu0 0.0
    %934 = vmatpush.xpose.msra.mxu0 0.0
    %935 = vmatpush.xpose.msra.mxu0 0.0
    %936 = vmatpush.xpose.msra.mxu0 0.0
    %937 = vmatpush.xpose.msra.mxu0 0.0
    %938 = vmatpush.xpose.msra.mxu0 0.0
    %939 = vmatpush.xpose.msra.mxu0 0.0
    %940 = vmatpush.xpose.msra.mxu0 0.0
    %941 = vmatpush.xpose.msra.mxu0 0.0
    %942 = vmatpush.xpose.msra.mxu0 0.0
    %943 = vmatpush.xpose.msra.mxu0 0.0
    %944 = vmatpush.xpose.msra.mxu0 0.0
    %945 = vmatpush.xpose.msra.mxu0 0.0
    %946 = vmatpush.xpose.msra.mxu0 0.0
    %947 = vmatpush.xpose.msra.mxu0 0.0
    %948 = vmatpush.xpose.msra.mxu0 %v931
    %949 = vmatmul.f32.gmra.mxu0 %v929
    %v950 = vpop.f32.mrf.mxu0
    %v951 = vadd.f32 0.0, %v950
    %952 = vdwg.mxu0
    %953 = vst [vmem:[#allocation1] ss:$4 sm:$0xff] %v499
    %v954 = vld.sshfl [vmem:[#allocation1] sm:$0xff pattern:$0x73625140]
    %955 = vrot.lane.b32.xlu0 %v954, 96
    %v956 = vpop.permute.xlu0 %955
    %v957 = vsel %vm536, %v451, 0
    %v959 = vsel %vm536, %v956, 0
    %961 = vmatpush.xpose.msra.mxu0 0.0
    %962 = vmatpush.xpose.msra.mxu0 0.0
    %963 = vmatpush.xpose.msra.mxu0 0.0
    %964 = vmatpush.xpose.msra.mxu0 0.0
    %965 = vmatpush.xpose.msra.mxu0 0.0
    %966 = vmatpush.xpose.msra.mxu0 0.0
    %967 = vmatpush.xpose.msra.mxu0 0.0
    %968 = vmatpush.xpose.msra.mxu0 0.0
    %969 = vmatpush.xpose.msra.mxu0 0.0
    %970 = vmatpush.xpose.msra.mxu0 0.0
    %971 = vmatpush.xpose.msra.mxu0 0.0
    %972 = vmatpush.xpose.msra.mxu0 0.0
    %973 = vmatpush.xpose.msra.mxu0 0.0
    %974 = vmatpush.xpose.msra.mxu0 0.0
    %975 = vmatpush.xpose.msra.mxu0 0.0
    %976 = vmatpush.xpose.msra.mxu0 %v959
    %977 = vmatmul.f32.gmra.mxu0 %v957
    %v978 = vpop.f32.mrf.mxu0
    %v979 = vadd.f32 0.0, %v978
    %980 = vdwg.mxu0
    %981 = vst [vmem:[#allocation1] ss:$4 sm:$0xff] %v501
    %v982 = vld.sshfl [vmem:[#allocation1] sm:$0xff pattern:$0x73625140]
    %983 = vrot.lane.b32.xlu0 %v982, 96
    %v984 = vpop.permute.xlu0 %983
    %v985 = vsel %vm536, %v453, 0
    %v987 = vsel %vm536, %v984, 0
    %989 = vmatpush.xpose.msra.mxu0 0.0
    %990 = vmatpush.xpose.msra.mxu0 0.0
    %991 = vmatpush.xpose.msra.mxu0 0.0
    %992 = vmatpush.xpose.msra.mxu0 0.0
    %993 = vmatpush.xpose.msra.mxu0 0.0
    %994 = vmatpush.xpose.msra.mxu0 0.0
    %995 = vmatpush.xpose.msra.mxu0 0.0
    %996 = vmatpush.xpose.msra.mxu0 0.0
    %997 = vmatpush.xpose.msra.mxu0 0.0
    %998 = vmatpush.xpose.msra.mxu0 0.0
    %999 = vmatpush.xpose.msra.mxu0 0.0
    %1000 = vmatpush.xpose.msra.mxu0 0.0
    %1001 = vmatpush.xpose.msra.mxu0 0.0
    %1002 = vmatpush.xpose.msra.mxu0 0.0
    %1003 = vmatpush.xpose.msra.mxu0 0.0
    %1004 = vmatpush.xpose.msra.mxu0 %v987
    %1005 = vmatmul.f32.gmra.mxu0 %v985
    %v1006 = vpop.f32.mrf.mxu0
    %v1007 = vadd.f32 0.0, %v1006
    %1008 = vdwg.mxu0
    %1009 = vst [vmem:[#allocation1] ss:$4 sm:$0xff] %v503
    %v1010 = vld.sshfl [vmem:[#allocation1] sm:$0xff pattern:$0x73625140]
    %1011 = vrot.lane.b32.xlu0 %v1010, 96
    %v1012 = vpop.permute.xlu0 %1011
    %v1013 = vsel %vm536, %v455, 0
    %v1015 = vsel %vm536, %v1012, 0
    %1017 = vmatpush.xpose.msra.mxu0 0.0
    %1018 = vmatpush.xpose.msra.mxu0 0.0
    %1019 = vmatpush.xpose.msra.mxu0 0.0
    %1020 = vmatpush.xpose.msra.mxu0 0.0
    %1021 = vmatpush.xpose.msra.mxu0 0.0
    %1022 = vmatpush.xpose.msra.mxu0 0.0
    %1023 = vmatpush.xpose.msra.mxu0 0.0
    %1024 = vmatpush.xpose.msra.mxu0 0.0
    %1025 = vmatpush.xpose.msra.mxu0 0.0
    %1026 = vmatpush.xpose.msra.mxu0 0.0
    %1027 = vmatpush.xpose.msra.mxu0 0.0
    %1028 = vmatpush.xpose.msra.mxu0 0.0
    %1029 = vmatpush.xpose.msra.mxu0 0.0
    %1030 = vmatpush.xpose.msra.mxu0 0.0
    %1031 = vmatpush.xpose.msra.mxu0 0.0
    %1032 = vmatpush.xpose.msra.mxu0 %v1015
    %1033 = vmatmul.f32.gmra.mxu0 %v1013
    %v1034 = vpop.f32.mrf.mxu0
    %v1035 = vadd.f32 0.0, %v1034
    %1036 = vdwg.mxu0
    %1037 = vst [vmem:[#allocation1] ss:$4 sm:$0xff] %v505
    %v1038 = vld.sshfl [vmem:[#allocation1] sm:$0xff pattern:$0x73625140]
    %1039 = vrot.lane.b32.xlu0 %v1038, 96
    %v1040 = vpop.permute.xlu0 %1039
    %v1041 = vsel %vm536, %v457, 0
    %v1043 = vsel %vm536, %v1040, 0
    %1045 = vmatpush.xpose.msra.mxu0 0.0
    %1046 = vmatpush.xpose.msra.mxu0 0.0
    %1047 = vmatpush.xpose.msra.mxu0 0.0
    %1048 = vmatpush.xpose.msra.mxu0 0.0
    %1049 = vmatpush.xpose.msra.mxu0 0.0
    %1050 = vmatpush.xpose.msra.mxu0 0.0
    %1051 = vmatpush.xpose.msra.mxu0 0.0
    %1052 = vmatpush.xpose.msra.mxu0 0.0
    %1053 = vmatpush.xpose.msra.mxu0 0.0
    %1054 = vmatpush.xpose.msra.mxu0 0.0
    %1055 = vmatpush.xpose.msra.mxu0 0.0
    %1056 = vmatpush.xpose.msra.mxu0 0.0
    %1057 = vmatpush.xpose.msra.mxu0 0.0
    %1058 = vmatpush.xpose.msra.mxu0 0.0
    %1059 = vmatpush.xpose.msra.mxu0 0.0
    %1060 = vmatpush.xpose.msra.mxu0 %v1043
    %1061 = vmatmul.f32.gmra.mxu0 %v1041
    %v1062 = vpop.f32.mrf.mxu0
    %v1063 = vadd.f32 0.0, %v1062
    %1064 = vdwg.mxu0
    %1065 = vst [vmem:[#allocation1] ss:$4 sm:$0xff] %v507
    %v1066 = vld.sshfl [vmem:[#allocation1] sm:$0xff pattern:$0x73625140]
    %1067 = vrot.lane.b32.xlu0 %v1066, 96
    %v1068 = vpop.permute.xlu0 %1067
    %v1069 = vsel %vm536, %v459, 0
    %v1071 = vsel %vm536, %v1068, 0
    %1073 = vmatpush.xpose.msra.mxu0 0.0
    %1074 = vmatpush.xpose.msra.mxu0 0.0
    %1075 = vmatpush.xpose.msra.mxu0 0.0
    %1076 = vmatpush.xpose.msra.mxu0 0.0
    %1077 = vmatpush.xpose.msra.mxu0 0.0
    %1078 = vmatpush.xpose.msra.mxu0 0.0
    %1079 = vmatpush.xpose.msra.mxu0 0.0
    %1080 = vmatpush.xpose.msra.mxu0 0.0
    %1081 = vmatpush.xpose.msra.mxu0 0.0
    %1082 = vmatpush.xpose.msra.mxu0 0.0
    %1083 = vmatpush.xpose.msra.mxu0 0.0
    %1084 = vmatpush.xpose.msra.mxu0 0.0
    %1085 = vmatpush.xpose.msra.mxu0 0.0
    %1086 = vmatpush.xpose.msra.mxu0 0.0
    %1087 = vmatpush.xpose.msra.mxu0 0.0
    %1088 = vmatpush.xpose.msra.mxu0 %v1071
    %1089 = vmatmul.f32.gmra.mxu0 %v1069
    %v1090 = vpop.f32.mrf.mxu0
    %v1091 = vadd.f32 0.0, %v1090
    %1092 = vdwg.mxu0
    %1093 = vst [vmem:[#allocation1] ss:$4 sm:$0xff] %v509
    %v1094 = vld.sshfl [vmem:[#allocation1] sm:$0xff pattern:$0x73625140]
    %1095 = vrot.lane.b32.xlu0 %v1094, 96
    %v1096 = vpop.permute.xlu0 %1095
    %v1097 = vsel %vm536, %v461, 0
    %v1099 = vsel %vm536, %v1096, 0
    %1101 = vmatpush.xpose.msra.mxu0 0.0
    %1102 = vmatpush.xpose.msra.mxu0 0.0
    %1103 = vmatpush.xpose.msra.mxu0 0.0
    %1104 = vmatpush.xpose.msra.mxu0 0.0
    %1105 = vmatpush.xpose.msra.mxu0 0.0
    %1106 = vmatpush.xpose.msra.mxu0 0.0
    %1107 = vmatpush.xpose.msra.mxu0 0.0
    %1108 = vmatpush.xpose.msra.mxu0 0.0
    %1109 = vmatpush.xpose.msra.mxu0 0.0
    %1110 = vmatpush.xpose.msra.mxu0 0.0
    %1111 = vmatpush.xpose.msra.mxu0 0.0
    %1112 = vmatpush.xpose.msra.mxu0 0.0
    %1113 = vmatpush.xpose.msra.mxu0 0.0
    %1114 = vmatpush.xpose.msra.mxu0 0.0
    %1115 = vmatpush.xpose.msra.mxu0 0.0
    %1116 = vmatpush.xpose.msra.mxu0 %v1099
    %1117 = vmatmul.f32.gmra.mxu0 %v1097
    %v1118 = vpop.f32.mrf.mxu0
    %v1119 = vadd.f32 0.0, %v1118
    %1120 = vdwg.mxu0
    %1121 = vst [vmem:[#allocation1] ss:$4 sm:$0xff] %v511
    %v1122 = vld.sshfl [vmem:[#allocation1] sm:$0xff pattern:$0x73625140]
    %1123 = vrot.lane.b32.xlu0 %v1122, 96
    %v1124 = vpop.permute.xlu0 %1123
    %v1125 = vsel %vm536, %v463, 0
    %v1127 = vsel %vm536, %v1124, 0
    %1129 = vmatpush.xpose.msra.mxu0 0.0
    %1130 = vmatpush.xpose.msra.mxu0 0.0
    %1131 = vmatpush.xpose.msra.mxu0 0.0
    %1132 = vmatpush.xpose.msra.mxu0 0.0
    %1133 = vmatpush.xpose.msra.mxu0 0.0
    %1134 = vmatpush.xpose.msra.mxu0 0.0
    %1135 = vmatpush.xpose.msra.mxu0 0.0
    %1136 = vmatpush.xpose.msra.mxu0 0.0
    %1137 = vmatpush.xpose.msra.mxu0 0.0
    %1138 = vmatpush.xpose.msra.mxu0 0.0
    %1139 = vmatpush.xpose.msra.mxu0 0.0
    %1140 = vmatpush.xpose.msra.mxu0 0.0
    %1141 = vmatpush.xpose.msra.mxu0 0.0
    %1142 = vmatpush.xpose.msra.mxu0 0.0
    %1143 = vmatpush.xpose.msra.mxu0 0.0
    %1144 = vmatpush.xpose.msra.mxu0 %v1127
    %1145 = vmatmul.f32.gmra.mxu0 %v1125
    %v1146 = vpop.f32.mrf.mxu0
    %v1147 = vadd.f32 0.0, %v1146
    %1148 = vdwg.mxu0
    %1149 = vst [vmem:[#allocation1] ss:$4 sm:$0xff] %v513
    %v1150 = vld.sshfl [vmem:[#allocation1] sm:$0xff pattern:$0x73625140]
    %1151 = vrot.lane.b32.xlu0 %v1150, 96
    %v1152 = vpop.permute.xlu0 %1151
    %v1153 = vsel %vm536, %v465, 0
    %v1155 = vsel %vm536, %v1152, 0
    %1157 = vmatpush.xpose.msra.mxu0 0.0
    %1158 = vmatpush.xpose.msra.mxu0 0.0
    %1159 = vmatpush.xpose.msra.mxu0 0.0
    %1160 = vmatpush.xpose.msra.mxu0 0.0
    %1161 = vmatpush.xpose.msra.mxu0 0.0
    %1162 = vmatpush.xpose.msra.mxu0 0.0
    %1163 = vmatpush.xpose.msra.mxu0 0.0
    %1164 = vmatpush.xpose.msra.mxu0 0.0
    %1165 = vmatpush.xpose.msra.mxu0 0.0
    %1166 = vmatpush.xpose.msra.mxu0 0.0
    %1167 = vmatpush.xpose.msra.mxu0 0.0
    %1168 = vmatpush.xpose.msra.mxu0 0.0
    %1169 = vmatpush.xpose.msra.mxu0 0.0
    %1170 = vmatpush.xpose.msra.mxu0 0.0
    %1171 = vmatpush.xpose.msra.mxu0 0.0
    %1172 = vmatpush.xpose.msra.mxu0 %v1155
    %1173 = vmatmul.f32.gmra.mxu0 %v1153
    %v1174 = vpop.f32.mrf.mxu0
    %v1175 = vadd.f32 0.0, %v1174
    %1176 = vdwg.mxu0
    %1177 = vst [vmem:[#allocation1] ss:$4 sm:$0xff] %v515
    %v1178 = vld.sshfl [vmem:[#allocation1] sm:$0xff pattern:$0x73625140]
    %1179 = vrot.lane.b32.xlu0 %v1178, 96
    %v1180 = vpop.permute.xlu0 %1179
    %v1181 = vsel %vm536, %v467, 0
    %v1183 = vsel %vm536, %v1180, 0
    %1185 = vmatpush.xpose.msra.mxu0 0.0
    %1186 = vmatpush.xpose.msra.mxu0 0.0
    %1187 = vmatpush.xpose.msra.mxu0 0.0
    %1188 = vmatpush.xpose.msra.mxu0 0.0
    %1189 = vmatpush.xpose.msra.mxu0 0.0
    %1190 = vmatpush.xpose.msra.mxu0 0.0
    %1191 = vmatpush.xpose.msra.mxu0 0.0
    %1192 = vmatpush.xpose.msra.mxu0 0.0
    %1193 = vmatpush.xpose.msra.mxu0 0.0
    %1194 = vmatpush.xpose.msra.mxu0 0.0
    %1195 = vmatpush.xpose.msra.mxu0 0.0
    %1196 = vmatpush.xpose.msra.mxu0 0.0
    %1197 = vmatpush.xpose.msra.mxu0 0.0
    %1198 = vmatpush.xpose.msra.mxu0 0.0
    %1199 = vmatpush.xpose.msra.mxu0 0.0
    %1200 = vmatpush.xpose.msra.mxu0 %v1183
    %1201 = vmatmul.f32.gmra.mxu0 %v1181
    %v1202 = vpop.f32.mrf.mxu0
    %v1203 = vadd.f32 0.0, %v1202
    %1204 = vdwg.mxu0
    %1205 = vst [vmem:[#allocation1] ss:$4 sm:$0xff] %v517
    %v1206 = vld.sshfl [vmem:[#allocation1] sm:$0xff pattern:$0x73625140]
    %1207 = vrot.lane.b32.xlu0 %v1206, 96
    %v1208 = vpop.permute.xlu0 %1207
    %v1209 = vsel %vm536, %v469, 0
    %v1211 = vsel %vm536, %v1208, 0
    %1213 = vmatpush.xpose.msra.mxu0 0.0
    %1214 = vmatpush.xpose.msra.mxu0 0.0
    %1215 = vmatpush.xpose.msra.mxu0 0.0
    %1216 = vmatpush.xpose.msra.mxu0 0.0
    %1217 = vmatpush.xpose.msra.mxu0 0.0
    %1218 = vmatpush.xpose.msra.mxu0 0.0
    %1219 = vmatpush.xpose.msra.mxu0 0.0
    %1220 = vmatpush.xpose.msra.mxu0 0.0
    %1221 = vmatpush.xpose.msra.mxu0 0.0
    %1222 = vmatpush.xpose.msra.mxu0 0.0
    %1223 = vmatpush.xpose.msra.mxu0 0.0
    %1224 = vmatpush.xpose.msra.mxu0 0.0
    %1225 = vmatpush.xpose.msra.mxu0 0.0
    %1226 = vmatpush.xpose.msra.mxu0 0.0
    %1227 = vmatpush.xpose.msra.mxu0 0.0
    %1228 = vmatpush.xpose.msra.mxu0 %v1211
    %1229 = vmatmul.f32.gmra.mxu0 %v1209
    %v1230 = vpop.f32.mrf.mxu0
    %v1231 = vadd.f32 0.0, %v1230
    %1232 = vdwg.mxu0
    %1233 = vst [vmem:[#allocation1] ss:$4 sm:$0xff] %v519
    %v1234 = vld.sshfl [vmem:[#allocation1] sm:$0xff pattern:$0x73625140]
    %1235 = vrot.lane.b32.xlu0 %v1234, 96
    %v1236 = vpop.permute.xlu0 %1235
    %v1237 = vsel %vm536, %v471, 0
    %v1239 = vsel %vm536, %v1236, 0
    %1241 = vmatpush.xpose.msra.mxu0 0.0
    %1242 = vmatpush.xpose.msra.mxu0 0.0
    %1243 = vmatpush.xpose.msra.mxu0 0.0
    %1244 = vmatpush.xpose.msra.mxu0 0.0
    %1245 = vmatpush.xpose.msra.mxu0 0.0
    %1246 = vmatpush.xpose.msra.mxu0 0.0
    %1247 = vmatpush.xpose.msra.mxu0 0.0
    %1248 = vmatpush.xpose.msra.mxu0 0.0
    %1249 = vmatpush.xpose.msra.mxu0 0.0
    %1250 = vmatpush.xpose.msra.mxu0 0.0
    %1251 = vmatpush.xpose.msra.mxu0 0.0
    %1252 = vmatpush.xpose.msra.mxu0 0.0
    %1253 = vmatpush.xpose.msra.mxu0 0.0
    %1254 = vmatpush.xpose.msra.mxu0 0.0
    %1255 = vmatpush.xpose.msra.mxu0 0.0
    %1256 = vmatpush.xpose.msra.mxu0 %v1239
    %1257 = vmatmul.f32.gmra.mxu0 %v1237
    %v1258 = vpop.f32.mrf.mxu0
    %v1259 = vadd.f32 0.0, %v1258
    %1260 = vdwg.mxu0
    %1261 = vst [vmem:[#allocation1] ss:$4 sm:$0xff] %v521
    %v1262 = vld.sshfl [vmem:[#allocation1] sm:$0xff pattern:$0x73625140]
    %1263 = vrot.lane.b32.xlu0 %v1262, 96
    %v1264 = vpop.permute.xlu0 %1263
    %v1265 = vsel %vm536, %v473, 0
    %v1267 = vsel %vm536, %v1264, 0
    %1269 = vmatpush.xpose.msra.mxu0 0.0
    %1270 = vmatpush.xpose.msra.mxu0 0.0
    %1271 = vmatpush.xpose.msra.mxu0 0.0
    %1272 = vmatpush.xpose.msra.mxu0 0.0
    %1273 = vmatpush.xpose.msra.mxu0 0.0
    %1274 = vmatpush.xpose.msra.mxu0 0.0
    %1275 = vmatpush.xpose.msra.mxu0 0.0
    %1276 = vmatpush.xpose.msra.mxu0 0.0
    %1277 = vmatpush.xpose.msra.mxu0 0.0
    %1278 = vmatpush.xpose.msra.mxu0 0.0
    %1279 = vmatpush.xpose.msra.mxu0 0.0
    %1280 = vmatpush.xpose.msra.mxu0 0.0
    %1281 = vmatpush.xpose.msra.mxu0 0.0
    %1282 = vmatpush.xpose.msra.mxu0 0.0
    %1283 = vmatpush.xpose.msra.mxu0 0.0
    %1284 = vmatpush.xpose.msra.mxu0 %v1267
    %1285 = vmatmul.f32.gmra.mxu0 %v1265
    %v1286 = vpop.f32.mrf.mxu0
    %v1287 = vadd.f32 0.0, %v1286
    %1288 = vdwg.mxu0
    %1289 = vst [vmem:[#allocation1] ss:$4 sm:$0xff] %v523
    %v1290 = vld.sshfl [vmem:[#allocation1] sm:$0xff pattern:$0x73625140]
    %1291 = vrot.lane.b32.xlu0 %v1290, 96
    %v1292 = vpop.permute.xlu0 %1291
    %v1293 = vsel %vm536, %v475, 0
    %v1295 = vsel %vm536, %v1292, 0
    %1297 = vmatpush.xpose.msra.mxu0 0.0
    %1298 = vmatpush.xpose.msra.mxu0 0.0
    %1299 = vmatpush.xpose.msra.mxu0 0.0
    %1300 = vmatpush.xpose.msra.mxu0 0.0
    %1301 = vmatpush.xpose.msra.mxu0 0.0
    %1302 = vmatpush.xpose.msra.mxu0 0.0
    %1303 = vmatpush.xpose.msra.mxu0 0.0
    %1304 = vmatpush.xpose.msra.mxu0 0.0
    %1305 = vmatpush.xpose.msra.mxu0 0.0
    %1306 = vmatpush.xpose.msra.mxu0 0.0
    %1307 = vmatpush.xpose.msra.mxu0 0.0
    %1308 = vmatpush.xpose.msra.mxu0 0.0
    %1309 = vmatpush.xpose.msra.mxu0 0.0
    %1310 = vmatpush.xpose.msra.mxu0 0.0
    %1311 = vmatpush.xpose.msra.mxu0 0.0
    %1312 = vmatpush.xpose.msra.mxu0 %v1295
    %1313 = vmatmul.f32.gmra.mxu0 %v1293
    %v1314 = vpop.f32.mrf.mxu0
    %v1315 = vadd.f32 0.0, %v1314
    %1316 = vdwg.mxu0
    %1317 = vst [vmem:[#allocation1] ss:$4 sm:$0xff] %v525
    %v1318 = vld.sshfl [vmem:[#allocation1] sm:$0xff pattern:$0x73625140]
    %1319 = vrot.lane.b32.xlu0 %v1318, 96
    %v1320 = vpop.permute.xlu0 %1319
    %v1321 = vsel %vm536, %v477, 0
    %v1323 = vsel %vm536, %v1320, 0
    %1325 = vmatpush.xpose.msra.mxu0 0.0
    %1326 = vmatpush.xpose.msra.mxu0 0.0
    %1327 = vmatpush.xpose.msra.mxu0 0.0
    %1328 = vmatpush.xpose.msra.mxu0 0.0
    %1329 = vmatpush.xpose.msra.mxu0 0.0
    %1330 = vmatpush.xpose.msra.mxu0 0.0
    %1331 = vmatpush.xpose.msra.mxu0 0.0
    %1332 = vmatpush.xpose.msra.mxu0 0.0
    %1333 = vmatpush.xpose.msra.mxu0 0.0
    %1334 = vmatpush.xpose.msra.mxu0 0.0
    %1335 = vmatpush.xpose.msra.mxu0 0.0
    %1336 = vmatpush.xpose.msra.mxu0 0.0
    %1337 = vmatpush.xpose.msra.mxu0 0.0
    %1338 = vmatpush.xpose.msra.mxu0 0.0
    %1339 = vmatpush.xpose.msra.mxu0 0.0
    %1340 = vmatpush.xpose.msra.mxu0 %v1323
    %1341 = vmatmul.f32.gmra.mxu0 %v1321
    %v1342 = vpop.f32.mrf.mxu0
    %v1343 = vadd.f32 0.0, %v1342
    %1344 = vdwg.mxu0
    %1345 = vst [vmem:[#allocation1] ss:$4 sm:$0xff] %v527
    %v1346 = vld.sshfl [vmem:[#allocation1] sm:$0xff pattern:$0x73625140]
    %1347 = vrot.lane.b32.xlu0 %v1346, 96
    %v1348 = vpop.permute.xlu0 %1347
    %v1349 = vsel %vm536, %v479, 0
    %v1351 = vsel %vm536, %v1348, 0
    %1353 = vmatpush.xpose.msra.mxu0 0.0
    %1354 = vmatpush.xpose.msra.mxu0 0.0
    %1355 = vmatpush.xpose.msra.mxu0 0.0
    %1356 = vmatpush.xpose.msra.mxu0 0.0
    %1357 = vmatpush.xpose.msra.mxu0 0.0
    %1358 = vmatpush.xpose.msra.mxu0 0.0
    %1359 = vmatpush.xpose.msra.mxu0 0.0
    %1360 = vmatpush.xpose.msra.mxu0 0.0
    %1361 = vmatpush.xpose.msra.mxu0 0.0
    %1362 = vmatpush.xpose.msra.mxu0 0.0
    %1363 = vmatpush.xpose.msra.mxu0 0.0
    %1364 = vmatpush.xpose.msra.mxu0 0.0
    %1365 = vmatpush.xpose.msra.mxu0 0.0
    %1366 = vmatpush.xpose.msra.mxu0 0.0
    %1367 = vmatpush.xpose.msra.mxu0 0.0
    %1368 = vmatpush.xpose.msra.mxu0 %v1351
    %1369 = vmatmul.f32.gmra.mxu0 %v1349
    %v1370 = vpop.f32.mrf.mxu0
    %v1371 = vadd.f32 0.0, %v1370
    %1372 = vdwg.mxu0
    %1373 = vst [vmem:[#allocation1] ss:$4 sm:$0xff] %v529
    %v1374 = vld.sshfl [vmem:[#allocation1] sm:$0xff pattern:$0x73625140]
    %1375 = vrot.lane.b32.xlu0 %v1374, 96
    %v1376 = vpop.permute.xlu0 %1375
    %v1377 = vsel %vm536, %v481, 0
    %v1379 = vsel %vm536, %v1376, 0
    %1381 = vmatpush.xpose.msra.mxu0 0.0
    %1382 = vmatpush.xpose.msra.mxu0 0.0
    %1383 = vmatpush.xpose.msra.mxu0 0.0
    %1384 = vmatpush.xpose.msra.mxu0 0.0
    %1385 = vmatpush.xpose.msra.mxu0 0.0
    %1386 = vmatpush.xpose.msra.mxu0 0.0
    %1387 = vmatpush.xpose.msra.mxu0 0.0
    %1388 = vmatpush.xpose.msra.mxu0 0.0
    %1389 = vmatpush.xpose.msra.mxu0 0.0
    %1390 = vmatpush.xpose.msra.mxu0 0.0
    %1391 = vmatpush.xpose.msra.mxu0 0.0
    %1392 = vmatpush.xpose.msra.mxu0 0.0
    %1393 = vmatpush.xpose.msra.mxu0 0.0
    %1394 = vmatpush.xpose.msra.mxu0 0.0
    %1395 = vmatpush.xpose.msra.mxu0 0.0
    %1396 = vmatpush.xpose.msra.mxu0 %v1379
    %1397 = vmatmul.f32.gmra.mxu0 %v1377
    %v1398 = vpop.f32.mrf.mxu0
    %v1399 = vadd.f32 0.0, %v1398
    %1400 = vdwg.mxu0
    %1401 = vst [vmem:[#allocation1] ss:$4 sm:$0xff] %v531
    %v1402 = vld.sshfl [vmem:[#allocation1] sm:$0xff pattern:$0x73625140]
    %1403 = vrot.lane.b32.xlu0 %v1402, 96
    %v1404 = vpop.permute.xlu0 %1403
    %v1405 = vsel %vm536, %v483, 0
    %v1407 = vsel %vm536, %v1404, 0
    %1409 = vmatpush.xpose.msra.mxu0 0.0
    %1410 = vmatpush.xpose.msra.mxu0 0.0
    %1411 = vmatpush.xpose.msra.mxu0 0.0
    %1412 = vmatpush.xpose.msra.mxu0 0.0
    %1413 = vmatpush.xpose.msra.mxu0 0.0
    %1414 = vmatpush.xpose.msra.mxu0 0.0
    %1415 = vmatpush.xpose.msra.mxu0 0.0
    %1416 = vmatpush.xpose.msra.mxu0 0.0
    %1417 = vmatpush.xpose.msra.mxu0 0.0
    %1418 = vmatpush.xpose.msra.mxu0 0.0
    %1419 = vmatpush.xpose.msra.mxu0 0.0
    %1420 = vmatpush.xpose.msra.mxu0 0.0
    %1421 = vmatpush.xpose.msra.mxu0 0.0
    %1422 = vmatpush.xpose.msra.mxu0 0.0
    %1423 = vmatpush.xpose.msra.mxu0 0.0
    %1424 = vmatpush.xpose.msra.mxu0 %v1407
    %1425 = vmatmul.f32.gmra.mxu0 %v1405
    %v1426 = vpop.f32.mrf.mxu0
    %v1427 = vadd.f32 0.0, %v1426
    %1428 = vdwg.mxu0
    %vm1429 = vcmask 9216
    %v1430 = vsel %vm1429, %v559, -inf
    %1431 = vmax.xlane.f32.xlu0 %v1430
    %v1432 = vpop.xlane.xlu0 %1431
    %v1433 = vsel %vm1429, %v587, -inf
    %1434 = vmax.xlane.f32.xlu0 %v1433
    %v1435 = vpop.xlane.xlu0 %1434
    %v1436 = vsel %vm1429, %v615, -inf
    %1437 = vmax.xlane.f32.xlu0 %v1436
    %v1438 = vpop.xlane.xlu0 %1437
    %v1439 = vsel %vm1429, %v643, -inf
    %1440 = vmax.xlane.f32.xlu0 %v1439
    %v1441 = vpop.xlane.xlu0 %1440
    %v1442 = vsel %vm1429, %v671, -inf
    %1443 = vmax.xlane.f32.xlu0 %v1442
    %v1444 = vpop.xlane.xlu0 %1443
    %v1445 = vsel %vm1429, %v699, -inf
    %1446 = vmax.xlane.f32.xlu0 %v1445
    %v1447 = vpop.xlane.xlu0 %1446
    %v1448 = vsel %vm1429, %v727, -inf
    %1449 = vmax.xlane.f32.xlu0 %v1448
    %v1450 = vpop.xlane.xlu0 %1449
    %v1451 = vsel %vm1429, %v755, -inf
    %1452 = vmax.xlane.f32.xlu0 %v1451
    %v1453 = vpop.xlane.xlu0 %1452
    %v1454 = vsel %vm1429, %v783, -inf
    %1455 = vmax.xlane.f32.xlu0 %v1454
    %v1456 = vpop.xlane.xlu0 %1455
    %v1457 = vsel %vm1429, %v811, -inf
    %1458 = vmax.xlane.f32.xlu0 %v1457
    %v1459 = vpop.xlane.xlu0 %1458
    %v1460 = vsel %vm1429, %v839, -inf
    %1461 = vmax.xlane.f32.xlu0 %v1460
    %v1462 = vpop.xlane.xlu0 %1461
    %v1463 = vsel %vm1429, %v867, -inf
    %1464 = vmax.xlane.f32.xlu0 %v1463
    %v1465 = vpop.xlane.xlu0 %1464
    %v1466 = vsel %vm1429, %v895, -inf
    %1467 = vmax.xlane.f32.xlu0 %v1466
    %v1468 = vpop.xlane.xlu0 %1467
    %v1469 = vsel %vm1429, %v923, -inf
    %1470 = vmax.xlane.f32.xlu0 %v1469
    %v1471 = vpop.xlane.xlu0 %1470
    %v1472 = vsel %vm1429, %v951, -inf
    %1473 = vmax.xlane.f32.xlu0 %v1472
    %v1474 = vpop.xlane.xlu0 %1473
    %v1475 = vsel %vm1429, %v979, -inf
    %1476 = vmax.xlane.f32.xlu0 %v1475
    %v1477 = vpop.xlane.xlu0 %1476
    %v1478 = vsel %vm1429, %v1007, -inf
    %1479 = vmax.xlane.f32.xlu0 %v1478
    %v1480 = vpop.xlane.xlu0 %1479
    %v1481 = vsel %vm1429, %v1035, -inf
    %1482 = vmax.xlane.f32.xlu0 %v1481
    %v1483 = vpop.xlane.xlu0 %1482
    %v1484 = vsel %vm1429, %v1063, -inf
    %1485 = vmax.xlane.f32.xlu0 %v1484
    %v1486 = vpop.xlane.xlu0 %1485
    %v1487 = vsel %vm1429, %v1091, -inf
    %1488 = vmax.xlane.f32.xlu0 %v1487
    %v1489 = vpop.xlane.xlu0 %1488
    %v1490 = vsel %vm1429, %v1119, -inf
    %1491 = vmax.xlane.f32.xlu0 %v1490
    %v1492 = vpop.xlane.xlu0 %1491
    %v1493 = vsel %vm1429, %v1147, -inf
    %1494 = vmax.xlane.f32.xlu0 %v1493
    %v1495 = vpop.xlane.xlu0 %1494
    %v1496 = vsel %vm1429, %v1175, -inf
    %1497 = vmax.xlane.f32.xlu0 %v1496
    %v1498 = vpop.xlane.xlu0 %1497
    %v1499 = vsel %vm1429, %v1203, -inf
    %1500 = vmax.xlane.f32.xlu0 %v1499
    %v1501 = vpop.xlane.xlu0 %1500
    %v1502 = vsel %vm1429, %v1231, -inf
    %1503 = vmax.xlane.f32.xlu0 %v1502
    %v1504 = vpop.xlane.xlu0 %1503
    %v1505 = vsel %vm1429, %v1259, -inf
    %1506 = vmax.xlane.f32.xlu0 %v1505
    %v1507 = vpop.xlane.xlu0 %1506
    %v1508 = vsel %vm1429, %v1287, -inf
    %1509 = vmax.xlane.f32.xlu0 %v1508
    %v1510 = vpop.xlane.xlu0 %1509
    %v1511 = vsel %vm1429, %v1315, -inf
    %1512 = vmax.xlane.f32.xlu0 %v1511
    %v1513 = vpop.xlane.xlu0 %1512
    %v1514 = vsel %vm1429, %v1343, -inf
    %1515 = vmax.xlane.f32.xlu0 %v1514
    %v1516 = vpop.xlane.xlu0 %1515
    %v1517 = vsel %vm1429, %v1371, -inf
    %1518 = vmax.xlane.f32.xlu0 %v1517
    %v1519 = vpop.xlane.xlu0 %1518
    %v1520 = vsel %vm1429, %v1399, -inf
    %1521 = vmax.xlane.f32.xlu0 %v1520
    %v1522 = vpop.xlane.xlu0 %1521
    %v1523 = vsel %vm1429, %v1427, -inf
    %1524 = vmax.xlane.f32.xlu0 %v1523
    %v1525 = vpop.xlane.xlu0 %1524
    %v1526 = vsub.f32 %v559, %v1432
    %v1527 = vsub.f32 %v587, %v1435
    %v1528 = vsub.f32 %v615, %v1438
    %v1529 = vsub.f32 %v643, %v1441
    %v1530 = vsub.f32 %v671, %v1444
    %v1531 = vsub.f32 %v699, %v1447
    %v1532 = vsub.f32 %v727, %v1450
    %v1533 = vsub.f32 %v755, %v1453
    %v1534 = vsub.f32 %v783, %v1456
    %v1535 = vsub.f32 %v811, %v1459
    %v1536 = vsub.f32 %v839, %v1462
    %v1537 = vsub.f32 %v867, %v1465
    %v1538 = vsub.f32 %v895, %v1468
    %v1539 = vsub.f32 %v923, %v1471
    %v1540 = vsub.f32 %v951, %v1474
    %v1541 = vsub.f32 %v979, %v1477
    %v1542 = vsub.f32 %v1007, %v1480
    %v1543 = vsub.f32 %v1035, %v1483
    %v1544 = vsub.f32 %v1063, %v1486
    %v1545 = vsub.f32 %v1091, %v1489
    %v1546 = vsub.f32 %v1119, %v1492
    %v1547 = vsub.f32 %v1147, %v1495
    %v1548 = vsub.f32 %v1175, %v1498
    %v1549 = vsub.f32 %v1203, %v1501
    %v1550 = vsub.f32 %v1231, %v1504
    %v1551 = vsub.f32 %v1259, %v1507
    %v1552 = vsub.f32 %v1287, %v1510
    %v1553 = vsub.f32 %v1315, %v1513
    %v1554 = vsub.f32 %v1343, %v1516
    %v1555 = vsub.f32 %v1371, %v1519
    %v1556 = vsub.f32 %v1399, %v1522
    %v1557 = vsub.f32 %v1427, %v1525
    %v1558 = vmul.f32 %v1526, 1.442695
    %v1559 = vpow.pop %v1558
    %v1560 = vmul.f32 %v1527, 1.442695
    %v1561 = vpow.pop %v1560
    %v1562 = vmul.f32 %v1528, 1.442695
    %v1563 = vpow.pop %v1562
    %v1564 = vmul.f32 %v1529, 1.442695
    %v1565 = vpow.pop %v1564
    %v1566 = vmul.f32 %v1530, 1.442695
    %v1567 = vpow.pop %v1566
    %v1568 = vmul.f32 %v1531, 1.442695
    %v1569 = vpow.pop %v1568
    %v1570 = vmul.f32 %v1532, 1.442695
    %v1571 = vpow.pop %v1570
    %v1572 = vmul.f32 %v1533, 1.442695
    %v1573 = vpow.pop %v1572
    %v1574 = vmul.f32 %v1534, 1.442695
    %v1575 = vpow.pop %v1574
    %v1576 = vmul.f32 %v1535, 1.442695
    %v1577 = vpow.pop %v1576
    %v1578 = vmul.f32 %v1536, 1.442695
    %v1579 = vpow.pop %v1578
    %v1580 = vmul.f32 %v1537, 1.442695
    %v1581 = vpow.pop %v1580
    %v1582 = vmul.f32 %v1538, 1.442695
    %v1583 = vpow.pop %v1582
    %v1584 = vmul.f32 %v1539, 1.442695
    %v1585 = vpow.pop %v1584
    %v1586 = vmul.f32 %v1540, 1.442695
    %v1587 = vpow.pop %v1586
    %v1588 = vmul.f32 %v1541, 1.442695
    %v1589 = vpow.pop %v1588
    %v1590 = vmul.f32 %v1542, 1.442695
    %v1591 = vpow.pop %v1590
    %v1592 = vmul.f32 %v1543, 1.442695
    %v1593 = vpow.pop %v1592
    %v1594 = vmul.f32 %v1544, 1.442695
    %v1595 = vpow.pop %v1594
    %v1596 = vmul.f32 %v1545, 1.442695
    %v1597 = vpow.pop %v1596
    %v1598 = vmul.f32 %v1546, 1.442695
    %v1599 = vpow.pop %v1598
    %v1600 = vmul.f32 %v1547, 1.442695
    %v1601 = vpow.pop %v1600
    %v1602 = vmul.f32 %v1548, 1.442695
    %v1603 = vpow.pop %v1602
    %v1604 = vmul.f32 %v1549, 1.442695
    %v1605 = vpow.pop %v1604
    %v1606 = vmul.f32 %v1550, 1.442695
    %v1607 = vpow.pop %v1606
    %v1608 = vmul.f32 %v1551, 1.442695
    %v1609 = vpow.pop %v1608
    %v1610 = vmul.f32 %v1552, 1.442695
    %v1611 = vpow.pop %v1610
    %v1612 = vmul.f32 %v1553, 1.442695
    %v1613 = vpow.pop %v1612
    %v1614 = vmul.f32 %v1554, 1.442695
    %v1615 = vpow.pop %v1614
    %v1616 = vmul.f32 %v1555, 1.442695
    %v1617 = vpow.pop %v1616
    %v1618 = vmul.f32 %v1556, 1.442695
    %v1619 = vpow.pop %v1618
    %v1620 = vmul.f32 %v1557, 1.442695
    %v1621 = vpow.pop %v1620
    %v1622 = vsel %vm1429, %v1559, 0.0
    %1623 = vadd.xlane.f32.xlu0 %v1622
    %v1624 = vpop.xlane.xlu0 %1623
    %v1625 = vsel %vm1429, %v1561, 0.0
    %1626 = vadd.xlane.f32.xlu0 %v1625
    %v1627 = vpop.xlane.xlu0 %1626
    %v1628 = vsel %vm1429, %v1563, 0.0
    %1629 = vadd.xlane.f32.xlu0 %v1628
    %v1630 = vpop.xlane.xlu0 %1629
    %v1631 = vsel %vm1429, %v1565, 0.0
    %1632 = vadd.xlane.f32.xlu0 %v1631
    %v1633 = vpop.xlane.xlu0 %1632
    %v1634 = vsel %vm1429, %v1567, 0.0
    %1635 = vadd.xlane.f32.xlu0 %v1634
    %v1636 = vpop.xlane.xlu0 %1635
    %v1637 = vsel %vm1429, %v1569, 0.0
    %1638 = vadd.xlane.f32.xlu0 %v1637
    %v1639 = vpop.xlane.xlu0 %1638
    %v1640 = vsel %vm1429, %v1571, 0.0
    %1641 = vadd.xlane.f32.xlu0 %v1640
    %v1642 = vpop.xlane.xlu0 %1641
    %v1643 = vsel %vm1429, %v1573, 0.0
    %1644 = vadd.xlane.f32.xlu0 %v1643
    %v1645 = vpop.xlane.xlu0 %1644
    %v1646 = vsel %vm1429, %v1575, 0.0
    %1647 = vadd.xlane.f32.xlu0 %v1646
    %v1648 = vpop.xlane.xlu0 %1647
    %v1649 = vsel %vm1429, %v1577, 0.0
    %1650 = vadd.xlane.f32.xlu0 %v1649
    %v1651 = vpop.xlane.xlu0 %1650
    %v1652 = vsel %vm1429, %v1579, 0.0
    %1653 = vadd.xlane.f32.xlu0 %v1652
    %v1654 = vpop.xlane.xlu0 %1653
    %v1655 = vsel %vm1429, %v1581, 0.0
    %1656 = vadd.xlane.f32.xlu0 %v1655
    %v1657 = vpop.xlane.xlu0 %1656
    %v1658 = vsel %vm1429, %v1583, 0.0
    %1659 = vadd.xlane.f32.xlu0 %v1658
    %v1660 = vpop.xlane.xlu0 %1659
    %v1661 = vsel %vm1429, %v1585, 0.0
    %1662 = vadd.xlane.f32.xlu0 %v1661
    %v1663 = vpop.xlane.xlu0 %1662
    %v1664 = vsel %vm1429, %v1587, 0.0
    %1665 = vadd.xlane.f32.xlu0 %v1664
    %v1666 = vpop.xlane.xlu0 %1665
    %v1667 = vsel %vm1429, %v1589, 0.0
    %1668 = vadd.xlane.f32.xlu0 %v1667
    %v1669 = vpop.xlane.xlu0 %1668
    %v1670 = vsel %vm1429, %v1591, 0.0
    %1671 = vadd.xlane.f32.xlu0 %v1670
    %v1672 = vpop.xlane.xlu0 %1671
    %v1673 = vsel %vm1429, %v1593, 0.0
    %1674 = vadd.xlane.f32.xlu0 %v1673
    %v1675 = vpop.xlane.xlu0 %1674
    %v1676 = vsel %vm1429, %v1595, 0.0
    %1677 = vadd.xlane.f32.xlu0 %v1676
    %v1678 = vpop.xlane.xlu0 %1677
    %v1679 = vsel %vm1429, %v1597, 0.0
    %1680 = vadd.xlane.f32.xlu0 %v1679
    %v1681 = vpop.xlane.xlu0 %1680
    %v1682 = vsel %vm1429, %v1599, 0.0
    %1683 = vadd.xlane.f32.xlu0 %v1682
    %v1684 = vpop.xlane.xlu0 %1683
    %v1685 = vsel %vm1429, %v1601, 0.0
    %1686 = vadd.xlane.f32.xlu0 %v1685
    %v1687 = vpop.xlane.xlu0 %1686
    %v1688 = vsel %vm1429, %v1603, 0.0
    %1689 = vadd.xlane.f32.xlu0 %v1688
    %v1690 = vpop.xlane.xlu0 %1689
    %v1691 = vsel %vm1429, %v1605, 0.0
    %1692 = vadd.xlane.f32.xlu0 %v1691
    %v1693 = vpop.xlane.xlu0 %1692
    %v1694 = vsel %vm1429, %v1607, 0.0
    %1695 = vadd.xlane.f32.xlu0 %v1694
    %v1696 = vpop.xlane.xlu0 %1695
    %v1697 = vsel %vm1429, %v1609, 0.0
    %1698 = vadd.xlane.f32.xlu0 %v1697
    %v1699 = vpop.xlane.xlu0 %1698
    %v1700 = vsel %vm1429, %v1611, 0.0
    %1701 = vadd.xlane.f32.xlu0 %v1700
    %v1702 = vpop.xlane.xlu0 %1701
    %v1703 = vsel %vm1429, %v1613, 0.0
    %1704 = vadd.xlane.f32.xlu0 %v1703
    %v1705 = vpop.xlane.xlu0 %1704
    %v1706 = vsel %vm1429, %v1615, 0.0
    %1707 = vadd.xlane.f32.xlu0 %v1706
    %v1708 = vpop.xlane.xlu0 %1707
    %v1709 = vsel %vm1429, %v1617, 0.0
    %1710 = vadd.xlane.f32.xlu0 %v1709
    %v1711 = vpop.xlane.xlu0 %1710
    %v1712 = vsel %vm1429, %v1619, 0.0
    %1713 = vadd.xlane.f32.xlu0 %v1712
    %v1714 = vpop.xlane.xlu0 %1713
    %v1715 = vsel %vm1429, %v1621, 0.0
    %1716 = vadd.xlane.f32.xlu0 %v1715
    %v1717 = vpop.xlane.xlu0 %1716
    %v1718 = vrcp.pop %v1624
    %v1719 = vrcp.pop %v1627
    %v1720 = vrcp.pop %v1630
    %v1721 = vrcp.pop %v1633
    %v1722 = vrcp.pop %v1636
    %v1723 = vrcp.pop %v1639
    %v1724 = vrcp.pop %v1642
    %v1725 = vrcp.pop %v1645
    %v1726 = vrcp.pop %v1648
    %v1727 = vrcp.pop %v1651
    %v1728 = vrcp.pop %v1654
    %v1729 = vrcp.pop %v1657
    %v1730 = vrcp.pop %v1660
    %v1731 = vrcp.pop %v1663
    %v1732 = vrcp.pop %v1666
    %v1733 = vrcp.pop %v1669
    %v1734 = vrcp.pop %v1672
    %v1735 = vrcp.pop %v1675
    %v1736 = vrcp.pop %v1678
    %v1737 = vrcp.pop %v1681
    %v1738 = vrcp.pop %v1684
    %v1739 = vrcp.pop %v1687
    %v1740 = vrcp.pop %v1690
    %v1741 = vrcp.pop %v1693
    %v1742 = vrcp.pop %v1696
    %v1743 = vrcp.pop %v1699
    %v1744 = vrcp.pop %v1702
    %v1745 = vrcp.pop %v1705
    %v1746 = vrcp.pop %v1708
    %v1747 = vrcp.pop %v1711
    %v1748 = vrcp.pop %v1714
    %v1749 = vrcp.pop %v1717
    %v1750 = vmul.f32 %v1559, %v1718
    %v1751 = vmul.f32 %v1561, %v1719
    %v1752 = vmul.f32 %v1563, %v1720
    %v1753 = vmul.f32 %v1565, %v1721
    %v1754 = vmul.f32 %v1567, %v1722
    %v1755 = vmul.f32 %v1569, %v1723
    %v1756 = vmul.f32 %v1571, %v1724
    %v1757 = vmul.f32 %v1573, %v1725
    %v1758 = vmul.f32 %v1575, %v1726
    %v1759 = vmul.f32 %v1577, %v1727
    %v1760 = vmul.f32 %v1579, %v1728
    %v1761 = vmul.f32 %v1581, %v1729
    %v1762 = vmul.f32 %v1583, %v1730
    %v1763 = vmul.f32 %v1585, %v1731
    %v1764 = vmul.f32 %v1587, %v1732
    %v1765 = vmul.f32 %v1589, %v1733
    %v1766 = vmul.f32 %v1591, %v1734
    %v1767 = vmul.f32 %v1593, %v1735
    %v1768 = vmul.f32 %v1595, %v1736
    %v1769 = vmul.f32 %v1597, %v1737
    %v1770 = vmul.f32 %v1599, %v1738
    %v1771 = vmul.f32 %v1601, %v1739
    %v1772 = vmul.f32 %v1603, %v1740
    %v1773 = vmul.f32 %v1605, %v1741
    %v1774 = vmul.f32 %v1607, %v1742
    %v1775 = vmul.f32 %v1609, %v1743
    %v1776 = vmul.f32 %v1611, %v1744
    %v1777 = vmul.f32 %v1613, %v1745
    %v1778 = vmul.f32 %v1615, %v1746
    %v1779 = vmul.f32 %v1617, %v1747
    %v1780 = vmul.f32 %v1619, %v1748
    %v1781 = vmul.f32 %v1621, %v1749
    %1782 = vst [vmem:[#allocation1] ss:$4 sm:$0xff] %v414
    %v1783 = vld.sshfl [vmem:[#allocation1] sm:$0xff pattern:$0x73625140]
    %1784 = vrot.lane.b32.xlu0 %v1783, 64
    %v1785 = vpop.permute.xlu0 %1784
    %vm1786 = vcmask 15360
    %v1788 = vsel %vm1786, %v1750, 0
    %vm1790 = vcmask 1041408
    %v1791 = vsel %vm1790, %v1785, 0
    %1793 = vmatpush.msra.mxu0 0.0
    %1794 = vmatpush.msra.mxu0 0.0
    %1795 = vmatpush.msra.mxu0 0.0
    %1796 = vmatpush.msra.mxu0 0.0
    %1797 = vmatpush.msra.mxu0 0.0
    %1798 = vmatpush.msra.mxu0 0.0
    %1799 = vmatpush.msra.mxu0 0.0
    %1800 = vmatpush.msra.mxu0 0.0
    %1801 = vmatpush.msra.mxu0 0.0
    %1802 = vmatpush.msra.mxu0 0.0
    %1803 = vmatpush.msra.mxu0 0.0
    %1804 = vmatpush.msra.mxu0 0.0
    %1805 = vmatpush.msra.mxu0 0.0
    %1806 = vmatpush.msra.mxu0 0.0
    %1807 = vmatpush.msra.mxu0 0.0
    %1808 = vmatpush.msra.mxu0 %v1791
    %1809 = vmatmul.f32.gmra.mxu0 %v1788
    %v1810 = vpop.f32.mrf.mxu0
    %v1811 = vadd.f32 0.0, %v1810
    %1812 = vdwg.mxu0
    %1813 = vst [vmem:[#allocation1] ss:$4 sm:$0xff] %v430
    %v1814 = vld.sshfl [vmem:[#allocation1] sm:$0xff pattern:$0x73625140]
    %1815 = vrot.lane.b32.xlu0 %v1814, 64
    %v1816 = vpop.permute.xlu0 %1815
    %v1818 = vsel %vm1786, %v1751, 0
    %v1820 = vsel %vm1790, %v1816, 0
    %1822 = vmatpush.msra.mxu0 0.0
    %1823 = vmatpush.msra.mxu0 0.0
    %1824 = vmatpush.msra.mxu0 0.0
    %1825 = vmatpush.msra.mxu0 0.0
    %1826 = vmatpush.msra.mxu0 0.0
    %1827 = vmatpush.msra.mxu0 0.0
    %1828 = vmatpush.msra.mxu0 0.0
    %1829 = vmatpush.msra.mxu0 0.0
    %1830 = vmatpush.msra.mxu0 0.0
    %1831 = vmatpush.msra.mxu0 0.0
    %1832 = vmatpush.msra.mxu0 0.0
    %1833 = vmatpush.msra.mxu0 0.0
    %1834 = vmatpush.msra.mxu0 0.0
    %1835 = vmatpush.msra.mxu0 0.0
    %1836 = vmatpush.msra.mxu0 0.0
    %1837 = vmatpush.msra.mxu0 %v1820
    %1838 = vmatmul.f32.gmra.mxu0 %v1818
    %v1839 = vpop.f32.mrf.mxu0
    %v1840 = vadd.f32 0.0, %v1839
    %1841 = vdwg.mxu0
    %1842 = vst [vmem:[#allocation1] ss:$4 sm:$0xff] %v431
    %v1843 = vld.sshfl [vmem:[#allocation1] sm:$0xff pattern:$0x73625140]
    %1844 = vrot.lane.b32.xlu0 %v1843, 64
    %v1845 = vpop.permute.xlu0 %1844
    %v1847 = vsel %vm1786, %v1752, 0
    %v1849 = vsel %vm1790, %v1845, 0
    %1851 = vmatpush.msra.mxu0 0.0
    %1852 = vmatpush.msra.mxu0 0.0
    %1853 = vmatpush.msra.mxu0 0.0
    %1854 = vmatpush.msra.mxu0 0.0
    %1855 = vmatpush.msra.mxu0 0.0
    %1856 = vmatpush.msra.mxu0 0.0
    %1857 = vmatpush.msra.mxu0 0.0
    %1858 = vmatpush.msra.mxu0 0.0
    %1859 = vmatpush.msra.mxu0 0.0
    %1860 = vmatpush.msra.mxu0 0.0
    %1861 = vmatpush.msra.mxu0 0.0
    %1862 = vmatpush.msra.mxu0 0.0
    %1863 = vmatpush.msra.mxu0 0.0
    %1864 = vmatpush.msra.mxu0 0.0
    %1865 = vmatpush.msra.mxu0 0.0
    %1866 = vmatpush.msra.mxu0 %v1849
    %1867 = vmatmul.f32.gmra.mxu0 %v1847
    %v1868 = vpop.f32.mrf.mxu0
    %v1869 = vadd.f32 0.0, %v1868
    %1870 = vdwg.mxu0
    %1871 = vst [vmem:[#allocation1] ss:$4 sm:$0xff] %v432
    %v1872 = vld.sshfl [vmem:[#allocation1] sm:$0xff pattern:$0x73625140]
    %1873 = vrot.lane.b32.xlu0 %v1872, 64
    %v1874 = vpop.permute.xlu0 %1873
    %v1876 = vsel %vm1786, %v1753, 0
    %v1878 = vsel %vm1790, %v1874, 0
    %1880 = vmatpush.msra.mxu0 0.0
    %1881 = vmatpush.msra.mxu0 0.0
    %1882 = vmatpush.msra.mxu0 0.0
    %1883 = vmatpush.msra.mxu0 0.0
    %1884 = vmatpush.msra.mxu0 0.0
    %1885 = vmatpush.msra.mxu0 0.0
    %1886 = vmatpush.msra.mxu0 0.0
    %1887 = vmatpush.msra.mxu0 0.0
    %1888 = vmatpush.msra.mxu0 0.0
    %1889 = vmatpush.msra.mxu0 0.0
    %1890 = vmatpush.msra.mxu0 0.0
    %1891 = vmatpush.msra.mxu0 0.0
    %1892 = vmatpush.msra.mxu0 0.0
    %1893 = vmatpush.msra.mxu0 0.0
    %1894 = vmatpush.msra.mxu0 0.0
    %1895 = vmatpush.msra.mxu0 %v1878
    %1896 = vmatmul.f32.gmra.mxu0 %v1876
    %v1897 = vpop.f32.mrf.mxu0
    %v1898 = vadd.f32 0.0, %v1897
    %1899 = vdwg.mxu0
    %1900 = vst [vmem:[#allocation1] ss:$4 sm:$0xff] %v416
    %v1901 = vld.sshfl [vmem:[#allocation1] sm:$0xff pattern:$0x73625140]
    %1902 = vrot.lane.b32.xlu0 %v1901, 64
    %v1903 = vpop.permute.xlu0 %1902
    %v1905 = vsel %vm1786, %v1754, 0
    %v1907 = vsel %vm1790, %v1903, 0
    %1909 = vmatpush.msra.mxu0 0.0
    %1910 = vmatpush.msra.mxu0 0.0
    %1911 = vmatpush.msra.mxu0 0.0
    %1912 = vmatpush.msra.mxu0 0.0
    %1913 = vmatpush.msra.mxu0 0.0
    %1914 = vmatpush.msra.mxu0 0.0
    %1915 = vmatpush.msra.mxu0 0.0
    %1916 = vmatpush.msra.mxu0 0.0
    %1917 = vmatpush.msra.mxu0 0.0
    %1918 = vmatpush.msra.mxu0 0.0
    %1919 = vmatpush.msra.mxu0 0.0
    %1920 = vmatpush.msra.mxu0 0.0
    %1921 = vmatpush.msra.mxu0 0.0
    %1922 = vmatpush.msra.mxu0 0.0
    %1923 = vmatpush.msra.mxu0 0.0
    %1924 = vmatpush.msra.mxu0 %v1907
    %1925 = vmatmul.f32.gmra.mxu0 %v1905
    %v1926 = vpop.f32.mrf.mxu0
    %v1927 = vadd.f32 0.0, %v1926
    %1928 = vdwg.mxu0
    %1929 = vst [vmem:[#allocation1] ss:$4 sm:$0xff] %v433
    %v1930 = vld.sshfl [vmem:[#allocation1] sm:$0xff pattern:$0x73625140]
    %1931 = vrot.lane.b32.xlu0 %v1930, 64
    %v1932 = vpop.permute.xlu0 %1931
    %v1934 = vsel %vm1786, %v1755, 0
    %v1936 = vsel %vm1790, %v1932, 0
    %1938 = vmatpush.msra.mxu0 0.0
    %1939 = vmatpush.msra.mxu0 0.0
    %1940 = vmatpush.msra.mxu0 0.0
    %1941 = vmatpush.msra.mxu0 0.0
    %1942 = vmatpush.msra.mxu0 0.0
    %1943 = vmatpush.msra.mxu0 0.0
    %1944 = vmatpush.msra.mxu0 0.0
    %1945 = vmatpush.msra.mxu0 0.0
    %1946 = vmatpush.msra.mxu0 0.0
    %1947 = vmatpush.msra.mxu0 0.0
    %1948 = vmatpush.msra.mxu0 0.0
    %1949 = vmatpush.msra.mxu0 0.0
    %1950 = vmatpush.msra.mxu0 0.0
    %1951 = vmatpush.msra.mxu0 0.0
    %1952 = vmatpush.msra.mxu0 0.0
    %1953 = vmatpush.msra.mxu0 %v1936
    %1954 = vmatmul.f32.gmra.mxu0 %v1934
    %v1955 = vpop.f32.mrf.mxu0
    %v1956 = vadd.f32 0.0, %v1955
    %1957 = vdwg.mxu0
    %1958 = vst [vmem:[#allocation1] ss:$4 sm:$0xff] %v434
    %v1959 = vld.sshfl [vmem:[#allocation1] sm:$0xff pattern:$0x73625140]
    %1960 = vrot.lane.b32.xlu0 %v1959, 64
    %v1961 = vpop.permute.xlu0 %1960
    %v1963 = vsel %vm1786, %v1756, 0
    %v1965 = vsel %vm1790, %v1961, 0
    %1967 = vmatpush.msra.mxu0 0.0
    %1968 = vmatpush.msra.mxu0 0.0
    %1969 = vmatpush.msra.mxu0 0.0
    %1970 = vmatpush.msra.mxu0 0.0
    %1971 = vmatpush.msra.mxu0 0.0
    %1972 = vmatpush.msra.mxu0 0.0
    %1973 = vmatpush.msra.mxu0 0.0
    %1974 = vmatpush.msra.mxu0 0.0
    %1975 = vmatpush.msra.mxu0 0.0
    %1976 = vmatpush.msra.mxu0 0.0
    %1977 = vmatpush.msra.mxu0 0.0
    %1978 = vmatpush.msra.mxu0 0.0
    %1979 = vmatpush.msra.mxu0 0.0
    %1980 = vmatpush.msra.mxu0 0.0
    %1981 = vmatpush.msra.mxu0 0.0
    %1982 = vmatpush.msra.mxu0 %v1965
    %1983 = vmatmul.f32.gmra.mxu0 %v1963
    %v1984 = vpop.f32.mrf.mxu0
    %v1985 = vadd.f32 0.0, %v1984
    %1986 = vdwg.mxu0
    %1987 = vst [vmem:[#allocation1] ss:$4 sm:$0xff] %v435
    %v1988 = vld.sshfl [vmem:[#allocation1] sm:$0xff pattern:$0x73625140]
    %1989 = vrot.lane.b32.xlu0 %v1988, 64
    %v1990 = vpop.permute.xlu0 %1989
    %v1992 = vsel %vm1786, %v1757, 0
    %v1994 = vsel %vm1790, %v1990, 0
    %1996 = vmatpush.msra.mxu0 0.0
    %1997 = vmatpush.msra.mxu0 0.0
    %1998 = vmatpush.msra.mxu0 0.0
    %1999 = vmatpush.msra.mxu0 0.0
    %2000 = vmatpush.msra.mxu0 0.0
    %2001 = vmatpush.msra.mxu0 0.0
    %2002 = vmatpush.msra.mxu0 0.0
    %2003 = vmatpush.msra.mxu0 0.0
    %2004 = vmatpush.msra.mxu0 0.0
    %2005 = vmatpush.msra.mxu0 0.0
    %2006 = vmatpush.msra.mxu0 0.0
    %2007 = vmatpush.msra.mxu0 0.0
    %2008 = vmatpush.msra.mxu0 0.0
    %2009 = vmatpush.msra.mxu0 0.0
    %2010 = vmatpush.msra.mxu0 0.0
    %2011 = vmatpush.msra.mxu0 %v1994
    %2012 = vmatmul.f32.gmra.mxu0 %v1992
    %v2013 = vpop.f32.mrf.mxu0
    %v2014 = vadd.f32 0.0, %v2013
    %2015 = vdwg.mxu0
    %2016 = vst [vmem:[#allocation1] ss:$4 sm:$0xff] %v485
    %v2017 = vld.sshfl [vmem:[#allocation1] sm:$0xff pattern:$0x73625140]
    %2018 = vrot.lane.b32.xlu0 %v2017, 64
    %v2019 = vpop.permute.xlu0 %2018
    %v2021 = vsel %vm1786, %v1758, 0
    %v2023 = vsel %vm1790, %v2019, 0
    %2025 = vmatpush.msra.mxu0 0.0
    %2026 = vmatpush.msra.mxu0 0.0
    %2027 = vmatpush.msra.mxu0 0.0
    %2028 = vmatpush.msra.mxu0 0.0
    %2029 = vmatpush.msra.mxu0 0.0
    %2030 = vmatpush.msra.mxu0 0.0
    %2031 = vmatpush.msra.mxu0 0.0
    %2032 = vmatpush.msra.mxu0 0.0
    %2033 = vmatpush.msra.mxu0 0.0
    %2034 = vmatpush.msra.mxu0 0.0
    %2035 = vmatpush.msra.mxu0 0.0
    %2036 = vmatpush.msra.mxu0 0.0
    %2037 = vmatpush.msra.mxu0 0.0
    %2038 = vmatpush.msra.mxu0 0.0
    %2039 = vmatpush.msra.mxu0 0.0
    %2040 = vmatpush.msra.mxu0 %v2023
    %2041 = vmatmul.f32.gmra.mxu0 %v2021
    %v2042 = vpop.f32.mrf.mxu0
    %v2043 = vadd.f32 0.0, %v2042
    %2044 = vdwg.mxu0
    %2045 = vst [vmem:[#allocation1] ss:$4 sm:$0xff] %v487
    %v2046 = vld.sshfl [vmem:[#allocation1] sm:$0xff pattern:$0x73625140]
    %2047 = vrot.lane.b32.xlu0 %v2046, 64
    %v2048 = vpop.permute.xlu0 %2047
    %v2050 = vsel %vm1786, %v1759, 0
    %v2052 = vsel %vm1790, %v2048, 0
    %2054 = vmatpush.msra.mxu0 0.0
    %2055 = vmatpush.msra.mxu0 0.0
    %2056 = vmatpush.msra.mxu0 0.0
    %2057 = vmatpush.msra.mxu0 0.0
    %2058 = vmatpush.msra.mxu0 0.0
    %2059 = vmatpush.msra.mxu0 0.0
    %2060 = vmatpush.msra.mxu0 0.0
    %2061 = vmatpush.msra.mxu0 0.0
    %2062 = vmatpush.msra.mxu0 0.0
    %2063 = vmatpush.msra.mxu0 0.0
    %2064 = vmatpush.msra.mxu0 0.0
    %2065 = vmatpush.msra.mxu0 0.0
    %2066 = vmatpush.msra.mxu0 0.0
    %2067 = vmatpush.msra.mxu0 0.0
    %2068 = vmatpush.msra.mxu0 0.0
    %2069 = vmatpush.msra.mxu0 %v2052
    %2070 = vmatmul.f32.gmra.mxu0 %v2050
    %v2071 = vpop.f32.mrf.mxu0
    %v2072 = vadd.f32 0.0, %v2071
    %2073 = vdwg.mxu0
    %2074 = vst [vmem:[#allocation1] ss:$4 sm:$0xff] %v489
    %v2075 = vld.sshfl [vmem:[#allocation1] sm:$0xff pattern:$0x73625140]
    %2076 = vrot.lane.b32.xlu0 %v2075, 64
    %v2077 = vpop.permute.xlu0 %2076
    %v2079 = vsel %vm1786, %v1760, 0
    %v2081 = vsel %vm1790, %v2077, 0
    %2083 = vmatpush.msra.mxu0 0.0
    %2084 = vmatpush.msra.mxu0 0.0
    %2085 = vmatpush.msra.mxu0 0.0
    %2086 = vmatpush.msra.mxu0 0.0
    %2087 = vmatpush.msra.mxu0 0.0
    %2088 = vmatpush.msra.mxu0 0.0
    %2089 = vmatpush.msra.mxu0 0.0
    %2090 = vmatpush.msra.mxu0 0.0
    %2091 = vmatpush.msra.mxu0 0.0
    %2092 = vmatpush.msra.mxu0 0.0
    %2093 = vmatpush.msra.mxu0 0.0
    %2094 = vmatpush.msra.mxu0 0.0
    %2095 = vmatpush.msra.mxu0 0.0
    %2096 = vmatpush.msra.mxu0 0.0
    %2097 = vmatpush.msra.mxu0 0.0
    %2098 = vmatpush.msra.mxu0 %v2081
    %2099 = vmatmul.f32.gmra.mxu0 %v2079
    %v2100 = vpop.f32.mrf.mxu0
    %v2101 = vadd.f32 0.0, %v2100
    %2102 = vdwg.mxu0
    %2103 = vst [vmem:[#allocation1] ss:$4 sm:$0xff] %v491
    %v2104 = vld.sshfl [vmem:[#allocation1] sm:$0xff pattern:$0x73625140]
    %2105 = vrot.lane.b32.xlu0 %v2104, 64
    %v2106 = vpop.permute.xlu0 %2105
    %v2108 = vsel %vm1786, %v1761, 0
    %v2110 = vsel %vm1790, %v2106, 0
    %2112 = vmatpush.msra.mxu0 0.0
    %2113 = vmatpush.msra.mxu0 0.0
    %2114 = vmatpush.msra.mxu0 0.0
    %2115 = vmatpush.msra.mxu0 0.0
    %2116 = vmatpush.msra.mxu0 0.0
    %2117 = vmatpush.msra.mxu0 0.0
    %2118 = vmatpush.msra.mxu0 0.0
    %2119 = vmatpush.msra.mxu0 0.0
    %2120 = vmatpush.msra.mxu0 0.0
    %2121 = vmatpush.msra.mxu0 0.0
    %2122 = vmatpush.msra.mxu0 0.0
    %2123 = vmatpush.msra.mxu0 0.0
    %2124 = vmatpush.msra.mxu0 0.0
    %2125 = vmatpush.msra.mxu0 0.0
    %2126 = vmatpush.msra.mxu0 0.0
    %2127 = vmatpush.msra.mxu0 %v2110
    %2128 = vmatmul.f32.gmra.mxu0 %v2108
    %v2129 = vpop.f32.mrf.mxu0
    %v2130 = vadd.f32 0.0, %v2129
    %2131 = vdwg.mxu0
    %2132 = vst [vmem:[#allocation1] ss:$4 sm:$0xff] %v493
    %v2133 = vld.sshfl [vmem:[#allocation1] sm:$0xff pattern:$0x73625140]
    %2134 = vrot.lane.b32.xlu0 %v2133, 64
    %v2135 = vpop.permute.xlu0 %2134
    %v2137 = vsel %vm1786, %v1762, 0
    %v2139 = vsel %vm1790, %v2135, 0
    %2141 = vmatpush.msra.mxu0 0.0
    %2142 = vmatpush.msra.mxu0 0.0
    %2143 = vmatpush.msra.mxu0 0.0
    %2144 = vmatpush.msra.mxu0 0.0
    %2145 = vmatpush.msra.mxu0 0.0
    %2146 = vmatpush.msra.mxu0 0.0
    %2147 = vmatpush.msra.mxu0 0.0
    %2148 = vmatpush.msra.mxu0 0.0
    %2149 = vmatpush.msra.mxu0 0.0
    %2150 = vmatpush.msra.mxu0 0.0
    %2151 = vmatpush.msra.mxu0 0.0
    %2152 = vmatpush.msra.mxu0 0.0
    %2153 = vmatpush.msra.mxu0 0.0
    %2154 = vmatpush.msra.mxu0 0.0
    %2155 = vmatpush.msra.mxu0 0.0
    %2156 = vmatpush.msra.mxu0 %v2139
    %2157 = vmatmul.f32.gmra.mxu0 %v2137
    %v2158 = vpop.f32.mrf.mxu0
    %v2159 = vadd.f32 0.0, %v2158
    %2160 = vdwg.mxu0
    %2161 = vst [vmem:[#allocation1] ss:$4 sm:$0xff] %v495
    %v2162 = vld.sshfl [vmem:[#allocation1] sm:$0xff pattern:$0x73625140]
    %2163 = vrot.lane.b32.xlu0 %v2162, 64
    %v2164 = vpop.permute.xlu0 %2163
    %v2166 = vsel %vm1786, %v1763, 0
    %v2168 = vsel %vm1790, %v2164, 0
    %2170 = vmatpush.msra.mxu0 0.0
    %2171 = vmatpush.msra.mxu0 0.0
    %2172 = vmatpush.msra.mxu0 0.0
    %2173 = vmatpush.msra.mxu0 0.0
    %2174 = vmatpush.msra.mxu0 0.0
    %2175 = vmatpush.msra.mxu0 0.0
    %2176 = vmatpush.msra.mxu0 0.0
    %2177 = vmatpush.msra.mxu0 0.0
    %2178 = vmatpush.msra.mxu0 0.0
    %2179 = vmatpush.msra.mxu0 0.0
    %2180 = vmatpush.msra.mxu0 0.0
    %2181 = vmatpush.msra.mxu0 0.0
    %2182 = vmatpush.msra.mxu0 0.0
    %2183 = vmatpush.msra.mxu0 0.0
    %2184 = vmatpush.msra.mxu0 0.0
    %2185 = vmatpush.msra.mxu0 %v2168
    %2186 = vmatmul.f32.gmra.mxu0 %v2166
    %v2187 = vpop.f32.mrf.mxu0
    %v2188 = vadd.f32 0.0, %v2187
    %2189 = vdwg.mxu0
    %2190 = vst [vmem:[#allocation1] ss:$4 sm:$0xff] %v497
    %v2191 = vld.sshfl [vmem:[#allocation1] sm:$0xff pattern:$0x73625140]
    %2192 = vrot.lane.b32.xlu0 %v2191, 64
    %v2193 = vpop.permute.xlu0 %2192
    %v2195 = vsel %vm1786, %v1764, 0
    %v2197 = vsel %vm1790, %v2193, 0
    %2199 = vmatpush.msra.mxu0 0.0
    %2200 = vmatpush.msra.mxu0 0.0
    %2201 = vmatpush.msra.mxu0 0.0
    %2202 = vmatpush.msra.mxu0 0.0
    %2203 = vmatpush.msra.mxu0 0.0
    %2204 = vmatpush.msra.mxu0 0.0
    %2205 = vmatpush.msra.mxu0 0.0
    %2206 = vmatpush.msra.mxu0 0.0
    %2207 = vmatpush.msra.mxu0 0.0
    %2208 = vmatpush.msra.mxu0 0.0
    %2209 = vmatpush.msra.mxu0 0.0
    %2210 = vmatpush.msra.mxu0 0.0
    %2211 = vmatpush.msra.mxu0 0.0
    %2212 = vmatpush.msra.mxu0 0.0
    %2213 = vmatpush.msra.mxu0 0.0
    %2214 = vmatpush.msra.mxu0 %v2197
    %2215 = vmatmul.f32.gmra.mxu0 %v2195
    %v2216 = vpop.f32.mrf.mxu0
    %v2217 = vadd.f32 0.0, %v2216
    %2218 = vdwg.mxu0
    %2219 = vst [vmem:[#allocation1] ss:$4 sm:$0xff] %v499
    %v2220 = vld.sshfl [vmem:[#allocation1] sm:$0xff pattern:$0x73625140]
    %2221 = vrot.lane.b32.xlu0 %v2220, 64
    %v2222 = vpop.permute.xlu0 %2221
    %v2224 = vsel %vm1786, %v1765, 0
    %v2226 = vsel %vm1790, %v2222, 0
    %2228 = vmatpush.msra.mxu0 0.0
    %2229 = vmatpush.msra.mxu0 0.0
    %2230 = vmatpush.msra.mxu0 0.0
    %2231 = vmatpush.msra.mxu0 0.0
    %2232 = vmatpush.msra.mxu0 0.0
    %2233 = vmatpush.msra.mxu0 0.0
    %2234 = vmatpush.msra.mxu0 0.0
    %2235 = vmatpush.msra.mxu0 0.0
    %2236 = vmatpush.msra.mxu0 0.0
    %2237 = vmatpush.msra.mxu0 0.0
    %2238 = vmatpush.msra.mxu0 0.0
    %2239 = vmatpush.msra.mxu0 0.0
    %2240 = vmatpush.msra.mxu0 0.0
    %2241 = vmatpush.msra.mxu0 0.0
    %2242 = vmatpush.msra.mxu0 0.0
    %2243 = vmatpush.msra.mxu0 %v2226
    %2244 = vmatmul.f32.gmra.mxu0 %v2224
    %v2245 = vpop.f32.mrf.mxu0
    %v2246 = vadd.f32 0.0, %v2245
    %2247 = vdwg.mxu0
    %2248 = vst [vmem:[#allocation1] ss:$4 sm:$0xff] %v501
    %v2249 = vld.sshfl [vmem:[#allocation1] sm:$0xff pattern:$0x73625140]
    %2250 = vrot.lane.b32.xlu0 %v2249, 64
    %v2251 = vpop.permute.xlu0 %2250
    %v2253 = vsel %vm1786, %v1766, 0
    %v2255 = vsel %vm1790, %v2251, 0
    %2257 = vmatpush.msra.mxu0 0.0
    %2258 = vmatpush.msra.mxu0 0.0
    %2259 = vmatpush.msra.mxu0 0.0
    %2260 = vmatpush.msra.mxu0 0.0
    %2261 = vmatpush.msra.mxu0 0.0
    %2262 = vmatpush.msra.mxu0 0.0
    %2263 = vmatpush.msra.mxu0 0.0
    %2264 = vmatpush.msra.mxu0 0.0
    %2265 = vmatpush.msra.mxu0 0.0
    %2266 = vmatpush.msra.mxu0 0.0
    %2267 = vmatpush.msra.mxu0 0.0
    %2268 = vmatpush.msra.mxu0 0.0
    %2269 = vmatpush.msra.mxu0 0.0
    %2270 = vmatpush.msra.mxu0 0.0
    %2271 = vmatpush.msra.mxu0 0.0
    %2272 = vmatpush.msra.mxu0 %v2255
    %2273 = vmatmul.f32.gmra.mxu0 %v2253
    %v2274 = vpop.f32.mrf.mxu0
    %v2275 = vadd.f32 0.0, %v2274
    %2276 = vdwg.mxu0
    %2277 = vst [vmem:[#allocation1] ss:$4 sm:$0xff] %v503
    %v2278 = vld.sshfl [vmem:[#allocation1] sm:$0xff pattern:$0x73625140]
    %2279 = vrot.lane.b32.xlu0 %v2278, 64
    %v2280 = vpop.permute.xlu0 %2279
    %v2282 = vsel %vm1786, %v1767, 0
    %v2284 = vsel %vm1790, %v2280, 0
    %2286 = vmatpush.msra.mxu0 0.0
    %2287 = vmatpush.msra.mxu0 0.0
    %2288 = vmatpush.msra.mxu0 0.0
    %2289 = vmatpush.msra.mxu0 0.0
    %2290 = vmatpush.msra.mxu0 0.0
    %2291 = vmatpush.msra.mxu0 0.0
    %2292 = vmatpush.msra.mxu0 0.0
    %2293 = vmatpush.msra.mxu0 0.0
    %2294 = vmatpush.msra.mxu0 0.0
    %2295 = vmatpush.msra.mxu0 0.0
    %2296 = vmatpush.msra.mxu0 0.0
    %2297 = vmatpush.msra.mxu0 0.0
    %2298 = vmatpush.msra.mxu0 0.0
    %2299 = vmatpush.msra.mxu0 0.0
    %2300 = vmatpush.msra.mxu0 0.0
    %2301 = vmatpush.msra.mxu0 %v2284
    %2302 = vmatmul.f32.gmra.mxu0 %v2282
    %v2303 = vpop.f32.mrf.mxu0
    %v2304 = vadd.f32 0.0, %v2303
    %2305 = vdwg.mxu0
    %2306 = vst [vmem:[#allocation1] ss:$4 sm:$0xff] %v505
    %v2307 = vld.sshfl [vmem:[#allocation1] sm:$0xff pattern:$0x73625140]
    %2308 = vrot.lane.b32.xlu0 %v2307, 64
    %v2309 = vpop.permute.xlu0 %2308
    %v2311 = vsel %vm1786, %v1768, 0
    %v2313 = vsel %vm1790, %v2309, 0
    %2315 = vmatpush.msra.mxu0 0.0
    %2316 = vmatpush.msra.mxu0 0.0
    %2317 = vmatpush.msra.mxu0 0.0
    %2318 = vmatpush.msra.mxu0 0.0
    %2319 = vmatpush.msra.mxu0 0.0
    %2320 = vmatpush.msra.mxu0 0.0
    %2321 = vmatpush.msra.mxu0 0.0
    %2322 = vmatpush.msra.mxu0 0.0
    %2323 = vmatpush.msra.mxu0 0.0
    %2324 = vmatpush.msra.mxu0 0.0
    %2325 = vmatpush.msra.mxu0 0.0
    %2326 = vmatpush.msra.mxu0 0.0
    %2327 = vmatpush.msra.mxu0 0.0
    %2328 = vmatpush.msra.mxu0 0.0
    %2329 = vmatpush.msra.mxu0 0.0
    %2330 = vmatpush.msra.mxu0 %v2313
    %2331 = vmatmul.f32.gmra.mxu0 %v2311
    %v2332 = vpop.f32.mrf.mxu0
    %v2333 = vadd.f32 0.0, %v2332
    %2334 = vdwg.mxu0
    %2335 = vst [vmem:[#allocation1] ss:$4 sm:$0xff] %v507
    %v2336 = vld.sshfl [vmem:[#allocation1] sm:$0xff pattern:$0x73625140]
    %2337 = vrot.lane.b32.xlu0 %v2336, 64
    %v2338 = vpop.permute.xlu0 %2337
    %v2340 = vsel %vm1786, %v1769, 0
    %v2342 = vsel %vm1790, %v2338, 0
    %2344 = vmatpush.msra.mxu0 0.0
    %2345 = vmatpush.msra.mxu0 0.0
    %2346 = vmatpush.msra.mxu0 0.0
    %2347 = vmatpush.msra.mxu0 0.0
    %2348 = vmatpush.msra.mxu0 0.0
    %2349 = vmatpush.msra.mxu0 0.0
    %2350 = vmatpush.msra.mxu0 0.0
    %2351 = vmatpush.msra.mxu0 0.0
    %2352 = vmatpush.msra.mxu0 0.0
    %2353 = vmatpush.msra.mxu0 0.0
    %2354 = vmatpush.msra.mxu0 0.0
    %2355 = vmatpush.msra.mxu0 0.0
    %2356 = vmatpush.msra.mxu0 0.0
    %2357 = vmatpush.msra.mxu0 0.0
    %2358 = vmatpush.msra.mxu0 0.0
    %2359 = vmatpush.msra.mxu0 %v2342
    %2360 = vmatmul.f32.gmra.mxu0 %v2340
    %v2361 = vpop.f32.mrf.mxu0
    %v2362 = vadd.f32 0.0, %v2361
    %2363 = vdwg.mxu0
    %2364 = vst [vmem:[#allocation1] ss:$4 sm:$0xff] %v509
    %v2365 = vld.sshfl [vmem:[#allocation1] sm:$0xff pattern:$0x73625140]
    %2366 = vrot.lane.b32.xlu0 %v2365, 64
    %v2367 = vpop.permute.xlu0 %2366
    %v2369 = vsel %vm1786, %v1770, 0
    %v2371 = vsel %vm1790, %v2367, 0
    %2373 = vmatpush.msra.mxu0 0.0
    %2374 = vmatpush.msra.mxu0 0.0
    %2375 = vmatpush.msra.mxu0 0.0
    %2376 = vmatpush.msra.mxu0 0.0
    %2377 = vmatpush.msra.mxu0 0.0
    %2378 = vmatpush.msra.mxu0 0.0
    %2379 = vmatpush.msra.mxu0 0.0
    %2380 = vmatpush.msra.mxu0 0.0
    %2381 = vmatpush.msra.mxu0 0.0
    %2382 = vmatpush.msra.mxu0 0.0
    %2383 = vmatpush.msra.mxu0 0.0
    %2384 = vmatpush.msra.mxu0 0.0
    %2385 = vmatpush.msra.mxu0 0.0
    %2386 = vmatpush.msra.mxu0 0.0
    %2387 = vmatpush.msra.mxu0 0.0
    %2388 = vmatpush.msra.mxu0 %v2371
    %2389 = vmatmul.f32.gmra.mxu0 %v2369
    %v2390 = vpop.f32.mrf.mxu0
    %v2391 = vadd.f32 0.0, %v2390
    %2392 = vdwg.mxu0
    %2393 = vst [vmem:[#allocation1] ss:$4 sm:$0xff] %v511
    %v2394 = vld.sshfl [vmem:[#allocation1] sm:$0xff pattern:$0x73625140]
    %2395 = vrot.lane.b32.xlu0 %v2394, 64
    %v2396 = vpop.permute.xlu0 %2395
    %v2398 = vsel %vm1786, %v1771, 0
    %v2400 = vsel %vm1790, %v2396, 0
    %2402 = vmatpush.msra.mxu0 0.0
    %2403 = vmatpush.msra.mxu0 0.0
    %2404 = vmatpush.msra.mxu0 0.0
    %2405 = vmatpush.msra.mxu0 0.0
    %2406 = vmatpush.msra.mxu0 0.0
    %2407 = vmatpush.msra.mxu0 0.0
    %2408 = vmatpush.msra.mxu0 0.0
    %2409 = vmatpush.msra.mxu0 0.0
    %2410 = vmatpush.msra.mxu0 0.0
    %2411 = vmatpush.msra.mxu0 0.0
    %2412 = vmatpush.msra.mxu0 0.0
    %2413 = vmatpush.msra.mxu0 0.0
    %2414 = vmatpush.msra.mxu0 0.0
    %2415 = vmatpush.msra.mxu0 0.0
    %2416 = vmatpush.msra.mxu0 0.0
    %2417 = vmatpush.msra.mxu0 %v2400
    %2418 = vmatmul.f32.gmra.mxu0 %v2398
    %v2419 = vpop.f32.mrf.mxu0
    %v2420 = vadd.f32 0.0, %v2419
    %2421 = vdwg.mxu0
    %2422 = vst [vmem:[#allocation1] ss:$4 sm:$0xff] %v513
    %v2423 = vld.sshfl [vmem:[#allocation1] sm:$0xff pattern:$0x73625140]
    %2424 = vrot.lane.b32.xlu0 %v2423, 64
    %v2425 = vpop.permute.xlu0 %2424
    %v2427 = vsel %vm1786, %v1772, 0
    %v2429 = vsel %vm1790, %v2425, 0
    %2431 = vmatpush.msra.mxu0 0.0
    %2432 = vmatpush.msra.mxu0 0.0
    %2433 = vmatpush.msra.mxu0 0.0
    %2434 = vmatpush.msra.mxu0 0.0
    %2435 = vmatpush.msra.mxu0 0.0
    %2436 = vmatpush.msra.mxu0 0.0
    %2437 = vmatpush.msra.mxu0 0.0
    %2438 = vmatpush.msra.mxu0 0.0
    %2439 = vmatpush.msra.mxu0 0.0
    %2440 = vmatpush.msra.mxu0 0.0
    %2441 = vmatpush.msra.mxu0 0.0
    %2442 = vmatpush.msra.mxu0 0.0
    %2443 = vmatpush.msra.mxu0 0.0
    %2444 = vmatpush.msra.mxu0 0.0
    %2445 = vmatpush.msra.mxu0 0.0
    %2446 = vmatpush.msra.mxu0 %v2429
    %2447 = vmatmul.f32.gmra.mxu0 %v2427
    %v2448 = vpop.f32.mrf.mxu0
    %v2449 = vadd.f32 0.0, %v2448
    %2450 = vdwg.mxu0
    %2451 = vst [vmem:[#allocation1] ss:$4 sm:$0xff] %v515
    %v2452 = vld.sshfl [vmem:[#allocation1] sm:$0xff pattern:$0x73625140]
    %2453 = vrot.lane.b32.xlu0 %v2452, 64
    %v2454 = vpop.permute.xlu0 %2453
    %v2456 = vsel %vm1786, %v1773, 0
    %v2458 = vsel %vm1790, %v2454, 0
    %2460 = vmatpush.msra.mxu0 0.0
    %2461 = vmatpush.msra.mxu0 0.0
    %2462 = vmatpush.msra.mxu0 0.0
    %2463 = vmatpush.msra.mxu0 0.0
    %2464 = vmatpush.msra.mxu0 0.0
    %2465 = vmatpush.msra.mxu0 0.0
    %2466 = vmatpush.msra.mxu0 0.0
    %2467 = vmatpush.msra.mxu0 0.0
    %2468 = vmatpush.msra.mxu0 0.0
    %2469 = vmatpush.msra.mxu0 0.0
    %2470 = vmatpush.msra.mxu0 0.0
    %2471 = vmatpush.msra.mxu0 0.0
    %2472 = vmatpush.msra.mxu0 0.0
    %2473 = vmatpush.msra.mxu0 0.0
    %2474 = vmatpush.msra.mxu0 0.0
    %2475 = vmatpush.msra.mxu0 %v2458
    %2476 = vmatmul.f32.gmra.mxu0 %v2456
    %v2477 = vpop.f32.mrf.mxu0
    %v2478 = vadd.f32 0.0, %v2477
    %2479 = vdwg.mxu0
    %2480 = vst [vmem:[#allocation1] ss:$4 sm:$0xff] %v517
    %v2481 = vld.sshfl [vmem:[#allocation1] sm:$0xff pattern:$0x73625140]
    %2482 = vrot.lane.b32.xlu0 %v2481, 64
    %v2483 = vpop.permute.xlu0 %2482
    %v2485 = vsel %vm1786, %v1774, 0
    %v2487 = vsel %vm1790, %v2483, 0
    %2489 = vmatpush.msra.mxu0 0.0
    %2490 = vmatpush.msra.mxu0 0.0
    %2491 = vmatpush.msra.mxu0 0.0
    %2492 = vmatpush.msra.mxu0 0.0
    %2493 = vmatpush.msra.mxu0 0.0
    %2494 = vmatpush.msra.mxu0 0.0
    %2495 = vmatpush.msra.mxu0 0.0
    %2496 = vmatpush.msra.mxu0 0.0
    %2497 = vmatpush.msra.mxu0 0.0
    %2498 = vmatpush.msra.mxu0 0.0
    %2499 = vmatpush.msra.mxu0 0.0
    %2500 = vmatpush.msra.mxu0 0.0
    %2501 = vmatpush.msra.mxu0 0.0
    %2502 = vmatpush.msra.mxu0 0.0
    %2503 = vmatpush.msra.mxu0 0.0
    %2504 = vmatpush.msra.mxu0 %v2487
    %2505 = vmatmul.f32.gmra.mxu0 %v2485
    %v2506 = vpop.f32.mrf.mxu0
    %v2507 = vadd.f32 0.0, %v2506
    %2508 = vdwg.mxu0
    %2509 = vst [vmem:[#allocation1] ss:$4 sm:$0xff] %v519
    %v2510 = vld.sshfl [vmem:[#allocation1] sm:$0xff pattern:$0x73625140]
    %2511 = vrot.lane.b32.xlu0 %v2510, 64
    %v2512 = vpop.permute.xlu0 %2511
    %v2514 = vsel %vm1786, %v1775, 0
    %v2516 = vsel %vm1790, %v2512, 0
    %2518 = vmatpush.msra.mxu0 0.0
    %2519 = vmatpush.msra.mxu0 0.0
    %2520 = vmatpush.msra.mxu0 0.0
    %2521 = vmatpush.msra.mxu0 0.0
    %2522 = vmatpush.msra.mxu0 0.0
    %2523 = vmatpush.msra.mxu0 0.0
    %2524 = vmatpush.msra.mxu0 0.0
    %2525 = vmatpush.msra.mxu0 0.0
    %2526 = vmatpush.msra.mxu0 0.0
    %2527 = vmatpush.msra.mxu0 0.0
    %2528 = vmatpush.msra.mxu0 0.0
    %2529 = vmatpush.msra.mxu0 0.0
    %2530 = vmatpush.msra.mxu0 0.0
    %2531 = vmatpush.msra.mxu0 0.0
    %2532 = vmatpush.msra.mxu0 0.0
    %2533 = vmatpush.msra.mxu0 %v2516
    %2534 = vmatmul.f32.gmra.mxu0 %v2514
    %v2535 = vpop.f32.mrf.mxu0
    %v2536 = vadd.f32 0.0, %v2535
    %2537 = vdwg.mxu0
    %2538 = vst [vmem:[#allocation1] ss:$4 sm:$0xff] %v521
    %v2539 = vld.sshfl [vmem:[#allocation1] sm:$0xff pattern:$0x73625140]
    %2540 = vrot.lane.b32.xlu0 %v2539, 64
    %v2541 = vpop.permute.xlu0 %2540
    %v2543 = vsel %vm1786, %v1776, 0
    %v2545 = vsel %vm1790, %v2541, 0
    %2547 = vmatpush.msra.mxu0 0.0
    %2548 = vmatpush.msra.mxu0 0.0
    %2549 = vmatpush.msra.mxu0 0.0
    %2550 = vmatpush.msra.mxu0 0.0
    %2551 = vmatpush.msra.mxu0 0.0
    %2552 = vmatpush.msra.mxu0 0.0
    %2553 = vmatpush.msra.mxu0 0.0
    %2554 = vmatpush.msra.mxu0 0.0
    %2555 = vmatpush.msra.mxu0 0.0
    %2556 = vmatpush.msra.mxu0 0.0
    %2557 = vmatpush.msra.mxu0 0.0
    %2558 = vmatpush.msra.mxu0 0.0
    %2559 = vmatpush.msra.mxu0 0.0
    %2560 = vmatpush.msra.mxu0 0.0
    %2561 = vmatpush.msra.mxu0 0.0
    %2562 = vmatpush.msra.mxu0 %v2545
    %2563 = vmatmul.f32.gmra.mxu0 %v2543
    %v2564 = vpop.f32.mrf.mxu0
    %v2565 = vadd.f32 0.0, %v2564
    %2566 = vdwg.mxu0
    %2567 = vst [vmem:[#allocation1] ss:$4 sm:$0xff] %v523
    %v2568 = vld.sshfl [vmem:[#allocation1] sm:$0xff pattern:$0x73625140]
    %2569 = vrot.lane.b32.xlu0 %v2568, 64
    %v2570 = vpop.permute.xlu0 %2569
    %v2572 = vsel %vm1786, %v1777, 0
    %v2574 = vsel %vm1790, %v2570, 0
    %2576 = vmatpush.msra.mxu0 0.0
    %2577 = vmatpush.msra.mxu0 0.0
    %2578 = vmatpush.msra.mxu0 0.0
    %2579 = vmatpush.msra.mxu0 0.0
    %2580 = vmatpush.msra.mxu0 0.0
    %2581 = vmatpush.msra.mxu0 0.0
    %2582 = vmatpush.msra.mxu0 0.0
    %2583 = vmatpush.msra.mxu0 0.0
    %2584 = vmatpush.msra.mxu0 0.0
    %2585 = vmatpush.msra.mxu0 0.0
    %2586 = vmatpush.msra.mxu0 0.0
    %2587 = vmatpush.msra.mxu0 0.0
    %2588 = vmatpush.msra.mxu0 0.0
    %2589 = vmatpush.msra.mxu0 0.0
    %2590 = vmatpush.msra.mxu0 0.0
    %2591 = vmatpush.msra.mxu0 %v2574
    %2592 = vmatmul.f32.gmra.mxu0 %v2572
    %v2593 = vpop.f32.mrf.mxu0
    %v2594 = vadd.f32 0.0, %v2593
    %2595 = vdwg.mxu0
    %2596 = vst [vmem:[#allocation1] ss:$4 sm:$0xff] %v525
    %v2597 = vld.sshfl [vmem:[#allocation1] sm:$0xff pattern:$0x73625140]
    %2598 = vrot.lane.b32.xlu0 %v2597, 64
    %v2599 = vpop.permute.xlu0 %2598
    %v2601 = vsel %vm1786, %v1778, 0
    %v2603 = vsel %vm1790, %v2599, 0
    %2605 = vmatpush.msra.mxu0 0.0
    %2606 = vmatpush.msra.mxu0 0.0
    %2607 = vmatpush.msra.mxu0 0.0
    %2608 = vmatpush.msra.mxu0 0.0
    %2609 = vmatpush.msra.mxu0 0.0
    %2610 = vmatpush.msra.mxu0 0.0
    %2611 = vmatpush.msra.mxu0 0.0
    %2612 = vmatpush.msra.mxu0 0.0
    %2613 = vmatpush.msra.mxu0 0.0
    %2614 = vmatpush.msra.mxu0 0.0
    %2615 = vmatpush.msra.mxu0 0.0
    %2616 = vmatpush.msra.mxu0 0.0
    %2617 = vmatpush.msra.mxu0 0.0
    %2618 = vmatpush.msra.mxu0 0.0
    %2619 = vmatpush.msra.mxu0 0.0
    %2620 = vmatpush.msra.mxu0 %v2603
    %2621 = vmatmul.f32.gmra.mxu0 %v2601
    %v2622 = vpop.f32.mrf.mxu0
    %v2623 = vadd.f32 0.0, %v2622
    %2624 = vdwg.mxu0
    %2625 = vst [vmem:[#allocation1] ss:$4 sm:$0xff] %v527
    %v2626 = vld.sshfl [vmem:[#allocation1] sm:$0xff pattern:$0x73625140]
    %2627 = vrot.lane.b32.xlu0 %v2626, 64
    %v2628 = vpop.permute.xlu0 %2627
    %v2630 = vsel %vm1786, %v1779, 0
    %v2632 = vsel %vm1790, %v2628, 0
    %2634 = vmatpush.msra.mxu0 0.0
    %2635 = vmatpush.msra.mxu0 0.0
    %2636 = vmatpush.msra.mxu0 0.0
    %2637 = vmatpush.msra.mxu0 0.0
    %2638 = vmatpush.msra.mxu0 0.0
    %2639 = vmatpush.msra.mxu0 0.0
    %2640 = vmatpush.msra.mxu0 0.0
    %2641 = vmatpush.msra.mxu0 0.0
    %2642 = vmatpush.msra.mxu0 0.0
    %2643 = vmatpush.msra.mxu0 0.0
    %2644 = vmatpush.msra.mxu0 0.0
    %2645 = vmatpush.msra.mxu0 0.0
    %2646 = vmatpush.msra.mxu0 0.0
    %2647 = vmatpush.msra.mxu0 0.0
    %2648 = vmatpush.msra.mxu0 0.0
    %2649 = vmatpush.msra.mxu0 %v2632
    %2650 = vmatmul.f32.gmra.mxu0 %v2630
    %v2651 = vpop.f32.mrf.mxu0
    %v2652 = vadd.f32 0.0, %v2651
    %2653 = vdwg.mxu0
    %2654 = vst [vmem:[#allocation1] ss:$4 sm:$0xff] %v529
    %v2655 = vld.sshfl [vmem:[#allocation1] sm:$0xff pattern:$0x73625140]
    %2656 = vrot.lane.b32.xlu0 %v2655, 64
    %v2657 = vpop.permute.xlu0 %2656
    %v2659 = vsel %vm1786, %v1780, 0
    %v2661 = vsel %vm1790, %v2657, 0
    %2663 = vmatpush.msra.mxu0 0.0
    %2664 = vmatpush.msra.mxu0 0.0
    %2665 = vmatpush.msra.mxu0 0.0
    %2666 = vmatpush.msra.mxu0 0.0
    %2667 = vmatpush.msra.mxu0 0.0
    %2668 = vmatpush.msra.mxu0 0.0
    %2669 = vmatpush.msra.mxu0 0.0
    %2670 = vmatpush.msra.mxu0 0.0
    %2671 = vmatpush.msra.mxu0 0.0
    %2672 = vmatpush.msra.mxu0 0.0
    %2673 = vmatpush.msra.mxu0 0.0
    %2674 = vmatpush.msra.mxu0 0.0
    %2675 = vmatpush.msra.mxu0 0.0
    %2676 = vmatpush.msra.mxu0 0.0
    %2677 = vmatpush.msra.mxu0 0.0
    %2678 = vmatpush.msra.mxu0 %v2661
    %2679 = vmatmul.f32.gmra.mxu0 %v2659
    %v2680 = vpop.f32.mrf.mxu0
    %v2681 = vadd.f32 0.0, %v2680
    %2682 = vdwg.mxu0
    %2683 = vst [vmem:[#allocation1] ss:$4 sm:$0xff] %v531
    %v2684 = vld.sshfl [vmem:[#allocation1] sm:$0xff pattern:$0x73625140]
    %2685 = vrot.lane.b32.xlu0 %v2684, 64
    %v2686 = vpop.permute.xlu0 %2685
    %v2688 = vsel %vm1786, %v1781, 0
    %v2690 = vsel %vm1790, %v2686, 0
    %2692 = vmatpush.msra.mxu0 0.0
    %2693 = vmatpush.msra.mxu0 0.0
    %2694 = vmatpush.msra.mxu0 0.0
    %2695 = vmatpush.msra.mxu0 0.0
    %2696 = vmatpush.msra.mxu0 0.0
    %2697 = vmatpush.msra.mxu0 0.0
    %2698 = vmatpush.msra.mxu0 0.0
    %2699 = vmatpush.msra.mxu0 0.0
    %2700 = vmatpush.msra.mxu0 0.0
    %2701 = vmatpush.msra.mxu0 0.0
    %2702 = vmatpush.msra.mxu0 0.0
    %2703 = vmatpush.msra.mxu0 0.0
    %2704 = vmatpush.msra.mxu0 0.0
    %2705 = vmatpush.msra.mxu0 0.0
    %2706 = vmatpush.msra.mxu0 0.0
    %2707 = vmatpush.msra.mxu0 %v2690
    %2708 = vmatmul.f32.gmra.mxu0 %v2688
    %v2709 = vpop.f32.mrf.mxu0
    %v2710 = vadd.f32 0.0, %v2709
    %2711 = vdwg.mxu0
    %2720 = vrot.lane.b32.xlu0 %v2043, 8
    %v2721 = vpop.permute.xlu0 %2720
    %2722 = vrot.lane.b32.xlu0 %v2072, 8
    %v2723 = vpop.permute.xlu0 %2722
    %2724 = vrot.lane.b32.xlu0 %v2101, 8
    %v2725 = vpop.permute.xlu0 %2724
    %2726 = vrot.lane.b32.xlu0 %v2130, 8
    %v2727 = vpop.permute.xlu0 %2726
    %2728 = vrot.lane.b32.xlu0 %v2159, 8
    %v2729 = vpop.permute.xlu0 %2728
    %2730 = vrot.lane.b32.xlu0 %v2188, 8
    %v2731 = vpop.permute.xlu0 %2730
    %2732 = vrot.lane.b32.xlu0 %v2217, 8
    %v2733 = vpop.permute.xlu0 %2732
    %2734 = vrot.lane.b32.xlu0 %v2246, 8
    %v2735 = vpop.permute.xlu0 %2734
    %2752 = vrot.lane.b32.xlu0 %v2275, 16
    %v2753 = vpop.permute.xlu0 %2752
    %2754 = vrot.lane.b32.xlu0 %v2304, 16
    %v2755 = vpop.permute.xlu0 %2754
    %2756 = vrot.lane.b32.xlu0 %v2333, 16
    %v2757 = vpop.permute.xlu0 %2756
    %2758 = vrot.lane.b32.xlu0 %v2362, 16
    %v2759 = vpop.permute.xlu0 %2758
    %2760 = vrot.lane.b32.xlu0 %v2391, 16
    %v2761 = vpop.permute.xlu0 %2760
    %2762 = vrot.lane.b32.xlu0 %v2420, 16
    %v2763 = vpop.permute.xlu0 %2762
    %2764 = vrot.lane.b32.xlu0 %v2449, 16
    %v2765 = vpop.permute.xlu0 %2764
    %2766 = vrot.lane.b32.xlu0 %v2478, 16
    %v2767 = vpop.permute.xlu0 %2766
    %2784 = vrot.lane.b32.xlu0 %v2507, 24
    %v2785 = vpop.permute.xlu0 %2784
    %2786 = vrot.lane.b32.xlu0 %v2536, 24
    %v2787 = vpop.permute.xlu0 %2786
    %2788 = vrot.lane.b32.xlu0 %v2565, 24
    %v2789 = vpop.permute.xlu0 %2788
    %2790 = vrot.lane.b32.xlu0 %v2594, 24
    %v2791 = vpop.permute.xlu0 %2790
    %2792 = vrot.lane.b32.xlu0 %v2623, 24
    %v2793 = vpop.permute.xlu0 %2792
    %2794 = vrot.lane.b32.xlu0 %v2652, 24
    %v2795 = vpop.permute.xlu0 %2794
    %2796 = vrot.lane.b32.xlu0 %v2681, 24
    %v2797 = vpop.permute.xlu0 %2796
    %2798 = vrot.lane.b32.xlu0 %v2710, 24
    %v2799 = vpop.permute.xlu0 %2798
    %v2808 = vsel %vm536, %v1811, %v2721
    %v2809 = vsel %vm536, %v1840, %v2723
    %v2810 = vsel %vm536, %v1869, %v2725
    %v2811 = vsel %vm536, %v1898, %v2727
    %v2812 = vsel %vm536, %v1927, %v2729
    %v2813 = vsel %vm536, %v1956, %v2731
    %v2814 = vsel %vm536, %v1985, %v2733
    %v2815 = vsel %vm536, %v2014, %v2735
    %vm2816 = vcmask 130048
    %v2817 = vsel %vm2816, %v2808, %v2753
    %v2818 = vsel %vm2816, %v2809, %v2755
    %v2819 = vsel %vm2816, %v2810, %v2757
    %v2820 = vsel %vm2816, %v2811, %v2759
    %v2821 = vsel %vm2816, %v2812, %v2761
    %v2822 = vsel %vm2816, %v2813, %v2763
    %v2823 = vsel %vm2816, %v2814, %v2765
    %v2824 = vsel %vm2816, %v2815, %v2767
    %vm2825 = vcmask 195584
    %v2826 = vsel %vm2825, %v2817, %v2785
    %v2827 = vsel %vm2825, %v2818, %v2787
    %v2828 = vsel %vm2825, %v2819, %v2789
    %v2829 = vsel %vm2825, %v2820, %v2791
    %v2830 = vsel %vm2825, %v2821, %v2793
    %v2831 = vsel %vm2825, %v2822, %v2795
    %v2832 = vsel %vm2825, %v2823, %v2797
    %v2833 = vsel %vm2825, %v2824, %v2799
    %2842 = vst [vmem:[#allocation1] ss:$4 sm:$0xff] %v2826
    %s2843 = scalar_lea.vmem [#allocation1], 1
    %2844 = vst [vmem:[%s2843] ss:$4 sm:$0xff] %v2827
    %s2845 = scalar_lea.vmem [#allocation1], 2
    %2846 = vst [vmem:[%s2845] ss:$4 sm:$0xff] %v2828
    %s2847 = scalar_lea.vmem [#allocation1], 3
    %2848 = vst [vmem:[%s2847] ss:$4 sm:$0xff] %v2829
    %s2849 = scalar_lea.vmem [#allocation1], 32
    %2850 = vst [vmem:[%s2849] ss:$4 sm:$0xff] %v2830
    %s2851 = scalar_lea.vmem [#allocation1], 33
    %2852 = vst [vmem:[%s2851] ss:$4 sm:$0xff] %v2831
    %s2853 = scalar_lea.vmem [#allocation1], 34
    %2854 = vst [vmem:[%s2853] ss:$4 sm:$0xff] %v2832
    %s2855 = scalar_lea.vmem [#allocation1], 35
    %2856 = vst [vmem:[%s2855] ss:$4 sm:$0xff] %v2833
    %v2857 = vld.sshfl [vmem:[#allocation1] sm:$0xff pattern:$0x73625140]
    %v2858 = vld.sshfl [vmem:[#allocation1 + $0x20] sm:$0xff pattern:$0x73625140]
    %v2861 = vpack.c.bf16 %v2858, %v2857
    %v2862 = vld [vmem:[%s5] sm:$0xf]
    %v2863 = vld [vmem:[%s5 + $0x4] sm:$0xf]
    %v2864 = vld [vmem:[%s5 + $0x8] sm:$0xf]
    %v2865 = vld [vmem:[%s5 + $0xc] sm:$0xf]
    %v2867 = vperm.slane %v347, 0
    %v2873 = vunpack.c.l.b16 %v2862
    %v2874 = vunpack.c.l.b16 %v2863
    %v2875 = vunpack.c.l.b16 %v2864
    %v2876 = vunpack.c.l.b16 %v2865
    %v2877 = vpack.c.b16 %v2874, %v2873
    %v2878 = vpack.c.b16 %v2876, %v2875
    %v2882 = vsel %vm400, %v2861, 0
    %2884 = vmatpush.bf16.msra.mxu0 0
    %2885 = vmatpush.bf16.msra.mxu0 0
    %2886 = vmatpush.bf16.msra.mxu0 0
    %2887 = vmatpush.bf16.msra.mxu0 0
    %2888 = vmatpush.bf16.msra.mxu0 0
    %2889 = vmatpush.bf16.msra.mxu0 0
    %2890 = vmatpush.bf16.msra.mxu0 %v2878
    %2891 = vmatpush.bf16.msra.mxu0 %v2877
    %2892 = vmatmul.bf16.gmra.mxu0 %v2882
    %v2893 = vpop.f32.mrf.mxu0
    %v2894 = vadd.f32 %v2867, %v2893
    %v2895 = vpop.f32.mrf.mxu0
    %v2896 = vadd.f32 %v2867, %v2895
    %2897 = vdwg.mxu0
    %v2900 = vrot.slane %v2894, 2
    %v2901 = vrot.slane %v2894, 4
    %v2902 = vrot.slane %v2894, 6
    %v2903 = vrot.slane %v2896, 2
    %v2904 = vrot.slane %v2896, 4
    %v2905 = vrot.slane %v2896, 6
    %v2912 = vadd.f32 %v183, %v2894
    %v2913 = vadd.f32 %v206, %v2900
    %v2914 = vadd.f32 %v229, %v2901
    %v2915 = vadd.f32 %v252, %v2902
    %v2916 = vadd.f32 %v275, %v2896
    %v2917 = vadd.f32 %v298, %v2903
    %v2918 = vadd.f32 %v321, %v2904
    %v2919 = vadd.f32 %v344, %v2905
    %2928 = vst [vmem:[#allocation1] ss:$4 sm:$0xff] %v2912
    %s2929 = scalar_lea.vmem [#allocation1], 1
    %2930 = vst [vmem:[%s2929] ss:$4 sm:$0xff] %v2913
    %s2931 = scalar_lea.vmem [#allocation1], 2
    %2932 = vst [vmem:[%s2931] ss:$4 sm:$0xff] %v2914
    %s2933 = scalar_lea.vmem [#allocation1], 3
    %2934 = vst [vmem:[%s2933] ss:$4 sm:$0xff] %v2915
    %s2935 = scalar_lea.vmem [#allocation1], 32
    %2936 = vst [vmem:[%s2935] ss:$4 sm:$0xff] %v2916
    %s2937 = scalar_lea.vmem [#allocation1], 33
    %2938 = vst [vmem:[%s2937] ss:$4 sm:$0xff] %v2917
    %s2939 = scalar_lea.vmem [#allocation1], 34
    %2940 = vst [vmem:[%s2939] ss:$4 sm:$0xff] %v2918
    %s2941 = scalar_lea.vmem [#allocation1], 35
    %2942 = vst [vmem:[%s2941] ss:$4 sm:$0xff] %v2919
    %v2943 = vld.sshfl [vmem:[#allocation1] sm:$0xff pattern:$0x73625140]
    %v2944 = vld.sshfl [vmem:[#allocation1 + $0x20] sm:$0xff pattern:$0x73625140]
    %v2947 = vsel %vm400, %v2943, 0.0
    %2948 = vadd.xlane.f32.xlu0 %v2947
    %v2949 = vpop.xlane.xlu0 %2948
    %v2950 = vsel %vm400, %v2944, 0.0
    %2951 = vadd.xlane.f32.xlu0 %v2950
    %v2952 = vpop.xlane.xlu0 %2951
    %v2953 = vrcp.pop 32.0
    %v2954 = vmul.f32 32.0, %v2953
    %v2955 = vsub.f32 1.0, %v2954
    %v2956 = vmul.f32 %v2953, %v2955
    %v2957 = vadd.f32 %v2953, %v2956
    %vm2958 = vweird.f32 %v2953
    %v2959 = vsel %vm2958, %v2953, %v2957
    %v2960 = vmul.f32 %v2949, %v2959
    %v2961 = vmul.f32 %v2952, %v2959
    %v2965 = vunpack.c.l.s4 269488144
    %v2966 = vunpack.c.0.s8 %v2965
    %v2967 = vperm.slane %v2960, %v2966
    %v2969 = vunpack.c.l.s4 842150450
    %v2970 = vunpack.c.0.s8 %v2969
    %v2971 = vperm.slane %v2960, %v2970
    %v2973 = vunpack.c.l.s4 1414812756
    %v2974 = vunpack.c.0.s8 %v2973
    %v2975 = vperm.slane %v2960, %v2974
    %v2977 = vunpack.c.l.s4 1987475062
    %v2978 = vunpack.c.0.s8 %v2977
    %v2979 = vperm.slane %v2960, %v2978
    %v2981 = vunpack.c.l.s4 269488144
    %v2982 = vunpack.c.0.s8 %v2981
    %v2983 = vperm.slane %v2961, %v2982
    %v2985 = vunpack.c.l.s4 842150450
    %v2986 = vunpack.c.0.s8 %v2985
    %v2987 = vperm.slane %v2961, %v2986
    %v2989 = vunpack.c.l.s4 1414812756
    %v2990 = vunpack.c.0.s8 %v2989
    %v2991 = vperm.slane %v2961, %v2990
    %v2993 = vunpack.c.l.s4 1987475062
    %v2994 = vunpack.c.0.s8 %v2993
    %v2995 = vperm.slane %v2961, %v2994
    %v3004 = vsub.f32 %v2912, %v2967
    %v3005 = vsub.f32 %v2913, %v2971
    %v3006 = vsub.f32 %v2914, %v2975
    %v3007 = vsub.f32 %v2915, %v2979
    %v3008 = vsub.f32 %v2916, %v2983
    %v3009 = vsub.f32 %v2917, %v2987
    %v3010 = vsub.f32 %v2918, %v2991
    %v3011 = vsub.f32 %v2919, %v2995
    %v3012 = vmul.f32 %v3004, %v3004
    %v3013 = vmul.f32 %v3005, %v3005
    %v3014 = vmul.f32 %v3006, %v3006
    %v3015 = vmul.f32 %v3007, %v3007
    %v3016 = vmul.f32 %v3008, %v3008
    %v3017 = vmul.f32 %v3009, %v3009
    %v3018 = vmul.f32 %v3010, %v3010
    %v3019 = vmul.f32 %v3011, %v3011
    %3028 = vst [vmem:[#allocation1] ss:$4 sm:$0xff] %v3012
    %s3029 = scalar_lea.vmem [#allocation1], 1
    %3030 = vst [vmem:[%s3029] ss:$4 sm:$0xff] %v3013
    %s3031 = scalar_lea.vmem [#allocation1], 2
    %3032 = vst [vmem:[%s3031] ss:$4 sm:$0xff] %v3014
    %s3033 = scalar_lea.vmem [#allocation1], 3
    %3034 = vst [vmem:[%s3033] ss:$4 sm:$0xff] %v3015
    %s3035 = scalar_lea.vmem [#allocation1], 32
    %3036 = vst [vmem:[%s3035] ss:$4 sm:$0xff] %v3016
    %s3037 = scalar_lea.vmem [#allocation1], 33
    %3038 = vst [vmem:[%s3037] ss:$4 sm:$0xff] %v3017
    %s3039 = scalar_lea.vmem [#allocation1], 34
    %3040 = vst [vmem:[%s3039] ss:$4 sm:$0xff] %v3018
    %s3041 = scalar_lea.vmem [#allocation1], 35
    %3042 = vst [vmem:[%s3041] ss:$4 sm:$0xff] %v3019
    %v3043 = vld.sshfl [vmem:[#allocation1] sm:$0xff pattern:$0x73625140]
    %v3044 = vld.sshfl [vmem:[#allocation1 + $0x20] sm:$0xff pattern:$0x73625140]
    %v3047 = vsel %vm400, %v3043, 0.0
    %3048 = vadd.xlane.f32.xlu0 %v3047
    %v3049 = vpop.xlane.xlu0 %3048
    %v3050 = vsel %vm400, %v3044, 0.0
    %3051 = vadd.xlane.f32.xlu0 %v3050
    %v3052 = vpop.xlane.xlu0 %3051
    %v3053 = vmul.f32 %v3049, %v2959
    %v3054 = vmul.f32 %v3052, %v2959
    %v3055 = vadd.f32 %v3053, 1e-05
    %v3056 = vadd.f32 %v3054, 1e-05
    %v3057 = vrsqrt.pop %v3055
    %v3058 = vmul.f32 %v3057, %v3055
    %v3059 = vmul.f32 %v3058, %v3057
    %v3060 = vmul.f32 0.5, %v3059
    %v3061 = vsub.f32 1.5, %v3060
    %v3062 = vmul.f32 %v3057, %v3061
    %vm3063 = vweird.f32 %v3055
    %vm3064 = vweird.f32 %v3057
    %vm3065 = vmor %vm3063, %vm3064
    %v3066 = vsel %vm3065, %v3057, %v3062
    %v3067 = vrsqrt.pop %v3056
    %v3068 = vmul.f32 %v3067, %v3056
    %v3069 = vmul.f32 %v3068, %v3067
    %v3070 = vmul.f32 0.5, %v3069
    %v3071 = vsub.f32 1.5, %v3070
    %v3072 = vmul.f32 %v3067, %v3071
    %vm3073 = vweird.f32 %v3056
    %vm3074 = vweird.f32 %v3067
    %vm3075 = vmor %vm3073, %vm3074
    %v3076 = vsel %vm3075, %v3067, %v3072
    %v3080 = vunpack.c.l.s4 269488144
    %v3081 = vunpack.c.0.s8 %v3080
    %v3082 = vperm.slane %v3066, %v3081
    %v3084 = vunpack.c.l.s4 842150450
    %v3085 = vunpack.c.0.s8 %v3084
    %v3086 = vperm.slane %v3066, %v3085
    %v3088 = vunpack.c.l.s4 1414812756
    %v3089 = vunpack.c.0.s8 %v3088
    %v3090 = vperm.slane %v3066, %v3089
    %v3092 = vunpack.c.l.s4 1987475062
    %v3093 = vunpack.c.0.s8 %v3092
    %v3094 = vperm.slane %v3066, %v3093
    %v3096 = vunpack.c.l.s4 269488144
    %v3097 = vunpack.c.0.s8 %v3096
    %v3098 = vperm.slane %v3076, %v3097
    %v3100 = vunpack.c.l.s4 842150450
    %v3101 = vunpack.c.0.s8 %v3100
    %v3102 = vperm.slane %v3076, %v3101
    %v3104 = vunpack.c.l.s4 1414812756
    %v3105 = vunpack.c.0.s8 %v3104
    %v3106 = vperm.slane %v3076, %v3105
    %v3108 = vunpack.c.l.s4 1987475062
    %v3109 = vunpack.c.0.s8 %v3108
    %v3110 = vperm.slane %v3076, %v3109
    %v3119 = vmul.f32 %v3004, %v3082
    %v3120 = vmul.f32 %v3005, %v3086
    %v3121 = vmul.f32 %v3006, %v3090
    %v3122 = vmul.f32 %v3007, %v3094
    %v3123 = vmul.f32 %v3008, %v3098
    %v3124 = vmul.f32 %v3009, %v3102
    %v3125 = vmul.f32 %v3010, %v3106
    %v3126 = vmul.f32 %v3011, %v3110
    %v3128 = vperm.slane %v349, 0
    %v3130 = vrot.slane %v3128, 2
    %v3131 = vrot.slane %v3128, 4
    %v3132 = vrot.slane %v3128, 6
    %v3136 = vmul.f32 %v3119, %v3128
    %v3137 = vmul.f32 %v3120, %v3130
    %v3138 = vmul.f32 %v3121, %v3131
    %v3139 = vmul.f32 %v3122, %v3132
    %v3140 = vmul.f32 %v3123, %v3128
    %v3141 = vmul.f32 %v3124, %v3130
    %v3142 = vmul.f32 %v3125, %v3131
    %v3143 = vmul.f32 %v3126, %v3132
    %v3145 = vperm.slane %v350, 0
    %v3147 = vrot.slane %v3145, 2
    %v3148 = vrot.slane %v3145, 4
    %v3149 = vrot.slane %v3145, 6
    %v3153 = vadd.f32 %v3136, %v3145
    %v3154 = vadd.f32 %v3137, %v3147
    %v3155 = vadd.f32 %v3138, %v3148
    %v3156 = vadd.f32 %v3139, %v3149
    %v3157 = vadd.f32 %v3140, %v3145
    %v3158 = vadd.f32 %v3141, %v3147
    %v3159 = vadd.f32 %v3142, %v3148
    %v3160 = vadd.f32 %v3143, %v3149
    %3169 = vst [vmem:[#allocation1] ss:$4 sm:$0xff] %v3153
    %s3170 = scalar_lea.vmem [#allocation1], 1
    %3171 = vst [vmem:[%s3170] ss:$4 sm:$0xff] %v3154
    %s3172 = scalar_lea.vmem [#allocation1], 2
    %3173 = vst [vmem:[%s3172] ss:$4 sm:$0xff] %v3155
    %s3174 = scalar_lea.vmem [#allocation1], 3
    %3175 = vst [vmem:[%s3174] ss:$4 sm:$0xff] %v3156
    %s3176 = scalar_lea.vmem [#allocation1], 32
    %3177 = vst [vmem:[%s3176] ss:$4 sm:$0xff] %v3157
    %s3178 = scalar_lea.vmem [#allocation1], 33
    %3179 = vst [vmem:[%s3178] ss:$4 sm:$0xff] %v3158
    %s3180 = scalar_lea.vmem [#allocation1], 34
    %3181 = vst [vmem:[%s3180] ss:$4 sm:$0xff] %v3159
    %s3182 = scalar_lea.vmem [#allocation1], 35
    %3183 = vst [vmem:[%s3182] ss:$4 sm:$0xff] %v3160
    %v3184 = vld.sshfl [vmem:[#allocation1] sm:$0xff pattern:$0x73625140]
    %v3185 = vld.sshfl [vmem:[#allocation1 + $0x20] sm:$0xff pattern:$0x73625140]
    %v3188 = vpack.c.bf16 %v3185, %v3184
    %v3189 = vld [vmem:[%s11] sm:$0xff]
    %v3190 = vld [vmem:[%s11 + $0x8] sm:$0xff]
    %v3191 = vld [vmem:[%s11 + $0x40] sm:$0xff]
    %v3192 = vld [vmem:[%s11 + $0x48] sm:$0xff]
    %v3193 = vld [vmem:[%s11 + $0x80] sm:$0xff]
    %v3194 = vld [vmem:[%s11 + $0x88] sm:$0xff]
    %v3195 = vld [vmem:[%s11 + $0xc0] sm:$0xff]
    %v3196 = vld [vmem:[%s11 + $0xc8] sm:$0xff]
    %v3197 = vld [vmem:[%s12] sm:$0xf]
    %v3199 = vperm.slane %v3197, 0
    %v3200 = vperm.slane %v3197, 1
    %v3201 = vperm.slane %v3197, 2
    %v3202 = vperm.slane %v3197, 3
    %v3215 = vunpack.c.l.b16 %v3189
    %v3216 = vunpack.c.h.b16 %v3189
    %v3217 = vunpack.c.l.b16 %v3190
    %v3218 = vunpack.c.h.b16 %v3190
    %v3219 = vunpack.c.l.b16 %v3191
    %v3220 = vunpack.c.h.b16 %v3191
    %v3221 = vunpack.c.l.b16 %v3192
    %v3222 = vunpack.c.h.b16 %v3192
    %v3223 = vunpack.c.l.b16 %v3193
    %v3224 = vunpack.c.h.b16 %v3193
    %v3225 = vunpack.c.l.b16 %v3194
    %v3226 = vunpack.c.h.b16 %v3194
    %v3227 = vunpack.c.l.b16 %v3195
    %v3228 = vunpack.c.h.b16 %v3195
    %v3229 = vunpack.c.l.b16 %v3196
    %v3230 = vunpack.c.h.b16 %v3196
    %v3231 = vpack.c.b16 %v3219, %v3215
    %v3232 = vpack.c.b16 %v3220, %v3216
    %v3233 = vpack.c.b16 %v3221, %v3217
    %v3234 = vpack.c.b16 %v3222, %v3218
    %v3235 = vpack.c.b16 %v3227, %v3223
    %v3236 = vpack.c.b16 %v3228, %v3224
    %v3237 = vpack.c.b16 %v3229, %v3225
    %v3238 = vpack.c.b16 %v3230, %v3226
    %v3248 = vsel %vm400, %v3188, 0
    %3250 = vmatpush.bf16.msra.mxu0 0
    %3251 = vmatpush.bf16.msra.mxu0 0
    %3252 = vmatpush.bf16.msra.mxu0 0
    %3253 = vmatpush.bf16.msra.mxu0 0
    %3254 = vmatpush.bf16.msra.mxu0 0
    %3255 = vmatpush.bf16.msra.mxu0 0
    %3256 = vmatpush.bf16.msra.mxu0 %v3235
    %3257 = vmatpush.bf16.msra.mxu0 %v3231
    %3258 = vmatmul.bf16.gmra.mxu0 %v3248
    %v3259 = vpop.f32.mrf.mxu0
    %v3260 = vadd.f32 %v3199, %v3259
    %v3261 = vpop.f32.mrf.mxu0
    %v3262 = vadd.f32 %v3199, %v3261
    %3263 = vdwg.mxu0
    %3264 = vmatpush.bf16.msra.mxu0 0
    %3265 = vmatpush.bf16.msra.mxu0 0
    %3266 = vmatpush.bf16.msra.mxu0 0
    %3267 = vmatpush.bf16.msra.mxu0 0
    %3268 = vmatpush.bf16.msra.mxu0 0
    %3269 = vmatpush.bf16.msra.mxu0 0
    %3270 = vmatpush.bf16.msra.mxu0 %v3236
    %3271 = vmatpush.bf16.msra.mxu0 %v3232
    %3272 = vmatmul.bf16.gmra.mxu0 %v3248
    %v3273 = vpop.f32.mrf.mxu0
    %v3274 = vadd.f32 %v3200, %v3273
    %v3275 = vpop.f32.mrf.mxu0
    %v3276 = vadd.f32 %v3200, %v3275
    %3277 = vdwg.mxu0
    %3278 = vmatpush.bf16.msra.mxu0 0
    %3279 = vmatpush.bf16.msra.mxu0 0
    %3280 = vmatpush.bf16.msra.mxu0 0
    %3281 = vmatpush.bf16.msra.mxu0 0
    %3282 = vmatpush.bf16.msra.mxu0 0
    %3283 = vmatpush.bf16.msra.mxu0 0
    %3284 = vmatpush.bf16.msra.mxu0 %v3237
    %3285 = vmatpush.bf16.msra.mxu0 %v3233
    %3286 = vmatmul.bf16.gmra.mxu0 %v3248
    %v3287 = vpop.f32.mrf.mxu0
    %v3288 = vadd.f32 %v3201, %v3287
    %v3289 = vpop.f32.mrf.mxu0
    %v3290 = vadd.f32 %v3201, %v3289
    %3291 = vdwg.mxu0
    %3292 = vmatpush.bf16.msra.mxu0 0
    %3293 = vmatpush.bf16.msra.mxu0 0
    %3294 = vmatpush.bf16.msra.mxu0 0
    %3295 = vmatpush.bf16.msra.mxu0 0
    %3296 = vmatpush.bf16.msra.mxu0 0
    %3297 = vmatpush.bf16.msra.mxu0 0
    %3298 = vmatpush.bf16.msra.mxu0 %v3238
    %3299 = vmatpush.bf16.msra.mxu0 %v3234
    %3300 = vmatmul.bf16.gmra.mxu0 %v3248
    %v3301 = vpop.f32.mrf.mxu0
    %v3302 = vadd.f32 %v3202, %v3301
    %v3303 = vpop.f32.mrf.mxu0
    %v3304 = vadd.f32 %v3202, %v3303
    %3305 = vdwg.mxu0
    %v3306 = vmax.f32 %v3260, 0.0
    %v3307 = vmax.f32 %v3274, 0.0
    %v3308 = vmax.f32 %v3288, 0.0
    %v3309 = vmax.f32 %v3302, 0.0
    %v3310 = vmax.f32 %v3262, 0.0
    %v3311 = vmax.f32 %v3276, 0.0
    %v3312 = vmax.f32 %v3290, 0.0
    %v3313 = vmax.f32 %v3304, 0.0
    %v3314 = vpack.c.bf16 %v3310, %v3306
    %v3315 = vpack.c.bf16 %v3311, %v3307
    %v3316 = vpack.c.bf16 %v3312, %v3308
    %v3317 = vpack.c.bf16 %v3313, %v3309
    %v3318 = vld [vmem:[%s13] sm:$0xf]
    %v3319 = vld [vmem:[%s13 + $0x4] sm:$0xf]
    %v3320 = vld [vmem:[%s13 + $0x8] sm:$0xf]
    %v3321 = vld [vmem:[%s13 + $0xc] sm:$0xf]
    %v3322 = vld [vmem:[%s13 + $0x10] sm:$0xf]
    %v3323 = vld [vmem:[%s13 + $0x14] sm:$0xf]
    %v3324 = vld [vmem:[%s13 + $0x18] sm:$0xf]
    %v3325 = vld [vmem:[%s13 + $0x1c] sm:$0xf]
    %v3326 = vld [vmem:[%s13 + $0x20] sm:$0xf]
    %v3327 = vld [vmem:[%s13 + $0x24] sm:$0xf]
    %v3328 = vld [vmem:[%s13 + $0x28] sm:$0xf]
    %v3329 = vld [vmem:[%s13 + $0x2c] sm:$0xf]
    %v3330 = vld [vmem:[%s13 + $0x30] sm:$0xf]
    %v3331 = vld [vmem:[%s13 + $0x34] sm:$0xf]
    %v3332 = vld [vmem:[%s13 + $0x38] sm:$0xf]
    %v3333 = vld [vmem:[%s13 + $0x3c] sm:$0xf]
    %v3334 = vld [vmem:[%s13 + $0x40] sm:$0xf]
    %v3335 = vld [vmem:[%s13 + $0x44] sm:$0xf]
    %v3336 = vld [vmem:[%s13 + $0x48] sm:$0xf]
    %v3337 = vld [vmem:[%s13 + $0x4c] sm:$0xf]
    %v3338 = vld [vmem:[%s13 + $0x50] sm:$0xf]
    %v3339 = vld [vmem:[%s13 + $0x54] sm:$0xf]
    %v3340 = vld [vmem:[%s13 + $0x58] sm:$0xf]
    %v3341 = vld [vmem:[%s13 + $0x5c] sm:$0xf]
    %v3342 = vld [vmem:[%s13 + $0x60] sm:$0xf]
    %v3343 = vld [vmem:[%s13 + $0x64] sm:$0xf]
    %v3344 = vld [vmem:[%s13 + $0x68] sm:$0xf]
    %v3345 = vld [vmem:[%s13 + $0x6c] sm:$0xf]
    %v3346 = vld [vmem:[%s13 + $0x70] sm:$0xf]
    %v3347 = vld [vmem:[%s13 + $0x74] sm:$0xf]
    %v3348 = vld [vmem:[%s13 + $0x78] sm:$0xf]
    %v3349 = vld [vmem:[%s13 + $0x7c] sm:$0xf]
    %v3350 = vld [vmem:[%s13 + $0x80] sm:$0xf]
    %v3351 = vld [vmem:[%s13 + $0x84] sm:$0xf]
    %v3352 = vld [vmem:[%s13 + $0x88] sm:$0xf]
    %v3353 = vld [vmem:[%s13 + $0x8c] sm:$0xf]
    %v3354 = vld [vmem:[%s13 + $0x90] sm:$0xf]
    %v3355 = vld [vmem:[%s13 + $0x94] sm:$0xf]
    %v3356 = vld [vmem:[%s13 + $0x98] sm:$0xf]
    %v3357 = vld [vmem:[%s13 + $0x9c] sm:$0xf]
    %v3358 = vld [vmem:[%s13 + $0xa0] sm:$0xf]
    %v3359 = vld [vmem:[%s13 + $0xa4] sm:$0xf]
    %v3360 = vld [vmem:[%s13 + $0xa8] sm:$0xf]
    %v3361 = vld [vmem:[%s13 + $0xac] sm:$0xf]
    %v3362 = vld [vmem:[%s13 + $0xb0] sm:$0xf]
    %v3363 = vld [vmem:[%s13 + $0xb4] sm:$0xf]
    %v3364 = vld [vmem:[%s13 + $0xb8] sm:$0xf]
    %v3365 = vld [vmem:[%s13 + $0xbc] sm:$0xf]
    %v3366 = vld [vmem:[%s13 + $0xc0] sm:$0xf]
    %v3367 = vld [vmem:[%s13 + $0xc4] sm:$0xf]
    %v3368 = vld [vmem:[%s13 + $0xc8] sm:$0xf]
    %v3369 = vld [vmem:[%s13 + $0xcc] sm:$0xf]
    %v3370 = vld [vmem:[%s13 + $0xd0] sm:$0xf]
    %v3371 = vld [vmem:[%s13 + $0xd4] sm:$0xf]
    %v3372 = vld [vmem:[%s13 + $0xd8] sm:$0xf]
    %v3373 = vld [vmem:[%s13 + $0xdc] sm:$0xf]
    %v3374 = vld [vmem:[%s13 + $0xe0] sm:$0xf]
    %v3375 = vld [vmem:[%s13 + $0xe4] sm:$0xf]
    %v3376 = vld [vmem:[%s13 + $0xe8] sm:$0xf]
    %v3377 = vld [vmem:[%s13 + $0xec] sm:$0xf]
    %v3378 = vld [vmem:[%s13 + $0xf0] sm:$0xf]
    %v3379 = vld [vmem:[%s13 + $0xf4] sm:$0xf]
    %v3380 = vld [vmem:[%s13 + $0xf8] sm:$0xf]
    %v3381 = vld [vmem:[%s13 + $0xfc] sm:$0xf]
    %v3382 = vld [vmem:[%s11 + $0x10] sm:$0xff]
    %v3383 = vld [vmem:[%s11 + $0x18] sm:$0xff]
    %v3384 = vld [vmem:[%s11 + $0x50] sm:$0xff]
    %v3385 = vld [vmem:[%s11 + $0x58] sm:$0xff]
    %v3386 = vld [vmem:[%s11 + $0x90] sm:$0xff]
    %v3387 = vld [vmem:[%s11 + $0x98] sm:$0xff]
    %v3388 = vld [vmem:[%s11 + $0xd0] sm:$0xff]
    %v3389 = vld [vmem:[%s11 + $0xd8] sm:$0xff]
    %v3390 = vld [vmem:[%s12 + $0x4] sm:$0xf]
    %v3392 = vperm.slane %v3390, 0
    %v3393 = vperm.slane %v3390, 1
    %v3394 = vperm.slane %v3390, 2
    %v3395 = vperm.slane %v3390, 3
    %v3408 = vunpack.c.l.b16 %v3382
    %v3409 = vunpack.c.h.b16 %v3382
    %v3410 = vunpack.c.l.b16 %v3383
    %v3411 = vunpack.c.h.b16 %v3383
    %v3412 = vunpack.c.l.b16 %v3384
    %v3413 = vunpack.c.h.b16 %v3384
    %v3414 = vunpack.c.l.b16 %v3385
    %v3415 = vunpack.c.h.b16 %v3385
    %v3416 = vunpack.c.l.b16 %v3386
    %v3417 = vunpack.c.h.b16 %v3386
    %v3418 = vunpack.c.l.b16 %v3387
    %v3419 = vunpack.c.h.b16 %v3387
    %v3420 = vunpack.c.l.b16 %v3388
    %v3421 = vunpack.c.h.b16 %v3388
    %v3422 = vunpack.c.l.b16 %v3389
    %v3423 = vunpack.c.h.b16 %v3389
    %v3424 = vpack.c.b16 %v3412, %v3408
    %v3425 = vpack.c.b16 %v3413, %v3409
    %v3426 = vpack.c.b16 %v3414, %v3410
    %v3427 = vpack.c.b16 %v3415, %v3411
    %v3428 = vpack.c.b16 %v3420, %v3416
    %v3429 = vpack.c.b16 %v3421, %v3417
    %v3430 = vpack.c.b16 %v3422, %v3418
    %v3431 = vpack.c.b16 %v3423, %v3419
    %3440 = vmatpush.bf16.msra.mxu0 0
    %3441 = vmatpush.bf16.msra.mxu0 0
    %3442 = vmatpush.bf16.msra.mxu0 0
    %3443 = vmatpush.bf16.msra.mxu0 0
    %3444 = vmatpush.bf16.msra.mxu0 0
    %3445 = vmatpush.bf16.msra.mxu0 0
    %3446 = vmatpush.bf16.msra.mxu0 %v3428
    %3447 = vmatpush.bf16.msra.mxu0 %v3424
    %3448 = vmatmul.bf16.gmra.mxu0 %v3248
    %v3449 = vpop.f32.mrf.mxu0
    %v3450 = vadd.f32 %v3392, %v3449
    %v3451 = vpop.f32.mrf.mxu0
    %v3452 = vadd.f32 %v3392, %v3451
    %3453 = vdwg.mxu0
    %3454 = vmatpush.bf16.msra.mxu0 0
    %3455 = vmatpush.bf16.msra.mxu0 0
    %3456 = vmatpush.bf16.msra.mxu0 0
    %3457 = vmatpush.bf16.msra.mxu0 0
    %3458 = vmatpush.bf16.msra.mxu0 0
    %3459 = vmatpush.bf16.msra.mxu0 0
    %3460 = vmatpush.bf16.msra.mxu0 %v3429
    %3461 = vmatpush.bf16.msra.mxu0 %v3425
    %3462 = vmatmul.bf16.gmra.mxu0 %v3248
    %v3463 = vpop.f32.mrf.mxu0
    %v3464 = vadd.f32 %v3393, %v3463
    %v3465 = vpop.f32.mrf.mxu0
    %v3466 = vadd.f32 %v3393, %v3465
    %3467 = vdwg.mxu0
    %3468 = vmatpush.bf16.msra.mxu0 0
    %3469 = vmatpush.bf16.msra.mxu0 0
    %3470 = vmatpush.bf16.msra.mxu0 0
    %3471 = vmatpush.bf16.msra.mxu0 0
    %3472 = vmatpush.bf16.msra.mxu0 0
    %3473 = vmatpush.bf16.msra.mxu0 0
    %3474 = vmatpush.bf16.msra.mxu0 %v3430
    %3475 = vmatpush.bf16.msra.mxu0 %v3426
    %3476 = vmatmul.bf16.gmra.mxu0 %v3248
    %v3477 = vpop.f32.mrf.mxu0
    %v3478 = vadd.f32 %v3394, %v3477
    %v3479 = vpop.f32.mrf.mxu0
    %v3480 = vadd.f32 %v3394, %v3479
    %3481 = vdwg.mxu0
    %3482 = vmatpush.bf16.msra.mxu0 0
    %3483 = vmatpush.bf16.msra.mxu0 0
    %3484 = vmatpush.bf16.msra.mxu0 0
    %3485 = vmatpush.bf16.msra.mxu0 0
    %3486 = vmatpush.bf16.msra.mxu0 0
    %3487 = vmatpush.bf16.msra.mxu0 0
    %3488 = vmatpush.bf16.msra.mxu0 %v3431
    %3489 = vmatpush.bf16.msra.mxu0 %v3427
    %3490 = vmatmul.bf16.gmra.mxu0 %v3248
    %v3491 = vpop.f32.mrf.mxu0
    %v3492 = vadd.f32 %v3395, %v3491
    %v3493 = vpop.f32.mrf.mxu0
    %v3494 = vadd.f32 %v3395, %v3493
    %3495 = vdwg.mxu0
    %v3496 = vmax.f32 %v3450, 0.0
    %v3497 = vmax.f32 %v3464, 0.0
    %v3498 = vmax.f32 %v3478, 0.0
    %v3499 = vmax.f32 %v3492, 0.0
    %v3500 = vmax.f32 %v3452, 0.0
    %v3501 = vmax.f32 %v3466, 0.0
    %v3502 = vmax.f32 %v3480, 0.0
    %v3503 = vmax.f32 %v3494, 0.0
    %v3504 = vpack.c.bf16 %v3500, %v3496
    %v3505 = vpack.c.bf16 %v3501, %v3497
    %v3506 = vpack.c.bf16 %v3502, %v3498
    %v3507 = vpack.c.bf16 %v3503, %v3499
    %v3508 = vld [vmem:[%s13 + $0x100] sm:$0xf]
    %v3509 = vld [vmem:[%s13 + $0x104] sm:$0xf]
    %v3510 = vld [vmem:[%s13 + $0x108] sm:$0xf]
    %v3511 = vld [vmem:[%s13 + $0x10c] sm:$0xf]
    %v3512 = vld [vmem:[%s13 + $0x110] sm:$0xf]
    %v3513 = vld [vmem:[%s13 + $0x114] sm:$0xf]
    %v3514 = vld [vmem:[%s13 + $0x118] sm:$0xf]
    %v3515 = vld [vmem:[%s13 + $0x11c] sm:$0xf]
    %v3516 = vld [vmem:[%s13 + $0x120] sm:$0xf]
    %v3517 = vld [vmem:[%s13 + $0x124] sm:$0xf]
    %v3518 = vld [vmem:[%s13 + $0x128] sm:$0xf]
    %v3519 = vld [vmem:[%s13 + $0x12c] sm:$0xf]
    %v3520 = vld [vmem:[%s13 + $0x130] sm:$0xf]
    %v3521 = vld [vmem:[%s13 + $0x134] sm:$0xf]
    %v3522 = vld [vmem:[%s13 + $0x138] sm:$0xf]
    %v3523 = vld [vmem:[%s13 + $0x13c] sm:$0xf]
    %v3524 = vld [vmem:[%s13 + $0x140] sm:$0xf]
    %v3525 = vld [vmem:[%s13 + $0x144] sm:$0xf]
    %v3526 = vld [vmem:[%s13 + $0x148] sm:$0xf]
    %v3527 = vld [vmem:[%s13 + $0x14c] sm:$0xf]
    %v3528 = vld [vmem:[%s13 + $0x150] sm:$0xf]
    %v3529 = vld [vmem:[%s13 + $0x154] sm:$0xf]
    %v3530 = vld [vmem:[%s13 + $0x158] sm:$0xf]
    %v3531 = vld [vmem:[%s13 + $0x15c] sm:$0xf]
    %v3532 = vld [vmem:[%s13 + $0x160] sm:$0xf]
    %v3533 = vld [vmem:[%s13 + $0x164] sm:$0xf]
    %v3534 = vld [vmem:[%s13 + $0x168] sm:$0xf]
    %v3535 = vld [vmem:[%s13 + $0x16c] sm:$0xf]
    %v3536 = vld [vmem:[%s13 + $0x170] sm:$0xf]
    %v3537 = vld [vmem:[%s13 + $0x174] sm:$0xf]
    %v3538 = vld [vmem:[%s13 + $0x178] sm:$0xf]
    %v3539 = vld [vmem:[%s13 + $0x17c] sm:$0xf]
    %v3540 = vld [vmem:[%s13 + $0x180] sm:$0xf]
    %v3541 = vld [vmem:[%s13 + $0x184] sm:$0xf]
    %v3542 = vld [vmem:[%s13 + $0x188] sm:$0xf]
    %v3543 = vld [vmem:[%s13 + $0x18c] sm:$0xf]
    %v3544 = vld [vmem:[%s13 + $0x190] sm:$0xf]
    %v3545 = vld [vmem:[%s13 + $0x194] sm:$0xf]
    %v3546 = vld [vmem:[%s13 + $0x198] sm:$0xf]
    %v3547 = vld [vmem:[%s13 + $0x19c] sm:$0xf]
    %v3548 = vld [vmem:[%s13 + $0x1a0] sm:$0xf]
    %v3549 = vld [vmem:[%s13 + $0x1a4] sm:$0xf]
    %v3550 = vld [vmem:[%s13 + $0x1a8] sm:$0xf]
    %v3551 = vld [vmem:[%s13 + $0x1ac] sm:$0xf]
    %v3552 = vld [vmem:[%s13 + $0x1b0] sm:$0xf]
    %v3553 = vld [vmem:[%s13 + $0x1b4] sm:$0xf]
    %v3554 = vld [vmem:[%s13 + $0x1b8] sm:$0xf]
    %v3555 = vld [vmem:[%s13 + $0x1bc] sm:$0xf]
    %v3556 = vld [vmem:[%s13 + $0x1c0] sm:$0xf]
    %v3557 = vld [vmem:[%s13 + $0x1c4] sm:$0xf]
    %v3558 = vld [vmem:[%s13 + $0x1c8] sm:$0xf]
    %v3559 = vld [vmem:[%s13 + $0x1cc] sm:$0xf]
    %v3560 = vld [vmem:[%s13 + $0x1d0] sm:$0xf]
    %v3561 = vld [vmem:[%s13 + $0x1d4] sm:$0xf]
    %v3562 = vld [vmem:[%s13 + $0x1d8] sm:$0xf]
    %v3563 = vld [vmem:[%s13 + $0x1dc] sm:$0xf]
    %v3564 = vld [vmem:[%s13 + $0x1e0] sm:$0xf]
    %v3565 = vld [vmem:[%s13 + $0x1e4] sm:$0xf]
    %v3566 = vld [vmem:[%s13 + $0x1e8] sm:$0xf]
    %v3567 = vld [vmem:[%s13 + $0x1ec] sm:$0xf]
    %v3568 = vld [vmem:[%s13 + $0x1f0] sm:$0xf]
    %v3569 = vld [vmem:[%s13 + $0x1f4] sm:$0xf]
    %v3570 = vld [vmem:[%s13 + $0x1f8] sm:$0xf]
    %v3571 = vld [vmem:[%s13 + $0x1fc] sm:$0xf]
    %v3636 = vunpack.c.l.b16 %v3508
    %v3637 = vunpack.c.l.b16 %v3509
    %v3638 = vunpack.c.l.b16 %v3510
    %v3639 = vunpack.c.l.b16 %v3511
    %v3640 = vunpack.c.l.b16 %v3512
    %v3641 = vunpack.c.l.b16 %v3513
    %v3642 = vunpack.c.l.b16 %v3514
    %v3643 = vunpack.c.l.b16 %v3515
    %v3644 = vunpack.c.l.b16 %v3516
    %v3645 = vunpack.c.l.b16 %v3517
    %v3646 = vunpack.c.l.b16 %v3518
    %v3647 = vunpack.c.l.b16 %v3519
    %v3648 = vunpack.c.l.b16 %v3520
    %v3649 = vunpack.c.l.b16 %v3521
    %v3650 = vunpack.c.l.b16 %v3522
    %v3651 = vunpack.c.l.b16 %v3523
    %v3652 = vunpack.c.l.b16 %v3524
    %v3653 = vunpack.c.l.b16 %v3525
    %v3654 = vunpack.c.l.b16 %v3526
    %v3655 = vunpack.c.l.b16 %v3527
    %v3656 = vunpack.c.l.b16 %v3528
    %v3657 = vunpack.c.l.b16 %v3529
    %v3658 = vunpack.c.l.b16 %v3530
    %v3659 = vunpack.c.l.b16 %v3531
    %v3660 = vunpack.c.l.b16 %v3532
    %v3661 = vunpack.c.l.b16 %v3533
    %v3662 = vunpack.c.l.b16 %v3534
    %v3663 = vunpack.c.l.b16 %v3535
    %v3664 = vunpack.c.l.b16 %v3536
    %v3665 = vunpack.c.l.b16 %v3537
    %v3666 = vunpack.c.l.b16 %v3538
    %v3667 = vunpack.c.l.b16 %v3539
    %v3668 = vunpack.c.l.b16 %v3540
    %v3669 = vunpack.c.l.b16 %v3541
    %v3670 = vunpack.c.l.b16 %v3542
    %v3671 = vunpack.c.l.b16 %v3543
    %v3672 = vunpack.c.l.b16 %v3544
    %v3673 = vunpack.c.l.b16 %v3545
    %v3674 = vunpack.c.l.b16 %v3546
    %v3675 = vunpack.c.l.b16 %v3547
    %v3676 = vunpack.c.l.b16 %v3548
    %v3677 = vunpack.c.l.b16 %v3549
    %v3678 = vunpack.c.l.b16 %v3550
    %v3679 = vunpack.c.l.b16 %v3551
    %v3680 = vunpack.c.l.b16 %v3552
    %v3681 = vunpack.c.l.b16 %v3553
    %v3682 = vunpack.c.l.b16 %v3554
    %v3683 = vunpack.c.l.b16 %v3555
    %v3684 = vunpack.c.l.b16 %v3556
    %v3685 = vunpack.c.l.b16 %v3557
    %v3686 = vunpack.c.l.b16 %v3558
    %v3687 = vunpack.c.l.b16 %v3559
    %v3688 = vunpack.c.l.b16 %v3560
    %v3689 = vunpack.c.l.b16 %v3561
    %v3690 = vunpack.c.l.b16 %v3562
    %v3691 = vunpack.c.l.b16 %v3563
    %v3692 = vunpack.c.l.b16 %v3564
    %v3693 = vunpack.c.l.b16 %v3565
    %v3694 = vunpack.c.l.b16 %v3566
    %v3695 = vunpack.c.l.b16 %v3567
    %v3696 = vunpack.c.l.b16 %v3568
    %v3697 = vunpack.c.l.b16 %v3569
    %v3698 = vunpack.c.l.b16 %v3570
    %v3699 = vunpack.c.l.b16 %v3571
    %v3700 = vpack.c.b16 %v3637, %v3636
    %v3701 = vpack.c.b16 %v3639, %v3638
    %v3702 = vpack.c.b16 %v3641, %v3640
    %v3703 = vpack.c.b16 %v3643, %v3642
    %v3704 = vpack.c.b16 %v3645, %v3644
    %v3705 = vpack.c.b16 %v3647, %v3646
    %v3706 = vpack.c.b16 %v3649, %v3648
    %v3707 = vpack.c.b16 %v3651, %v3650
    %v3708 = vpack.c.b16 %v3653, %v3652
    %v3709 = vpack.c.b16 %v3655, %v3654
    %v3710 = vpack.c.b16 %v3657, %v3656
    %v3711 = vpack.c.b16 %v3659, %v3658
    %v3712 = vpack.c.b16 %v3661, %v3660
    %v3713 = vpack.c.b16 %v3663, %v3662
    %v3714 = vpack.c.b16 %v3665, %v3664
    %v3715 = vpack.c.b16 %v3667, %v3666
    %v3716 = vpack.c.b16 %v3669, %v3668
    %v3717 = vpack.c.b16 %v3671, %v3670
    %v3718 = vpack.c.b16 %v3673, %v3672
    %v3719 = vpack.c.b16 %v3675, %v3674
    %v3720 = vpack.c.b16 %v3677, %v3676
    %v3721 = vpack.c.b16 %v3679, %v3678
    %v3722 = vpack.c.b16 %v3681, %v3680
    %v3723 = vpack.c.b16 %v3683, %v3682
    %v3724 = vpack.c.b16 %v3685, %v3684
    %v3725 = vpack.c.b16 %v3687, %v3686
    %v3726 = vpack.c.b16 %v3689, %v3688
    %v3727 = vpack.c.b16 %v3691, %v3690
    %v3728 = vpack.c.b16 %v3693, %v3692
    %v3729 = vpack.c.b16 %v3695, %v3694
    %v3730 = vpack.c.b16 %v3697, %v3696
    %v3731 = vpack.c.b16 %v3699, %v3698
    %3764 = vmatpush.bf16.msra.mxu0 %v3707
    %3765 = vmatpush.bf16.msra.mxu0 %v3706
    %3766 = vmatpush.bf16.msra.mxu0 %v3705
    %3767 = vmatpush.bf16.msra.mxu0 %v3704
    %3768 = vmatpush.bf16.msra.mxu0 %v3703
    %3769 = vmatpush.bf16.msra.mxu0 %v3702
    %3770 = vmatpush.bf16.msra.mxu0 %v3701
    %3771 = vmatpush.bf16.msra.mxu0 %v3700
    %3772 = vmatmul.bf16.gmra.mxu0 %v3504
    %v3773 = vpop.f32.mrf.mxu0
    %v3774 = vadd.f32 0.0, %v3773
    %v3775 = vpop.f32.mrf.mxu0
    %v3776 = vadd.f32 0.0, %v3775
    %3777 = vdwg.mxu0
    %3778 = vmatpush.bf16.msra.mxu0 %v3715
    %3779 = vmatpush.bf16.msra.mxu0 %v3714
    %3780 = vmatpush.bf16.msra.mxu0 %v3713
    %3781 = vmatpush.bf16.msra.mxu0 %v3712
    %3782 = vmatpush.bf16.msra.mxu0 %v3711
    %3783 = vmatpush.bf16.msra.mxu0 %v3710
    %3784 = vmatpush.bf16.msra.mxu0 %v3709
    %3785 = vmatpush.bf16.msra.mxu0 %v3708
    %3786 = vmatmul.bf16.gmra.mxu0 %v3505
    %v3787 = vpop.f32.mrf.mxu0
    %v3788 = vadd.f32 %v3774, %v3787
    %v3789 = vpop.f32.mrf.mxu0
    %v3790 = vadd.f32 %v3776, %v3789
    %3791 = vdwg.mxu0
    %3792 = vmatpush.bf16.msra.mxu0 %v3723
    %3793 = vmatpush.bf16.msra.mxu0 %v3722
    %3794 = vmatpush.bf16.msra.mxu0 %v3721
    %3795 = vmatpush.bf16.msra.mxu0 %v3720
    %3796 = vmatpush.bf16.msra.mxu0 %v3719
    %3797 = vmatpush.bf16.msra.mxu0 %v3718
    %3798 = vmatpush.bf16.msra.mxu0 %v3717
    %3799 = vmatpush.bf16.msra.mxu0 %v3716
    %3800 = vmatmul.bf16.gmra.mxu0 %v3506
    %v3801 = vpop.f32.mrf.mxu0
    %v3802 = vadd.f32 %v3788, %v3801
    %v3803 = vpop.f32.mrf.mxu0
    %v3804 = vadd.f32 %v3790, %v3803
    %3805 = vdwg.mxu0
    %3806 = vmatpush.bf16.msra.mxu0 %v3731
    %3807 = vmatpush.bf16.msra.mxu0 %v3730
    %3808 = vmatpush.bf16.msra.mxu0 %v3729
    %3809 = vmatpush.bf16.msra.mxu0 %v3728
    %3810 = vmatpush.bf16.msra.mxu0 %v3727
    %3811 = vmatpush.bf16.msra.mxu0 %v3726
    %3812 = vmatpush.bf16.msra.mxu0 %v3725
    %3813 = vmatpush.bf16.msra.mxu0 %v3724
    %3814 = vmatmul.bf16.gmra.mxu0 %v3507
    %v3815 = vpop.f32.mrf.mxu0
    %v3816 = vadd.f32 %v3802, %v3815
    %v3817 = vpop.f32.mrf.mxu0
    %v3818 = vadd.f32 %v3804, %v3817
    %3819 = vdwg.mxu0
    %v3884 = vunpack.c.l.b16 %v3318
    %v3885 = vunpack.c.l.b16 %v3319
    %v3886 = vunpack.c.l.b16 %v3320
    %v3887 = vunpack.c.l.b16 %v3321
    %v3888 = vunpack.c.l.b16 %v3322
    %v3889 = vunpack.c.l.b16 %v3323
    %v3890 = vunpack.c.l.b16 %v3324
    %v3891 = vunpack.c.l.b16 %v3325
    %v3892 = vunpack.c.l.b16 %v3326
    %v3893 = vunpack.c.l.b16 %v3327
    %v3894 = vunpack.c.l.b16 %v3328
    %v3895 = vunpack.c.l.b16 %v3329
    %v3896 = vunpack.c.l.b16 %v3330
    %v3897 = vunpack.c.l.b16 %v3331
    %v3898 = vunpack.c.l.b16 %v3332
    %v3899 = vunpack.c.l.b16 %v3333
    %v3900 = vunpack.c.l.b16 %v3334
    %v3901 = vunpack.c.l.b16 %v3335
    %v3902 = vunpack.c.l.b16 %v3336
    %v3903 = vunpack.c.l.b16 %v3337
    %v3904 = vunpack.c.l.b16 %v3338
    %v3905 = vunpack.c.l.b16 %v3339
    %v3906 = vunpack.c.l.b16 %v3340
    %v3907 = vunpack.c.l.b16 %v3341
    %v3908 = vunpack.c.l.b16 %v3342
    %v3909 = vunpack.c.l.b16 %v3343
    %v3910 = vunpack.c.l.b16 %v3344
    %v3911 = vunpack.c.l.b16 %v3345
    %v3912 = vunpack.c.l.b16 %v3346
    %v3913 = vunpack.c.l.b16 %v3347
    %v3914 = vunpack.c.l.b16 %v3348
    %v3915 = vunpack.c.l.b16 %v3349
    %v3916 = vunpack.c.l.b16 %v3350
    %v3917 = vunpack.c.l.b16 %v3351
    %v3918 = vunpack.c.l.b16 %v3352
    %v3919 = vunpack.c.l.b16 %v3353
    %v3920 = vunpack.c.l.b16 %v3354
    %v3921 = vunpack.c.l.b16 %v3355
    %v3922 = vunpack.c.l.b16 %v3356
    %v3923 = vunpack.c.l.b16 %v3357
    %v3924 = vunpack.c.l.b16 %v3358
    %v3925 = vunpack.c.l.b16 %v3359
    %v3926 = vunpack.c.l.b16 %v3360
    %v3927 = vunpack.c.l.b16 %v3361
    %v3928 = vunpack.c.l.b16 %v3362
    %v3929 = vunpack.c.l.b16 %v3363
    %v3930 = vunpack.c.l.b16 %v3364
    %v3931 = vunpack.c.l.b16 %v3365
    %v3932 = vunpack.c.l.b16 %v3366
    %v3933 = vunpack.c.l.b16 %v3367
    %v3934 = vunpack.c.l.b16 %v3368
    %v3935 = vunpack.c.l.b16 %v3369
    %v3936 = vunpack.c.l.b16 %v3370
    %v3937 = vunpack.c.l.b16 %v3371
    %v3938 = vunpack.c.l.b16 %v3372
    %v3939 = vunpack.c.l.b16 %v3373
    %v3940 = vunpack.c.l.b16 %v3374
    %v3941 = vunpack.c.l.b16 %v3375
    %v3942 = vunpack.c.l.b16 %v3376
    %v3943 = vunpack.c.l.b16 %v3377
    %v3944 = vunpack.c.l.b16 %v3378
    %v3945 = vunpack.c.l.b16 %v3379
    %v3946 = vunpack.c.l.b16 %v3380
    %v3947 = vunpack.c.l.b16 %v3381
    %v3948 = vpack.c.b16 %v3885, %v3884
    %v3949 = vpack.c.b16 %v3887, %v3886
    %v3950 = vpack.c.b16 %v3889, %v3888
    %v3951 = vpack.c.b16 %v3891, %v3890
    %v3952 = vpack.c.b16 %v3893, %v3892
    %v3953 = vpack.c.b16 %v3895, %v3894
    %v3954 = vpack.c.b16 %v3897, %v3896
    %v3955 = vpack.c.b16 %v3899, %v3898
    %v3956 = vpack.c.b16 %v3901, %v3900
    %v3957 = vpack.c.b16 %v3903, %v3902
    %v3958 = vpack.c.b16 %v3905, %v3904
    %v3959 = vpack.c.b16 %v3907, %v3906
    %v3960 = vpack.c.b16 %v3909, %v3908
    %v3961 = vpack.c.b16 %v3911, %v3910
    %v3962 = vpack.c.b16 %v3913, %v3912
    %v3963 = vpack.c.b16 %v3915, %v3914
    %v3964 = vpack.c.b16 %v3917, %v3916
    %v3965 = vpack.c.b16 %v3919, %v3918
    %v3966 = vpack.c.b16 %v3921, %v3920
    %v3967 = vpack.c.b16 %v3923, %v3922
    %v3968 = vpack.c.b16 %v3925, %v3924
    %v3969 = vpack.c.b16 %v3927, %v3926
    %v3970 = vpack.c.b16 %v3929, %v3928
    %v3971 = vpack.c.b16 %v3931, %v3930
    %v3972 = vpack.c.b16 %v3933, %v3932
    %v3973 = vpack.c.b16 %v3935, %v3934
    %v3974 = vpack.c.b16 %v3937, %v3936
    %v3975 = vpack.c.b16 %v3939, %v3938
    %v3976 = vpack.c.b16 %v3941, %v3940
    %v3977 = vpack.c.b16 %v3943, %v3942
    %v3978 = vpack.c.b16 %v3945, %v3944
    %v3979 = vpack.c.b16 %v3947, %v3946
    %4012 = vmatpush.bf16.msra.mxu0 %v3955
    %4013 = vmatpush.bf16.msra.mxu0 %v3954
    %4014 = vmatpush.bf16.msra.mxu0 %v3953
    %4015 = vmatpush.bf16.msra.mxu0 %v3952
    %4016 = vmatpush.bf16.msra.mxu0 %v3951
    %4017 = vmatpush.bf16.msra.mxu0 %v3950
    %4018 = vmatpush.bf16.msra.mxu0 %v3949
    %4019 = vmatpush.bf16.msra.mxu0 %v3948
    %4020 = vmatmul.bf16.gmra.mxu0 %v3314
    %v4021 = vpop.f32.mrf.mxu0
    %v4022 = vadd.f32 %v3816, %v4021
    %v4023 = vpop.f32.mrf.mxu0
    %v4024 = vadd.f32 %v3818, %v4023
    %4025 = vdwg.mxu0
    %4026 = vmatpush.bf16.msra.mxu0 %v3963
    %4027 = vmatpush.bf16.msra.mxu0 %v3962
    %4028 = vmatpush.bf16.msra.mxu0 %v3961
    %4029 = vmatpush.bf16.msra.mxu0 %v3960
    %4030 = vmatpush.bf16.msra.mxu0 %v3959
    %4031 = vmatpush.bf16.msra.mxu0 %v3958
    %4032 = vmatpush.bf16.msra.mxu0 %v3957
    %4033 = vmatpush.bf16.msra.mxu0 %v3956
    %4034 = vmatmul.bf16.gmra.mxu0 %v3315
    %v4035 = vpop.f32.mrf.mxu0
    %v4036 = vadd.f32 %v4022, %v4035
    %v4037 = vpop.f32.mrf.mxu0
    %v4038 = vadd.f32 %v4024, %v4037
    %4039 = vdwg.mxu0
    %4040 = vmatpush.bf16.msra.mxu0 %v3971
    %4041 = vmatpush.bf16.msra.mxu0 %v3970
    %4042 = vmatpush.bf16.msra.mxu0 %v3969
    %4043 = vmatpush.bf16.msra.mxu0 %v3968
    %4044 = vmatpush.bf16.msra.mxu0 %v3967
    %4045 = vmatpush.bf16.msra.mxu0 %v3966
    %4046 = vmatpush.bf16.msra.mxu0 %v3965
    %4047 = vmatpush.bf16.msra.mxu0 %v3964
    %4048 = vmatmul.bf16.gmra.mxu0 %v3316
    %v4049 = vpop.f32.mrf.mxu0
    %v4050 = vadd.f32 %v4036, %v4049
    %v4051 = vpop.f32.mrf.mxu0
    %v4052 = vadd.f32 %v4038, %v4051
    %4053 = vdwg.mxu0
    %4054 = vmatpush.bf16.msra.mxu0 %v3979
    %4055 = vmatpush.bf16.msra.mxu0 %v3978
    %4056 = vmatpush.bf16.msra.mxu0 %v3977
    %4057 = vmatpush.bf16.msra.mxu0 %v3976
    %4058 = vmatpush.bf16.msra.mxu0 %v3975
    %4059 = vmatpush.bf16.msra.mxu0 %v3974
    %4060 = vmatpush.bf16.msra.mxu0 %v3973
    %4061 = vmatpush.bf16.msra.mxu0 %v3972
    %4062 = vmatmul.bf16.gmra.mxu0 %v3317
    %v4063 = vpop.f32.mrf.mxu0
    %v4064 = vadd.f32 %v4050, %v4063
    %v4065 = vpop.f32.mrf.mxu0
    %v4066 = vadd.f32 %v4052, %v4065
    %4067 = vdwg.mxu0
    %v4068 = vld [vmem:[%s11 + $0x20] sm:$0xff]
    %v4069 = vld [vmem:[%s11 + $0x28] sm:$0xff]
    %v4070 = vld [vmem:[%s11 + $0x60] sm:$0xff]
    %v4071 = vld [vmem:[%s11 + $0x68] sm:$0xff]
    %v4072 = vld [vmem:[%s11 + $0xa0] sm:$0xff]
    %v4073 = vld [vmem:[%s11 + $0xa8] sm:$0xff]
    %v4074 = vld [vmem:[%s11 + $0xe0] sm:$0xff]
    %v4075 = vld [vmem:[%s11 + $0xe8] sm:$0xff]
    %v4076 = vld [vmem:[%s12 + $0x8] sm:$0xf]
    %v4078 = vperm.slane %v4076, 0
    %v4079 = vperm.slane %v4076, 1
    %v4080 = vperm.slane %v4076, 2
    %v4081 = vperm.slane %v4076, 3
    %v4094 = vunpack.c.l.b16 %v4068
    %v4095 = vunpack.c.h.b16 %v4068
    %v4096 = vunpack.c.l.b16 %v4069
    %v4097 = vunpack.c.h.b16 %v4069
    %v4098 = vunpack.c.l.b16 %v4070
    %v4099 = vunpack.c.h.b16 %v4070
    %v4100 = vunpack.c.l.b16 %v4071
    %v4101 = vunpack.c.h.b16 %v4071
    %v4102 = vunpack.c.l.b16 %v4072
    %v4103 = vunpack.c.h.b16 %v4072
    %v4104 = vunpack.c.l.b16 %v4073
    %v4105 = vunpack.c.h.b16 %v4073
    %v4106 = vunpack.c.l.b16 %v4074
    %v4107 = vunpack.c.h.b16 %v4074
    %v4108 = vunpack.c.l.b16 %v4075
    %v4109 = vunpack.c.h.b16 %v4075
    %v4110 = vpack.c.b16 %v4098, %v4094
    %v4111 = vpack.c.b16 %v4099, %v4095
    %v4112 = vpack.c.b16 %v4100, %v4096
    %v4113 = vpack.c.b16 %v4101, %v4097
    %v4114 = vpack.c.b16 %v4106, %v4102
    %v4115 = vpack.c.b16 %v4107, %v4103
    %v4116 = vpack.c.b16 %v4108, %v4104
    %v4117 = vpack.c.b16 %v4109, %v4105
    %4126 = vmatpush.bf16.msra.mxu0 0
    %4127 = vmatpush.bf16.msra.mxu0 0
    %4128 = vmatpush.bf16.msra.mxu0 0
    %4129 = vmatpush.bf16.msra.mxu0 0
    %4130 = vmatpush.bf16.msra.mxu0 0
    %4131 = vmatpush.bf16.msra.mxu0 0
    %4132 = vmatpush.bf16.msra.mxu0 %v4114
    %4133 = vmatpush.bf16.msra.mxu0 %v4110
    %4134 = vmatmul.bf16.gmra.mxu0 %v3248
    %v4135 = vpop.f32.mrf.mxu0
    %v4136 = vadd.f32 %v4078, %v4135
    %v4137 = vpop.f32.mrf.mxu0
    %v4138 = vadd.f32 %v4078, %v4137
    %4139 = vdwg.mxu0
    %4140 = vmatpush.bf16.msra.mxu0 0
    %4141 = vmatpush.bf16.msra.mxu0 0
    %4142 = vmatpush.bf16.msra.mxu0 0
    %4143 = vmatpush.bf16.msra.mxu0 0
    %4144 = vmatpush.bf16.msra.mxu0 0
    %4145 = vmatpush.bf16.msra.mxu0 0
    %4146 = vmatpush.bf16.msra.mxu0 %v4115
    %4147 = vmatpush.bf16.msra.mxu0 %v4111
    %4148 = vmatmul.bf16.gmra.mxu0 %v3248
    %v4149 = vpop.f32.mrf.mxu0
    %v4150 = vadd.f32 %v4079, %v4149
    %v4151 = vpop.f32.mrf.mxu0
    %v4152 = vadd.f32 %v4079, %v4151
    %4153 = vdwg.mxu0
    %4154 = vmatpush.bf16.msra.mxu0 0
    %4155 = vmatpush.bf16.msra.mxu0 0
    %4156 = vmatpush.bf16.msra.mxu0 0
    %4157 = vmatpush.bf16.msra.mxu0 0
    %4158 = vmatpush.bf16.msra.mxu0 0
    %4159 = vmatpush.bf16.msra.mxu0 0
    %4160 = vmatpush.bf16.msra.mxu0 %v4116
    %4161 = vmatpush.bf16.msra.mxu0 %v4112
    %4162 = vmatmul.bf16.gmra.mxu0 %v3248
    %v4163 = vpop.f32.mrf.mxu0
    %v4164 = vadd.f32 %v4080, %v4163
    %v4165 = vpop.f32.mrf.mxu0
    %v4166 = vadd.f32 %v4080, %v4165
    %4167 = vdwg.mxu0
    %4168 = vmatpush.bf16.msra.mxu0 0
    %4169 = vmatpush.bf16.msra.mxu0 0
    %4170 = vmatpush.bf16.msra.mxu0 0
    %4171 = vmatpush.bf16.msra.mxu0 0
    %4172 = vmatpush.bf16.msra.mxu0 0
    %4173 = vmatpush.bf16.msra.mxu0 0
    %4174 = vmatpush.bf16.msra.mxu0 %v4117
    %4175 = vmatpush.bf16.msra.mxu0 %v4113
    %4176 = vmatmul.bf16.gmra.mxu0 %v3248
    %v4177 = vpop.f32.mrf.mxu0
    %v4178 = vadd.f32 %v4081, %v4177
    %v4179 = vpop.f32.mrf.mxu0
    %v4180 = vadd.f32 %v4081, %v4179
    %4181 = vdwg.mxu0
    %v4182 = vmax.f32 %v4136, 0.0
    %v4183 = vmax.f32 %v4150, 0.0
    %v4184 = vmax.f32 %v4164, 0.0
    %v4185 = vmax.f32 %v4178, 0.0
    %v4186 = vmax.f32 %v4138, 0.0
    %v4187 = vmax.f32 %v4152, 0.0
    %v4188 = vmax.f32 %v4166, 0.0
    %v4189 = vmax.f32 %v4180, 0.0
    %v4190 = vpack.c.bf16 %v4186, %v4182
    %v4191 = vpack.c.bf16 %v4187, %v4183
    %v4192 = vpack.c.bf16 %v4188, %v4184
    %v4193 = vpack.c.bf16 %v4189, %v4185
    %v4194 = vld [vmem:[%s13 + $0x200] sm:$0xf]
    %v4195 = vld [vmem:[%s13 + $0x204] sm:$0xf]
    %v4196 = vld [vmem:[%s13 + $0x208] sm:$0xf]
    %v4197 = vld [vmem:[%s13 + $0x20c] sm:$0xf]
    %v4198 = vld [vmem:[%s13 + $0x210] sm:$0xf]
    %v4199 = vld [vmem:[%s13 + $0x214] sm:$0xf]
    %v4200 = vld [vmem:[%s13 + $0x218] sm:$0xf]
    %v4201 = vld [vmem:[%s13 + $0x21c] sm:$0xf]
    %v4202 = vld [vmem:[%s13 + $0x220] sm:$0xf]
    %v4203 = vld [vmem:[%s13 + $0x224] sm:$0xf]
    %v4204 = vld [vmem:[%s13 + $0x228] sm:$0xf]
    %v4205 = vld [vmem:[%s13 + $0x22c] sm:$0xf]
    %v4206 = vld [vmem:[%s13 + $0x230] sm:$0xf]
    %v4207 = vld [vmem:[%s13 + $0x234] sm:$0xf]
    %v4208 = vld [vmem:[%s13 + $0x238] sm:$0xf]
    %v4209 = vld [vmem:[%s13 + $0x23c] sm:$0xf]
    %v4210 = vld [vmem:[%s13 + $0x240] sm:$0xf]
    %v4211 = vld [vmem:[%s13 + $0x244] sm:$0xf]
    %v4212 = vld [vmem:[%s13 + $0x248] sm:$0xf]
    %v4213 = vld [vmem:[%s13 + $0x24c] sm:$0xf]
    %v4214 = vld [vmem:[%s13 + $0x250] sm:$0xf]
    %v4215 = vld [vmem:[%s13 + $0x254] sm:$0xf]
    %v4216 = vld [vmem:[%s13 + $0x258] sm:$0xf]
    %v4217 = vld [vmem:[%s13 + $0x25c] sm:$0xf]
    %v4218 = vld [vmem:[%s13 + $0x260] sm:$0xf]
    %v4219 = vld [vmem:[%s13 + $0x264] sm:$0xf]
    %v4220 = vld [vmem:[%s13 + $0x268] sm:$0xf]
    %v4221 = vld [vmem:[%s13 + $0x26c] sm:$0xf]
    %v4222 = vld [vmem:[%s13 + $0x270] sm:$0xf]
    %v4223 = vld [vmem:[%s13 + $0x274] sm:$0xf]
    %v4224 = vld [vmem:[%s13 + $0x278] sm:$0xf]
    %v4225 = vld [vmem:[%s13 + $0x27c] sm:$0xf]
    %v4226 = vld [vmem:[%s13 + $0x280] sm:$0xf]
    %v4227 = vld [vmem:[%s13 + $0x284] sm:$0xf]
    %v4228 = vld [vmem:[%s13 + $0x288] sm:$0xf]
    %v4229 = vld [vmem:[%s13 + $0x28c] sm:$0xf]
    %v4230 = vld [vmem:[%s13 + $0x290] sm:$0xf]
    %v4231 = vld [vmem:[%s13 + $0x294] sm:$0xf]
    %v4232 = vld [vmem:[%s13 + $0x298] sm:$0xf]
    %v4233 = vld [vmem:[%s13 + $0x29c] sm:$0xf]
    %v4234 = vld [vmem:[%s13 + $0x2a0] sm:$0xf]
    %v4235 = vld [vmem:[%s13 + $0x2a4] sm:$0xf]
    %v4236 = vld [vmem:[%s13 + $0x2a8] sm:$0xf]
    %v4237 = vld [vmem:[%s13 + $0x2ac] sm:$0xf]
    %v4238 = vld [vmem:[%s13 + $0x2b0] sm:$0xf]
    %v4239 = vld [vmem:[%s13 + $0x2b4] sm:$0xf]
    %v4240 = vld [vmem:[%s13 + $0x2b8] sm:$0xf]
    %v4241 = vld [vmem:[%s13 + $0x2bc] sm:$0xf]
    %v4242 = vld [vmem:[%s13 + $0x2c0] sm:$0xf]
    %v4243 = vld [vmem:[%s13 + $0x2c4] sm:$0xf]
    %v4244 = vld [vmem:[%s13 + $0x2c8] sm:$0xf]
    %v4245 = vld [vmem:[%s13 + $0x2cc] sm:$0xf]
    %v4246 = vld [vmem:[%s13 + $0x2d0] sm:$0xf]
    %v4247 = vld [vmem:[%s13 + $0x2d4] sm:$0xf]
    %v4248 = vld [vmem:[%s13 + $0x2d8] sm:$0xf]
    %v4249 = vld [vmem:[%s13 + $0x2dc] sm:$0xf]
    %v4250 = vld [vmem:[%s13 + $0x2e0] sm:$0xf]
    %v4251 = vld [vmem:[%s13 + $0x2e4] sm:$0xf]
    %v4252 = vld [vmem:[%s13 + $0x2e8] sm:$0xf]
    %v4253 = vld [vmem:[%s13 + $0x2ec] sm:$0xf]
    %v4254 = vld [vmem:[%s13 + $0x2f0] sm:$0xf]
    %v4255 = vld [vmem:[%s13 + $0x2f4] sm:$0xf]
    %v4256 = vld [vmem:[%s13 + $0x2f8] sm:$0xf]
    %v4257 = vld [vmem:[%s13 + $0x2fc] sm:$0xf]
    %v4322 = vunpack.c.l.b16 %v4194
    %v4323 = vunpack.c.l.b16 %v4195
    %v4324 = vunpack.c.l.b16 %v4196
    %v4325 = vunpack.c.l.b16 %v4197
    %v4326 = vunpack.c.l.b16 %v4198
    %v4327 = vunpack.c.l.b16 %v4199
    %v4328 = vunpack.c.l.b16 %v4200
    %v4329 = vunpack.c.l.b16 %v4201
    %v4330 = vunpack.c.l.b16 %v4202
    %v4331 = vunpack.c.l.b16 %v4203
    %v4332 = vunpack.c.l.b16 %v4204
    %v4333 = vunpack.c.l.b16 %v4205
    %v4334 = vunpack.c.l.b16 %v4206
    %v4335 = vunpack.c.l.b16 %v4207
    %v4336 = vunpack.c.l.b16 %v4208
    %v4337 = vunpack.c.l.b16 %v4209
    %v4338 = vunpack.c.l.b16 %v4210
    %v4339 = vunpack.c.l.b16 %v4211
    %v4340 = vunpack.c.l.b16 %v4212
    %v4341 = vunpack.c.l.b16 %v4213
    %v4342 = vunpack.c.l.b16 %v4214
    %v4343 = vunpack.c.l.b16 %v4215
    %v4344 = vunpack.c.l.b16 %v4216
    %v4345 = vunpack.c.l.b16 %v4217
    %v4346 = vunpack.c.l.b16 %v4218
    %v4347 = vunpack.c.l.b16 %v4219
    %v4348 = vunpack.c.l.b16 %v4220
    %v4349 = vunpack.c.l.b16 %v4221
    %v4350 = vunpack.c.l.b16 %v4222
    %v4351 = vunpack.c.l.b16 %v4223
    %v4352 = vunpack.c.l.b16 %v4224
    %v4353 = vunpack.c.l.b16 %v4225
    %v4354 = vunpack.c.l.b16 %v4226
    %v4355 = vunpack.c.l.b16 %v4227
    %v4356 = vunpack.c.l.b16 %v4228
    %v4357 = vunpack.c.l.b16 %v4229
    %v4358 = vunpack.c.l.b16 %v4230
    %v4359 = vunpack.c.l.b16 %v4231
    %v4360 = vunpack.c.l.b16 %v4232
    %v4361 = vunpack.c.l.b16 %v4233
    %v4362 = vunpack.c.l.b16 %v4234
    %v4363 = vunpack.c.l.b16 %v4235
    %v4364 = vunpack.c.l.b16 %v4236
    %v4365 = vunpack.c.l.b16 %v4237
    %v4366 = vunpack.c.l.b16 %v4238
    %v4367 = vunpack.c.l.b16 %v4239
    %v4368 = vunpack.c.l.b16 %v4240
    %v4369 = vunpack.c.l.b16 %v4241
    %v4370 = vunpack.c.l.b16 %v4242
    %v4371 = vunpack.c.l.b16 %v4243
    %v4372 = vunpack.c.l.b16 %v4244
    %v4373 = vunpack.c.l.b16 %v4245
    %v4374 = vunpack.c.l.b16 %v4246
    %v4375 = vunpack.c.l.b16 %v4247
    %v4376 = vunpack.c.l.b16 %v4248
    %v4377 = vunpack.c.l.b16 %v4249
    %v4378 = vunpack.c.l.b16 %v4250
    %v4379 = vunpack.c.l.b16 %v4251
    %v4380 = vunpack.c.l.b16 %v4252
    %v4381 = vunpack.c.l.b16 %v4253
    %v4382 = vunpack.c.l.b16 %v4254
    %v4383 = vunpack.c.l.b16 %v4255
    %v4384 = vunpack.c.l.b16 %v4256
    %v4385 = vunpack.c.l.b16 %v4257
    %v4386 = vpack.c.b16 %v4323, %v4322
    %v4387 = vpack.c.b16 %v4325, %v4324
    %v4388 = vpack.c.b16 %v4327, %v4326
    %v4389 = vpack.c.b16 %v4329, %v4328
    %v4390 = vpack.c.b16 %v4331, %v4330
    %v4391 = vpack.c.b16 %v4333, %v4332
    %v4392 = vpack.c.b16 %v4335, %v4334
    %v4393 = vpack.c.b16 %v4337, %v4336
    %v4394 = vpack.c.b16 %v4339, %v4338
    %v4395 = vpack.c.b16 %v4341, %v4340
    %v4396 = vpack.c.b16 %v4343, %v4342
    %v4397 = vpack.c.b16 %v4345, %v4344
    %v4398 = vpack.c.b16 %v4347, %v4346
    %v4399 = vpack.c.b16 %v4349, %v4348
    %v4400 = vpack.c.b16 %v4351, %v4350
    %v4401 = vpack.c.b16 %v4353, %v4352
    %v4402 = vpack.c.b16 %v4355, %v4354
    %v4403 = vpack.c.b16 %v4357, %v4356
    %v4404 = vpack.c.b16 %v4359, %v4358
    %v4405 = vpack.c.b16 %v4361, %v4360
    %v4406 = vpack.c.b16 %v4363, %v4362
    %v4407 = vpack.c.b16 %v4365, %v4364
    %v4408 = vpack.c.b16 %v4367, %v4366
    %v4409 = vpack.c.b16 %v4369, %v4368
    %v4410 = vpack.c.b16 %v4371, %v4370
    %v4411 = vpack.c.b16 %v4373, %v4372
    %v4412 = vpack.c.b16 %v4375, %v4374
    %v4413 = vpack.c.b16 %v4377, %v4376
    %v4414 = vpack.c.b16 %v4379, %v4378
    %v4415 = vpack.c.b16 %v4381, %v4380
    %v4416 = vpack.c.b16 %v4383, %v4382
    %v4417 = vpack.c.b16 %v4385, %v4384
    %4450 = vmatpush.bf16.msra.mxu0 %v4393
    %4451 = vmatpush.bf16.msra.mxu0 %v4392
    %4452 = vmatpush.bf16.msra.mxu0 %v4391
    %4453 = vmatpush.bf16.msra.mxu0 %v4390
    %4454 = vmatpush.bf16.msra.mxu0 %v4389
    %4455 = vmatpush.bf16.msra.mxu0 %v4388
    %4456 = vmatpush.bf16.msra.mxu0 %v4387
    %4457 = vmatpush.bf16.msra.mxu0 %v4386
    %4458 = vmatmul.bf16.gmra.mxu0 %v4190
    %v4459 = vpop.f32.mrf.mxu0
    %v4460 = vadd.f32 0.0, %v4459
    %v4461 = vpop.f32.mrf.mxu0
    %v4462 = vadd.f32 0.0, %v4461
    %4463 = vdwg.mxu0
    %4464 = vmatpush.bf16.msra.mxu0 %v4401
    %4465 = vmatpush.bf16.msra.mxu0 %v4400
    %4466 = vmatpush.bf16.msra.mxu0 %v4399
    %4467 = vmatpush.bf16.msra.mxu0 %v4398
    %4468 = vmatpush.bf16.msra.mxu0 %v4397
    %4469 = vmatpush.bf16.msra.mxu0 %v4396
    %4470 = vmatpush.bf16.msra.mxu0 %v4395
    %4471 = vmatpush.bf16.msra.mxu0 %v4394
    %4472 = vmatmul.bf16.gmra.mxu0 %v4191
    %v4473 = vpop.f32.mrf.mxu0
    %v4474 = vadd.f32 %v4460, %v4473
    %v4475 = vpop.f32.mrf.mxu0
    %v4476 = vadd.f32 %v4462, %v4475
    %4477 = vdwg.mxu0
    %4478 = vmatpush.bf16.msra.mxu0 %v4409
    %4479 = vmatpush.bf16.msra.mxu0 %v4408
    %4480 = vmatpush.bf16.msra.mxu0 %v4407
    %4481 = vmatpush.bf16.msra.mxu0 %v4406
    %4482 = vmatpush.bf16.msra.mxu0 %v4405
    %4483 = vmatpush.bf16.msra.mxu0 %v4404
    %4484 = vmatpush.bf16.msra.mxu0 %v4403
    %4485 = vmatpush.bf16.msra.mxu0 %v4402
    %4486 = vmatmul.bf16.gmra.mxu0 %v4192
    %v4487 = vpop.f32.mrf.mxu0
    %v4488 = vadd.f32 %v4474, %v4487
    %v4489 = vpop.f32.mrf.mxu0
    %v4490 = vadd.f32 %v4476, %v4489
    %4491 = vdwg.mxu0
    %4492 = vmatpush.bf16.msra.mxu0 %v4417
    %4493 = vmatpush.bf16.msra.mxu0 %v4416
    %4494 = vmatpush.bf16.msra.mxu0 %v4415
    %4495 = vmatpush.bf16.msra.mxu0 %v4414
    %4496 = vmatpush.bf16.msra.mxu0 %v4413
    %4497 = vmatpush.bf16.msra.mxu0 %v4412
    %4498 = vmatpush.bf16.msra.mxu0 %v4411
    %4499 = vmatpush.bf16.msra.mxu0 %v4410
    %4500 = vmatmul.bf16.gmra.mxu0 %v4193
    %v4501 = vpop.f32.mrf.mxu0
    %v4502 = vadd.f32 %v4488, %v4501
    %v4503 = vpop.f32.mrf.mxu0
    %v4504 = vadd.f32 %v4490, %v4503
    %4505 = vdwg.mxu0
    %v4506 = vadd.f32 %v4064, %v4502
    %v4507 = vadd.f32 %v4066, %v4504
    %v4508 = vld [vmem:[%s11 + $0x30] sm:$0xff]
    %v4509 = vld [vmem:[%s11 + $0x38] sm:$0xff]
    %v4510 = vld [vmem:[%s11 + $0x70] sm:$0xff]
    %v4511 = vld [vmem:[%s11 + $0x78] sm:$0xff]
    %v4512 = vld [vmem:[%s11 + $0xb0] sm:$0xff]
    %v4513 = vld [vmem:[%s11 + $0xb8] sm:$0xff]
    %v4514 = vld [vmem:[%s11 + $0xf0] sm:$0xff]
    %v4515 = vld [vmem:[%s11 + $0xf8] sm:$0xff]
    %v4516 = vld [vmem:[%s12 + $0xc] sm:$0xf]
    %v4518 = vperm.slane %v4516, 0
    %v4519 = vperm.slane %v4516, 1
    %v4520 = vperm.slane %v4516, 2
    %v4521 = vperm.slane %v4516, 3
    %v4534 = vunpack.c.l.b16 %v4508
    %v4535 = vunpack.c.h.b16 %v4508
    %v4536 = vunpack.c.l.b16 %v4509
    %v4537 = vunpack.c.h.b16 %v4509
    %v4538 = vunpack.c.l.b16 %v4510
    %v4539 = vunpack.c.h.b16 %v4510
    %v4540 = vunpack.c.l.b16 %v4511
    %v4541 = vunpack.c.h.b16 %v4511
    %v4542 = vunpack.c.l.b16 %v4512
    %v4543 = vunpack.c.h.b16 %v4512
    %v4544 = vunpack.c.l.b16 %v4513
    %v4545 = vunpack.c.h.b16 %v4513
    %v4546 = vunpack.c.l.b16 %v4514
    %v4547 = vunpack.c.h.b16 %v4514
    %v4548 = vunpack.c.l.b16 %v4515
    %v4549 = vunpack.c.h.b16 %v4515
    %v4550 = vpack.c.b16 %v4538, %v4534
    %v4551 = vpack.c.b16 %v4539, %v4535
    %v4552 = vpack.c.b16 %v4540, %v4536
    %v4553 = vpack.c.b16 %v4541, %v4537
    %v4554 = vpack.c.b16 %v4546, %v4542
    %v4555 = vpack.c.b16 %v4547, %v4543
    %v4556 = vpack.c.b16 %v4548, %v4544
    %v4557 = vpack.c.b16 %v4549, %v4545
    %4566 = vmatpush.bf16.msra.mxu0 0
    %4567 = vmatpush.bf16.msra.mxu0 0
    %4568 = vmatpush.bf16.msra.mxu0 0
    %4569 = vmatpush.bf16.msra.mxu0 0
    %4570 = vmatpush.bf16.msra.mxu0 0
    %4571 = vmatpush.bf16.msra.mxu0 0
    %4572 = vmatpush.bf16.msra.mxu0 %v4554
    %4573 = vmatpush.bf16.msra.mxu0 %v4550
    %4574 = vmatmul.bf16.gmra.mxu0 %v3248
    %v4575 = vpop.f32.mrf.mxu0
    %v4576 = vadd.f32 %v4518, %v4575
    %v4577 = vpop.f32.mrf.mxu0
    %v4578 = vadd.f32 %v4518, %v4577
    %4579 = vdwg.mxu0
    %4580 = vmatpush.bf16.msra.mxu0 0
    %4581 = vmatpush.bf16.msra.mxu0 0
    %4582 = vmatpush.bf16.msra.mxu0 0
    %4583 = vmatpush.bf16.msra.mxu0 0
    %4584 = vmatpush.bf16.msra.mxu0 0
    %4585 = vmatpush.bf16.msra.mxu0 0
    %4586 = vmatpush.bf16.msra.mxu0 %v4555
    %4587 = vmatpush.bf16.msra.mxu0 %v4551
    %4588 = vmatmul.bf16.gmra.mxu0 %v3248
    %v4589 = vpop.f32.mrf.mxu0
    %v4590 = vadd.f32 %v4519, %v4589
    %v4591 = vpop.f32.mrf.mxu0
    %v4592 = vadd.f32 %v4519, %v4591
    %4593 = vdwg.mxu0
    %4594 = vmatpush.bf16.msra.mxu0 0
    %4595 = vmatpush.bf16.msra.mxu0 0
    %4596 = vmatpush.bf16.msra.mxu0 0
    %4597 = vmatpush.bf16.msra.mxu0 0
    %4598 = vmatpush.bf16.msra.mxu0 0
    %4599 = vmatpush.bf16.msra.mxu0 0
    %4600 = vmatpush.bf16.msra.mxu0 %v4556
    %4601 = vmatpush.bf16.msra.mxu0 %v4552
    %4602 = vmatmul.bf16.gmra.mxu0 %v3248
    %v4603 = vpop.f32.mrf.mxu0
    %v4604 = vadd.f32 %v4520, %v4603
    %v4605 = vpop.f32.mrf.mxu0
    %v4606 = vadd.f32 %v4520, %v4605
    %4607 = vdwg.mxu0
    %4608 = vmatpush.bf16.msra.mxu0 0
    %4609 = vmatpush.bf16.msra.mxu0 0
    %4610 = vmatpush.bf16.msra.mxu0 0
    %4611 = vmatpush.bf16.msra.mxu0 0
    %4612 = vmatpush.bf16.msra.mxu0 0
    %4613 = vmatpush.bf16.msra.mxu0 0
    %4614 = vmatpush.bf16.msra.mxu0 %v4557
    %4615 = vmatpush.bf16.msra.mxu0 %v4553
    %4616 = vmatmul.bf16.gmra.mxu0 %v3248
    %v4617 = vpop.f32.mrf.mxu0
    %v4618 = vadd.f32 %v4521, %v4617
    %v4619 = vpop.f32.mrf.mxu0
    %v4620 = vadd.f32 %v4521, %v4619
    %4621 = vdwg.mxu0
    %v4622 = vmax.f32 %v4576, 0.0
    %v4623 = vmax.f32 %v4590, 0.0
    %v4624 = vmax.f32 %v4604, 0.0
    %v4625 = vmax.f32 %v4618, 0.0
    %v4626 = vmax.f32 %v4578, 0.0
    %v4627 = vmax.f32 %v4592, 0.0
    %v4628 = vmax.f32 %v4606, 0.0
    %v4629 = vmax.f32 %v4620, 0.0
    %v4630 = vpack.c.bf16 %v4626, %v4622
    %v4631 = vpack.c.bf16 %v4627, %v4623
    %v4632 = vpack.c.bf16 %v4628, %v4624
    %v4633 = vpack.c.bf16 %v4629, %v4625
    %v4634 = vld [vmem:[%s13 + $0x300] sm:$0xf]
    %v4635 = vld [vmem:[%s13 + $0x304] sm:$0xf]
    %v4636 = vld [vmem:[%s13 + $0x308] sm:$0xf]
    %v4637 = vld [vmem:[%s13 + $0x30c] sm:$0xf]
    %v4638 = vld [vmem:[%s13 + $0x310] sm:$0xf]
    %v4639 = vld [vmem:[%s13 + $0x314] sm:$0xf]
    %v4640 = vld [vmem:[%s13 + $0x318] sm:$0xf]
    %v4641 = vld [vmem:[%s13 + $0x31c] sm:$0xf]
    %v4642 = vld [vmem:[%s13 + $0x320] sm:$0xf]
    %v4643 = vld [vmem:[%s13 + $0x324] sm:$0xf]
    %v4644 = vld [vmem:[%s13 + $0x328] sm:$0xf]
    %v4645 = vld [vmem:[%s13 + $0x32c] sm:$0xf]
    %v4646 = vld [vmem:[%s13 + $0x330] sm:$0xf]
    %v4647 = vld [vmem:[%s13 + $0x334] sm:$0xf]
    %v4648 = vld [vmem:[%s13 + $0x338] sm:$0xf]
    %v4649 = vld [vmem:[%s13 + $0x33c] sm:$0xf]
    %v4650 = vld [vmem:[%s13 + $0x340] sm:$0xf]
    %v4651 = vld [vmem:[%s13 + $0x344] sm:$0xf]
    %v4652 = vld [vmem:[%s13 + $0x348] sm:$0xf]
    %v4653 = vld [vmem:[%s13 + $0x34c] sm:$0xf]
    %v4654 = vld [vmem:[%s13 + $0x350] sm:$0xf]
    %v4655 = vld [vmem:[%s13 + $0x354] sm:$0xf]
    %v4656 = vld [vmem:[%s13 + $0x358] sm:$0xf]
    %v4657 = vld [vmem:[%s13 + $0x35c] sm:$0xf]
    %v4658 = vld [vmem:[%s13 + $0x360] sm:$0xf]
    %v4659 = vld [vmem:[%s13 + $0x364] sm:$0xf]
    %v4660 = vld [vmem:[%s13 + $0x368] sm:$0xf]
    %v4661 = vld [vmem:[%s13 + $0x36c] sm:$0xf]
    %v4662 = vld [vmem:[%s13 + $0x370] sm:$0xf]
    %v4663 = vld [vmem:[%s13 + $0x374] sm:$0xf]
    %v4664 = vld [vmem:[%s13 + $0x378] sm:$0xf]
    %v4665 = vld [vmem:[%s13 + $0x37c] sm:$0xf]
    %v4666 = vld [vmem:[%s13 + $0x380] sm:$0xf]
    %v4667 = vld [vmem:[%s13 + $0x384] sm:$0xf]
    %v4668 = vld [vmem:[%s13 + $0x388] sm:$0xf]
    %v4669 = vld [vmem:[%s13 + $0x38c] sm:$0xf]
    %v4670 = vld [vmem:[%s13 + $0x390] sm:$0xf]
    %v4671 = vld [vmem:[%s13 + $0x394] sm:$0xf]
    %v4672 = vld [vmem:[%s13 + $0x398] sm:$0xf]
    %v4673 = vld [vmem:[%s13 + $0x39c] sm:$0xf]
    %v4674 = vld [vmem:[%s13 + $0x3a0] sm:$0xf]
    %v4675 = vld [vmem:[%s13 + $0x3a4] sm:$0xf]
    %v4676 = vld [vmem:[%s13 + $0x3a8] sm:$0xf]
    %v4677 = vld [vmem:[%s13 + $0x3ac] sm:$0xf]
    %v4678 = vld [vmem:[%s13 + $0x3b0] sm:$0xf]
    %v4679 = vld [vmem:[%s13 + $0x3b4] sm:$0xf]
    %v4680 = vld [vmem:[%s13 + $0x3b8] sm:$0xf]
    %v4681 = vld [vmem:[%s13 + $0x3bc] sm:$0xf]
    %v4682 = vld [vmem:[%s13 + $0x3c0] sm:$0xf]
    %v4683 = vld [vmem:[%s13 + $0x3c4] sm:$0xf]
    %v4684 = vld [vmem:[%s13 + $0x3c8] sm:$0xf]
    %v4685 = vld [vmem:[%s13 + $0x3cc] sm:$0xf]
    %v4686 = vld [vmem:[%s13 + $0x3d0] sm:$0xf]
    %v4687 = vld [vmem:[%s13 + $0x3d4] sm:$0xf]
    %v4688 = vld [vmem:[%s13 + $0x3d8] sm:$0xf]
    %v4689 = vld [vmem:[%s13 + $0x3dc] sm:$0xf]
    %v4690 = vld [vmem:[%s13 + $0x3e0] sm:$0xf]
    %v4691 = vld [vmem:[%s13 + $0x3e4] sm:$0xf]
    %v4692 = vld [vmem:[%s13 + $0x3e8] sm:$0xf]
    %v4693 = vld [vmem:[%s13 + $0x3ec] sm:$0xf]
    %v4694 = vld [vmem:[%s13 + $0x3f0] sm:$0xf]
    %v4695 = vld [vmem:[%s13 + $0x3f4] sm:$0xf]
    %v4696 = vld [vmem:[%s13 + $0x3f8] sm:$0xf]
    %v4697 = vld [vmem:[%s13 + $0x3fc] sm:$0xf]
    %v4762 = vunpack.c.l.b16 %v4634
    %v4763 = vunpack.c.l.b16 %v4635
    %v4764 = vunpack.c.l.b16 %v4636
    %v4765 = vunpack.c.l.b16 %v4637
    %v4766 = vunpack.c.l.b16 %v4638
    %v4767 = vunpack.c.l.b16 %v4639
    %v4768 = vunpack.c.l.b16 %v4640
    %v4769 = vunpack.c.l.b16 %v4641
    %v4770 = vunpack.c.l.b16 %v4642
    %v4771 = vunpack.c.l.b16 %v4643
    %v4772 = vunpack.c.l.b16 %v4644
    %v4773 = vunpack.c.l.b16 %v4645
    %v4774 = vunpack.c.l.b16 %v4646
    %v4775 = vunpack.c.l.b16 %v4647
    %v4776 = vunpack.c.l.b16 %v4648
    %v4777 = vunpack.c.l.b16 %v4649
    %v4778 = vunpack.c.l.b16 %v4650
    %v4779 = vunpack.c.l.b16 %v4651
    %v4780 = vunpack.c.l.b16 %v4652
    %v4781 = vunpack.c.l.b16 %v4653
    %v4782 = vunpack.c.l.b16 %v4654
    %v4783 = vunpack.c.l.b16 %v4655
    %v4784 = vunpack.c.l.b16 %v4656
    %v4785 = vunpack.c.l.b16 %v4657
    %v4786 = vunpack.c.l.b16 %v4658
    %v4787 = vunpack.c.l.b16 %v4659
    %v4788 = vunpack.c.l.b16 %v4660
    %v4789 = vunpack.c.l.b16 %v4661
    %v4790 = vunpack.c.l.b16 %v4662
    %v4791 = vunpack.c.l.b16 %v4663
    %v4792 = vunpack.c.l.b16 %v4664
    %v4793 = vunpack.c.l.b16 %v4665
    %v4794 = vunpack.c.l.b16 %v4666
    %v4795 = vunpack.c.l.b16 %v4667
    %v4796 = vunpack.c.l.b16 %v4668
    %v4797 = vunpack.c.l.b16 %v4669
    %v4798 = vunpack.c.l.b16 %v4670
    %v4799 = vunpack.c.l.b16 %v4671
    %v4800 = vunpack.c.l.b16 %v4672
    %v4801 = vunpack.c.l.b16 %v4673
    %v4802 = vunpack.c.l.b16 %v4674
    %v4803 = vunpack.c.l.b16 %v4675
    %v4804 = vunpack.c.l.b16 %v4676
    %v4805 = vunpack.c.l.b16 %v4677
    %v4806 = vunpack.c.l.b16 %v4678
    %v4807 = vunpack.c.l.b16 %v4679
    %v4808 = vunpack.c.l.b16 %v4680
    %v4809 = vunpack.c.l.b16 %v4681
    %v4810 = vunpack.c.l.b16 %v4682
    %v4811 = vunpack.c.l.b16 %v4683
    %v4812 = vunpack.c.l.b16 %v4684
    %v4813 = vunpack.c.l.b16 %v4685
    %v4814 = vunpack.c.l.b16 %v4686
    %v4815 = vunpack.c.l.b16 %v4687
    %v4816 = vunpack.c.l.b16 %v4688
    %v4817 = vunpack.c.l.b16 %v4689
    %v4818 = vunpack.c.l.b16 %v4690
    %v4819 = vunpack.c.l.b16 %v4691
    %v4820 = vunpack.c.l.b16 %v4692
    %v4821 = vunpack.c.l.b16 %v4693
    %v4822 = vunpack.c.l.b16 %v4694
    %v4823 = vunpack.c.l.b16 %v4695
    %v4824 = vunpack.c.l.b16 %v4696
    %v4825 = vunpack.c.l.b16 %v4697
    %v4826 = vpack.c.b16 %v4763, %v4762
    %v4827 = vpack.c.b16 %v4765, %v4764
    %v4828 = vpack.c.b16 %v4767, %v4766
    %v4829 = vpack.c.b16 %v4769, %v4768
    %v4830 = vpack.c.b16 %v4771, %v4770
    %v4831 = vpack.c.b16 %v4773, %v4772
    %v4832 = vpack.c.b16 %v4775, %v4774
    %v4833 = vpack.c.b16 %v4777, %v4776
    %v4834 = vpack.c.b16 %v4779, %v4778
    %v4835 = vpack.c.b16 %v4781, %v4780
    %v4836 = vpack.c.b16 %v4783, %v4782
    %v4837 = vpack.c.b16 %v4785, %v4784
    %v4838 = vpack.c.b16 %v4787, %v4786
    %v4839 = vpack.c.b16 %v4789, %v4788
    %v4840 = vpack.c.b16 %v4791, %v4790
    %v4841 = vpack.c.b16 %v4793, %v4792
    %v4842 = vpack.c.b16 %v4795, %v4794
    %v4843 = vpack.c.b16 %v4797, %v4796
    %v4844 = vpack.c.b16 %v4799, %v4798
    %v4845 = vpack.c.b16 %v4801, %v4800
    %v4846 = vpack.c.b16 %v4803, %v4802
    %v4847 = vpack.c.b16 %v4805, %v4804
    %v4848 = vpack.c.b16 %v4807, %v4806
    %v4849 = vpack.c.b16 %v4809, %v4808
    %v4850 = vpack.c.b16 %v4811, %v4810
    %v4851 = vpack.c.b16 %v4813, %v4812
    %v4852 = vpack.c.b16 %v4815, %v4814
    %v4853 = vpack.c.b16 %v4817, %v4816
    %v4854 = vpack.c.b16 %v4819, %v4818
    %v4855 = vpack.c.b16 %v4821, %v4820
    %v4856 = vpack.c.b16 %v4823, %v4822
    %v4857 = vpack.c.b16 %v4825, %v4824
    %4890 = vmatpush.bf16.msra.mxu0 %v4833
    %4891 = vmatpush.bf16.msra.mxu0 %v4832
    %4892 = vmatpush.bf16.msra.mxu0 %v4831
    %4893 = vmatpush.bf16.msra.mxu0 %v4830
    %4894 = vmatpush.bf16.msra.mxu0 %v4829
    %4895 = vmatpush.bf16.msra.mxu0 %v4828
    %4896 = vmatpush.bf16.msra.mxu0 %v4827
    %4897 = vmatpush.bf16.msra.mxu0 %v4826
    %4898 = vmatmul.bf16.gmra.mxu0 %v4630
    %v4899 = vpop.f32.mrf.mxu0
    %v4900 = vadd.f32 0.0, %v4899
    %v4901 = vpop.f32.mrf.mxu0
    %v4902 = vadd.f32 0.0, %v4901
    %4903 = vdwg.mxu0
    %4904 = vmatpush.bf16.msra.mxu0 %v4841
    %4905 = vmatpush.bf16.msra.mxu0 %v4840
    %4906 = vmatpush.bf16.msra.mxu0 %v4839
    %4907 = vmatpush.bf16.msra.mxu0 %v4838
    %4908 = vmatpush.bf16.msra.mxu0 %v4837
    %4909 = vmatpush.bf16.msra.mxu0 %v4836
    %4910 = vmatpush.bf16.msra.mxu0 %v4835
    %4911 = vmatpush.bf16.msra.mxu0 %v4834
    %4912 = vmatmul.bf16.gmra.mxu0 %v4631
    %v4913 = vpop.f32.mrf.mxu0
    %v4914 = vadd.f32 %v4900, %v4913
    %v4915 = vpop.f32.mrf.mxu0
    %v4916 = vadd.f32 %v4902, %v4915
    %4917 = vdwg.mxu0
    %4918 = vmatpush.bf16.msra.mxu0 %v4849
    %4919 = vmatpush.bf16.msra.mxu0 %v4848
    %4920 = vmatpush.bf16.msra.mxu0 %v4847
    %4921 = vmatpush.bf16.msra.mxu0 %v4846
    %4922 = vmatpush.bf16.msra.mxu0 %v4845
    %4923 = vmatpush.bf16.msra.mxu0 %v4844
    %4924 = vmatpush.bf16.msra.mxu0 %v4843
    %4925 = vmatpush.bf16.msra.mxu0 %v4842
    %4926 = vmatmul.bf16.gmra.mxu0 %v4632
    %v4927 = vpop.f32.mrf.mxu0
    %v4928 = vadd.f32 %v4914, %v4927
    %v4929 = vpop.f32.mrf.mxu0
    %v4930 = vadd.f32 %v4916, %v4929
    %4931 = vdwg.mxu0
    %4932 = vmatpush.bf16.msra.mxu0 %v4857
    %4933 = vmatpush.bf16.msra.mxu0 %v4856
    %4934 = vmatpush.bf16.msra.mxu0 %v4855
    %4935 = vmatpush.bf16.msra.mxu0 %v4854
    %4936 = vmatpush.bf16.msra.mxu0 %v4853
    %4937 = vmatpush.bf16.msra.mxu0 %v4852
    %4938 = vmatpush.bf16.msra.mxu0 %v4851
    %4939 = vmatpush.bf16.msra.mxu0 %v4850
    %4940 = vmatmul.bf16.gmra.mxu0 %v4633
    %v4941 = vpop.f32.mrf.mxu0
    %v4942 = vadd.f32 %v4928, %v4941
    %v4943 = vpop.f32.mrf.mxu0
    %v4944 = vadd.f32 %v4930, %v4943
    %4945 = vdwg.mxu0
    %v4946 = vadd.f32 %v4506, %v4942
    %v4947 = vadd.f32 %v4507, %v4944
    %v4949 = vperm.slane %v348, 0
    %v4951 = vadd.f32 %v4946, %v4949
    %v4952 = vadd.f32 %v4947, %v4949
    %v4955 = vrot.slane %v4951, 2
    %v4956 = vrot.slane %v4951, 4
    %v4957 = vrot.slane %v4951, 6
    %v4958 = vrot.slane %v4952, 2
    %v4959 = vrot.slane %v4952, 4
    %v4960 = vrot.slane %v4952, 6
    %v4967 = vadd.f32 %v3153, %v4951
    %v4968 = vadd.f32 %v3154, %v4955
    %v4969 = vadd.f32 %v3155, %v4956
    %v4970 = vadd.f32 %v3156, %v4957
    %v4971 = vadd.f32 %v3157, %v4952
    %v4972 = vadd.f32 %v3158, %v4958
    %v4973 = vadd.f32 %v3159, %v4959
    %v4974 = vadd.f32 %v3160, %v4960
    %4983 = vst [vmem:[#allocation1] ss:$4 sm:$0xff] %v4967
    %s4984 = scalar_lea.vmem [#allocation1], 1
    %4985 = vst [vmem:[%s4984] ss:$4 sm:$0xff] %v4968
    %s4986 = scalar_lea.vmem [#allocation1], 2
    %4987 = vst [vmem:[%s4986] ss:$4 sm:$0xff] %v4969
    %s4988 = scalar_lea.vmem [#allocation1], 3
    %4989 = vst [vmem:[%s4988] ss:$4 sm:$0xff] %v4970
    %s4990 = scalar_lea.vmem [#allocation1], 32
    %4991 = vst [vmem:[%s4990] ss:$4 sm:$0xff] %v4971
    %s4992 = scalar_lea.vmem [#allocation1], 33
    %4993 = vst [vmem:[%s4992] ss:$4 sm:$0xff] %v4972
    %s4994 = scalar_lea.vmem [#allocation1], 34
    %4995 = vst [vmem:[%s4994] ss:$4 sm:$0xff] %v4973
    %s4996 = scalar_lea.vmem [#allocation1], 35
    %4997 = vst [vmem:[%s4996] ss:$4 sm:$0xff] %v4974
    %v4998 = vld.sshfl [vmem:[#allocation1] sm:$0xff pattern:$0x73625140]
    %v4999 = vld.sshfl [vmem:[#allocation1 + $0x20] sm:$0xff pattern:$0x73625140]
    %v5002 = vsel %vm400, %v4998, 0.0
    %5003 = vadd.xlane.f32.xlu0 %v5002
    %v5004 = vpop.xlane.xlu0 %5003
    %v5005 = vsel %vm400, %v4999, 0.0
    %5006 = vadd.xlane.f32.xlu0 %v5005
    %v5007 = vpop.xlane.xlu0 %5006
    %v5008 = vmul.f32 %v5004, %v2959
    %v5009 = vmul.f32 %v5007, %v2959
    %v5013 = vunpack.c.l.s4 269488144
    %v5014 = vunpack.c.0.s8 %v5013
    %v5015 = vperm.slane %v5008, %v5014
    %v5017 = vunpack.c.l.s4 842150450
    %v5018 = vunpack.c.0.s8 %v5017
    %v5019 = vperm.slane %v5008, %v5018
    %v5021 = vunpack.c.l.s4 1414812756
    %v5022 = vunpack.c.0.s8 %v5021
    %v5023 = vperm.slane %v5008, %v5022
    %v5025 = vunpack.c.l.s4 1987475062
    %v5026 = vunpack.c.0.s8 %v5025
    %v5027 = vperm.slane %v5008, %v5026
    %v5029 = vunpack.c.l.s4 269488144
    %v5030 = vunpack.c.0.s8 %v5029
    %v5031 = vperm.slane %v5009, %v5030
    %v5033 = vunpack.c.l.s4 842150450
    %v5034 = vunpack.c.0.s8 %v5033
    %v5035 = vperm.slane %v5009, %v5034
    %v5037 = vunpack.c.l.s4 1414812756
    %v5038 = vunpack.c.0.s8 %v5037
    %v5039 = vperm.slane %v5009, %v5038
    %v5041 = vunpack.c.l.s4 1987475062
    %v5042 = vunpack.c.0.s8 %v5041
    %v5043 = vperm.slane %v5009, %v5042
    %v5052 = vsub.f32 %v4967, %v5015
    %v5053 = vsub.f32 %v4968, %v5019
    %v5054 = vsub.f32 %v4969, %v5023
    %v5055 = vsub.f32 %v4970, %v5027
    %v5056 = vsub.f32 %v4971, %v5031
    %v5057 = vsub.f32 %v4972, %v5035
    %v5058 = vsub.f32 %v4973, %v5039
    %v5059 = vsub.f32 %v4974, %v5043
    %v5060 = vmul.f32 %v5052, %v5052
    %v5061 = vmul.f32 %v5053, %v5053
    %v5062 = vmul.f32 %v5054, %v5054
    %v5063 = vmul.f32 %v5055, %v5055
    %v5064 = vmul.f32 %v5056, %v5056
    %v5065 = vmul.f32 %v5057, %v5057
    %v5066 = vmul.f32 %v5058, %v5058
    %v5067 = vmul.f32 %v5059, %v5059
    %5076 = vst [vmem:[#allocation1] ss:$4 sm:$0xff] %v5060
    %s5077 = scalar_lea.vmem [#allocation1], 1
    %5078 = vst [vmem:[%s5077] ss:$4 sm:$0xff] %v5061
    %s5079 = scalar_lea.vmem [#allocation1], 2
    %5080 = vst [vmem:[%s5079] ss:$4 sm:$0xff] %v5062
    %s5081 = scalar_lea.vmem [#allocation1], 3
    %5082 = vst [vmem:[%s5081] ss:$4 sm:$0xff] %v5063
    %s5083 = scalar_lea.vmem [#allocation1], 32
    %5084 = vst [vmem:[%s5083] ss:$4 sm:$0xff] %v5064
    %s5085 = scalar_lea.vmem [#allocation1], 33
    %5086 = vst [vmem:[%s5085] ss:$4 sm:$0xff] %v5065
    %s5087 = scalar_lea.vmem [#allocation1], 34
    %5088 = vst [vmem:[%s5087] ss:$4 sm:$0xff] %v5066
    %s5089 = scalar_lea.vmem [#allocation1], 35
    %5090 = vst [vmem:[%s5089] ss:$4 sm:$0xff] %v5067
    %v5091 = vld.sshfl [vmem:[#allocation1] sm:$0xff pattern:$0x73625140]
    %v5092 = vld.sshfl [vmem:[#allocation1 + $0x20] sm:$0xff pattern:$0x73625140]
    %v5095 = vsel %vm400, %v5091, 0.0
    %5096 = vadd.xlane.f32.xlu0 %v5095
    %v5097 = vpop.xlane.xlu0 %5096
    %v5098 = vsel %vm400, %v5092, 0.0
    %5099 = vadd.xlane.f32.xlu0 %v5098
    %v5100 = vpop.xlane.xlu0 %5099
    %v5101 = vmul.f32 %v5097, %v2959
    %v5102 = vmul.f32 %v5100, %v2959
    %v5103 = vadd.f32 %v5101, 1e-05
    %v5104 = vadd.f32 %v5102, 1e-05
    %v5105 = vrsqrt.pop %v5103
    %v5106 = vmul.f32 %v5105, %v5103
    %v5107 = vmul.f32 %v5106, %v5105
    %v5108 = vmul.f32 0.5, %v5107
    %v5109 = vsub.f32 1.5, %v5108
    %v5110 = vmul.f32 %v5105, %v5109
    %vm5111 = vweird.f32 %v5103
    %vm5112 = vweird.f32 %v5105
    %vm5113 = vmor %vm5111, %vm5112
    %v5114 = vsel %vm5113, %v5105, %v5110
    %v5115 = vrsqrt.pop %v5104
    %v5116 = vmul.f32 %v5115, %v5104
    %v5117 = vmul.f32 %v5116, %v5115
    %v5118 = vmul.f32 0.5, %v5117
    %v5119 = vsub.f32 1.5, %v5118
    %v5120 = vmul.f32 %v5115, %v5119
    %vm5121 = vweird.f32 %v5104
    %vm5122 = vweird.f32 %v5115
    %vm5123 = vmor %vm5121, %vm5122
    %v5124 = vsel %vm5123, %v5115, %v5120
    %v5128 = vunpack.c.l.s4 269488144
    %v5129 = vunpack.c.0.s8 %v5128
    %v5130 = vperm.slane %v5114, %v5129
    %v5132 = vunpack.c.l.s4 842150450
    %v5133 = vunpack.c.0.s8 %v5132
    %v5134 = vperm.slane %v5114, %v5133
    %v5136 = vunpack.c.l.s4 1414812756
    %v5137 = vunpack.c.0.s8 %v5136
    %v5138 = vperm.slane %v5114, %v5137
    %v5140 = vunpack.c.l.s4 1987475062
    %v5141 = vunpack.c.0.s8 %v5140
    %v5142 = vperm.slane %v5114, %v5141
    %v5144 = vunpack.c.l.s4 269488144
    %v5145 = vunpack.c.0.s8 %v5144
    %v5146 = vperm.slane %v5124, %v5145
    %v5148 = vunpack.c.l.s4 842150450
    %v5149 = vunpack.c.0.s8 %v5148
    %v5150 = vperm.slane %v5124, %v5149
    %v5152 = vunpack.c.l.s4 1414812756
    %v5153 = vunpack.c.0.s8 %v5152
    %v5154 = vperm.slane %v5124, %v5153
    %v5156 = vunpack.c.l.s4 1987475062
    %v5157 = vunpack.c.0.s8 %v5156
    %v5158 = vperm.slane %v5124, %v5157
    %v5167 = vmul.f32 %v5052, %v5130
    %v5168 = vmul.f32 %v5053, %v5134
    %v5169 = vmul.f32 %v5054, %v5138
    %v5170 = vmul.f32 %v5055, %v5142
    %v5171 = vmul.f32 %v5056, %v5146
    %v5172 = vmul.f32 %v5057, %v5150
    %v5173 = vmul.f32 %v5058, %v5154
    %v5174 = vmul.f32 %v5059, %v5158
    %v5176 = vperm.slane %v351, 0
    %v5178 = vrot.slane %v5176, 2
    %v5179 = vrot.slane %v5176, 4
    %v5180 = vrot.slane %v5176, 6
    %v5184 = vmul.f32 %v5167, %v5176
    %v5185 = vmul.f32 %v5168, %v5178
    %v5186 = vmul.f32 %v5169, %v5179
    %v5187 = vmul.f32 %v5170, %v5180
    %v5188 = vmul.f32 %v5171, %v5176
    %v5189 = vmul.f32 %v5172, %v5178
    %v5190 = vmul.f32 %v5173, %v5179
    %v5191 = vmul.f32 %v5174, %v5180
    %v5193 = vperm.slane %v352, 0
    %v5195 = vrot.slane %v5193, 2
    %v5196 = vrot.slane %v5193, 4
    %v5197 = vrot.slane %v5193, 6
    %v5201 = vadd.f32 %v5184, %v5193
    %v5202 = vadd.f32 %v5185, %v5195
    %v5203 = vadd.f32 %v5186, %v5196
    %v5204 = vadd.f32 %v5187, %v5197
    %v5205 = vadd.f32 %v5188, %v5193
    %v5206 = vadd.f32 %v5189, %v5195
    %v5207 = vadd.f32 %v5190, %v5196
    %v5208 = vadd.f32 %v5191, %v5197
    %s5209 = scalar_lea.vmem %s4, 1
    %v5210 = vld [vmem:[%s5209] sm:$0x1]
    %s5211 = scalar_lea.vmem %s6, 1
    %v5212 = vld [vmem:[%s5211] sm:$0x1]
    %s5213 = scalar_lea.vmem %s14, 1
    %v5214 = vld [vmem:[%s5213] sm:$0x1]
    %s5215 = scalar_lea.vmem %s7, 1
    %v5216 = vld [vmem:[%s5215] sm:$0x1]
    %s5217 = scalar_lea.vmem %s8, 1
    %v5218 = vld [vmem:[%s5217] sm:$0x1]
    %s5219 = scalar_lea.vmem %s9, 1
    %v5220 = vld [vmem:[%s5219] sm:$0x1]
    %s5221 = scalar_lea.vmem %s10, 1
    %v5222 = vld [vmem:[%s5221] sm:$0x1]
    %5231 = vst [vmem:[#allocation1] ss:$4 sm:$0xff] %v5201
    %s5232 = scalar_lea.vmem [#allocation1], 1
    %5233 = vst [vmem:[%s5232] ss:$4 sm:$0xff] %v5202
    %s5234 = scalar_lea.vmem [#allocation1], 2
    %5235 = vst [vmem:[%s5234] ss:$4 sm:$0xff] %v5203
    %s5236 = scalar_lea.vmem [#allocation1], 3
    %5237 = vst [vmem:[%s5236] ss:$4 sm:$0xff] %v5204
    %s5238 = scalar_lea.vmem [#allocation1], 32
    %5239 = vst [vmem:[%s5238] ss:$4 sm:$0xff] %v5205
    %s5240 = scalar_lea.vmem [#allocation1], 33
    %5241 = vst [vmem:[%s5240] ss:$4 sm:$0xff] %v5206
    %s5242 = scalar_lea.vmem [#allocation1], 34
    %5243 = vst [vmem:[%s5242] ss:$4 sm:$0xff] %v5207
    %s5244 = scalar_lea.vmem [#allocation1], 35
    %5245 = vst [vmem:[%s5244] ss:$4 sm:$0xff] %v5208
    %v5246 = vld.sshfl [vmem:[#allocation1] sm:$0xff pattern:$0x73625140]
    %v5247 = vld.sshfl [vmem:[#allocation1 + $0x20] sm:$0xff pattern:$0x73625140]
    %v5250 = vpack.c.bf16 %v5247, %v5246
    %s5251 = scalar_lea.vmem %s3, 16
    %v5252 = vld [vmem:[%s5251] sm:$0xf]
    %v5253 = vld [vmem:[%s5251 + $0x4] sm:$0xf]
    %v5254 = vld [vmem:[%s5251 + $0x8] sm:$0xf]
    %v5255 = vld [vmem:[%s5251 + $0xc] sm:$0xf]
    %v5257 = vperm.slane %v5210, 0
    %v5263 = vunpack.c.l.b16 %v5252
    %v5264 = vunpack.c.l.b16 %v5253
    %v5265 = vunpack.c.l.b16 %v5254
    %v5266 = vunpack.c.l.b16 %v5255
    %v5267 = vpack.c.b16 %v5264, %v5263
    %v5268 = vpack.c.b16 %v5266, %v5265
    %v5272 = vsel %vm400, %v5250, 0
    %5274 = vmatpush.bf16.msra.mxu0 0
    %5275 = vmatpush.bf16.msra.mxu0 0
    %5276 = vmatpush.bf16.msra.mxu0 0
    %5277 = vmatpush.bf16.msra.mxu0 0
    %5278 = vmatpush.bf16.msra.mxu0 0
    %5279 = vmatpush.bf16.msra.mxu0 0
    %5280 = vmatpush.bf16.msra.mxu0 %v5268
    %5281 = vmatpush.bf16.msra.mxu0 %v5267
    %5282 = vmatmul.bf16.gmra.mxu0 %v5272
    %v5283 = vpop.f32.mrf.mxu0
    %v5284 = vadd.f32 %v5257, %v5283
    %v5285 = vpop.f32.mrf.mxu0
    %v5286 = vadd.f32 %v5257, %v5285
    %5287 = vdwg.mxu0
    %v5288 = vmul.f32 %v5284, 0.35355338
    %v5289 = vmul.f32 %v5286, 0.35355338
    %v5292 = vrot.slane %v5288, 2
    %v5293 = vrot.slane %v5288, 4
    %v5294 = vrot.slane %v5288, 6
    %v5295 = vrot.slane %v5289, 2
    %v5296 = vrot.slane %v5289, 4
    %v5297 = vrot.slane %v5289, 6
    %v5300 = vrot.slane %v5284, 2
    %v5301 = vrot.slane %v5284, 4
    %v5302 = vrot.slane %v5284, 6
    %v5303 = vrot.slane %v5286, 2
    %v5304 = vrot.slane %v5286, 4
    %v5305 = vrot.slane %v5286, 6
    %5306 = vrot.lane.b32.xlu0 %v5288, 120
    %v5307 = vpop.permute.xlu0 %5306
    %5308 = vrot.lane.b32.xlu0 %v5292, 120
    %v5309 = vpop.permute.xlu0 %5308
    %5310 = vrot.lane.b32.xlu0 %v5293, 120
    %v5311 = vpop.permute.xlu0 %5310
    %5312 = vrot.lane.b32.xlu0 %v5294, 120
    %v5313 = vpop.permute.xlu0 %5312
    %5314 = vrot.lane.b32.xlu0 %v5289, 120
    %v5315 = vpop.permute.xlu0 %5314
    %5316 = vrot.lane.b32.xlu0 %v5295, 120
    %v5317 = vpop.permute.xlu0 %5316
    %5318 = vrot.lane.b32.xlu0 %v5296, 120
    %v5319 = vpop.permute.xlu0 %5318
    %5320 = vrot.lane.b32.xlu0 %v5297, 120
    %v5321 = vpop.permute.xlu0 %5320
    %5322 = vrot.lane.b32.xlu0 %v5288, 112
    %v5323 = vpop.permute.xlu0 %5322
    %5324 = vrot.lane.b32.xlu0 %v5292, 112
    %v5325 = vpop.permute.xlu0 %5324
    %5326 = vrot.lane.b32.xlu0 %v5293, 112
    %v5327 = vpop.permute.xlu0 %5326
    %5328 = vrot.lane.b32.xlu0 %v5294, 112
    %v5329 = vpop.permute.xlu0 %5328
    %5330 = vrot.lane.b32.xlu0 %v5289, 112
    %v5331 = vpop.permute.xlu0 %5330
    %5332 = vrot.lane.b32.xlu0 %v5295, 112
    %v5333 = vpop.permute.xlu0 %5332
    %5334 = vrot.lane.b32.xlu0 %v5296, 112
    %v5335 = vpop.permute.xlu0 %5334
    %5336 = vrot.lane.b32.xlu0 %v5297, 112
    %v5337 = vpop.permute.xlu0 %5336
    %5338 = vrot.lane.b32.xlu0 %v5288, 104
    %v5339 = vpop.permute.xlu0 %5338
    %5340 = vrot.lane.b32.xlu0 %v5292, 104
    %v5341 = vpop.permute.xlu0 %5340
    %5342 = vrot.lane.b32.xlu0 %v5293, 104
    %v5343 = vpop.permute.xlu0 %5342
    %5344 = vrot.lane.b32.xlu0 %v5294, 104
    %v5345 = vpop.permute.xlu0 %5344
    %5346 = vrot.lane.b32.xlu0 %v5289, 104
    %v5347 = vpop.permute.xlu0 %5346
    %5348 = vrot.lane.b32.xlu0 %v5295, 104
    %v5349 = vpop.permute.xlu0 %5348
    %5350 = vrot.lane.b32.xlu0 %v5296, 104
    %v5351 = vpop.permute.xlu0 %5350
    %5352 = vrot.lane.b32.xlu0 %v5297, 104
    %v5353 = vpop.permute.xlu0 %5352
    %5354 = vrot.lane.b32.xlu0 %v5284, 120
    %v5355 = vpop.permute.xlu0 %5354
    %5356 = vrot.lane.b32.xlu0 %v5300, 120
    %v5357 = vpop.permute.xlu0 %5356
    %5358 = vrot.lane.b32.xlu0 %v5301, 120
    %v5359 = vpop.permute.xlu0 %5358
    %5360 = vrot.lane.b32.xlu0 %v5302, 120
    %v5361 = vpop.permute.xlu0 %5360
    %5362 = vrot.lane.b32.xlu0 %v5286, 120
    %v5363 = vpop.permute.xlu0 %5362
    %5364 = vrot.lane.b32.xlu0 %v5303, 120
    %v5365 = vpop.permute.xlu0 %5364
    %5366 = vrot.lane.b32.xlu0 %v5304, 120
    %v5367 = vpop.permute.xlu0 %5366
    %5368 = vrot.lane.b32.xlu0 %v5305, 120
    %v5369 = vpop.permute.xlu0 %5368
    %5370 = vrot.lane.b32.xlu0 %v5284, 112
    %v5371 = vpop.permute.xlu0 %5370
    %5372 = vrot.lane.b32.xlu0 %v5300, 112
    %v5373 = vpop.permute.xlu0 %5372
    %5374 = vrot.lane.b32.xlu0 %v5301, 112
    %v5375 = vpop.permute.xlu0 %5374
    %5376 = vrot.lane.b32.xlu0 %v5302, 112
    %v5377 = vpop.permute.xlu0 %5376
    %5378 = vrot.lane.b32.xlu0 %v5286, 112
    %v5379 = vpop.permute.xlu0 %5378
    %5380 = vrot.lane.b32.xlu0 %v5303, 112
    %v5381 = vpop.permute.xlu0 %5380
    %5382 = vrot.lane.b32.xlu0 %v5304, 112
    %v5383 = vpop.permute.xlu0 %5382
    %5384 = vrot.lane.b32.xlu0 %v5305, 112
    %v5385 = vpop.permute.xlu0 %5384
    %5386 = vrot.lane.b32.xlu0 %v5284, 104
    %v5387 = vpop.permute.xlu0 %5386
    %5388 = vrot.lane.b32.xlu0 %v5300, 104
    %v5389 = vpop.permute.xlu0 %5388
    %5390 = vrot.lane.b32.xlu0 %v5301, 104
    %v5391 = vpop.permute.xlu0 %5390
    %5392 = vrot.lane.b32.xlu0 %v5302, 104
    %v5393 = vpop.permute.xlu0 %5392
    %5394 = vrot.lane.b32.xlu0 %v5286, 104
    %v5395 = vpop.permute.xlu0 %5394
    %5396 = vrot.lane.b32.xlu0 %v5303, 104
    %v5397 = vpop.permute.xlu0 %5396
    %5398 = vrot.lane.b32.xlu0 %v5304, 104
    %v5399 = vpop.permute.xlu0 %5398
    %5400 = vrot.lane.b32.xlu0 %v5305, 104
    %v5401 = vpop.permute.xlu0 %5400
    %5402 = vst [vmem:[#allocation1] ss:$4 sm:$0xff] %v5284
    %v5403 = vld.sshfl [vmem:[#allocation1] sm:$0xff pattern:$0x73625140]
    %5404 = vrot.lane.b32.xlu0 %v5403, 96
    %v5405 = vpop.permute.xlu0 %5404
    %v5406 = vsel %vm536, %v5288, 0
    %v5408 = vsel %vm536, %v5405, 0
    %5410 = vmatpush.xpose.msra.mxu0 0.0
    %5411 = vmatpush.xpose.msra.mxu0 0.0
    %5412 = vmatpush.xpose.msra.mxu0 0.0
    %5413 = vmatpush.xpose.msra.mxu0 0.0
    %5414 = vmatpush.xpose.msra.mxu0 0.0
    %5415 = vmatpush.xpose.msra.mxu0 0.0
    %5416 = vmatpush.xpose.msra.mxu0 0.0
    %5417 = vmatpush.xpose.msra.mxu0 0.0
    %5418 = vmatpush.xpose.msra.mxu0 0.0
    %5419 = vmatpush.xpose.msra.mxu0 0.0
    %5420 = vmatpush.xpose.msra.mxu0 0.0
    %5421 = vmatpush.xpose.msra.mxu0 0.0
    %5422 = vmatpush.xpose.msra.mxu0 0.0
    %5423 = vmatpush.xpose.msra.mxu0 0.0
    %5424 = vmatpush.xpose.msra.mxu0 0.0
    %5425 = vmatpush.xpose.msra.mxu0 %v5408
    %5426 = vmatmul.f32.gmra.mxu0 %v5406
    %v5427 = vpop.f32.mrf.mxu0
    %v5428 = vadd.f32 0.0, %v5427
    %5429 = vdwg.mxu0
    %5430 = vst [vmem:[#allocation1] ss:$4 sm:$0xff] %v5300
    %v5431 = vld.sshfl [vmem:[#allocation1] sm:$0xff pattern:$0x73625140]
    %5432 = vrot.lane.b32.xlu0 %v5431, 96
    %v5433 = vpop.permute.xlu0 %5432
    %v5434 = vsel %vm536, %v5292, 0
    %v5436 = vsel %vm536, %v5433, 0
    %5438 = vmatpush.xpose.msra.mxu0 0.0
    %5439 = vmatpush.xpose.msra.mxu0 0.0
    %5440 = vmatpush.xpose.msra.mxu0 0.0
    %5441 = vmatpush.xpose.msra.mxu0 0.0
    %5442 = vmatpush.xpose.msra.mxu0 0.0
    %5443 = vmatpush.xpose.msra.mxu0 0.0
    %5444 = vmatpush.xpose.msra.mxu0 0.0
    %5445 = vmatpush.xpose.msra.mxu0 0.0
    %5446 = vmatpush.xpose.msra.mxu0 0.0
    %5447 = vmatpush.xpose.msra.mxu0 0.0
    %5448 = vmatpush.xpose.msra.mxu0 0.0
    %5449 = vmatpush.xpose.msra.mxu0 0.0
    %5450 = vmatpush.xpose.msra.mxu0 0.0
    %5451 = vmatpush.xpose.msra.mxu0 0.0
    %5452 = vmatpush.xpose.msra.mxu0 0.0
    %5453 = vmatpush.xpose.msra.mxu0 %v5436
    %5454 = vmatmul.f32.gmra.mxu0 %v5434
    %v5455 = vpop.f32.mrf.mxu0
    %v5456 = vadd.f32 0.0, %v5455
    %5457 = vdwg.mxu0
    %5458 = vst [vmem:[#allocation1] ss:$4 sm:$0xff] %v5301
    %v5459 = vld.sshfl [vmem:[#allocation1] sm:$0xff pattern:$0x73625140]
    %5460 = vrot.lane.b32.xlu0 %v5459, 96
    %v5461 = vpop.permute.xlu0 %5460
    %v5462 = vsel %vm536, %v5293, 0
    %v5464 = vsel %vm536, %v5461, 0
    %5466 = vmatpush.xpose.msra.mxu0 0.0
    %5467 = vmatpush.xpose.msra.mxu0 0.0
    %5468 = vmatpush.xpose.msra.mxu0 0.0
    %5469 = vmatpush.xpose.msra.mxu0 0.0
    %5470 = vmatpush.xpose.msra.mxu0 0.0
    %5471 = vmatpush.xpose.msra.mxu0 0.0
    %5472 = vmatpush.xpose.msra.mxu0 0.0
    %5473 = vmatpush.xpose.msra.mxu0 0.0
    %5474 = vmatpush.xpose.msra.mxu0 0.0
    %5475 = vmatpush.xpose.msra.mxu0 0.0
    %5476 = vmatpush.xpose.msra.mxu0 0.0
    %5477 = vmatpush.xpose.msra.mxu0 0.0
    %5478 = vmatpush.xpose.msra.mxu0 0.0
    %5479 = vmatpush.xpose.msra.mxu0 0.0
    %5480 = vmatpush.xpose.msra.mxu0 0.0
    %5481 = vmatpush.xpose.msra.mxu0 %v5464
    %5482 = vmatmul.f32.gmra.mxu0 %v5462
    %v5483 = vpop.f32.mrf.mxu0
    %v5484 = vadd.f32 0.0, %v5483
    %5485 = vdwg.mxu0
    %5486 = vst [vmem:[#allocation1] ss:$4 sm:$0xff] %v5302
    %v5487 = vld.sshfl [vmem:[#allocation1] sm:$0xff pattern:$0x73625140]
    %5488 = vrot.lane.b32.xlu0 %v5487, 96
    %v5489 = vpop.permute.xlu0 %5488
    %v5490 = vsel %vm536, %v5294, 0
    %v5492 = vsel %vm536, %v5489, 0
    %5494 = vmatpush.xpose.msra.mxu0 0.0
    %5495 = vmatpush.xpose.msra.mxu0 0.0
    %5496 = vmatpush.xpose.msra.mxu0 0.0
    %5497 = vmatpush.xpose.msra.mxu0 0.0
    %5498 = vmatpush.xpose.msra.mxu0 0.0
    %5499 = vmatpush.xpose.msra.mxu0 0.0
    %5500 = vmatpush.xpose.msra.mxu0 0.0
    %5501 = vmatpush.xpose.msra.mxu0 0.0
    %5502 = vmatpush.xpose.msra.mxu0 0.0
    %5503 = vmatpush.xpose.msra.mxu0 0.0
    %5504 = vmatpush.xpose.msra.mxu0 0.0
    %5505 = vmatpush.xpose.msra.mxu0 0.0
    %5506 = vmatpush.xpose.msra.mxu0 0.0
    %5507 = vmatpush.xpose.msra.mxu0 0.0
    %5508 = vmatpush.xpose.msra.mxu0 0.0
    %5509 = vmatpush.xpose.msra.mxu0 %v5492
    %5510 = vmatmul.f32.gmra.mxu0 %v5490
    %v5511 = vpop.f32.mrf.mxu0
    %v5512 = vadd.f32 0.0, %v5511
    %5513 = vdwg.mxu0
    %5514 = vst [vmem:[#allocation1] ss:$4 sm:$0xff] %v5286
    %v5515 = vld.sshfl [vmem:[#allocation1] sm:$0xff pattern:$0x73625140]
    %5516 = vrot.lane.b32.xlu0 %v5515, 96
    %v5517 = vpop.permute.xlu0 %5516
    %v5518 = vsel %vm536, %v5289, 0
    %v5520 = vsel %vm536, %v5517, 0
    %5522 = vmatpush.xpose.msra.mxu0 0.0
    %5523 = vmatpush.xpose.msra.mxu0 0.0
    %5524 = vmatpush.xpose.msra.mxu0 0.0
    %5525 = vmatpush.xpose.msra.mxu0 0.0
    %5526 = vmatpush.xpose.msra.mxu0 0.0
    %5527 = vmatpush.xpose.msra.mxu0 0.0
    %5528 = vmatpush.xpose.msra.mxu0 0.0
    %5529 = vmatpush.xpose.msra.mxu0 0.0
    %5530 = vmatpush.xpose.msra.mxu0 0.0
    %5531 = vmatpush.xpose.msra.mxu0 0.0
    %5532 = vmatpush.xpose.msra.mxu0 0.0
    %5533 = vmatpush.xpose.msra.mxu0 0.0
    %5534 = vmatpush.xpose.msra.mxu0 0.0
    %5535 = vmatpush.xpose.msra.mxu0 0.0
    %5536 = vmatpush.xpose.msra.mxu0 0.0
    %5537 = vmatpush.xpose.msra.mxu0 %v5520
    %5538 = vmatmul.f32.gmra.mxu0 %v5518
    %v5539 = vpop.f32.mrf.mxu0
    %v5540 = vadd.f32 0.0, %v5539
    %5541 = vdwg.mxu0
    %5542 = vst [vmem:[#allocation1] ss:$4 sm:$0xff] %v5303
    %v5543 = vld.sshfl [vmem:[#allocation1] sm:$0xff pattern:$0x73625140]
    %5544 = vrot.lane.b32.xlu0 %v5543, 96
    %v5545 = vpop.permute.xlu0 %5544
    %v5546 = vsel %vm536, %v5295, 0
    %v5548 = vsel %vm536, %v5545, 0
    %5550 = vmatpush.xpose.msra.mxu0 0.0
    %5551 = vmatpush.xpose.msra.mxu0 0.0
    %5552 = vmatpush.xpose.msra.mxu0 0.0
    %5553 = vmatpush.xpose.msra.mxu0 0.0
    %5554 = vmatpush.xpose.msra.mxu0 0.0
    %5555 = vmatpush.xpose.msra.mxu0 0.0
    %5556 = vmatpush.xpose.msra.mxu0 0.0
    %5557 = vmatpush.xpose.msra.mxu0 0.0
    %5558 = vmatpush.xpose.msra.mxu0 0.0
    %5559 = vmatpush.xpose.msra.mxu0 0.0
    %5560 = vmatpush.xpose.msra.mxu0 0.0
    %5561 = vmatpush.xpose.msra.mxu0 0.0
    %5562 = vmatpush.xpose.msra.mxu0 0.0
    %5563 = vmatpush.xpose.msra.mxu0 0.0
    %5564 = vmatpush.xpose.msra.mxu0 0.0
    %5565 = vmatpush.xpose.msra.mxu0 %v5548
    %5566 = vmatmul.f32.gmra.mxu0 %v5546
    %v5567 = vpop.f32.mrf.mxu0
    %v5568 = vadd.f32 0.0, %v5567
    %5569 = vdwg.mxu0
    %5570 = vst [vmem:[#allocation1] ss:$4 sm:$0xff] %v5304
    %v5571 = vld.sshfl [vmem:[#allocation1] sm:$0xff pattern:$0x73625140]
    %5572 = vrot.lane.b32.xlu0 %v5571, 96
    %v5573 = vpop.permute.xlu0 %5572
    %v5574 = vsel %vm536, %v5296, 0
    %v5576 = vsel %vm536, %v5573, 0
    %5578 = vmatpush.xpose.msra.mxu0 0.0
    %5579 = vmatpush.xpose.msra.mxu0 0.0
    %5580 = vmatpush.xpose.msra.mxu0 0.0
    %5581 = vmatpush.xpose.msra.mxu0 0.0
    %5582 = vmatpush.xpose.msra.mxu0 0.0
    %5583 = vmatpush.xpose.msra.mxu0 0.0
    %5584 = vmatpush.xpose.msra.mxu0 0.0
    %5585 = vmatpush.xpose.msra.mxu0 0.0
    %5586 = vmatpush.xpose.msra.mxu0 0.0
    %5587 = vmatpush.xpose.msra.mxu0 0.0
    %5588 = vmatpush.xpose.msra.mxu0 0.0
    %5589 = vmatpush.xpose.msra.mxu0 0.0
    %5590 = vmatpush.xpose.msra.mxu0 0.0
    %5591 = vmatpush.xpose.msra.mxu0 0.0
    %5592 = vmatpush.xpose.msra.mxu0 0.0
    %5593 = vmatpush.xpose.msra.mxu0 %v5576
    %5594 = vmatmul.f32.gmra.mxu0 %v5574
    %v5595 = vpop.f32.mrf.mxu0
    %v5596 = vadd.f32 0.0, %v5595
    %5597 = vdwg.mxu0
    %5598 = vst [vmem:[#allocation1] ss:$4 sm:$0xff] %v5305
    %v5599 = vld.sshfl [vmem:[#allocation1] sm:$0xff pattern:$0x73625140]
    %5600 = vrot.lane.b32.xlu0 %v5599, 96
    %v5601 = vpop.permute.xlu0 %5600
    %v5602 = vsel %vm536, %v5297, 0
    %v5604 = vsel %vm536, %v5601, 0
    %5606 = vmatpush.xpose.msra.mxu0 0.0
    %5607 = vmatpush.xpose.msra.mxu0 0.0
    %5608 = vmatpush.xpose.msra.mxu0 0.0
    %5609 = vmatpush.xpose.msra.mxu0 0.0
    %5610 = vmatpush.xpose.msra.mxu0 0.0
    %5611 = vmatpush.xpose.msra.mxu0 0.0
    %5612 = vmatpush.xpose.msra.mxu0 0.0
    %5613 = vmatpush.xpose.msra.mxu0 0.0
    %5614 = vmatpush.xpose.msra.mxu0 0.0
    %5615 = vmatpush.xpose.msra.mxu0 0.0
    %5616 = vmatpush.xpose.msra.mxu0 0.0
    %5617 = vmatpush.xpose.msra.mxu0 0.0
    %5618 = vmatpush.xpose.msra.mxu0 0.0
    %5619 = vmatpush.xpose.msra.mxu0 0.0
    %5620 = vmatpush.xpose.msra.mxu0 0.0
    %5621 = vmatpush.xpose.msra.mxu0 %v5604
    %5622 = vmatmul.f32.gmra.mxu0 %v5602
    %v5623 = vpop.f32.mrf.mxu0
    %v5624 = vadd.f32 0.0, %v5623
    %5625 = vdwg.mxu0
    %5626 = vst [vmem:[#allocation1] ss:$4 sm:$0xff] %v5355
    %v5627 = vld.sshfl [vmem:[#allocation1] sm:$0xff pattern:$0x73625140]
    %5628 = vrot.lane.b32.xlu0 %v5627, 96
    %v5629 = vpop.permute.xlu0 %5628
    %v5630 = vsel %vm536, %v5307, 0
    %v5632 = vsel %vm536, %v5629, 0
    %5634 = vmatpush.xpose.msra.mxu0 0.0
    %5635 = vmatpush.xpose.msra.mxu0 0.0
    %5636 = vmatpush.xpose.msra.mxu0 0.0
    %5637 = vmatpush.xpose.msra.mxu0 0.0
    %5638 = vmatpush.xpose.msra.mxu0 0.0
    %5639 = vmatpush.xpose.msra.mxu0 0.0
    %5640 = vmatpush.xpose.msra.mxu0 0.0
    %5641 = vmatpush.xpose.msra.mxu0 0.0
    %5642 = vmatpush.xpose.msra.mxu0 0.0
    %5643 = vmatpush.xpose.msra.mxu0 0.0
    %5644 = vmatpush.xpose.msra.mxu0 0.0
    %5645 = vmatpush.xpose.msra.mxu0 0.0
    %5646 = vmatpush.xpose.msra.mxu0 0.0
    %5647 = vmatpush.xpose.msra.mxu0 0.0
    %5648 = vmatpush.xpose.msra.mxu0 0.0
    %5649 = vmatpush.xpose.msra.mxu0 %v5632
    %5650 = vmatmul.f32.gmra.mxu0 %v5630
    %v5651 = vpop.f32.mrf.mxu0
    %v5652 = vadd.f32 0.0, %v5651
    %5653 = vdwg.mxu0
    %5654 = vst [vmem:[#allocation1] ss:$4 sm:$0xff] %v5357
    %v5655 = vld.sshfl [vmem:[#allocation1] sm:$0xff pattern:$0x73625140]
    %5656 = vrot.lane.b32.xlu0 %v5655, 96
    %v5657 = vpop.permute.xlu0 %5656
    %v5658 = vsel %vm536, %v5309, 0
    %v5660 = vsel %vm536, %v5657, 0
    %5662 = vmatpush.xpose.msra.mxu0 0.0
    %5663 = vmatpush.xpose.msra.mxu0 0.0
    %5664 = vmatpush.xpose.msra.mxu0 0.0
    %5665 = vmatpush.xpose.msra.mxu0 0.0
    %5666 = vmatpush.xpose.msra.mxu0 0.0
    %5667 = vmatpush.xpose.msra.mxu0 0.0
    %5668 = vmatpush.xpose.msra.mxu0 0.0
    %5669 = vmatpush.xpose.msra.mxu0 0.0
    %5670 = vmatpush.xpose.msra.mxu0 0.0
    %5671 = vmatpush.xpose.msra.mxu0 0.0
    %5672 = vmatpush.xpose.msra.mxu0 0.0
    %5673 = vmatpush.xpose.msra.mxu0 0.0
    %5674 = vmatpush.xpose.msra.mxu0 0.0
    %5675 = vmatpush.xpose.msra.mxu0 0.0
    %5676 = vmatpush.xpose.msra.mxu0 0.0
    %5677 = vmatpush.xpose.msra.mxu0 %v5660
    %5678 = vmatmul.f32.gmra.mxu0 %v5658
    %v5679 = vpop.f32.mrf.mxu0
    %v5680 = vadd.f32 0.0, %v5679
    %5681 = vdwg.mxu0
    %5682 = vst [vmem:[#allocation1] ss:$4 sm:$0xff] %v5359
    %v5683 = vld.sshfl [vmem:[#allocation1] sm:$0xff pattern:$0x73625140]
    %5684 = vrot.lane.b32.xlu0 %v5683, 96
    %v5685 = vpop.permute.xlu0 %5684
    %v5686 = vsel %vm536, %v5311, 0
    %v5688 = vsel %vm536, %v5685, 0
    %5690 = vmatpush.xpose.msra.mxu0 0.0
    %5691 = vmatpush.xpose.msra.mxu0 0.0
    %5692 = vmatpush.xpose.msra.mxu0 0.0
    %5693 = vmatpush.xpose.msra.mxu0 0.0
    %5694 = vmatpush.xpose.msra.mxu0 0.0
    %5695 = vmatpush.xpose.msra.mxu0 0.0
    %5696 = vmatpush.xpose.msra.mxu0 0.0
    %5697 = vmatpush.xpose.msra.mxu0 0.0
    %5698 = vmatpush.xpose.msra.mxu0 0.0
    %5699 = vmatpush.xpose.msra.mxu0 0.0
    %5700 = vmatpush.xpose.msra.mxu0 0.0
    %5701 = vmatpush.xpose.msra.mxu0 0.0
    %5702 = vmatpush.xpose.msra.mxu0 0.0
    %5703 = vmatpush.xpose.msra.mxu0 0.0
    %5704 = vmatpush.xpose.msra.mxu0 0.0
    %5705 = vmatpush.xpose.msra.mxu0 %v5688
    %5706 = vmatmul.f32.gmra.mxu0 %v5686
    %v5707 = vpop.f32.mrf.mxu0
    %v5708 = vadd.f32 0.0, %v5707
    %5709 = vdwg.mxu0
    %5710 = vst [vmem:[#allocation1] ss:$4 sm:$0xff] %v5361
    %v5711 = vld.sshfl [vmem:[#allocation1] sm:$0xff pattern:$0x73625140]
    %5712 = vrot.lane.b32.xlu0 %v5711, 96
    %v5713 = vpop.permute.xlu0 %5712
    %v5714 = vsel %vm536, %v5313, 0
    %v5716 = vsel %vm536, %v5713, 0
    %5718 = vmatpush.xpose.msra.mxu0 0.0
    %5719 = vmatpush.xpose.msra.mxu0 0.0
    %5720 = vmatpush.xpose.msra.mxu0 0.0
    %5721 = vmatpush.xpose.msra.mxu0 0.0
    %5722 = vmatpush.xpose.msra.mxu0 0.0
    %5723 = vmatpush.xpose.msra.mxu0 0.0
    %5724 = vmatpush.xpose.msra.mxu0 0.0
    %5725 = vmatpush.xpose.msra.mxu0 0.0
    %5726 = vmatpush.xpose.msra.mxu0 0.0
    %5727 = vmatpush.xpose.msra.mxu0 0.0
    %5728 = vmatpush.xpose.msra.mxu0 0.0
    %5729 = vmatpush.xpose.msra.mxu0 0.0
    %5730 = vmatpush.xpose.msra.mxu0 0.0
    %5731 = vmatpush.xpose.msra.mxu0 0.0
    %5732 = vmatpush.xpose.msra.mxu0 0.0
    %5733 = vmatpush.xpose.msra.mxu0 %v5716
    %5734 = vmatmul.f32.gmra.mxu0 %v5714
    %v5735 = vpop.f32.mrf.mxu0
    %v5736 = vadd.f32 0.0, %v5735
    %5737 = vdwg.mxu0
    %5738 = vst [vmem:[#allocation1] ss:$4 sm:$0xff] %v5363
    %v5739 = vld.sshfl [vmem:[#allocation1] sm:$0xff pattern:$0x73625140]
    %5740 = vrot.lane.b32.xlu0 %v5739, 96
    %v5741 = vpop.permute.xlu0 %5740
    %v5742 = vsel %vm536, %v5315, 0
    %v5744 = vsel %vm536, %v5741, 0
    %5746 = vmatpush.xpose.msra.mxu0 0.0
    %5747 = vmatpush.xpose.msra.mxu0 0.0
    %5748 = vmatpush.xpose.msra.mxu0 0.0
    %5749 = vmatpush.xpose.msra.mxu0 0.0
    %5750 = vmatpush.xpose.msra.mxu0 0.0
    %5751 = vmatpush.xpose.msra.mxu0 0.0
    %5752 = vmatpush.xpose.msra.mxu0 0.0
    %5753 = vmatpush.xpose.msra.mxu0 0.0
    %5754 = vmatpush.xpose.msra.mxu0 0.0
    %5755 = vmatpush.xpose.msra.mxu0 0.0
    %5756 = vmatpush.xpose.msra.mxu0 0.0
    %5757 = vmatpush.xpose.msra.mxu0 0.0
    %5758 = vmatpush.xpose.msra.mxu0 0.0
    %5759 = vmatpush.xpose.msra.mxu0 0.0
    %5760 = vmatpush.xpose.msra.mxu0 0.0
    %5761 = vmatpush.xpose.msra.mxu0 %v5744
    %5762 = vmatmul.f32.gmra.mxu0 %v5742
    %v5763 = vpop.f32.mrf.mxu0
    %v5764 = vadd.f32 0.0, %v5763
    %5765 = vdwg.mxu0
    %5766 = vst [vmem:[#allocation1] ss:$4 sm:$0xff] %v5365
    %v5767 = vld.sshfl [vmem:[#allocation1] sm:$0xff pattern:$0x73625140]
    %5768 = vrot.lane.b32.xlu0 %v5767, 96
    %v5769 = vpop.permute.xlu0 %5768
    %v5770 = vsel %vm536, %v5317, 0
    %v5772 = vsel %vm536, %v5769, 0
    %5774 = vmatpush.xpose.msra.mxu0 0.0
    %5775 = vmatpush.xpose.msra.mxu0 0.0
    %5776 = vmatpush.xpose.msra.mxu0 0.0
    %5777 = vmatpush.xpose.msra.mxu0 0.0
    %5778 = vmatpush.xpose.msra.mxu0 0.0
    %5779 = vmatpush.xpose.msra.mxu0 0.0
    %5780 = vmatpush.xpose.msra.mxu0 0.0
    %5781 = vmatpush.xpose.msra.mxu0 0.0
    %5782 = vmatpush.xpose.msra.mxu0 0.0
    %5783 = vmatpush.xpose.msra.mxu0 0.0
    %5784 = vmatpush.xpose.msra.mxu0 0.0
    %5785 = vmatpush.xpose.msra.mxu0 0.0
    %5786 = vmatpush.xpose.msra.mxu0 0.0
    %5787 = vmatpush.xpose.msra.mxu0 0.0
    %5788 = vmatpush.xpose.msra.mxu0 0.0
    %5789 = vmatpush.xpose.msra.mxu0 %v5772
    %5790 = vmatmul.f32.gmra.mxu0 %v5770
    %v5791 = vpop.f32.mrf.mxu0
    %v5792 = vadd.f32 0.0, %v5791
    %5793 = vdwg.mxu0
    %5794 = vst [vmem:[#allocation1] ss:$4 sm:$0xff] %v5367
    %v5795 = vld.sshfl [vmem:[#allocation1] sm:$0xff pattern:$0x73625140]
    %5796 = vrot.lane.b32.xlu0 %v5795, 96
    %v5797 = vpop.permute.xlu0 %5796
    %v5798 = vsel %vm536, %v5319, 0
    %v5800 = vsel %vm536, %v5797, 0
    %5802 = vmatpush.xpose.msra.mxu0 0.0
    %5803 = vmatpush.xpose.msra.mxu0 0.0
    %5804 = vmatpush.xpose.msra.mxu0 0.0
    %5805 = vmatpush.xpose.msra.mxu0 0.0
    %5806 = vmatpush.xpose.msra.mxu0 0.0
    %5807 = vmatpush.xpose.msra.mxu0 0.0
    %5808 = vmatpush.xpose.msra.mxu0 0.0
    %5809 = vmatpush.xpose.msra.mxu0 0.0
    %5810 = vmatpush.xpose.msra.mxu0 0.0
    %5811 = vmatpush.xpose.msra.mxu0 0.0
    %5812 = vmatpush.xpose.msra.mxu0 0.0
    %5813 = vmatpush.xpose.msra.mxu0 0.0
    %5814 = vmatpush.xpose.msra.mxu0 0.0
    %5815 = vmatpush.xpose.msra.mxu0 0.0
    %5816 = vmatpush.xpose.msra.mxu0 0.0
    %5817 = vmatpush.xpose.msra.mxu0 %v5800
    %5818 = vmatmul.f32.gmra.mxu0 %v5798
    %v5819 = vpop.f32.mrf.mxu0
    %v5820 = vadd.f32 0.0, %v5819
    %5821 = vdwg.mxu0
    %5822 = vst [vmem:[#allocation1] ss:$4 sm:$0xff] %v5369
    %v5823 = vld.sshfl [vmem:[#allocation1] sm:$0xff pattern:$0x73625140]
    %5824 = vrot.lane.b32.xlu0 %v5823, 96
    %v5825 = vpop.permute.xlu0 %5824
    %v5826 = vsel %vm536, %v5321, 0
    %v5828 = vsel %vm536, %v5825, 0
    %5830 = vmatpush.xpose.msra.mxu0 0.0
    %5831 = vmatpush.xpose.msra.mxu0 0.0
    %5832 = vmatpush.xpose.msra.mxu0 0.0
    %5833 = vmatpush.xpose.msra.mxu0 0.0
    %5834 = vmatpush.xpose.msra.mxu0 0.0
    %5835 = vmatpush.xpose.msra.mxu0 0.0
    %5836 = vmatpush.xpose.msra.mxu0 0.0
    %5837 = vmatpush.xpose.msra.mxu0 0.0
    %5838 = vmatpush.xpose.msra.mxu0 0.0
    %5839 = vmatpush.xpose.msra.mxu0 0.0
    %5840 = vmatpush.xpose.msra.mxu0 0.0
    %5841 = vmatpush.xpose.msra.mxu0 0.0
    %5842 = vmatpush.xpose.msra.mxu0 0.0
    %5843 = vmatpush.xpose.msra.mxu0 0.0
    %5844 = vmatpush.xpose.msra.mxu0 0.0
    %5845 = vmatpush.xpose.msra.mxu0 %v5828
    %5846 = vmatmul.f32.gmra.mxu0 %v5826
    %v5847 = vpop.f32.mrf.mxu0
    %v5848 = vadd.f32 0.0, %v5847
    %5849 = vdwg.mxu0
    %5850 = vst [vmem:[#allocation1] ss:$4 sm:$0xff] %v5371
    %v5851 = vld.sshfl [vmem:[#allocation1] sm:$0xff pattern:$0x73625140]
    %5852 = vrot.lane.b32.xlu0 %v5851, 96
    %v5853 = vpop.permute.xlu0 %5852
    %v5854 = vsel %vm536, %v5323, 0
    %v5856 = vsel %vm536, %v5853, 0
    %5858 = vmatpush.xpose.msra.mxu0 0.0
    %5859 = vmatpush.xpose.msra.mxu0 0.0
    %5860 = vmatpush.xpose.msra.mxu0 0.0
    %5861 = vmatpush.xpose.msra.mxu0 0.0
    %5862 = vmatpush.xpose.msra.mxu0 0.0
    %5863 = vmatpush.xpose.msra.mxu0 0.0
    %5864 = vmatpush.xpose.msra.mxu0 0.0
    %5865 = vmatpush.xpose.msra.mxu0 0.0
    %5866 = vmatpush.xpose.msra.mxu0 0.0
    %5867 = vmatpush.xpose.msra.mxu0 0.0
    %5868 = vmatpush.xpose.msra.mxu0 0.0
    %5869 = vmatpush.xpose.msra.mxu0 0.0
    %5870 = vmatpush.xpose.msra.mxu0 0.0
    %5871 = vmatpush.xpose.msra.mxu0 0.0
    %5872 = vmatpush.xpose.msra.mxu0 0.0
    %5873 = vmatpush.xpose.msra.mxu0 %v5856
    %5874 = vmatmul.f32.gmra.mxu0 %v5854
    %v5875 = vpop.f32.mrf.mxu0
    %v5876 = vadd.f32 0.0, %v5875
    %5877 = vdwg.mxu0
    %5878 = vst [vmem:[#allocation1] ss:$4 sm:$0xff] %v5373
    %v5879 = vld.sshfl [vmem:[#allocation1] sm:$0xff pattern:$0x73625140]
    %5880 = vrot.lane.b32.xlu0 %v5879, 96
    %v5881 = vpop.permute.xlu0 %5880
    %v5882 = vsel %vm536, %v5325, 0
    %v5884 = vsel %vm536, %v5881, 0
    %5886 = vmatpush.xpose.msra.mxu0 0.0
    %5887 = vmatpush.xpose.msra.mxu0 0.0
    %5888 = vmatpush.xpose.msra.mxu0 0.0
    %5889 = vmatpush.xpose.msra.mxu0 0.0
    %5890 = vmatpush.xpose.msra.mxu0 0.0
    %5891 = vmatpush.xpose.msra.mxu0 0.0
    %5892 = vmatpush.xpose.msra.mxu0 0.0
    %5893 = vmatpush.xpose.msra.mxu0 0.0
    %5894 = vmatpush.xpose.msra.mxu0 0.0
    %5895 = vmatpush.xpose.msra.mxu0 0.0
    %5896 = vmatpush.xpose.msra.mxu0 0.0
    %5897 = vmatpush.xpose.msra.mxu0 0.0
    %5898 = vmatpush.xpose.msra.mxu0 0.0
    %5899 = vmatpush.xpose.msra.mxu0 0.0
    %5900 = vmatpush.xpose.msra.mxu0 0.0
    %5901 = vmatpush.xpose.msra.mxu0 %v5884
    %5902 = vmatmul.f32.gmra.mxu0 %v5882
    %v5903 = vpop.f32.mrf.mxu0
    %v5904 = vadd.f32 0.0, %v5903
    %5905 = vdwg.mxu0
    %5906 = vst [vmem:[#allocation1] ss:$4 sm:$0xff] %v5375
    %v5907 = vld.sshfl [vmem:[#allocation1] sm:$0xff pattern:$0x73625140]
    %5908 = vrot.lane.b32.xlu0 %v5907, 96
    %v5909 = vpop.permute.xlu0 %5908
    %v5910 = vsel %vm536, %v5327, 0
    %v5912 = vsel %vm536, %v5909, 0
    %5914 = vmatpush.xpose.msra.mxu0 0.0
    %5915 = vmatpush.xpose.msra.mxu0 0.0
    %5916 = vmatpush.xpose.msra.mxu0 0.0
    %5917 = vmatpush.xpose.msra.mxu0 0.0
    %5918 = vmatpush.xpose.msra.mxu0 0.0
    %5919 = vmatpush.xpose.msra.mxu0 0.0
    %5920 = vmatpush.xpose.msra.mxu0 0.0
    %5921 = vmatpush.xpose.msra.mxu0 0.0
    %5922 = vmatpush.xpose.msra.mxu0 0.0
    %5923 = vmatpush.xpose.msra.mxu0 0.0
    %5924 = vmatpush.xpose.msra.mxu0 0.0
    %5925 = vmatpush.xpose.msra.mxu0 0.0
    %5926 = vmatpush.xpose.msra.mxu0 0.0
    %5927 = vmatpush.xpose.msra.mxu0 0.0
    %5928 = vmatpush.xpose.msra.mxu0 0.0
    %5929 = vmatpush.xpose.msra.mxu0 %v5912
    %5930 = vmatmul.f32.gmra.mxu0 %v5910
    %v5931 = vpop.f32.mrf.mxu0
    %v5932 = vadd.f32 0.0, %v5931
    %5933 = vdwg.mxu0
    %5934 = vst [vmem:[#allocation1] ss:$4 sm:$0xff] %v5377
    %v5935 = vld.sshfl [vmem:[#allocation1] sm:$0xff pattern:$0x73625140]
    %5936 = vrot.lane.b32.xlu0 %v5935, 96
    %v5937 = vpop.permute.xlu0 %5936
    %v5938 = vsel %vm536, %v5329, 0
    %v5940 = vsel %vm536, %v5937, 0
    %5942 = vmatpush.xpose.msra.mxu0 0.0
    %5943 = vmatpush.xpose.msra.mxu0 0.0
    %5944 = vmatpush.xpose.msra.mxu0 0.0
    %5945 = vmatpush.xpose.msra.mxu0 0.0
    %5946 = vmatpush.xpose.msra.mxu0 0.0
    %5947 = vmatpush.xpose.msra.mxu0 0.0
    %5948 = vmatpush.xpose.msra.mxu0 0.0
    %5949 = vmatpush.xpose.msra.mxu0 0.0
    %5950 = vmatpush.xpose.msra.mxu0 0.0
    %5951 = vmatpush.xpose.msra.mxu0 0.0
    %5952 = vmatpush.xpose.msra.mxu0 0.0
    %5953 = vmatpush.xpose.msra.mxu0 0.0
    %5954 = vmatpush.xpose.msra.mxu0 0.0
    %5955 = vmatpush.xpose.msra.mxu0 0.0
    %5956 = vmatpush.xpose.msra.mxu0 0.0
    %5957 = vmatpush.xpose.msra.mxu0 %v5940
    %5958 = vmatmul.f32.gmra.mxu0 %v5938
    %v5959 = vpop.f32.mrf.mxu0
    %v5960 = vadd.f32 0.0, %v5959
    %5961 = vdwg.mxu0
    %5962 = vst [vmem:[#allocation1] ss:$4 sm:$0xff] %v5379
    %v5963 = vld.sshfl [vmem:[#allocation1] sm:$0xff pattern:$0x73625140]
    %5964 = vrot.lane.b32.xlu0 %v5963, 96
    %v5965 = vpop.permute.xlu0 %5964
    %v5966 = vsel %vm536, %v5331, 0
    %v5968 = vsel %vm536, %v5965, 0
    %5970 = vmatpush.xpose.msra.mxu0 0.0
    %5971 = vmatpush.xpose.msra.mxu0 0.0
    %5972 = vmatpush.xpose.msra.mxu0 0.0
    %5973 = vmatpush.xpose.msra.mxu0 0.0
    %5974 = vmatpush.xpose.msra.mxu0 0.0
    %5975 = vmatpush.xpose.msra.mxu0 0.0
    %5976 = vmatpush.xpose.msra.mxu0 0.0
    %5977 = vmatpush.xpose.msra.mxu0 0.0
    %5978 = vmatpush.xpose.msra.mxu0 0.0
    %5979 = vmatpush.xpose.msra.mxu0 0.0
    %5980 = vmatpush.xpose.msra.mxu0 0.0
    %5981 = vmatpush.xpose.msra.mxu0 0.0
    %5982 = vmatpush.xpose.msra.mxu0 0.0
    %5983 = vmatpush.xpose.msra.mxu0 0.0
    %5984 = vmatpush.xpose.msra.mxu0 0.0
    %5985 = vmatpush.xpose.msra.mxu0 %v5968
    %5986 = vmatmul.f32.gmra.mxu0 %v5966
    %v5987 = vpop.f32.mrf.mxu0
    %v5988 = vadd.f32 0.0, %v5987
    %5989 = vdwg.mxu0
    %5990 = vst [vmem:[#allocation1] ss:$4 sm:$0xff] %v5381
    %v5991 = vld.sshfl [vmem:[#allocation1] sm:$0xff pattern:$0x73625140]
    %5992 = vrot.lane.b32.xlu0 %v5991, 96
    %v5993 = vpop.permute.xlu0 %5992
    %v5994 = vsel %vm536, %v5333, 0
    %v5996 = vsel %vm536, %v5993, 0
    %5998 = vmatpush.xpose.msra.mxu0 0.0
    %5999 = vmatpush.xpose.msra.mxu0 0.0
    %6000 = vmatpush.xpose.msra.mxu0 0.0
    %6001 = vmatpush.xpose.msra.mxu0 0.0
    %6002 = vmatpush.xpose.msra.mxu0 0.0
    %6003 = vmatpush.xpose.msra.mxu0 0.0
    %6004 = vmatpush.xpose.msra.mxu0 0.0
    %6005 = vmatpush.xpose.msra.mxu0 0.0
    %6006 = vmatpush.xpose.msra.mxu0 0.0
    %6007 = vmatpush.xpose.msra.mxu0 0.0
    %6008 = vmatpush.xpose.msra.mxu0 0.0
    %6009 = vmatpush.xpose.msra.mxu0 0.0
    %6010 = vmatpush.xpose.msra.mxu0 0.0
    %6011 = vmatpush.xpose.msra.mxu0 0.0
    %6012 = vmatpush.xpose.msra.mxu0 0.0
    %6013 = vmatpush.xpose.msra.mxu0 %v5996
    %6014 = vmatmul.f32.gmra.mxu0 %v5994
    %v6015 = vpop.f32.mrf.mxu0
    %v6016 = vadd.f32 0.0, %v6015
    %6017 = vdwg.mxu0
    %6018 = vst [vmem:[#allocation1] ss:$4 sm:$0xff] %v5383
    %v6019 = vld.sshfl [vmem:[#allocation1] sm:$0xff pattern:$0x73625140]
    %6020 = vrot.lane.b32.xlu0 %v6019, 96
    %v6021 = vpop.permute.xlu0 %6020
    %v6022 = vsel %vm536, %v5335, 0
    %v6024 = vsel %vm536, %v6021, 0
    %6026 = vmatpush.xpose.msra.mxu0 0.0
    %6027 = vmatpush.xpose.msra.mxu0 0.0
    %6028 = vmatpush.xpose.msra.mxu0 0.0
    %6029 = vmatpush.xpose.msra.mxu0 0.0
    %6030 = vmatpush.xpose.msra.mxu0 0.0
    %6031 = vmatpush.xpose.msra.mxu0 0.0
    %6032 = vmatpush.xpose.msra.mxu0 0.0
    %6033 = vmatpush.xpose.msra.mxu0 0.0
    %6034 = vmatpush.xpose.msra.mxu0 0.0
    %6035 = vmatpush.xpose.msra.mxu0 0.0
    %6036 = vmatpush.xpose.msra.mxu0 0.0
    %6037 = vmatpush.xpose.msra.mxu0 0.0
    %6038 = vmatpush.xpose.msra.mxu0 0.0
    %6039 = vmatpush.xpose.msra.mxu0 0.0
    %6040 = vmatpush.xpose.msra.mxu0 0.0
    %6041 = vmatpush.xpose.msra.mxu0 %v6024
    %6042 = vmatmul.f32.gmra.mxu0 %v6022
    %v6043 = vpop.f32.mrf.mxu0
    %v6044 = vadd.f32 0.0, %v6043
    %6045 = vdwg.mxu0
    %6046 = vst [vmem:[#allocation1] ss:$4 sm:$0xff] %v5385
    %v6047 = vld.sshfl [vmem:[#allocation1] sm:$0xff pattern:$0x73625140]
    %6048 = vrot.lane.b32.xlu0 %v6047, 96
    %v6049 = vpop.permute.xlu0 %6048
    %v6050 = vsel %vm536, %v5337, 0
    %v6052 = vsel %vm536, %v6049, 0
    %6054 = vmatpush.xpose.msra.mxu0 0.0
    %6055 = vmatpush.xpose.msra.mxu0 0.0
    %6056 = vmatpush.xpose.msra.mxu0 0.0
    %6057 = vmatpush.xpose.msra.mxu0 0.0
    %6058 = vmatpush.xpose.msra.mxu0 0.0
    %6059 = vmatpush.xpose.msra.mxu0 0.0
    %6060 = vmatpush.xpose.msra.mxu0 0.0
    %6061 = vmatpush.xpose.msra.mxu0 0.0
    %6062 = vmatpush.xpose.msra.mxu0 0.0
    %6063 = vmatpush.xpose.msra.mxu0 0.0
    %6064 = vmatpush.xpose.msra.mxu0 0.0
    %6065 = vmatpush.xpose.msra.mxu0 0.0
    %6066 = vmatpush.xpose.msra.mxu0 0.0
    %6067 = vmatpush.xpose.msra.mxu0 0.0
    %6068 = vmatpush.xpose.msra.mxu0 0.0
    %6069 = vmatpush.xpose.msra.mxu0 %v6052
    %6070 = vmatmul.f32.gmra.mxu0 %v6050
    %v6071 = vpop.f32.mrf.mxu0
    %v6072 = vadd.f32 0.0, %v6071
    %6073 = vdwg.mxu0
    %6074 = vst [vmem:[#allocation1] ss:$4 sm:$0xff] %v5387
    %v6075 = vld.sshfl [vmem:[#allocation1] sm:$0xff pattern:$0x73625140]
    %6076 = vrot.lane.b32.xlu0 %v6075, 96
    %v6077 = vpop.permute.xlu0 %6076
    %v6078 = vsel %vm536, %v5339, 0
    %v6080 = vsel %vm536, %v6077, 0
    %6082 = vmatpush.xpose.msra.mxu0 0.0
    %6083 = vmatpush.xpose.msra.mxu0 0.0
    %6084 = vmatpush.xpose.msra.mxu0 0.0
    %6085 = vmatpush.xpose.msra.mxu0 0.0
    %6086 = vmatpush.xpose.msra.mxu0 0.0
    %6087 = vmatpush.xpose.msra.mxu0 0.0
    %6088 = vmatpush.xpose.msra.mxu0 0.0
    %6089 = vmatpush.xpose.msra.mxu0 0.0
    %6090 = vmatpush.xpose.msra.mxu0 0.0
    %6091 = vmatpush.xpose.msra.mxu0 0.0
    %6092 = vmatpush.xpose.msra.mxu0 0.0
    %6093 = vmatpush.xpose.msra.mxu0 0.0
    %6094 = vmatpush.xpose.msra.mxu0 0.0
    %6095 = vmatpush.xpose.msra.mxu0 0.0
    %6096 = vmatpush.xpose.msra.mxu0 0.0
    %6097 = vmatpush.xpose.msra.mxu0 %v6080
    %6098 = vmatmul.f32.gmra.mxu0 %v6078
    %v6099 = vpop.f32.mrf.mxu0
    %v6100 = vadd.f32 0.0, %v6099
    %6101 = vdwg.mxu0
    %6102 = vst [vmem:[#allocation1] ss:$4 sm:$0xff] %v5389
    %v6103 = vld.sshfl [vmem:[#allocation1] sm:$0xff pattern:$0x73625140]
    %6104 = vrot.lane.b32.xlu0 %v6103, 96
    %v6105 = vpop.permute.xlu0 %6104
    %v6106 = vsel %vm536, %v5341, 0
    %v6108 = vsel %vm536, %v6105, 0
    %6110 = vmatpush.xpose.msra.mxu0 0.0
    %6111 = vmatpush.xpose.msra.mxu0 0.0
    %6112 = vmatpush.xpose.msra.mxu0 0.0
    %6113 = vmatpush.xpose.msra.mxu0 0.0
    %6114 = vmatpush.xpose.msra.mxu0 0.0
    %6115 = vmatpush.xpose.msra.mxu0 0.0
    %6116 = vmatpush.xpose.msra.mxu0 0.0
    %6117 = vmatpush.xpose.msra.mxu0 0.0
    %6118 = vmatpush.xpose.msra.mxu0 0.0
    %6119 = vmatpush.xpose.msra.mxu0 0.0
    %6120 = vmatpush.xpose.msra.mxu0 0.0
    %6121 = vmatpush.xpose.msra.mxu0 0.0
    %6122 = vmatpush.xpose.msra.mxu0 0.0
    %6123 = vmatpush.xpose.msra.mxu0 0.0
    %6124 = vmatpush.xpose.msra.mxu0 0.0
    %6125 = vmatpush.xpose.msra.mxu0 %v6108
    %6126 = vmatmul.f32.gmra.mxu0 %v6106
    %v6127 = vpop.f32.mrf.mxu0
    %v6128 = vadd.f32 0.0, %v6127
    %6129 = vdwg.mxu0
    %6130 = vst [vmem:[#allocation1] ss:$4 sm:$0xff] %v5391
    %v6131 = vld.sshfl [vmem:[#allocation1] sm:$0xff pattern:$0x73625140]
    %6132 = vrot.lane.b32.xlu0 %v6131, 96
    %v6133 = vpop.permute.xlu0 %6132
    %v6134 = vsel %vm536, %v5343, 0
    %v6136 = vsel %vm536, %v6133, 0
    %6138 = vmatpush.xpose.msra.mxu0 0.0
    %6139 = vmatpush.xpose.msra.mxu0 0.0
    %6140 = vmatpush.xpose.msra.mxu0 0.0
    %6141 = vmatpush.xpose.msra.mxu0 0.0
    %6142 = vmatpush.xpose.msra.mxu0 0.0
    %6143 = vmatpush.xpose.msra.mxu0 0.0
    %6144 = vmatpush.xpose.msra.mxu0 0.0
    %6145 = vmatpush.xpose.msra.mxu0 0.0
    %6146 = vmatpush.xpose.msra.mxu0 0.0
    %6147 = vmatpush.xpose.msra.mxu0 0.0
    %6148 = vmatpush.xpose.msra.mxu0 0.0
    %6149 = vmatpush.xpose.msra.mxu0 0.0
    %6150 = vmatpush.xpose.msra.mxu0 0.0
    %6151 = vmatpush.xpose.msra.mxu0 0.0
    %6152 = vmatpush.xpose.msra.mxu0 0.0
    %6153 = vmatpush.xpose.msra.mxu0 %v6136
    %6154 = vmatmul.f32.gmra.mxu0 %v6134
    %v6155 = vpop.f32.mrf.mxu0
    %v6156 = vadd.f32 0.0, %v6155
    %6157 = vdwg.mxu0
    %6158 = vst [vmem:[#allocation1] ss:$4 sm:$0xff] %v5393
    %v6159 = vld.sshfl [vmem:[#allocation1] sm:$0xff pattern:$0x73625140]
    %6160 = vrot.lane.b32.xlu0 %v6159, 96
    %v6161 = vpop.permute.xlu0 %6160
    %v6162 = vsel %vm536, %v5345, 0
    %v6164 = vsel %vm536, %v6161, 0
    %6166 = vmatpush.xpose.msra.mxu0 0.0
    %6167 = vmatpush.xpose.msra.mxu0 0.0
    %6168 = vmatpush.xpose.msra.mxu0 0.0
    %6169 = vmatpush.xpose.msra.mxu0 0.0
    %6170 = vmatpush.xpose.msra.mxu0 0.0
    %6171 = vmatpush.xpose.msra.mxu0 0.0
    %6172 = vmatpush.xpose.msra.mxu0 0.0
    %6173 = vmatpush.xpose.msra.mxu0 0.0
    %6174 = vmatpush.xpose.msra.mxu0 0.0
    %6175 = vmatpush.xpose.msra.mxu0 0.0
    %6176 = vmatpush.xpose.msra.mxu0 0.0
    %6177 = vmatpush.xpose.msra.mxu0 0.0
    %6178 = vmatpush.xpose.msra.mxu0 0.0
    %6179 = vmatpush.xpose.msra.mxu0 0.0
    %6180 = vmatpush.xpose.msra.mxu0 0.0
    %6181 = vmatpush.xpose.msra.mxu0 %v6164
    %6182 = vmatmul.f32.gmra.mxu0 %v6162
    %v6183 = vpop.f32.mrf.mxu0
    %v6184 = vadd.f32 0.0, %v6183
    %6185 = vdwg.mxu0
    %6186 = vst [vmem:[#allocation1] ss:$4 sm:$0xff] %v5395
    %v6187 = vld.sshfl [vmem:[#allocation1] sm:$0xff pattern:$0x73625140]
    %6188 = vrot.lane.b32.xlu0 %v6187, 96
    %v6189 = vpop.permute.xlu0 %6188
    %v6190 = vsel %vm536, %v5347, 0
    %v6192 = vsel %vm536, %v6189, 0
    %6194 = vmatpush.xpose.msra.mxu0 0.0
    %6195 = vmatpush.xpose.msra.mxu0 0.0
    %6196 = vmatpush.xpose.msra.mxu0 0.0
    %6197 = vmatpush.xpose.msra.mxu0 0.0
    %6198 = vmatpush.xpose.msra.mxu0 0.0
    %6199 = vmatpush.xpose.msra.mxu0 0.0
    %6200 = vmatpush.xpose.msra.mxu0 0.0
    %6201 = vmatpush.xpose.msra.mxu0 0.0
    %6202 = vmatpush.xpose.msra.mxu0 0.0
    %6203 = vmatpush.xpose.msra.mxu0 0.0
    %6204 = vmatpush.xpose.msra.mxu0 0.0
    %6205 = vmatpush.xpose.msra.mxu0 0.0
    %6206 = vmatpush.xpose.msra.mxu0 0.0
    %6207 = vmatpush.xpose.msra.mxu0 0.0
    %6208 = vmatpush.xpose.msra.mxu0 0.0
    %6209 = vmatpush.xpose.msra.mxu0 %v6192
    %6210 = vmatmul.f32.gmra.mxu0 %v6190
    %v6211 = vpop.f32.mrf.mxu0
    %v6212 = vadd.f32 0.0, %v6211
    %6213 = vdwg.mxu0
    %6214 = vst [vmem:[#allocation1] ss:$4 sm:$0xff] %v5397
    %v6215 = vld.sshfl [vmem:[#allocation1] sm:$0xff pattern:$0x73625140]
    %6216 = vrot.lane.b32.xlu0 %v6215, 96
    %v6217 = vpop.permute.xlu0 %6216
    %v6218 = vsel %vm536, %v5349, 0
    %v6220 = vsel %vm536, %v6217, 0
    %6222 = vmatpush.xpose.msra.mxu0 0.0
    %6223 = vmatpush.xpose.msra.mxu0 0.0
    %6224 = vmatpush.xpose.msra.mxu0 0.0
    %6225 = vmatpush.xpose.msra.mxu0 0.0
    %6226 = vmatpush.xpose.msra.mxu0 0.0
    %6227 = vmatpush.xpose.msra.mxu0 0.0
    %6228 = vmatpush.xpose.msra.mxu0 0.0
    %6229 = vmatpush.xpose.msra.mxu0 0.0
    %6230 = vmatpush.xpose.msra.mxu0 0.0
    %6231 = vmatpush.xpose.msra.mxu0 0.0
    %6232 = vmatpush.xpose.msra.mxu0 0.0
    %6233 = vmatpush.xpose.msra.mxu0 0.0
    %6234 = vmatpush.xpose.msra.mxu0 0.0
    %6235 = vmatpush.xpose.msra.mxu0 0.0
    %6236 = vmatpush.xpose.msra.mxu0 0.0
    %6237 = vmatpush.xpose.msra.mxu0 %v6220
    %6238 = vmatmul.f32.gmra.mxu0 %v6218
    %v6239 = vpop.f32.mrf.mxu0
    %v6240 = vadd.f32 0.0, %v6239
    %6241 = vdwg.mxu0
    %6242 = vst [vmem:[#allocation1] ss:$4 sm:$0xff] %v5399
    %v6243 = vld.sshfl [vmem:[#allocation1] sm:$0xff pattern:$0x73625140]
    %6244 = vrot.lane.b32.xlu0 %v6243, 96
    %v6245 = vpop.permute.xlu0 %6244
    %v6246 = vsel %vm536, %v5351, 0
    %v6248 = vsel %vm536, %v6245, 0
    %6250 = vmatpush.xpose.msra.mxu0 0.0
    %6251 = vmatpush.xpose.msra.mxu0 0.0
    %6252 = vmatpush.xpose.msra.mxu0 0.0
    %6253 = vmatpush.xpose.msra.mxu0 0.0
    %6254 = vmatpush.xpose.msra.mxu0 0.0
    %6255 = vmatpush.xpose.msra.mxu0 0.0
    %6256 = vmatpush.xpose.msra.mxu0 0.0
    %6257 = vmatpush.xpose.msra.mxu0 0.0
    %6258 = vmatpush.xpose.msra.mxu0 0.0
    %6259 = vmatpush.xpose.msra.mxu0 0.0
    %6260 = vmatpush.xpose.msra.mxu0 0.0
    %6261 = vmatpush.xpose.msra.mxu0 0.0
    %6262 = vmatpush.xpose.msra.mxu0 0.0
    %6263 = vmatpush.xpose.msra.mxu0 0.0
    %6264 = vmatpush.xpose.msra.mxu0 0.0
    %6265 = vmatpush.xpose.msra.mxu0 %v6248
    %6266 = vmatmul.f32.gmra.mxu0 %v6246
    %v6267 = vpop.f32.mrf.mxu0
    %v6268 = vadd.f32 0.0, %v6267
    %6269 = vdwg.mxu0
    %6270 = vst [vmem:[#allocation1] ss:$4 sm:$0xff] %v5401
    %v6271 = vld.sshfl [vmem:[#allocation1] sm:$0xff pattern:$0x73625140]
    %6272 = vrot.lane.b32.xlu0 %v6271, 96
    %v6273 = vpop.permute.xlu0 %6272
    %v6274 = vsel %vm536, %v5353, 0
    %v6276 = vsel %vm536, %v6273, 0
    %6278 = vmatpush.xpose.msra.mxu0 0.0
    %6279 = vmatpush.xpose.msra.mxu0 0.0
    %6280 = vmatpush.xpose.msra.mxu0 0.0
    %6281 = vmatpush.xpose.msra.mxu0 0.0
    %6282 = vmatpush.xpose.msra.mxu0 0.0
    %6283 = vmatpush.xpose.msra.mxu0 0.0
    %6284 = vmatpush.xpose.msra.mxu0 0.0
    %6285 = vmatpush.xpose.msra.mxu0 0.0
    %6286 = vmatpush.xpose.msra.mxu0 0.0
    %6287 = vmatpush.xpose.msra.mxu0 0.0
    %6288 = vmatpush.xpose.msra.mxu0 0.0
    %6289 = vmatpush.xpose.msra.mxu0 0.0
    %6290 = vmatpush.xpose.msra.mxu0 0.0
    %6291 = vmatpush.xpose.msra.mxu0 0.0
    %6292 = vmatpush.xpose.msra.mxu0 0.0
    %6293 = vmatpush.xpose.msra.mxu0 %v6276
    %6294 = vmatmul.f32.gmra.mxu0 %v6274
    %v6295 = vpop.f32.mrf.mxu0
    %v6296 = vadd.f32 0.0, %v6295
    %6297 = vdwg.mxu0
    %v6298 = vsel %vm1429, %v5428, -inf
    %6299 = vmax.xlane.f32.xlu0 %v6298
    %v6300 = vpop.xlane.xlu0 %6299
    %v6301 = vsel %vm1429, %v5456, -inf
    %6302 = vmax.xlane.f32.xlu0 %v6301
    %v6303 = vpop.xlane.xlu0 %6302
    %v6304 = vsel %vm1429, %v5484, -inf
    %6305 = vmax.xlane.f32.xlu0 %v6304
    %v6306 = vpop.xlane.xlu0 %6305
    %v6307 = vsel %vm1429, %v5512, -inf
    %6308 = vmax.xlane.f32.xlu0 %v6307
    %v6309 = vpop.xlane.xlu0 %6308
    %v6310 = vsel %vm1429, %v5540, -inf
    %6311 = vmax.xlane.f32.xlu0 %v6310
    %v6312 = vpop.xlane.xlu0 %6311
    %v6313 = vsel %vm1429, %v5568, -inf
    %6314 = vmax.xlane.f32.xlu0 %v6313
    %v6315 = vpop.xlane.xlu0 %6314
    %v6316 = vsel %vm1429, %v5596, -inf
    %6317 = vmax.xlane.f32.xlu0 %v6316
    %v6318 = vpop.xlane.xlu0 %6317
    %v6319 = vsel %vm1429, %v5624, -inf
    %6320 = vmax.xlane.f32.xlu0 %v6319
    %v6321 = vpop.xlane.xlu0 %6320
    %v6322 = vsel %vm1429, %v5652, -inf
    %6323 = vmax.xlane.f32.xlu0 %v6322
    %v6324 = vpop.xlane.xlu0 %6323
    %v6325 = vsel %vm1429, %v5680, -inf
    %6326 = vmax.xlane.f32.xlu0 %v6325
    %v6327 = vpop.xlane.xlu0 %6326
    %v6328 = vsel %vm1429, %v5708, -inf
    %6329 = vmax.xlane.f32.xlu0 %v6328
    %v6330 = vpop.xlane.xlu0 %6329
    %v6331 = vsel %vm1429, %v5736, -inf
    %6332 = vmax.xlane.f32.xlu0 %v6331
    %v6333 = vpop.xlane.xlu0 %6332
    %v6334 = vsel %vm1429, %v5764, -inf
    %6335 = vmax.xlane.f32.xlu0 %v6334
    %v6336 = vpop.xlane.xlu0 %6335
    %v6337 = vsel %vm1429, %v5792, -inf
    %6338 = vmax.xlane.f32.xlu0 %v6337
    %v6339 = vpop.xlane.xlu0 %6338
    %v6340 = vsel %vm1429, %v5820, -inf
    %6341 = vmax.xlane.f32.xlu0 %v6340
    %v6342 = vpop.xlane.xlu0 %6341
    %v6343 = vsel %vm1429, %v5848, -inf
    %6344 = vmax.xlane.f32.xlu0 %v6343
    %v6345 = vpop.xlane.xlu0 %6344
    %v6346 = vsel %vm1429, %v5876, -inf
    %6347 = vmax.xlane.f32.xlu0 %v6346
    %v6348 = vpop.xlane.xlu0 %6347
    %v6349 = vsel %vm1429, %v5904, -inf
    %6350 = vmax.xlane.f32.xlu0 %v6349
    %v6351 = vpop.xlane.xlu0 %6350
    %v6352 = vsel %vm1429, %v5932, -inf
    %6353 = vmax.xlane.f32.xlu0 %v6352
    %v6354 = vpop.xlane.xlu0 %6353
    %v6355 = vsel %vm1429, %v5960, -inf
    %6356 = vmax.xlane.f32.xlu0 %v6355
    %v6357 = vpop.xlane.xlu0 %6356
    %v6358 = vsel %vm1429, %v5988, -inf
    %6359 = vmax.xlane.f32.xlu0 %v6358
    %v6360 = vpop.xlane.xlu0 %6359
    %v6361 = vsel %vm1429, %v6016, -inf
    %6362 = vmax.xlane.f32.xlu0 %v6361
    %v6363 = vpop.xlane.xlu0 %6362
    %v6364 = vsel %vm1429, %v6044, -inf
    %6365 = vmax.xlane.f32.xlu0 %v6364
    %v6366 = vpop.xlane.xlu0 %6365
    %v6367 = vsel %vm1429, %v6072, -inf
    %6368 = vmax.xlane.f32.xlu0 %v6367
    %v6369 = vpop.xlane.xlu0 %6368
    %v6370 = vsel %vm1429, %v6100, -inf
    %6371 = vmax.xlane.f32.xlu0 %v6370
    %v6372 = vpop.xlane.xlu0 %6371
    %v6373 = vsel %vm1429, %v6128, -inf
    %6374 = vmax.xlane.f32.xlu0 %v6373
    %v6375 = vpop.xlane.xlu0 %6374
    %v6376 = vsel %vm1429, %v6156, -inf
    %6377 = vmax.xlane.f32.xlu0 %v6376
    %v6378 = vpop.xlane.xlu0 %6377
    %v6379 = vsel %vm1429, %v6184, -inf
    %6380 = vmax.xlane.f32.xlu0 %v6379
    %v6381 = vpop.xlane.xlu0 %6380
    %v6382 = vsel %vm1429, %v6212, -inf
    %6383 = vmax.xlane.f32.xlu0 %v6382
    %v6384 = vpop.xlane.xlu0 %6383
    %v6385 = vsel %vm1429, %v6240, -inf
    %6386 = vmax.xlane.f32.xlu0 %v6385
    %v6387 = vpop.xlane.xlu0 %6386
    %v6388 = vsel %vm1429, %v6268, -inf
    %6389 = vmax.xlane.f32.xlu0 %v6388
    %v6390 = vpop.xlane.xlu0 %6389
    %v6391 = vsel %vm1429, %v6296, -inf
    %6392 = vmax.xlane.f32.xlu0 %v6391
    %v6393 = vpop.xlane.xlu0 %6392
    %v6394 = vsub.f32 %v5428, %v6300
    %v6395 = vsub.f32 %v5456, %v6303
    %v6396 = vsub.f32 %v5484, %v6306
    %v6397 = vsub.f32 %v5512, %v6309
    %v6398 = vsub.f32 %v5540, %v6312
    %v6399 = vsub.f32 %v5568, %v6315
    %v6400 = vsub.f32 %v5596, %v6318
    %v6401 = vsub.f32 %v5624, %v6321
    %v6402 = vsub.f32 %v5652, %v6324
    %v6403 = vsub.f32 %v5680, %v6327
    %v6404 = vsub.f32 %v5708, %v6330
    %v6405 = vsub.f32 %v5736, %v6333
    %v6406 = vsub.f32 %v5764, %v6336
    %v6407 = vsub.f32 %v5792, %v6339
    %v6408 = vsub.f32 %v5820, %v6342
    %v6409 = vsub.f32 %v5848, %v6345
    %v6410 = vsub.f32 %v5876, %v6348
    %v6411 = vsub.f32 %v5904, %v6351
    %v6412 = vsub.f32 %v5932, %v6354
    %v6413 = vsub.f32 %v5960, %v6357
    %v6414 = vsub.f32 %v5988, %v6360
    %v6415 = vsub.f32 %v6016, %v6363
    %v6416 = vsub.f32 %v6044, %v6366
    %v6417 = vsub.f32 %v6072, %v6369
    %v6418 = vsub.f32 %v6100, %v6372
    %v6419 = vsub.f32 %v6128, %v6375
    %v6420 = vsub.f32 %v6156, %v6378
    %v6421 = vsub.f32 %v6184, %v6381
    %v6422 = vsub.f32 %v6212, %v6384
    %v6423 = vsub.f32 %v6240, %v6387
    %v6424 = vsub.f32 %v6268, %v6390
    %v6425 = vsub.f32 %v6296, %v6393
    %v6426 = vmul.f32 %v6394, 1.442695
    %v6427 = vpow.pop %v6426
    %v6428 = vmul.f32 %v6395, 1.442695
    %v6429 = vpow.pop %v6428
    %v6430 = vmul.f32 %v6396, 1.442695
    %v6431 = vpow.pop %v6430
    %v6432 = vmul.f32 %v6397, 1.442695
    %v6433 = vpow.pop %v6432
    %v6434 = vmul.f32 %v6398, 1.442695
    %v6435 = vpow.pop %v6434
    %v6436 = vmul.f32 %v6399, 1.442695
    %v6437 = vpow.pop %v6436
    %v6438 = vmul.f32 %v6400, 1.442695
    %v6439 = vpow.pop %v6438
    %v6440 = vmul.f32 %v6401, 1.442695
    %v6441 = vpow.pop %v6440
    %v6442 = vmul.f32 %v6402, 1.442695
    %v6443 = vpow.pop %v6442
    %v6444 = vmul.f32 %v6403, 1.442695
    %v6445 = vpow.pop %v6444
    %v6446 = vmul.f32 %v6404, 1.442695
    %v6447 = vpow.pop %v6446
    %v6448 = vmul.f32 %v6405, 1.442695
    %v6449 = vpow.pop %v6448
    %v6450 = vmul.f32 %v6406, 1.442695
    %v6451 = vpow.pop %v6450
    %v6452 = vmul.f32 %v6407, 1.442695
    %v6453 = vpow.pop %v6452
    %v6454 = vmul.f32 %v6408, 1.442695
    %v6455 = vpow.pop %v6454
    %v6456 = vmul.f32 %v6409, 1.442695
    %v6457 = vpow.pop %v6456
    %v6458 = vmul.f32 %v6410, 1.442695
    %v6459 = vpow.pop %v6458
    %v6460 = vmul.f32 %v6411, 1.442695
    %v6461 = vpow.pop %v6460
    %v6462 = vmul.f32 %v6412, 1.442695
    %v6463 = vpow.pop %v6462
    %v6464 = vmul.f32 %v6413, 1.442695
    %v6465 = vpow.pop %v6464
    %v6466 = vmul.f32 %v6414, 1.442695
    %v6467 = vpow.pop %v6466
    %v6468 = vmul.f32 %v6415, 1.442695
    %v6469 = vpow.pop %v6468
    %v6470 = vmul.f32 %v6416, 1.442695
    %v6471 = vpow.pop %v6470
    %v6472 = vmul.f32 %v6417, 1.442695
    %v6473 = vpow.pop %v6472
    %v6474 = vmul.f32 %v6418, 1.442695
    %v6475 = vpow.pop %v6474
    %v6476 = vmul.f32 %v6419, 1.442695
    %v6477 = vpow.pop %v6476
    %v6478 = vmul.f32 %v6420, 1.442695
    %v6479 = vpow.pop %v6478
    %v6480 = vmul.f32 %v6421, 1.442695
    %v6481 = vpow.pop %v6480
    %v6482 = vmul.f32 %v6422, 1.442695
    %v6483 = vpow.pop %v6482
    %v6484 = vmul.f32 %v6423, 1.442695
    %v6485 = vpow.pop %v6484
    %v6486 = vmul.f32 %v6424, 1.442695
    %v6487 = vpow.pop %v6486
    %v6488 = vmul.f32 %v6425, 1.442695
    %v6489 = vpow.pop %v6488
    %v6490 = vsel %vm1429, %v6427, 0.0
    %6491 = vadd.xlane.f32.xlu0 %v6490
    %v6492 = vpop.xlane.xlu0 %6491
    %v6493 = vsel %vm1429, %v6429, 0.0
    %6494 = vadd.xlane.f32.xlu0 %v6493
    %v6495 = vpop.xlane.xlu0 %6494
    %v6496 = vsel %vm1429, %v6431, 0.0
    %6497 = vadd.xlane.f32.xlu0 %v6496
    %v6498 = vpop.xlane.xlu0 %6497
    %v6499 = vsel %vm1429, %v6433, 0.0
    %6500 = vadd.xlane.f32.xlu0 %v6499
    %v6501 = vpop.xlane.xlu0 %6500
    %v6502 = vsel %vm1429, %v6435, 0.0
    %6503 = vadd.xlane.f32.xlu0 %v6502
    %v6504 = vpop.xlane.xlu0 %6503
    %v6505 = vsel %vm1429, %v6437, 0.0
    %6506 = vadd.xlane.f32.xlu0 %v6505
    %v6507 = vpop.xlane.xlu0 %6506
    %v6508 = vsel %vm1429, %v6439, 0.0
    %6509 = vadd.xlane.f32.xlu0 %v6508
    %v6510 = vpop.xlane.xlu0 %6509
    %v6511 = vsel %vm1429, %v6441, 0.0
    %6512 = vadd.xlane.f32.xlu0 %v6511
    %v6513 = vpop.xlane.xlu0 %6512
    %v6514 = vsel %vm1429, %v6443, 0.0
    %6515 = vadd.xlane.f32.xlu0 %v6514
    %v6516 = vpop.xlane.xlu0 %6515
    %v6517 = vsel %vm1429, %v6445, 0.0
    %6518 = vadd.xlane.f32.xlu0 %v6517
    %v6519 = vpop.xlane.xlu0 %6518
    %v6520 = vsel %vm1429, %v6447, 0.0
    %6521 = vadd.xlane.f32.xlu0 %v6520
    %v6522 = vpop.xlane.xlu0 %6521
    %v6523 = vsel %vm1429, %v6449, 0.0
    %6524 = vadd.xlane.f32.xlu0 %v6523
    %v6525 = vpop.xlane.xlu0 %6524
    %v6526 = vsel %vm1429, %v6451, 0.0
    %6527 = vadd.xlane.f32.xlu0 %v6526
    %v6528 = vpop.xlane.xlu0 %6527
    %v6529 = vsel %vm1429, %v6453, 0.0
    %6530 = vadd.xlane.f32.xlu0 %v6529
    %v6531 = vpop.xlane.xlu0 %6530
    %v6532 = vsel %vm1429, %v6455, 0.0
    %6533 = vadd.xlane.f32.xlu0 %v6532
    %v6534 = vpop.xlane.xlu0 %6533
    %v6535 = vsel %vm1429, %v6457, 0.0
    %6536 = vadd.xlane.f32.xlu0 %v6535
    %v6537 = vpop.xlane.xlu0 %6536
    %v6538 = vsel %vm1429, %v6459, 0.0
    %6539 = vadd.xlane.f32.xlu0 %v6538
    %v6540 = vpop.xlane.xlu0 %6539
    %v6541 = vsel %vm1429, %v6461, 0.0
    %6542 = vadd.xlane.f32.xlu0 %v6541
    %v6543 = vpop.xlane.xlu0 %6542
    %v6544 = vsel %vm1429, %v6463, 0.0
    %6545 = vadd.xlane.f32.xlu0 %v6544
    %v6546 = vpop.xlane.xlu0 %6545
    %v6547 = vsel %vm1429, %v6465, 0.0
    %6548 = vadd.xlane.f32.xlu0 %v6547
    %v6549 = vpop.xlane.xlu0 %6548
    %v6550 = vsel %vm1429, %v6467, 0.0
    %6551 = vadd.xlane.f32.xlu0 %v6550
    %v6552 = vpop.xlane.xlu0 %6551
    %v6553 = vsel %vm1429, %v6469, 0.0
    %6554 = vadd.xlane.f32.xlu0 %v6553
    %v6555 = vpop.xlane.xlu0 %6554
    %v6556 = vsel %vm1429, %v6471, 0.0
    %6557 = vadd.xlane.f32.xlu0 %v6556
    %v6558 = vpop.xlane.xlu0 %6557
    %v6559 = vsel %vm1429, %v6473, 0.0
    %6560 = vadd.xlane.f32.xlu0 %v6559
    %v6561 = vpop.xlane.xlu0 %6560
    %v6562 = vsel %vm1429, %v6475, 0.0
    %6563 = vadd.xlane.f32.xlu0 %v6562
    %v6564 = vpop.xlane.xlu0 %6563
    %v6565 = vsel %vm1429, %v6477, 0.0
    %6566 = vadd.xlane.f32.xlu0 %v6565
    %v6567 = vpop.xlane.xlu0 %6566
    %v6568 = vsel %vm1429, %v6479, 0.0
    %6569 = vadd.xlane.f32.xlu0 %v6568
    %v6570 = vpop.xlane.xlu0 %6569
    %v6571 = vsel %vm1429, %v6481, 0.0
    %6572 = vadd.xlane.f32.xlu0 %v6571
    %v6573 = vpop.xlane.xlu0 %6572
    %v6574 = vsel %vm1429, %v6483, 0.0
    %6575 = vadd.xlane.f32.xlu0 %v6574
    %v6576 = vpop.xlane.xlu0 %6575
    %v6577 = vsel %vm1429, %v6485, 0.0
    %6578 = vadd.xlane.f32.xlu0 %v6577
    %v6579 = vpop.xlane.xlu0 %6578
    %v6580 = vsel %vm1429, %v6487, 0.0
    %6581 = vadd.xlane.f32.xlu0 %v6580
    %v6582 = vpop.xlane.xlu0 %6581
    %v6583 = vsel %vm1429, %v6489, 0.0
    %6584 = vadd.xlane.f32.xlu0 %v6583
    %v6585 = vpop.xlane.xlu0 %6584
    %v6586 = vrcp.pop %v6492
    %v6587 = vrcp.pop %v6495
    %v6588 = vrcp.pop %v6498
    %v6589 = vrcp.pop %v6501
    %v6590 = vrcp.pop %v6504
    %v6591 = vrcp.pop %v6507
    %v6592 = vrcp.pop %v6510
    %v6593 = vrcp.pop %v6513
    %v6594 = vrcp.pop %v6516
    %v6595 = vrcp.pop %v6519
    %v6596 = vrcp.pop %v6522
    %v6597 = vrcp.pop %v6525
    %v6598 = vrcp.pop %v6528
    %v6599 = vrcp.pop %v6531
    %v6600 = vrcp.pop %v6534
    %v6601 = vrcp.pop %v6537
    %v6602 = vrcp.pop %v6540
    %v6603 = vrcp.pop %v6543
    %v6604 = vrcp.pop %v6546
    %v6605 = vrcp.pop %v6549
    %v6606 = vrcp.pop %v6552
    %v6607 = vrcp.pop %v6555
    %v6608 = vrcp.pop %v6558
    %v6609 = vrcp.pop %v6561
    %v6610 = vrcp.pop %v6564
    %v6611 = vrcp.pop %v6567
    %v6612 = vrcp.pop %v6570
    %v6613 = vrcp.pop %v6573
    %v6614 = vrcp.pop %v6576
    %v6615 = vrcp.pop %v6579
    %v6616 = vrcp.pop %v6582
    %v6617 = vrcp.pop %v6585
    %v6618 = vmul.f32 %v6427, %v6586
    %v6619 = vmul.f32 %v6429, %v6587
    %v6620 = vmul.f32 %v6431, %v6588
    %v6621 = vmul.f32 %v6433, %v6589
    %v6622 = vmul.f32 %v6435, %v6590
    %v6623 = vmul.f32 %v6437, %v6591
    %v6624 = vmul.f32 %v6439, %v6592
    %v6625 = vmul.f32 %v6441, %v6593
    %v6626 = vmul.f32 %v6443, %v6594
    %v6627 = vmul.f32 %v6445, %v6595
    %v6628 = vmul.f32 %v6447, %v6596
    %v6629 = vmul.f32 %v6449, %v6597
    %v6630 = vmul.f32 %v6451, %v6598
    %v6631 = vmul.f32 %v6453, %v6599
    %v6632 = vmul.f32 %v6455, %v6600
    %v6633 = vmul.f32 %v6457, %v6601
    %v6634 = vmul.f32 %v6459, %v6602
    %v6635 = vmul.f32 %v6461, %v6603
    %v6636 = vmul.f32 %v6463, %v6604
    %v6637 = vmul.f32 %v6465, %v6605
    %v6638 = vmul.f32 %v6467, %v6606
    %v6639 = vmul.f32 %v6469, %v6607
    %v6640 = vmul.f32 %v6471, %v6608
    %v6641 = vmul.f32 %v6473, %v6609
    %v6642 = vmul.f32 %v6475, %v6610
    %v6643 = vmul.f32 %v6477, %v6611
    %v6644 = vmul.f32 %v6479, %v6612
    %v6645 = vmul.f32 %v6481, %v6613
    %v6646 = vmul.f32 %v6483, %v6614
    %v6647 = vmul.f32 %v6485, %v6615
    %v6648 = vmul.f32 %v6487, %v6616
    %v6649 = vmul.f32 %v6489, %v6617
    %6650 = vst [vmem:[#allocation1] ss:$4 sm:$0xff] %v5284
    %v6651 = vld.sshfl [vmem:[#allocation1] sm:$0xff pattern:$0x73625140]
    %6652 = vrot.lane.b32.xlu0 %v6651, 64
    %v6653 = vpop.permute.xlu0 %6652
    %v6655 = vsel %vm1786, %v6618, 0
    %v6657 = vsel %vm1790, %v6653, 0
    %6659 = vmatpush.msra.mxu0 0.0
    %6660 = vmatpush.msra.mxu0 0.0
    %6661 = vmatpush.msra.mxu0 0.0
    %6662 = vmatpush.msra.mxu0 0.0
    %6663 = vmatpush.msra.mxu0 0.0
    %6664 = vmatpush.msra.mxu0 0.0
    %6665 = vmatpush.msra.mxu0 0.0
    %6666 = vmatpush.msra.mxu0 0.0
    %6667 = vmatpush.msra.mxu0 0.0
    %6668 = vmatpush.msra.mxu0 0.0
    %6669 = vmatpush.msra.mxu0 0.0
    %6670 = vmatpush.msra.mxu0 0.0
    %6671 = vmatpush.msra.mxu0 0.0
    %6672 = vmatpush.msra.mxu0 0.0
    %6673 = vmatpush.msra.mxu0 0.0
    %6674 = vmatpush.msra.mxu0 %v6657
    %6675 = vmatmul.f32.gmra.mxu0 %v6655
    %v6676 = vpop.f32.mrf.mxu0
    %v6677 = vadd.f32 0.0, %v6676
    %6678 = vdwg.mxu0
    %6679 = vst [vmem:[#allocation1] ss:$4 sm:$0xff] %v5300
    %v6680 = vld.sshfl [vmem:[#allocation1] sm:$0xff pattern:$0x73625140]
    %6681 = vrot.lane.b32.xlu0 %v6680, 64
    %v6682 = vpop.permute.xlu0 %6681
    %v6684 = vsel %vm1786, %v6619, 0
    %v6686 = vsel %vm1790, %v6682, 0
    %6688 = vmatpush.msra.mxu0 0.0
    %6689 = vmatpush.msra.mxu0 0.0
    %6690 = vmatpush.msra.mxu0 0.0
    %6691 = vmatpush.msra.mxu0 0.0
    %6692 = vmatpush.msra.mxu0 0.0
    %6693 = vmatpush.msra.mxu0 0.0
    %6694 = vmatpush.msra.mxu0 0.0
    %6695 = vmatpush.msra.mxu0 0.0
    %6696 = vmatpush.msra.mxu0 0.0
    %6697 = vmatpush.msra.mxu0 0.0
    %6698 = vmatpush.msra.mxu0 0.0
    %6699 = vmatpush.msra.mxu0 0.0
    %6700 = vmatpush.msra.mxu0 0.0
    %6701 = vmatpush.msra.mxu0 0.0
    %6702 = vmatpush.msra.mxu0 0.0
    %6703 = vmatpush.msra.mxu0 %v6686
    %6704 = vmatmul.f32.gmra.mxu0 %v6684
    %v6705 = vpop.f32.mrf.mxu0
    %v6706 = vadd.f32 0.0, %v6705
    %6707 = vdwg.mxu0
    %6708 = vst [vmem:[#allocation1] ss:$4 sm:$0xff] %v5301
    %v6709 = vld.sshfl [vmem:[#allocation1] sm:$0xff pattern:$0x73625140]
    %6710 = vrot.lane.b32.xlu0 %v6709, 64
    %v6711 = vpop.permute.xlu0 %6710
    %v6713 = vsel %vm1786, %v6620, 0
    %v6715 = vsel %vm1790, %v6711, 0
    %6717 = vmatpush.msra.mxu0 0.0
    %6718 = vmatpush.msra.mxu0 0.0
    %6719 = vmatpush.msra.mxu0 0.0
    %6720 = vmatpush.msra.mxu0 0.0
    %6721 = vmatpush.msra.mxu0 0.0
    %6722 = vmatpush.msra.mxu0 0.0
    %6723 = vmatpush.msra.mxu0 0.0
    %6724 = vmatpush.msra.mxu0 0.0
    %6725 = vmatpush.msra.mxu0 0.0
    %6726 = vmatpush.msra.mxu0 0.0
    %6727 = vmatpush.msra.mxu0 0.0
    %6728 = vmatpush.msra.mxu0 0.0
    %6729 = vmatpush.msra.mxu0 0.0
    %6730 = vmatpush.msra.mxu0 0.0
    %6731 = vmatpush.msra.mxu0 0.0
    %6732 = vmatpush.msra.mxu0 %v6715
    %6733 = vmatmul.f32.gmra.mxu0 %v6713
    %v6734 = vpop.f32.mrf.mxu0
    %v6735 = vadd.f32 0.0, %v6734
    %6736 = vdwg.mxu0
    %6737 = vst [vmem:[#allocation1] ss:$4 sm:$0xff] %v5302
    %v6738 = vld.sshfl [vmem:[#allocation1] sm:$0xff pattern:$0x73625140]
    %6739 = vrot.lane.b32.xlu0 %v6738, 64
    %v6740 = vpop.permute.xlu0 %6739
    %v6742 = vsel %vm1786, %v6621, 0
    %v6744 = vsel %vm1790, %v6740, 0
    %6746 = vmatpush.msra.mxu0 0.0
    %6747 = vmatpush.msra.mxu0 0.0
    %6748 = vmatpush.msra.mxu0 0.0
    %6749 = vmatpush.msra.mxu0 0.0
    %6750 = vmatpush.msra.mxu0 0.0
    %6751 = vmatpush.msra.mxu0 0.0
    %6752 = vmatpush.msra.mxu0 0.0
    %6753 = vmatpush.msra.mxu0 0.0
    %6754 = vmatpush.msra.mxu0 0.0
    %6755 = vmatpush.msra.mxu0 0.0
    %6756 = vmatpush.msra.mxu0 0.0
    %6757 = vmatpush.msra.mxu0 0.0
    %6758 = vmatpush.msra.mxu0 0.0
    %6759 = vmatpush.msra.mxu0 0.0
    %6760 = vmatpush.msra.mxu0 0.0
    %6761 = vmatpush.msra.mxu0 %v6744
    %6762 = vmatmul.f32.gmra.mxu0 %v6742
    %v6763 = vpop.f32.mrf.mxu0
    %v6764 = vadd.f32 0.0, %v6763
    %6765 = vdwg.mxu0
    %6766 = vst [vmem:[#allocation1] ss:$4 sm:$0xff] %v5286
    %v6767 = vld.sshfl [vmem:[#allocation1] sm:$0xff pattern:$0x73625140]
    %6768 = vrot.lane.b32.xlu0 %v6767, 64
    %v6769 = vpop.permute.xlu0 %6768
    %v6771 = vsel %vm1786, %v6622, 0
    %v6773 = vsel %vm1790, %v6769, 0
    %6775 = vmatpush.msra.mxu0 0.0
    %6776 = vmatpush.msra.mxu0 0.0
    %6777 = vmatpush.msra.mxu0 0.0
    %6778 = vmatpush.msra.mxu0 0.0
    %6779 = vmatpush.msra.mxu0 0.0
    %6780 = vmatpush.msra.mxu0 0.0
    %6781 = vmatpush.msra.mxu0 0.0
    %6782 = vmatpush.msra.mxu0 0.0
    %6783 = vmatpush.msra.mxu0 0.0
    %6784 = vmatpush.msra.mxu0 0.0
    %6785 = vmatpush.msra.mxu0 0.0
    %6786 = vmatpush.msra.mxu0 0.0
    %6787 = vmatpush.msra.mxu0 0.0
    %6788 = vmatpush.msra.mxu0 0.0
    %6789 = vmatpush.msra.mxu0 0.0
    %6790 = vmatpush.msra.mxu0 %v6773
    %6791 = vmatmul.f32.gmra.mxu0 %v6771
    %v6792 = vpop.f32.mrf.mxu0
    %v6793 = vadd.f32 0.0, %v6792
    %6794 = vdwg.mxu0
    %6795 = vst [vmem:[#allocation1] ss:$4 sm:$0xff] %v5303
    %v6796 = vld.sshfl [vmem:[#allocation1] sm:$0xff pattern:$0x73625140]
    %6797 = vrot.lane.b32.xlu0 %v6796, 64
    %v6798 = vpop.permute.xlu0 %6797
    %v6800 = vsel %vm1786, %v6623, 0
    %v6802 = vsel %vm1790, %v6798, 0
    %6804 = vmatpush.msra.mxu0 0.0
    %6805 = vmatpush.msra.mxu0 0.0
    %6806 = vmatpush.msra.mxu0 0.0
    %6807 = vmatpush.msra.mxu0 0.0
    %6808 = vmatpush.msra.mxu0 0.0
    %6809 = vmatpush.msra.mxu0 0.0
    %6810 = vmatpush.msra.mxu0 0.0
    %6811 = vmatpush.msra.mxu0 0.0
    %6812 = vmatpush.msra.mxu0 0.0
    %6813 = vmatpush.msra.mxu0 0.0
    %6814 = vmatpush.msra.mxu0 0.0
    %6815 = vmatpush.msra.mxu0 0.0
    %6816 = vmatpush.msra.mxu0 0.0
    %6817 = vmatpush.msra.mxu0 0.0
    %6818 = vmatpush.msra.mxu0 0.0
    %6819 = vmatpush.msra.mxu0 %v6802
    %6820 = vmatmul.f32.gmra.mxu0 %v6800
    %v6821 = vpop.f32.mrf.mxu0
    %v6822 = vadd.f32 0.0, %v6821
    %6823 = vdwg.mxu0
    %6824 = vst [vmem:[#allocation1] ss:$4 sm:$0xff] %v5304
    %v6825 = vld.sshfl [vmem:[#allocation1] sm:$0xff pattern:$0x73625140]
    %6826 = vrot.lane.b32.xlu0 %v6825, 64
    %v6827 = vpop.permute.xlu0 %6826
    %v6829 = vsel %vm1786, %v6624, 0
    %v6831 = vsel %vm1790, %v6827, 0
    %6833 = vmatpush.msra.mxu0 0.0
    %6834 = vmatpush.msra.mxu0 0.0
    %6835 = vmatpush.msra.mxu0 0.0
    %6836 = vmatpush.msra.mxu0 0.0
    %6837 = vmatpush.msra.mxu0 0.0
    %6838 = vmatpush.msra.mxu0 0.0
    %6839 = vmatpush.msra.mxu0 0.0
    %6840 = vmatpush.msra.mxu0 0.0
    %6841 = vmatpush.msra.mxu0 0.0
    %6842 = vmatpush.msra.mxu0 0.0
    %6843 = vmatpush.msra.mxu0 0.0
    %6844 = vmatpush.msra.mxu0 0.0
    %6845 = vmatpush.msra.mxu0 0.0
    %6846 = vmatpush.msra.mxu0 0.0
    %6847 = vmatpush.msra.mxu0 0.0
    %6848 = vmatpush.msra.mxu0 %v6831
    %6849 = vmatmul.f32.gmra.mxu0 %v6829
    %v6850 = vpop.f32.mrf.mxu0
    %v6851 = vadd.f32 0.0, %v6850
    %6852 = vdwg.mxu0
    %6853 = vst [vmem:[#allocation1] ss:$4 sm:$0xff] %v5305
    %v6854 = vld.sshfl [vmem:[#allocation1] sm:$0xff pattern:$0x73625140]
    %6855 = vrot.lane.b32.xlu0 %v6854, 64
    %v6856 = vpop.permute.xlu0 %6855
    %v6858 = vsel %vm1786, %v6625, 0
    %v6860 = vsel %vm1790, %v6856, 0
    %6862 = vmatpush.msra.mxu0 0.0
    %6863 = vmatpush.msra.mxu0 0.0
    %6864 = vmatpush.msra.mxu0 0.0
    %6865 = vmatpush.msra.mxu0 0.0
    %6866 = vmatpush.msra.mxu0 0.0
    %6867 = vmatpush.msra.mxu0 0.0
    %6868 = vmatpush.msra.mxu0 0.0
    %6869 = vmatpush.msra.mxu0 0.0
    %6870 = vmatpush.msra.mxu0 0.0
    %6871 = vmatpush.msra.mxu0 0.0
    %6872 = vmatpush.msra.mxu0 0.0
    %6873 = vmatpush.msra.mxu0 0.0
    %6874 = vmatpush.msra.mxu0 0.0
    %6875 = vmatpush.msra.mxu0 0.0
    %6876 = vmatpush.msra.mxu0 0.0
    %6877 = vmatpush.msra.mxu0 %v6860
    %6878 = vmatmul.f32.gmra.mxu0 %v6858
    %v6879 = vpop.f32.mrf.mxu0
    %v6880 = vadd.f32 0.0, %v6879
    %6881 = vdwg.mxu0
    %6882 = vst [vmem:[#allocation1] ss:$4 sm:$0xff] %v5355
    %v6883 = vld.sshfl [vmem:[#allocation1] sm:$0xff pattern:$0x73625140]
    %6884 = vrot.lane.b32.xlu0 %v6883, 64
    %v6885 = vpop.permute.xlu0 %6884
    %v6887 = vsel %vm1786, %v6626, 0
    %v6889 = vsel %vm1790, %v6885, 0
    %6891 = vmatpush.msra.mxu0 0.0
    %6892 = vmatpush.msra.mxu0 0.0
    %6893 = vmatpush.msra.mxu0 0.0
    %6894 = vmatpush.msra.mxu0 0.0
    %6895 = vmatpush.msra.mxu0 0.0
    %6896 = vmatpush.msra.mxu0 0.0
    %6897 = vmatpush.msra.mxu0 0.0
    %6898 = vmatpush.msra.mxu0 0.0
    %6899 = vmatpush.msra.mxu0 0.0
    %6900 = vmatpush.msra.mxu0 0.0
    %6901 = vmatpush.msra.mxu0 0.0
    %6902 = vmatpush.msra.mxu0 0.0
    %6903 = vmatpush.msra.mxu0 0.0
    %6904 = vmatpush.msra.mxu0 0.0
    %6905 = vmatpush.msra.mxu0 0.0
    %6906 = vmatpush.msra.mxu0 %v6889
    %6907 = vmatmul.f32.gmra.mxu0 %v6887
    %v6908 = vpop.f32.mrf.mxu0
    %v6909 = vadd.f32 0.0, %v6908
    %6910 = vdwg.mxu0
    %6911 = vst [vmem:[#allocation1] ss:$4 sm:$0xff] %v5357
    %v6912 = vld.sshfl [vmem:[#allocation1] sm:$0xff pattern:$0x73625140]
    %6913 = vrot.lane.b32.xlu0 %v6912, 64
    %v6914 = vpop.permute.xlu0 %6913
    %v6916 = vsel %vm1786, %v6627, 0
    %v6918 = vsel %vm1790, %v6914, 0
    %6920 = vmatpush.msra.mxu0 0.0
    %6921 = vmatpush.msra.mxu0 0.0
    %6922 = vmatpush.msra.mxu0 0.0
    %6923 = vmatpush.msra.mxu0 0.0
    %6924 = vmatpush.msra.mxu0 0.0
    %6925 = vmatpush.msra.mxu0 0.0
    %6926 = vmatpush.msra.mxu0 0.0
    %6927 = vmatpush.msra.mxu0 0.0
    %6928 = vmatpush.msra.mxu0 0.0
    %6929 = vmatpush.msra.mxu0 0.0
    %6930 = vmatpush.msra.mxu0 0.0
    %6931 = vmatpush.msra.mxu0 0.0
    %6932 = vmatpush.msra.mxu0 0.0
    %6933 = vmatpush.msra.mxu0 0.0
    %6934 = vmatpush.msra.mxu0 0.0
    %6935 = vmatpush.msra.mxu0 %v6918
    %6936 = vmatmul.f32.gmra.mxu0 %v6916
    %v6937 = vpop.f32.mrf.mxu0
    %v6938 = vadd.f32 0.0, %v6937
    %6939 = vdwg.mxu0
    %6940 = vst [vmem:[#allocation1] ss:$4 sm:$0xff] %v5359
    %v6941 = vld.sshfl [vmem:[#allocation1] sm:$0xff pattern:$0x73625140]
    %6942 = vrot.lane.b32.xlu0 %v6941, 64
    %v6943 = vpop.permute.xlu0 %6942
    %v6945 = vsel %vm1786, %v6628, 0
    %v6947 = vsel %vm1790, %v6943, 0
    %6949 = vmatpush.msra.mxu0 0.0
    %6950 = vmatpush.msra.mxu0 0.0
    %6951 = vmatpush.msra.mxu0 0.0
    %6952 = vmatpush.msra.mxu0 0.0
    %6953 = vmatpush.msra.mxu0 0.0
    %6954 = vmatpush.msra.mxu0 0.0
    %6955 = vmatpush.msra.mxu0 0.0
    %6956 = vmatpush.msra.mxu0 0.0
    %6957 = vmatpush.msra.mxu0 0.0
    %6958 = vmatpush.msra.mxu0 0.0
    %6959 = vmatpush.msra.mxu0 0.0
    %6960 = vmatpush.msra.mxu0 0.0
    %6961 = vmatpush.msra.mxu0 0.0
    %6962 = vmatpush.msra.mxu0 0.0
    %6963 = vmatpush.msra.mxu0 0.0
    %6964 = vmatpush.msra.mxu0 %v6947
    %6965 = vmatmul.f32.gmra.mxu0 %v6945
    %v6966 = vpop.f32.mrf.mxu0
    %v6967 = vadd.f32 0.0, %v6966
    %6968 = vdwg.mxu0
    %6969 = vst [vmem:[#allocation1] ss:$4 sm:$0xff] %v5361
    %v6970 = vld.sshfl [vmem:[#allocation1] sm:$0xff pattern:$0x73625140]
    %6971 = vrot.lane.b32.xlu0 %v6970, 64
    %v6972 = vpop.permute.xlu0 %6971
    %v6974 = vsel %vm1786, %v6629, 0
    %v6976 = vsel %vm1790, %v6972, 0
    %6978 = vmatpush.msra.mxu0 0.0
    %6979 = vmatpush.msra.mxu0 0.0
    %6980 = vmatpush.msra.mxu0 0.0
    %6981 = vmatpush.msra.mxu0 0.0
    %6982 = vmatpush.msra.mxu0 0.0
    %6983 = vmatpush.msra.mxu0 0.0
    %6984 = vmatpush.msra.mxu0 0.0
    %6985 = vmatpush.msra.mxu0 0.0
    %6986 = vmatpush.msra.mxu0 0.0
    %6987 = vmatpush.msra.mxu0 0.0
    %6988 = vmatpush.msra.mxu0 0.0
    %6989 = vmatpush.msra.mxu0 0.0
    %6990 = vmatpush.msra.mxu0 0.0
    %6991 = vmatpush.msra.mxu0 0.0
    %6992 = vmatpush.msra.mxu0 0.0
    %6993 = vmatpush.msra.mxu0 %v6976
    %6994 = vmatmul.f32.gmra.mxu0 %v6974
    %v6995 = vpop.f32.mrf.mxu0
    %v6996 = vadd.f32 0.0, %v6995
    %6997 = vdwg.mxu0
    %6998 = vst [vmem:[#allocation1] ss:$4 sm:$0xff] %v5363
    %v6999 = vld.sshfl [vmem:[#allocation1] sm:$0xff pattern:$0x73625140]
    %7000 = vrot.lane.b32.xlu0 %v6999, 64
    %v7001 = vpop.permute.xlu0 %7000
    %v7003 = vsel %vm1786, %v6630, 0
    %v7005 = vsel %vm1790, %v7001, 0
    %7007 = vmatpush.msra.mxu0 0.0
    %7008 = vmatpush.msra.mxu0 0.0
    %7009 = vmatpush.msra.mxu0 0.0
    %7010 = vmatpush.msra.mxu0 0.0
    %7011 = vmatpush.msra.mxu0 0.0
    %7012 = vmatpush.msra.mxu0 0.0
    %7013 = vmatpush.msra.mxu0 0.0
    %7014 = vmatpush.msra.mxu0 0.0
    %7015 = vmatpush.msra.mxu0 0.0
    %7016 = vmatpush.msra.mxu0 0.0
    %7017 = vmatpush.msra.mxu0 0.0
    %7018 = vmatpush.msra.mxu0 0.0
    %7019 = vmatpush.msra.mxu0 0.0
    %7020 = vmatpush.msra.mxu0 0.0
    %7021 = vmatpush.msra.mxu0 0.0
    %7022 = vmatpush.msra.mxu0 %v7005
    %7023 = vmatmul.f32.gmra.mxu0 %v7003
    %v7024 = vpop.f32.mrf.mxu0
    %v7025 = vadd.f32 0.0, %v7024
    %7026 = vdwg.mxu0
    %7027 = vst [vmem:[#allocation1] ss:$4 sm:$0xff] %v5365
    %v7028 = vld.sshfl [vmem:[#allocation1] sm:$0xff pattern:$0x73625140]
    %7029 = vrot.lane.b32.xlu0 %v7028, 64
    %v7030 = vpop.permute.xlu0 %7029
    %v7032 = vsel %vm1786, %v6631, 0
    %v7034 = vsel %vm1790, %v7030, 0
    %7036 = vmatpush.msra.mxu0 0.0
    %7037 = vmatpush.msra.mxu0 0.0
    %7038 = vmatpush.msra.mxu0 0.0
    %7039 = vmatpush.msra.mxu0 0.0
    %7040 = vmatpush.msra.mxu0 0.0
    %7041 = vmatpush.msra.mxu0 0.0
    %7042 = vmatpush.msra.mxu0 0.0
    %7043 = vmatpush.msra.mxu0 0.0
    %7044 = vmatpush.msra.mxu0 0.0
    %7045 = vmatpush.msra.mxu0 0.0
    %7046 = vmatpush.msra.mxu0 0.0
    %7047 = vmatpush.msra.mxu0 0.0
    %7048 = vmatpush.msra.mxu0 0.0
    %7049 = vmatpush.msra.mxu0 0.0
    %7050 = vmatpush.msra.mxu0 0.0
    %7051 = vmatpush.msra.mxu0 %v7034
    %7052 = vmatmul.f32.gmra.mxu0 %v7032
    %v7053 = vpop.f32.mrf.mxu0
    %v7054 = vadd.f32 0.0, %v7053
    %7055 = vdwg.mxu0
    %7056 = vst [vmem:[#allocation1] ss:$4 sm:$0xff] %v5367
    %v7057 = vld.sshfl [vmem:[#allocation1] sm:$0xff pattern:$0x73625140]
    %7058 = vrot.lane.b32.xlu0 %v7057, 64
    %v7059 = vpop.permute.xlu0 %7058
    %v7061 = vsel %vm1786, %v6632, 0
    %v7063 = vsel %vm1790, %v7059, 0
    %7065 = vmatpush.msra.mxu0 0.0
    %7066 = vmatpush.msra.mxu0 0.0
    %7067 = vmatpush.msra.mxu0 0.0
    %7068 = vmatpush.msra.mxu0 0.0
    %7069 = vmatpush.msra.mxu0 0.0
    %7070 = vmatpush.msra.mxu0 0.0
    %7071 = vmatpush.msra.mxu0 0.0
    %7072 = vmatpush.msra.mxu0 0.0
    %7073 = vmatpush.msra.mxu0 0.0
    %7074 = vmatpush.msra.mxu0 0.0
    %7075 = vmatpush.msra.mxu0 0.0
    %7076 = vmatpush.msra.mxu0 0.0
    %7077 = vmatpush.msra.mxu0 0.0
    %7078 = vmatpush.msra.mxu0 0.0
    %7079 = vmatpush.msra.mxu0 0.0
    %7080 = vmatpush.msra.mxu0 %v7063
    %7081 = vmatmul.f32.gmra.mxu0 %v7061
    %v7082 = vpop.f32.mrf.mxu0
    %v7083 = vadd.f32 0.0, %v7082
    %7084 = vdwg.mxu0
    %7085 = vst [vmem:[#allocation1] ss:$4 sm:$0xff] %v5369
    %v7086 = vld.sshfl [vmem:[#allocation1] sm:$0xff pattern:$0x73625140]
    %7087 = vrot.lane.b32.xlu0 %v7086, 64
    %v7088 = vpop.permute.xlu0 %7087
    %v7090 = vsel %vm1786, %v6633, 0
    %v7092 = vsel %vm1790, %v7088, 0
    %7094 = vmatpush.msra.mxu0 0.0
    %7095 = vmatpush.msra.mxu0 0.0
    %7096 = vmatpush.msra.mxu0 0.0
    %7097 = vmatpush.msra.mxu0 0.0
    %7098 = vmatpush.msra.mxu0 0.0
    %7099 = vmatpush.msra.mxu0 0.0
    %7100 = vmatpush.msra.mxu0 0.0
    %7101 = vmatpush.msra.mxu0 0.0
    %7102 = vmatpush.msra.mxu0 0.0
    %7103 = vmatpush.msra.mxu0 0.0
    %7104 = vmatpush.msra.mxu0 0.0
    %7105 = vmatpush.msra.mxu0 0.0
    %7106 = vmatpush.msra.mxu0 0.0
    %7107 = vmatpush.msra.mxu0 0.0
    %7108 = vmatpush.msra.mxu0 0.0
    %7109 = vmatpush.msra.mxu0 %v7092
    %7110 = vmatmul.f32.gmra.mxu0 %v7090
    %v7111 = vpop.f32.mrf.mxu0
    %v7112 = vadd.f32 0.0, %v7111
    %7113 = vdwg.mxu0
    %7114 = vst [vmem:[#allocation1] ss:$4 sm:$0xff] %v5371
    %v7115 = vld.sshfl [vmem:[#allocation1] sm:$0xff pattern:$0x73625140]
    %7116 = vrot.lane.b32.xlu0 %v7115, 64
    %v7117 = vpop.permute.xlu0 %7116
    %v7119 = vsel %vm1786, %v6634, 0
    %v7121 = vsel %vm1790, %v7117, 0
    %7123 = vmatpush.msra.mxu0 0.0
    %7124 = vmatpush.msra.mxu0 0.0
    %7125 = vmatpush.msra.mxu0 0.0
    %7126 = vmatpush.msra.mxu0 0.0
    %7127 = vmatpush.msra.mxu0 0.0
    %7128 = vmatpush.msra.mxu0 0.0
    %7129 = vmatpush.msra.mxu0 0.0
    %7130 = vmatpush.msra.mxu0 0.0
    %7131 = vmatpush.msra.mxu0 0.0
    %7132 = vmatpush.msra.mxu0 0.0
    %7133 = vmatpush.msra.mxu0 0.0
    %7134 = vmatpush.msra.mxu0 0.0
    %7135 = vmatpush.msra.mxu0 0.0
    %7136 = vmatpush.msra.mxu0 0.0
    %7137 = vmatpush.msra.mxu0 0.0
    %7138 = vmatpush.msra.mxu0 %v7121
    %7139 = vmatmul.f32.gmra.mxu0 %v7119
    %v7140 = vpop.f32.mrf.mxu0
    %v7141 = vadd.f32 0.0, %v7140
    %7142 = vdwg.mxu0
    %7143 = vst [vmem:[#allocation1] ss:$4 sm:$0xff] %v5373
    %v7144 = vld.sshfl [vmem:[#allocation1] sm:$0xff pattern:$0x73625140]
    %7145 = vrot.lane.b32.xlu0 %v7144, 64
    %v7146 = vpop.permute.xlu0 %7145
    %v7148 = vsel %vm1786, %v6635, 0
    %v7150 = vsel %vm1790, %v7146, 0
    %7152 = vmatpush.msra.mxu0 0.0
    %7153 = vmatpush.msra.mxu0 0.0
    %7154 = vmatpush.msra.mxu0 0.0
    %7155 = vmatpush.msra.mxu0 0.0
    %7156 = vmatpush.msra.mxu0 0.0
    %7157 = vmatpush.msra.mxu0 0.0
    %7158 = vmatpush.msra.mxu0 0.0
    %7159 = vmatpush.msra.mxu0 0.0
    %7160 = vmatpush.msra.mxu0 0.0
    %7161 = vmatpush.msra.mxu0 0.0
    %7162 = vmatpush.msra.mxu0 0.0
    %7163 = vmatpush.msra.mxu0 0.0
    %7164 = vmatpush.msra.mxu0 0.0
    %7165 = vmatpush.msra.mxu0 0.0
    %7166 = vmatpush.msra.mxu0 0.0
    %7167 = vmatpush.msra.mxu0 %v7150
    %7168 = vmatmul.f32.gmra.mxu0 %v7148
    %v7169 = vpop.f32.mrf.mxu0
    %v7170 = vadd.f32 0.0, %v7169
    %7171 = vdwg.mxu0
    %7172 = vst [vmem:[#allocation1] ss:$4 sm:$0xff] %v5375
    %v7173 = vld.sshfl [vmem:[#allocation1] sm:$0xff pattern:$0x73625140]
    %7174 = vrot.lane.b32.xlu0 %v7173, 64
    %v7175 = vpop.permute.xlu0 %7174
    %v7177 = vsel %vm1786, %v6636, 0
    %v7179 = vsel %vm1790, %v7175, 0
    %7181 = vmatpush.msra.mxu0 0.0
    %7182 = vmatpush.msra.mxu0 0.0
    %7183 = vmatpush.msra.mxu0 0.0
    %7184 = vmatpush.msra.mxu0 0.0
    %7185 = vmatpush.msra.mxu0 0.0
    %7186 = vmatpush.msra.mxu0 0.0
    %7187 = vmatpush.msra.mxu0 0.0
    %7188 = vmatpush.msra.mxu0 0.0
    %7189 = vmatpush.msra.mxu0 0.0
    %7190 = vmatpush.msra.mxu0 0.0
    %7191 = vmatpush.msra.mxu0 0.0
    %7192 = vmatpush.msra.mxu0 0.0
    %7193 = vmatpush.msra.mxu0 0.0
    %7194 = vmatpush.msra.mxu0 0.0
    %7195 = vmatpush.msra.mxu0 0.0
    %7196 = vmatpush.msra.mxu0 %v7179
    %7197 = vmatmul.f32.gmra.mxu0 %v7177
    %v7198 = vpop.f32.mrf.mxu0
    %v7199 = vadd.f32 0.0, %v7198
    %7200 = vdwg.mxu0
    %7201 = vst [vmem:[#allocation1] ss:$4 sm:$0xff] %v5377
    %v7202 = vld.sshfl [vmem:[#allocation1] sm:$0xff pattern:$0x73625140]
    %7203 = vrot.lane.b32.xlu0 %v7202, 64
    %v7204 = vpop.permute.xlu0 %7203
    %v7206 = vsel %vm1786, %v6637, 0
    %v7208 = vsel %vm1790, %v7204, 0
    %7210 = vmatpush.msra.mxu0 0.0
    %7211 = vmatpush.msra.mxu0 0.0
    %7212 = vmatpush.msra.mxu0 0.0
    %7213 = vmatpush.msra.mxu0 0.0
    %7214 = vmatpush.msra.mxu0 0.0
    %7215 = vmatpush.msra.mxu0 0.0
    %7216 = vmatpush.msra.mxu0 0.0
    %7217 = vmatpush.msra.mxu0 0.0
    %7218 = vmatpush.msra.mxu0 0.0
    %7219 = vmatpush.msra.mxu0 0.0
    %7220 = vmatpush.msra.mxu0 0.0
    %7221 = vmatpush.msra.mxu0 0.0
    %7222 = vmatpush.msra.mxu0 0.0
    %7223 = vmatpush.msra.mxu0 0.0
    %7224 = vmatpush.msra.mxu0 0.0
    %7225 = vmatpush.msra.mxu0 %v7208
    %7226 = vmatmul.f32.gmra.mxu0 %v7206
    %v7227 = vpop.f32.mrf.mxu0
    %v7228 = vadd.f32 0.0, %v7227
    %7229 = vdwg.mxu0
    %7230 = vst [vmem:[#allocation1] ss:$4 sm:$0xff] %v5379
    %v7231 = vld.sshfl [vmem:[#allocation1] sm:$0xff pattern:$0x73625140]
    %7232 = vrot.lane.b32.xlu0 %v7231, 64
    %v7233 = vpop.permute.xlu0 %7232
    %v7235 = vsel %vm1786, %v6638, 0
    %v7237 = vsel %vm1790, %v7233, 0
    %7239 = vmatpush.msra.mxu0 0.0
    %7240 = vmatpush.msra.mxu0 0.0
    %7241 = vmatpush.msra.mxu0 0.0
    %7242 = vmatpush.msra.mxu0 0.0
    %7243 = vmatpush.msra.mxu0 0.0
    %7244 = vmatpush.msra.mxu0 0.0
    %7245 = vmatpush.msra.mxu0 0.0
    %7246 = vmatpush.msra.mxu0 0.0
    %7247 = vmatpush.msra.mxu0 0.0
    %7248 = vmatpush.msra.mxu0 0.0
    %7249 = vmatpush.msra.mxu0 0.0
    %7250 = vmatpush.msra.mxu0 0.0
    %7251 = vmatpush.msra.mxu0 0.0
    %7252 = vmatpush.msra.mxu0 0.0
    %7253 = vmatpush.msra.mxu0 0.0
    %7254 = vmatpush.msra.mxu0 %v7237
    %7255 = vmatmul.f32.gmra.mxu0 %v7235
    %v7256 = vpop.f32.mrf.mxu0
    %v7257 = vadd.f32 0.0, %v7256
    %7258 = vdwg.mxu0
    %7259 = vst [vmem:[#allocation1] ss:$4 sm:$0xff] %v5381
    %v7260 = vld.sshfl [vmem:[#allocation1] sm:$0xff pattern:$0x73625140]
    %7261 = vrot.lane.b32.xlu0 %v7260, 64
    %v7262 = vpop.permute.xlu0 %7261
    %v7264 = vsel %vm1786, %v6639, 0
    %v7266 = vsel %vm1790, %v7262, 0
    %7268 = vmatpush.msra.mxu0 0.0
    %7269 = vmatpush.msra.mxu0 0.0
    %7270 = vmatpush.msra.mxu0 0.0
    %7271 = vmatpush.msra.mxu0 0.0
    %7272 = vmatpush.msra.mxu0 0.0
    %7273 = vmatpush.msra.mxu0 0.0
    %7274 = vmatpush.msra.mxu0 0.0
    %7275 = vmatpush.msra.mxu0 0.0
    %7276 = vmatpush.msra.mxu0 0.0
    %7277 = vmatpush.msra.mxu0 0.0
    %7278 = vmatpush.msra.mxu0 0.0
    %7279 = vmatpush.msra.mxu0 0.0
    %7280 = vmatpush.msra.mxu0 0.0
    %7281 = vmatpush.msra.mxu0 0.0
    %7282 = vmatpush.msra.mxu0 0.0
    %7283 = vmatpush.msra.mxu0 %v7266
    %7284 = vmatmul.f32.gmra.mxu0 %v7264
    %v7285 = vpop.f32.mrf.mxu0
    %v7286 = vadd.f32 0.0, %v7285
    %7287 = vdwg.mxu0
    %7288 = vst [vmem:[#allocation1] ss:$4 sm:$0xff] %v5383
    %v7289 = vld.sshfl [vmem:[#allocation1] sm:$0xff pattern:$0x73625140]
    %7290 = vrot.lane.b32.xlu0 %v7289, 64
    %v7291 = vpop.permute.xlu0 %7290
    %v7293 = vsel %vm1786, %v6640, 0
    %v7295 = vsel %vm1790, %v7291, 0
    %7297 = vmatpush.msra.mxu0 0.0
    %7298 = vmatpush.msra.mxu0 0.0
    %7299 = vmatpush.msra.mxu0 0.0
    %7300 = vmatpush.msra.mxu0 0.0
    %7301 = vmatpush.msra.mxu0 0.0
    %7302 = vmatpush.msra.mxu0 0.0
    %7303 = vmatpush.msra.mxu0 0.0
    %7304 = vmatpush.msra.mxu0 0.0
    %7305 = vmatpush.msra.mxu0 0.0
    %7306 = vmatpush.msra.mxu0 0.0
    %7307 = vmatpush.msra.mxu0 0.0
    %7308 = vmatpush.msra.mxu0 0.0
    %7309 = vmatpush.msra.mxu0 0.0
    %7310 = vmatpush.msra.mxu0 0.0
    %7311 = vmatpush.msra.mxu0 0.0
    %7312 = vmatpush.msra.mxu0 %v7295
    %7313 = vmatmul.f32.gmra.mxu0 %v7293
    %v7314 = vpop.f32.mrf.mxu0
    %v7315 = vadd.f32 0.0, %v7314
    %7316 = vdwg.mxu0
    %7317 = vst [vmem:[#allocation1] ss:$4 sm:$0xff] %v5385
    %v7318 = vld.sshfl [vmem:[#allocation1] sm:$0xff pattern:$0x73625140]
    %7319 = vrot.lane.b32.xlu0 %v7318, 64
    %v7320 = vpop.permute.xlu0 %7319
    %v7322 = vsel %vm1786, %v6641, 0
    %v7324 = vsel %vm1790, %v7320, 0
    %7326 = vmatpush.msra.mxu0 0.0
    %7327 = vmatpush.msra.mxu0 0.0
    %7328 = vmatpush.msra.mxu0 0.0
    %7329 = vmatpush.msra.mxu0 0.0
    %7330 = vmatpush.msra.mxu0 0.0
    %7331 = vmatpush.msra.mxu0 0.0
    %7332 = vmatpush.msra.mxu0 0.0
    %7333 = vmatpush.msra.mxu0 0.0
    %7334 = vmatpush.msra.mxu0 0.0
    %7335 = vmatpush.msra.mxu0 0.0
    %7336 = vmatpush.msra.mxu0 0.0
    %7337 = vmatpush.msra.mxu0 0.0
    %7338 = vmatpush.msra.mxu0 0.0
    %7339 = vmatpush.msra.mxu0 0.0
    %7340 = vmatpush.msra.mxu0 0.0
    %7341 = vmatpush.msra.mxu0 %v7324
    %7342 = vmatmul.f32.gmra.mxu0 %v7322
    %v7343 = vpop.f32.mrf.mxu0
    %v7344 = vadd.f32 0.0, %v7343
    %7345 = vdwg.mxu0
    %7346 = vst [vmem:[#allocation1] ss:$4 sm:$0xff] %v5387
    %v7347 = vld.sshfl [vmem:[#allocation1] sm:$0xff pattern:$0x73625140]
    %7348 = vrot.lane.b32.xlu0 %v7347, 64
    %v7349 = vpop.permute.xlu0 %7348
    %v7351 = vsel %vm1786, %v6642, 0
    %v7353 = vsel %vm1790, %v7349, 0
    %7355 = vmatpush.msra.mxu0 0.0
    %7356 = vmatpush.msra.mxu0 0.0
    %7357 = vmatpush.msra.mxu0 0.0
    %7358 = vmatpush.msra.mxu0 0.0
    %7359 = vmatpush.msra.mxu0 0.0
    %7360 = vmatpush.msra.mxu0 0.0
    %7361 = vmatpush.msra.mxu0 0.0
    %7362 = vmatpush.msra.mxu0 0.0
    %7363 = vmatpush.msra.mxu0 0.0
    %7364 = vmatpush.msra.mxu0 0.0
    %7365 = vmatpush.msra.mxu0 0.0
    %7366 = vmatpush.msra.mxu0 0.0
    %7367 = vmatpush.msra.mxu0 0.0
    %7368 = vmatpush.msra.mxu0 0.0
    %7369 = vmatpush.msra.mxu0 0.0
    %7370 = vmatpush.msra.mxu0 %v7353
    %7371 = vmatmul.f32.gmra.mxu0 %v7351
    %v7372 = vpop.f32.mrf.mxu0
    %v7373 = vadd.f32 0.0, %v7372
    %7374 = vdwg.mxu0
    %7375 = vst [vmem:[#allocation1] ss:$4 sm:$0xff] %v5389
    %v7376 = vld.sshfl [vmem:[#allocation1] sm:$0xff pattern:$0x73625140]
    %7377 = vrot.lane.b32.xlu0 %v7376, 64
    %v7378 = vpop.permute.xlu0 %7377
    %v7380 = vsel %vm1786, %v6643, 0
    %v7382 = vsel %vm1790, %v7378, 0
    %7384 = vmatpush.msra.mxu0 0.0
    %7385 = vmatpush.msra.mxu0 0.0
    %7386 = vmatpush.msra.mxu0 0.0
    %7387 = vmatpush.msra.mxu0 0.0
    %7388 = vmatpush.msra.mxu0 0.0
    %7389 = vmatpush.msra.mxu0 0.0
    %7390 = vmatpush.msra.mxu0 0.0
    %7391 = vmatpush.msra.mxu0 0.0
    %7392 = vmatpush.msra.mxu0 0.0
    %7393 = vmatpush.msra.mxu0 0.0
    %7394 = vmatpush.msra.mxu0 0.0
    %7395 = vmatpush.msra.mxu0 0.0
    %7396 = vmatpush.msra.mxu0 0.0
    %7397 = vmatpush.msra.mxu0 0.0
    %7398 = vmatpush.msra.mxu0 0.0
    %7399 = vmatpush.msra.mxu0 %v7382
    %7400 = vmatmul.f32.gmra.mxu0 %v7380
    %v7401 = vpop.f32.mrf.mxu0
    %v7402 = vadd.f32 0.0, %v7401
    %7403 = vdwg.mxu0
    %7404 = vst [vmem:[#allocation1] ss:$4 sm:$0xff] %v5391
    %v7405 = vld.sshfl [vmem:[#allocation1] sm:$0xff pattern:$0x73625140]
    %7406 = vrot.lane.b32.xlu0 %v7405, 64
    %v7407 = vpop.permute.xlu0 %7406
    %v7409 = vsel %vm1786, %v6644, 0
    %v7411 = vsel %vm1790, %v7407, 0
    %7413 = vmatpush.msra.mxu0 0.0
    %7414 = vmatpush.msra.mxu0 0.0
    %7415 = vmatpush.msra.mxu0 0.0
    %7416 = vmatpush.msra.mxu0 0.0
    %7417 = vmatpush.msra.mxu0 0.0
    %7418 = vmatpush.msra.mxu0 0.0
    %7419 = vmatpush.msra.mxu0 0.0
    %7420 = vmatpush.msra.mxu0 0.0
    %7421 = vmatpush.msra.mxu0 0.0
    %7422 = vmatpush.msra.mxu0 0.0
    %7423 = vmatpush.msra.mxu0 0.0
    %7424 = vmatpush.msra.mxu0 0.0
    %7425 = vmatpush.msra.mxu0 0.0
    %7426 = vmatpush.msra.mxu0 0.0
    %7427 = vmatpush.msra.mxu0 0.0
    %7428 = vmatpush.msra.mxu0 %v7411
    %7429 = vmatmul.f32.gmra.mxu0 %v7409
    %v7430 = vpop.f32.mrf.mxu0
    %v7431 = vadd.f32 0.0, %v7430
    %7432 = vdwg.mxu0
    %7433 = vst [vmem:[#allocation1] ss:$4 sm:$0xff] %v5393
    %v7434 = vld.sshfl [vmem:[#allocation1] sm:$0xff pattern:$0x73625140]
    %7435 = vrot.lane.b32.xlu0 %v7434, 64
    %v7436 = vpop.permute.xlu0 %7435
    %v7438 = vsel %vm1786, %v6645, 0
    %v7440 = vsel %vm1790, %v7436, 0
    %7442 = vmatpush.msra.mxu0 0.0
    %7443 = vmatpush.msra.mxu0 0.0
    %7444 = vmatpush.msra.mxu0 0.0
    %7445 = vmatpush.msra.mxu0 0.0
    %7446 = vmatpush.msra.mxu0 0.0
    %7447 = vmatpush.msra.mxu0 0.0
    %7448 = vmatpush.msra.mxu0 0.0
    %7449 = vmatpush.msra.mxu0 0.0
    %7450 = vmatpush.msra.mxu0 0.0
    %7451 = vmatpush.msra.mxu0 0.0
    %7452 = vmatpush.msra.mxu0 0.0
    %7453 = vmatpush.msra.mxu0 0.0
    %7454 = vmatpush.msra.mxu0 0.0
    %7455 = vmatpush.msra.mxu0 0.0
    %7456 = vmatpush.msra.mxu0 0.0
    %7457 = vmatpush.msra.mxu0 %v7440
    %7458 = vmatmul.f32.gmra.mxu0 %v7438
    %v7459 = vpop.f32.mrf.mxu0
    %v7460 = vadd.f32 0.0, %v7459
    %7461 = vdwg.mxu0
    %7462 = vst [vmem:[#allocation1] ss:$4 sm:$0xff] %v5395
    %v7463 = vld.sshfl [vmem:[#allocation1] sm:$0xff pattern:$0x73625140]
    %7464 = vrot.lane.b32.xlu0 %v7463, 64
    %v7465 = vpop.permute.xlu0 %7464
    %v7467 = vsel %vm1786, %v6646, 0
    %v7469 = vsel %vm1790, %v7465, 0
    %7471 = vmatpush.msra.mxu0 0.0
    %7472 = vmatpush.msra.mxu0 0.0
    %7473 = vmatpush.msra.mxu0 0.0
    %7474 = vmatpush.msra.mxu0 0.0
    %7475 = vmatpush.msra.mxu0 0.0
    %7476 = vmatpush.msra.mxu0 0.0
    %7477 = vmatpush.msra.mxu0 0.0
    %7478 = vmatpush.msra.mxu0 0.0
    %7479 = vmatpush.msra.mxu0 0.0
    %7480 = vmatpush.msra.mxu0 0.0
    %7481 = vmatpush.msra.mxu0 0.0
    %7482 = vmatpush.msra.mxu0 0.0
    %7483 = vmatpush.msra.mxu0 0.0
    %7484 = vmatpush.msra.mxu0 0.0
    %7485 = vmatpush.msra.mxu0 0.0
    %7486 = vmatpush.msra.mxu0 %v7469
    %7487 = vmatmul.f32.gmra.mxu0 %v7467
    %v7488 = vpop.f32.mrf.mxu0
    %v7489 = vadd.f32 0.0, %v7488
    %7490 = vdwg.mxu0
    %7491 = vst [vmem:[#allocation1] ss:$4 sm:$0xff] %v5397
    %v7492 = vld.sshfl [vmem:[#allocation1] sm:$0xff pattern:$0x73625140]
    %7493 = vrot.lane.b32.xlu0 %v7492, 64
    %v7494 = vpop.permute.xlu0 %7493
    %v7496 = vsel %vm1786, %v6647, 0
    %v7498 = vsel %vm1790, %v7494, 0
    %7500 = vmatpush.msra.mxu0 0.0
    %7501 = vmatpush.msra.mxu0 0.0
    %7502 = vmatpush.msra.mxu0 0.0
    %7503 = vmatpush.msra.mxu0 0.0
    %7504 = vmatpush.msra.mxu0 0.0
    %7505 = vmatpush.msra.mxu0 0.0
    %7506 = vmatpush.msra.mxu0 0.0
    %7507 = vmatpush.msra.mxu0 0.0
    %7508 = vmatpush.msra.mxu0 0.0
    %7509 = vmatpush.msra.mxu0 0.0
    %7510 = vmatpush.msra.mxu0 0.0
    %7511 = vmatpush.msra.mxu0 0.0
    %7512 = vmatpush.msra.mxu0 0.0
    %7513 = vmatpush.msra.mxu0 0.0
    %7514 = vmatpush.msra.mxu0 0.0
    %7515 = vmatpush.msra.mxu0 %v7498
    %7516 = vmatmul.f32.gmra.mxu0 %v7496
    %v7517 = vpop.f32.mrf.mxu0
    %v7518 = vadd.f32 0.0, %v7517
    %7519 = vdwg.mxu0
    %7520 = vst [vmem:[#allocation1] ss:$4 sm:$0xff] %v5399
    %v7521 = vld.sshfl [vmem:[#allocation1] sm:$0xff pattern:$0x73625140]
    %7522 = vrot.lane.b32.xlu0 %v7521, 64
    %v7523 = vpop.permute.xlu0 %7522
    %v7525 = vsel %vm1786, %v6648, 0
    %v7527 = vsel %vm1790, %v7523, 0
    %7529 = vmatpush.msra.mxu0 0.0
    %7530 = vmatpush.msra.mxu0 0.0
    %7531 = vmatpush.msra.mxu0 0.0
    %7532 = vmatpush.msra.mxu0 0.0
    %7533 = vmatpush.msra.mxu0 0.0
    %7534 = vmatpush.msra.mxu0 0.0
    %7535 = vmatpush.msra.mxu0 0.0
    %7536 = vmatpush.msra.mxu0 0.0
    %7537 = vmatpush.msra.mxu0 0.0
    %7538 = vmatpush.msra.mxu0 0.0
    %7539 = vmatpush.msra.mxu0 0.0
    %7540 = vmatpush.msra.mxu0 0.0
    %7541 = vmatpush.msra.mxu0 0.0
    %7542 = vmatpush.msra.mxu0 0.0
    %7543 = vmatpush.msra.mxu0 0.0
    %7544 = vmatpush.msra.mxu0 %v7527
    %7545 = vmatmul.f32.gmra.mxu0 %v7525
    %v7546 = vpop.f32.mrf.mxu0
    %v7547 = vadd.f32 0.0, %v7546
    %7548 = vdwg.mxu0
    %7549 = vst [vmem:[#allocation1] ss:$4 sm:$0xff] %v5401
    %v7550 = vld.sshfl [vmem:[#allocation1] sm:$0xff pattern:$0x73625140]
    %7551 = vrot.lane.b32.xlu0 %v7550, 64
    %v7552 = vpop.permute.xlu0 %7551
    %v7554 = vsel %vm1786, %v6649, 0
    %v7556 = vsel %vm1790, %v7552, 0
    %7558 = vmatpush.msra.mxu0 0.0
    %7559 = vmatpush.msra.mxu0 0.0
    %7560 = vmatpush.msra.mxu0 0.0
    %7561 = vmatpush.msra.mxu0 0.0
    %7562 = vmatpush.msra.mxu0 0.0
    %7563 = vmatpush.msra.mxu0 0.0
    %7564 = vmatpush.msra.mxu0 0.0
    %7565 = vmatpush.msra.mxu0 0.0
    %7566 = vmatpush.msra.mxu0 0.0
    %7567 = vmatpush.msra.mxu0 0.0
    %7568 = vmatpush.msra.mxu0 0.0
    %7569 = vmatpush.msra.mxu0 0.0
    %7570 = vmatpush.msra.mxu0 0.0
    %7571 = vmatpush.msra.mxu0 0.0
    %7572 = vmatpush.msra.mxu0 0.0
    %7573 = vmatpush.msra.mxu0 %v7556
    %7574 = vmatmul.f32.gmra.mxu0 %v7554
    %v7575 = vpop.f32.mrf.mxu0
    %v7576 = vadd.f32 0.0, %v7575
    %7577 = vdwg.mxu0
    %7586 = vrot.lane.b32.xlu0 %v6909, 8
    %v7587 = vpop.permute.xlu0 %7586
    %7588 = vrot.lane.b32.xlu0 %v6938, 8
    %v7589 = vpop.permute.xlu0 %7588
    %7590 = vrot.lane.b32.xlu0 %v6967, 8
    %v7591 = vpop.permute.xlu0 %7590
    %7592 = vrot.lane.b32.xlu0 %v6996, 8
    %v7593 = vpop.permute.xlu0 %7592
    %7594 = vrot.lane.b32.xlu0 %v7025, 8
    %v7595 = vpop.permute.xlu0 %7594
    %7596 = vrot.lane.b32.xlu0 %v7054, 8
    %v7597 = vpop.permute.xlu0 %7596
    %7598 = vrot.lane.b32.xlu0 %v7083, 8
    %v7599 = vpop.permute.xlu0 %7598
    %7600 = vrot.lane.b32.xlu0 %v7112, 8
    %v7601 = vpop.permute.xlu0 %7600
    %7618 = vrot.lane.b32.xlu0 %v7141, 16
    %v7619 = vpop.permute.xlu0 %7618
    %7620 = vrot.lane.b32.xlu0 %v7170, 16
    %v7621 = vpop.permute.xlu0 %7620
    %7622 = vrot.lane.b32.xlu0 %v7199, 16
    %v7623 = vpop.permute.xlu0 %7622
    %7624 = vrot.lane.b32.xlu0 %v7228, 16
    %v7625 = vpop.permute.xlu0 %7624
    %7626 = vrot.lane.b32.xlu0 %v7257, 16
    %v7627 = vpop.permute.xlu0 %7626
    %7628 = vrot.lane.b32.xlu0 %v7286, 16
    %v7629 = vpop.permute.xlu0 %7628
    %7630 = vrot.lane.b32.xlu0 %v7315, 16
    %v7631 = vpop.permute.xlu0 %7630
    %7632 = vrot.lane.b32.xlu0 %v7344, 16
    %v7633 = vpop.permute.xlu0 %7632
    %7650 = vrot.lane.b32.xlu0 %v7373, 24
    %v7651 = vpop.permute.xlu0 %7650
    %7652 = vrot.lane.b32.xlu0 %v7402, 24
    %v7653 = vpop.permute.xlu0 %7652
    %7654 = vrot.lane.b32.xlu0 %v7431, 24
    %v7655 = vpop.permute.xlu0 %7654
    %7656 = vrot.lane.b32.xlu0 %v7460, 24
    %v7657 = vpop.permute.xlu0 %7656
    %7658 = vrot.lane.b32.xlu0 %v7489, 24
    %v7659 = vpop.permute.xlu0 %7658
    %7660 = vrot.lane.b32.xlu0 %v7518, 24
    %v7661 = vpop.permute.xlu0 %7660
    %7662 = vrot.lane.b32.xlu0 %v7547, 24
    %v7663 = vpop.permute.xlu0 %7662
    %7664 = vrot.lane.b32.xlu0 %v7576, 24
    %v7665 = vpop.permute.xlu0 %7664
    %v7674 = vsel %vm536, %v6677, %v7587
    %v7675 = vsel %vm536, %v6706, %v7589
    %v7676 = vsel %vm536, %v6735, %v7591
    %v7677 = vsel %vm536, %v6764, %v7593
    %v7678 = vsel %vm536, %v6793, %v7595
    %v7679 = vsel %vm536, %v6822, %v7597
    %v7680 = vsel %vm536, %v6851, %v7599
    %v7681 = vsel %vm536, %v6880, %v7601
    %v7682 = vsel %vm2816, %v7674, %v7619
    %v7683 = vsel %vm2816, %v7675, %v7621
    %v7684 = vsel %vm2816, %v7676, %v7623
    %v7685 = vsel %vm2816, %v7677, %v7625
    %v7686 = vsel %vm2816, %v7678, %v7627
    %v7687 = vsel %vm2816, %v7679, %v7629
    %v7688 = vsel %vm2816, %v7680, %v7631
    %v7689 = vsel %vm2816, %v7681, %v7633
    %v7690 = vsel %vm2825, %v7682, %v7651
    %v7691 = vsel %vm2825, %v7683, %v7653
    %v7692 = vsel %vm2825, %v7684, %v7655
    %v7693 = vsel %vm2825, %v7685, %v7657
    %v7694 = vsel %vm2825, %v7686, %v7659
    %v7695 = vsel %vm2825, %v7687, %v7661
    %v7696 = vsel %vm2825, %v7688, %v7663
    %v7697 = vsel %vm2825, %v7689, %v7665
    %7706 = vst [vmem:[#allocation1] ss:$4 sm:$0xff] %v7690
    %s7707 = scalar_lea.vmem [#allocation1], 1
    %7708 = vst [vmem:[%s7707] ss:$4 sm:$0xff] %v7691
    %s7709 = scalar_lea.vmem [#allocation1], 2
    %7710 = vst [vmem:[%s7709] ss:$4 sm:$0xff] %v7692
    %s7711 = scalar_lea.vmem [#allocation1], 3
    %7712 = vst [vmem:[%s7711] ss:$4 sm:$0xff] %v7693
    %s7713 = scalar_lea.vmem [#allocation1], 32
    %7714 = vst [vmem:[%s7713] ss:$4 sm:$0xff] %v7694
    %s7715 = scalar_lea.vmem [#allocation1], 33
    %7716 = vst [vmem:[%s7715] ss:$4 sm:$0xff] %v7695
    %s7717 = scalar_lea.vmem [#allocation1], 34
    %7718 = vst [vmem:[%s7717] ss:$4 sm:$0xff] %v7696
    %s7719 = scalar_lea.vmem [#allocation1], 35
    %7720 = vst [vmem:[%s7719] ss:$4 sm:$0xff] %v7697
    %v7721 = vld.sshfl [vmem:[#allocation1] sm:$0xff pattern:$0x73625140]
    %v7722 = vld.sshfl [vmem:[#allocation1 + $0x20] sm:$0xff pattern:$0x73625140]
    %v7725 = vpack.c.bf16 %v7722, %v7721
    %s7726 = scalar_lea.vmem %s5, 16
    %v7727 = vld [vmem:[%s7726] sm:$0xf]
    %v7728 = vld [vmem:[%s7726 + $0x4] sm:$0xf]
    %v7729 = vld [vmem:[%s7726 + $0x8] sm:$0xf]
    %v7730 = vld [vmem:[%s7726 + $0xc] sm:$0xf]
    %v7732 = vperm.slane %v5212, 0
    %v7738 = vunpack.c.l.b16 %v7727
    %v7739 = vunpack.c.l.b16 %v7728
    %v7740 = vunpack.c.l.b16 %v7729
    %v7741 = vunpack.c.l.b16 %v7730
    %v7742 = vpack.c.b16 %v7739, %v7738
    %v7743 = vpack.c.b16 %v7741, %v7740
    %v7747 = vsel %vm400, %v7725, 0
    %7749 = vmatpush.bf16.msra.mxu0 0
    %7750 = vmatpush.bf16.msra.mxu0 0
    %7751 = vmatpush.bf16.msra.mxu0 0
    %7752 = vmatpush.bf16.msra.mxu0 0
    %7753 = vmatpush.bf16.msra.mxu0 0
    %7754 = vmatpush.bf16.msra.mxu0 0
    %7755 = vmatpush.bf16.msra.mxu0 %v7743
    %7756 = vmatpush.bf16.msra.mxu0 %v7742
    %7757 = vmatmul.bf16.gmra.mxu0 %v7747
    %v7758 = vpop.f32.mrf.mxu0
    %v7759 = vadd.f32 %v7732, %v7758
    %v7760 = vpop.f32.mrf.mxu0
    %v7761 = vadd.f32 %v7732, %v7760
    %7762 = vdwg.mxu0
    %v7765 = vrot.slane %v7759, 2
    %v7766 = vrot.slane %v7759, 4
    %v7767 = vrot.slane %v7759, 6
    %v7768 = vrot.slane %v7761, 2
    %v7769 = vrot.slane %v7761, 4
    %v7770 = vrot.slane %v7761, 6
    %v7777 = vadd.f32 %v5201, %v7759
    %v7778 = vadd.f32 %v5202, %v7765
    %v7779 = vadd.f32 %v5203, %v7766
    %v7780 = vadd.f32 %v5204, %v7767
    %v7781 = vadd.f32 %v5205, %v7761
    %v7782 = vadd.f32 %v5206, %v7768
    %v7783 = vadd.f32 %v5207, %v7769
    %v7784 = vadd.f32 %v5208, %v7770
    %7793 = vst [vmem:[#allocation1] ss:$4 sm:$0xff] %v7777
    %s7794 = scalar_lea.vmem [#allocation1], 1
    %7795 = vst [vmem:[%s7794] ss:$4 sm:$0xff] %v7778
    %s7796 = scalar_lea.vmem [#allocation1], 2
    %7797 = vst [vmem:[%s7796] ss:$4 sm:$0xff] %v7779
    %s7798 = scalar_lea.vmem [#allocation1], 3
    %7799 = vst [vmem:[%s7798] ss:$4 sm:$0xff] %v7780
    %s7800 = scalar_lea.vmem [#allocation1], 32
    %7801 = vst [vmem:[%s7800] ss:$4 sm:$0xff] %v7781
    %s7802 = scalar_lea.vmem [#allocation1], 33
    %7803 = vst [vmem:[%s7802] ss:$4 sm:$0xff] %v7782
    %s7804 = scalar_lea.vmem [#allocation1], 34
    %7805 = vst [vmem:[%s7804] ss:$4 sm:$0xff] %v7783
    %s7806 = scalar_lea.vmem [#allocation1], 35
    %7807 = vst [vmem:[%s7806] ss:$4 sm:$0xff] %v7784
    %v7808 = vld.sshfl [vmem:[#allocation1] sm:$0xff pattern:$0x73625140]
    %v7809 = vld.sshfl [vmem:[#allocation1 + $0x20] sm:$0xff pattern:$0x73625140]
    %v7812 = vsel %vm400, %v7808, 0.0
    %7813 = vadd.xlane.f32.xlu0 %v7812
    %v7814 = vpop.xlane.xlu0 %7813
    %v7815 = vsel %vm400, %v7809, 0.0
    %7816 = vadd.xlane.f32.xlu0 %v7815
    %v7817 = vpop.xlane.xlu0 %7816
    %v7818 = vmul.f32 %v7814, %v2959
    %v7819 = vmul.f32 %v7817, %v2959
    %v7823 = vunpack.c.l.s4 269488144
    %v7824 = vunpack.c.0.s8 %v7823
    %v7825 = vperm.slane %v7818, %v7824
    %v7827 = vunpack.c.l.s4 842150450
    %v7828 = vunpack.c.0.s8 %v7827
    %v7829 = vperm.slane %v7818, %v7828
    %v7831 = vunpack.c.l.s4 1414812756
    %v7832 = vunpack.c.0.s8 %v7831
    %v7833 = vperm.slane %v7818, %v7832
    %v7835 = vunpack.c.l.s4 1987475062
    %v7836 = vunpack.c.0.s8 %v7835
    %v7837 = vperm.slane %v7818, %v7836
    %v7839 = vunpack.c.l.s4 269488144
    %v7840 = vunpack.c.0.s8 %v7839
    %v7841 = vperm.slane %v7819, %v7840
    %v7843 = vunpack.c.l.s4 842150450
    %v7844 = vunpack.c.0.s8 %v7843
    %v7845 = vperm.slane %v7819, %v7844
    %v7847 = vunpack.c.l.s4 1414812756
    %v7848 = vunpack.c.0.s8 %v7847
    %v7849 = vperm.slane %v7819, %v7848
    %v7851 = vunpack.c.l.s4 1987475062
    %v7852 = vunpack.c.0.s8 %v7851
    %v7853 = vperm.slane %v7819, %v7852
    %v7862 = vsub.f32 %v7777, %v7825
    %v7863 = vsub.f32 %v7778, %v7829
    %v7864 = vsub.f32 %v7779, %v7833
    %v7865 = vsub.f32 %v7780, %v7837
    %v7866 = vsub.f32 %v7781, %v7841
    %v7867 = vsub.f32 %v7782, %v7845
    %v7868 = vsub.f32 %v7783, %v7849
    %v7869 = vsub.f32 %v7784, %v7853
    %v7870 = vmul.f32 %v7862, %v7862
    %v7871 = vmul.f32 %v7863, %v7863
    %v7872 = vmul.f32 %v7864, %v7864
    %v7873 = vmul.f32 %v7865, %v7865
    %v7874 = vmul.f32 %v7866, %v7866
    %v7875 = vmul.f32 %v7867, %v7867
    %v7876 = vmul.f32 %v7868, %v7868
    %v7877 = vmul.f32 %v7869, %v7869
    %7886 = vst [vmem:[#allocation1] ss:$4 sm:$0xff] %v7870
    %s7887 = scalar_lea.vmem [#allocation1], 1
    %7888 = vst [vmem:[%s7887] ss:$4 sm:$0xff] %v7871
    %s7889 = scalar_lea.vmem [#allocation1], 2
    %7890 = vst [vmem:[%s7889] ss:$4 sm:$0xff] %v7872
    %s7891 = scalar_lea.vmem [#allocation1], 3
    %7892 = vst [vmem:[%s7891] ss:$4 sm:$0xff] %v7873
    %s7893 = scalar_lea.vmem [#allocation1], 32
    %7894 = vst [vmem:[%s7893] ss:$4 sm:$0xff] %v7874
    %s7895 = scalar_lea.vmem [#allocation1], 33
    %7896 = vst [vmem:[%s7895] ss:$4 sm:$0xff] %v7875
    %s7897 = scalar_lea.vmem [#allocation1], 34
    %7898 = vst [vmem:[%s7897] ss:$4 sm:$0xff] %v7876
    %s7899 = scalar_lea.vmem [#allocation1], 35
    %7900 = vst [vmem:[%s7899] ss:$4 sm:$0xff] %v7877
    %v7901 = vld.sshfl [vmem:[#allocation1] sm:$0xff pattern:$0x73625140]
    %v7902 = vld.sshfl [vmem:[#allocation1 + $0x20] sm:$0xff pattern:$0x73625140]
    %v7905 = vsel %vm400, %v7901, 0.0
    %7906 = vadd.xlane.f32.xlu0 %v7905
    %v7907 = vpop.xlane.xlu0 %7906
    %v7908 = vsel %vm400, %v7902, 0.0
    %7909 = vadd.xlane.f32.xlu0 %v7908
    %v7910 = vpop.xlane.xlu0 %7909
    %v7911 = vmul.f32 %v7907, %v2959
    %v7912 = vmul.f32 %v7910, %v2959
    %v7913 = vadd.f32 %v7911, 1e-05
    %v7914 = vadd.f32 %v7912, 1e-05
    %v7915 = vrsqrt.pop %v7913
    %v7916 = vmul.f32 %v7915, %v7913
    %v7917 = vmul.f32 %v7916, %v7915
    %v7918 = vmul.f32 0.5, %v7917
    %v7919 = vsub.f32 1.5, %v7918
    %v7920 = vmul.f32 %v7915, %v7919
    %vm7921 = vweird.f32 %v7913
    %vm7922 = vweird.f32 %v7915
    %vm7923 = vmor %vm7921, %vm7922
    %v7924 = vsel %vm7923, %v7915, %v7920
    %v7925 = vrsqrt.pop %v7914
    %v7926 = vmul.f32 %v7925, %v7914
    %v7927 = vmul.f32 %v7926, %v7925
    %v7928 = vmul.f32 0.5, %v7927
    %v7929 = vsub.f32 1.5, %v7928
    %v7930 = vmul.f32 %v7925, %v7929
    %vm7931 = vweird.f32 %v7914
    %vm7932 = vweird.f32 %v7925
    %vm7933 = vmor %vm7931, %vm7932
    %v7934 = vsel %vm7933, %v7925, %v7930
    %v7938 = vunpack.c.l.s4 269488144
    %v7939 = vunpack.c.0.s8 %v7938
    %v7940 = vperm.slane %v7924, %v7939
    %v7942 = vunpack.c.l.s4 842150450
    %v7943 = vunpack.c.0.s8 %v7942
    %v7944 = vperm.slane %v7924, %v7943
    %v7946 = vunpack.c.l.s4 1414812756
    %v7947 = vunpack.c.0.s8 %v7946
    %v7948 = vperm.slane %v7924, %v7947
    %v7950 = vunpack.c.l.s4 1987475062
    %v7951 = vunpack.c.0.s8 %v7950
    %v7952 = vperm.slane %v7924, %v7951
    %v7954 = vunpack.c.l.s4 269488144
    %v7955 = vunpack.c.0.s8 %v7954
    %v7956 = vperm.slane %v7934, %v7955
    %v7958 = vunpack.c.l.s4 842150450
    %v7959 = vunpack.c.0.s8 %v7958
    %v7960 = vperm.slane %v7934, %v7959
    %v7962 = vunpack.c.l.s4 1414812756
    %v7963 = vunpack.c.0.s8 %v7962
    %v7964 = vperm.slane %v7934, %v7963
    %v7966 = vunpack.c.l.s4 1987475062
    %v7967 = vunpack.c.0.s8 %v7966
    %v7968 = vperm.slane %v7934, %v7967
    %v7977 = vmul.f32 %v7862, %v7940
    %v7978 = vmul.f32 %v7863, %v7944
    %v7979 = vmul.f32 %v7864, %v7948
    %v7980 = vmul.f32 %v7865, %v7952
    %v7981 = vmul.f32 %v7866, %v7956
    %v7982 = vmul.f32 %v7867, %v7960
    %v7983 = vmul.f32 %v7868, %v7964
    %v7984 = vmul.f32 %v7869, %v7968
    %v7986 = vperm.slane %v5216, 0
    %v7988 = vrot.slane %v7986, 2
    %v7989 = vrot.slane %v7986, 4
    %v7990 = vrot.slane %v7986, 6
    %v7994 = vmul.f32 %v7977, %v7986
    %v7995 = vmul.f32 %v7978, %v7988
    %v7996 = vmul.f32 %v7979, %v7989
    %v7997 = vmul.f32 %v7980, %v7990
    %v7998 = vmul.f32 %v7981, %v7986
    %v7999 = vmul.f32 %v7982, %v7988
    %v8000 = vmul.f32 %v7983, %v7989
    %v8001 = vmul.f32 %v7984, %v7990
    %v8003 = vperm.slane %v5218, 0
    %v8005 = vrot.slane %v8003, 2
    %v8006 = vrot.slane %v8003, 4
    %v8007 = vrot.slane %v8003, 6
    %v8011 = vadd.f32 %v7994, %v8003
    %v8012 = vadd.f32 %v7995, %v8005
    %v8013 = vadd.f32 %v7996, %v8006
    %v8014 = vadd.f32 %v7997, %v8007
    %v8015 = vadd.f32 %v7998, %v8003
    %v8016 = vadd.f32 %v7999, %v8005
    %v8017 = vadd.f32 %v8000, %v8006
    %v8018 = vadd.f32 %v8001, %v8007
    %8027 = vst [vmem:[#allocation1] ss:$4 sm:$0xff] %v8011
    %s8028 = scalar_lea.vmem [#allocation1], 1
    %8029 = vst [vmem:[%s8028] ss:$4 sm:$0xff] %v8012
    %s8030 = scalar_lea.vmem [#allocation1], 2
    %8031 = vst [vmem:[%s8030] ss:$4 sm:$0xff] %v8013
    %s8032 = scalar_lea.vmem [#allocation1], 3
    %8033 = vst [vmem:[%s8032] ss:$4 sm:$0xff] %v8014
    %s8034 = scalar_lea.vmem [#allocation1], 32
    %8035 = vst [vmem:[%s8034] ss:$4 sm:$0xff] %v8015
    %s8036 = scalar_lea.vmem [#allocation1], 33
    %8037 = vst [vmem:[%s8036] ss:$4 sm:$0xff] %v8016
    %s8038 = scalar_lea.vmem [#allocation1], 34
    %8039 = vst [vmem:[%s8038] ss:$4 sm:$0xff] %v8017
    %s8040 = scalar_lea.vmem [#allocation1], 35
    %8041 = vst [vmem:[%s8040] ss:$4 sm:$0xff] %v8018
    %v8042 = vld.sshfl [vmem:[#allocation1] sm:$0xff pattern:$0x73625140]
    %v8043 = vld.sshfl [vmem:[#allocation1 + $0x20] sm:$0xff pattern:$0x73625140]
    %v8046 = vpack.c.bf16 %v8043, %v8042
    %s8047 = scalar_lea.vmem %s11, 256
    %v8048 = vld [vmem:[%s8047] sm:$0xff]
    %v8049 = vld [vmem:[%s8047 + $0x8] sm:$0xff]
    %v8050 = vld [vmem:[%s8047 + $0x40] sm:$0xff]
    %v8051 = vld [vmem:[%s8047 + $0x48] sm:$0xff]
    %v8052 = vld [vmem:[%s8047 + $0x80] sm:$0xff]
    %v8053 = vld [vmem:[%s8047 + $0x88] sm:$0xff]
    %v8054 = vld [vmem:[%s8047 + $0xc0] sm:$0xff]
    %v8055 = vld [vmem:[%s8047 + $0xc8] sm:$0xff]
    %s8056 = scalar_lea.vmem %s12, 16
    %v8057 = vld [vmem:[%s8056] sm:$0xf]
    %v8059 = vperm.slane %v8057, 0
    %v8060 = vperm.slane %v8057, 1
    %v8061 = vperm.slane %v8057, 2
    %v8062 = vperm.slane %v8057, 3
    %v8075 = vunpack.c.l.b16 %v8048
    %v8076 = vunpack.c.h.b16 %v8048
    %v8077 = vunpack.c.l.b16 %v8049
    %v8078 = vunpack.c.h.b16 %v8049
    %v8079 = vunpack.c.l.b16 %v8050
    %v8080 = vunpack.c.h.b16 %v8050
    %v8081 = vunpack.c.l.b16 %v8051
    %v8082 = vunpack.c.h.b16 %v8051
    %v8083 = vunpack.c.l.b16 %v8052
    %v8084 = vunpack.c.h.b16 %v8052
    %v8085 = vunpack.c.l.b16 %v8053
    %v8086 = vunpack.c.h.b16 %v8053
    %v8087 = vunpack.c.l.b16 %v8054
    %v8088 = vunpack.c.h.b16 %v8054
    %v8089 = vunpack.c.l.b16 %v8055
    %v8090 = vunpack.c.h.b16 %v8055
    %v8091 = vpack.c.b16 %v8079, %v8075
    %v8092 = vpack.c.b16 %v8080, %v8076
    %v8093 = vpack.c.b16 %v8081, %v8077
    %v8094 = vpack.c.b16 %v8082, %v8078
    %v8095 = vpack.c.b16 %v8087, %v8083
    %v8096 = vpack.c.b16 %v8088, %v8084
    %v8097 = vpack.c.b16 %v8089, %v8085
    %v8098 = vpack.c.b16 %v8090, %v8086
    %v8108 = vsel %vm400, %v8046, 0
    %8110 = vmatpush.bf16.msra.mxu0 0
    %8111 = vmatpush.bf16.msra.mxu0 0
    %8112 = vmatpush.bf16.msra.mxu0 0
    %8113 = vmatpush.bf16.msra.mxu0 0
    %8114 = vmatpush.bf16.msra.mxu0 0
    %8115 = vmatpush.bf16.msra.mxu0 0
    %8116 = vmatpush.bf16.msra.mxu0 %v8095
    %8117 = vmatpush.bf16.msra.mxu0 %v8091
    %8118 = vmatmul.bf16.gmra.mxu0 %v8108
    %v8119 = vpop.f32.mrf.mxu0
    %v8120 = vadd.f32 %v8059, %v8119
    %v8121 = vpop.f32.mrf.mxu0
    %v8122 = vadd.f32 %v8059, %v8121
    %8123 = vdwg.mxu0
    %8124 = vmatpush.bf16.msra.mxu0 0
    %8125 = vmatpush.bf16.msra.mxu0 0
    %8126 = vmatpush.bf16.msra.mxu0 0
    %8127 = vmatpush.bf16.msra.mxu0 0
    %8128 = vmatpush.bf16.msra.mxu0 0
    %8129 = vmatpush.bf16.msra.mxu0 0
    %8130 = vmatpush.bf16.msra.mxu0 %v8096
    %8131 = vmatpush.bf16.msra.mxu0 %v8092
    %8132 = vmatmul.bf16.gmra.mxu0 %v8108
    %v8133 = vpop.f32.mrf.mxu0
    %v8134 = vadd.f32 %v8060, %v8133
    %v8135 = vpop.f32.mrf.mxu0
    %v8136 = vadd.f32 %v8060, %v8135
    %8137 = vdwg.mxu0
    %8138 = vmatpush.bf16.msra.mxu0 0
    %8139 = vmatpush.bf16.msra.mxu0 0
    %8140 = vmatpush.bf16.msra.mxu0 0
    %8141 = vmatpush.bf16.msra.mxu0 0
    %8142 = vmatpush.bf16.msra.mxu0 0
    %8143 = vmatpush.bf16.msra.mxu0 0
    %8144 = vmatpush.bf16.msra.mxu0 %v8097
    %8145 = vmatpush.bf16.msra.mxu0 %v8093
    %8146 = vmatmul.bf16.gmra.mxu0 %v8108
    %v8147 = vpop.f32.mrf.mxu0
    %v8148 = vadd.f32 %v8061, %v8147
    %v8149 = vpop.f32.mrf.mxu0
    %v8150 = vadd.f32 %v8061, %v8149
    %8151 = vdwg.mxu0
    %8152 = vmatpush.bf16.msra.mxu0 0
    %8153 = vmatpush.bf16.msra.mxu0 0
    %8154 = vmatpush.bf16.msra.mxu0 0
    %8155 = vmatpush.bf16.msra.mxu0 0
    %8156 = vmatpush.bf16.msra.mxu0 0
    %8157 = vmatpush.bf16.msra.mxu0 0
    %8158 = vmatpush.bf16.msra.mxu0 %v8098
    %8159 = vmatpush.bf16.msra.mxu0 %v8094
    %8160 = vmatmul.bf16.gmra.mxu0 %v8108
    %v8161 = vpop.f32.mrf.mxu0
    %v8162 = vadd.f32 %v8062, %v8161
    %v8163 = vpop.f32.mrf.mxu0
    %v8164 = vadd.f32 %v8062, %v8163
    %8165 = vdwg.mxu0
    %v8166 = vmax.f32 %v8120, 0.0
    %v8167 = vmax.f32 %v8134, 0.0
    %v8168 = vmax.f32 %v8148, 0.0
    %v8169 = vmax.f32 %v8162, 0.0
    %v8170 = vmax.f32 %v8122, 0.0
    %v8171 = vmax.f32 %v8136, 0.0
    %v8172 = vmax.f32 %v8150, 0.0
    %v8173 = vmax.f32 %v8164, 0.0
    %v8174 = vpack.c.bf16 %v8170, %v8166
    %v8175 = vpack.c.bf16 %v8171, %v8167
    %v8176 = vpack.c.bf16 %v8172, %v8168
    %v8177 = vpack.c.bf16 %v8173, %v8169
    %s8178 = scalar_lea.vmem %s13, 1024
    %v8179 = vld [vmem:[%s8178] sm:$0xf]
    %v8180 = vld [vmem:[%s8178 + $0x4] sm:$0xf]
    %v8181 = vld [vmem:[%s8178 + $0x8] sm:$0xf]
    %v8182 = vld [vmem:[%s8178 + $0xc] sm:$0xf]
    %v8183 = vld [vmem:[%s8178 + $0x10] sm:$0xf]
    %v8184 = vld [vmem:[%s8178 + $0x14] sm:$0xf]
    %v8185 = vld [vmem:[%s8178 + $0x18] sm:$0xf]
    %v8186 = vld [vmem:[%s8178 + $0x1c] sm:$0xf]
    %v8187 = vld [vmem:[%s8178 + $0x20] sm:$0xf]
    %v8188 = vld [vmem:[%s8178 + $0x24] sm:$0xf]
    %v8189 = vld [vmem:[%s8178 + $0x28] sm:$0xf]
    %v8190 = vld [vmem:[%s8178 + $0x2c] sm:$0xf]
    %v8191 = vld [vmem:[%s8178 + $0x30] sm:$0xf]
    %v8192 = vld [vmem:[%s8178 + $0x34] sm:$0xf]
    %v8193 = vld [vmem:[%s8178 + $0x38] sm:$0xf]
    %v8194 = vld [vmem:[%s8178 + $0x3c] sm:$0xf]
    %v8195 = vld [vmem:[%s8178 + $0x40] sm:$0xf]
    %v8196 = vld [vmem:[%s8178 + $0x44] sm:$0xf]
    %v8197 = vld [vmem:[%s8178 + $0x48] sm:$0xf]
    %v8198 = vld [vmem:[%s8178 + $0x4c] sm:$0xf]
    %v8199 = vld [vmem:[%s8178 + $0x50] sm:$0xf]
    %v8200 = vld [vmem:[%s8178 + $0x54] sm:$0xf]
    %v8201 = vld [vmem:[%s8178 + $0x58] sm:$0xf]
    %v8202 = vld [vmem:[%s8178 + $0x5c] sm:$0xf]
    %v8203 = vld [vmem:[%s8178 + $0x60] sm:$0xf]
    %v8204 = vld [vmem:[%s8178 + $0x64] sm:$0xf]
    %v8205 = vld [vmem:[%s8178 + $0x68] sm:$0xf]
    %v8206 = vld [vmem:[%s8178 + $0x6c] sm:$0xf]
    %v8207 = vld [vmem:[%s8178 + $0x70] sm:$0xf]
    %v8208 = vld [vmem:[%s8178 + $0x74] sm:$0xf]
    %v8209 = vld [vmem:[%s8178 + $0x78] sm:$0xf]
    %v8210 = vld [vmem:[%s8178 + $0x7c] sm:$0xf]
    %v8211 = vld [vmem:[%s8178 + $0x80] sm:$0xf]
    %v8212 = vld [vmem:[%s8178 + $0x84] sm:$0xf]
    %v8213 = vld [vmem:[%s8178 + $0x88] sm:$0xf]
    %v8214 = vld [vmem:[%s8178 + $0x8c] sm:$0xf]
    %v8215 = vld [vmem:[%s8178 + $0x90] sm:$0xf]
    %v8216 = vld [vmem:[%s8178 + $0x94] sm:$0xf]
    %v8217 = vld [vmem:[%s8178 + $0x98] sm:$0xf]
    %v8218 = vld [vmem:[%s8178 + $0x9c] sm:$0xf]
    %v8219 = vld [vmem:[%s8178 + $0xa0] sm:$0xf]
    %v8220 = vld [vmem:[%s8178 + $0xa4] sm:$0xf]
    %v8221 = vld [vmem:[%s8178 + $0xa8] sm:$0xf]
    %v8222 = vld [vmem:[%s8178 + $0xac] sm:$0xf]
    %v8223 = vld [vmem:[%s8178 + $0xb0] sm:$0xf]
    %v8224 = vld [vmem:[%s8178 + $0xb4] sm:$0xf]
    %v8225 = vld [vmem:[%s8178 + $0xb8] sm:$0xf]
    %v8226 = vld [vmem:[%s8178 + $0xbc] sm:$0xf]
    %v8227 = vld [vmem:[%s8178 + $0xc0] sm:$0xf]
    %v8228 = vld [vmem:[%s8178 + $0xc4] sm:$0xf]
    %v8229 = vld [vmem:[%s8178 + $0xc8] sm:$0xf]
    %v8230 = vld [vmem:[%s8178 + $0xcc] sm:$0xf]
    %v8231 = vld [vmem:[%s8178 + $0xd0] sm:$0xf]
    %v8232 = vld [vmem:[%s8178 + $0xd4] sm:$0xf]
    %v8233 = vld [vmem:[%s8178 + $0xd8] sm:$0xf]
    %v8234 = vld [vmem:[%s8178 + $0xdc] sm:$0xf]
    %v8235 = vld [vmem:[%s8178 + $0xe0] sm:$0xf]
    %v8236 = vld [vmem:[%s8178 + $0xe4] sm:$0xf]
    %v8237 = vld [vmem:[%s8178 + $0xe8] sm:$0xf]
    %v8238 = vld [vmem:[%s8178 + $0xec] sm:$0xf]
    %v8239 = vld [vmem:[%s8178 + $0xf0] sm:$0xf]
    %v8240 = vld [vmem:[%s8178 + $0xf4] sm:$0xf]
    %v8241 = vld [vmem:[%s8178 + $0xf8] sm:$0xf]
    %v8242 = vld [vmem:[%s8178 + $0xfc] sm:$0xf]
    %v8243 = vld [vmem:[%s8047 + $0x10] sm:$0xff]
    %v8244 = vld [vmem:[%s8047 + $0x18] sm:$0xff]
    %v8245 = vld [vmem:[%s8047 + $0x50] sm:$0xff]
    %v8246 = vld [vmem:[%s8047 + $0x58] sm:$0xff]
    %v8247 = vld [vmem:[%s8047 + $0x90] sm:$0xff]
    %v8248 = vld [vmem:[%s8047 + $0x98] sm:$0xff]
    %v8249 = vld [vmem:[%s8047 + $0xd0] sm:$0xff]
    %v8250 = vld [vmem:[%s8047 + $0xd8] sm:$0xff]
    %v8251 = vld [vmem:[%s8056 + $0x4] sm:$0xf]
    %v8253 = vperm.slane %v8251, 0
    %v8254 = vperm.slane %v8251, 1
    %v8255 = vperm.slane %v8251, 2
    %v8256 = vperm.slane %v8251, 3
    %v8269 = vunpack.c.l.b16 %v8243
    %v8270 = vunpack.c.h.b16 %v8243
    %v8271 = vunpack.c.l.b16 %v8244
    %v8272 = vunpack.c.h.b16 %v8244
    %v8273 = vunpack.c.l.b16 %v8245
    %v8274 = vunpack.c.h.b16 %v8245
    %v8275 = vunpack.c.l.b16 %v8246
    %v8276 = vunpack.c.h.b16 %v8246
    %v8277 = vunpack.c.l.b16 %v8247
    %v8278 = vunpack.c.h.b16 %v8247
    %v8279 = vunpack.c.l.b16 %v8248
    %v8280 = vunpack.c.h.b16 %v8248
    %v8281 = vunpack.c.l.b16 %v8249
    %v8282 = vunpack.c.h.b16 %v8249
    %v8283 = vunpack.c.l.b16 %v8250
    %v8284 = vunpack.c.h.b16 %v8250
    %v8285 = vpack.c.b16 %v8273, %v8269
    %v8286 = vpack.c.b16 %v8274, %v8270
    %v8287 = vpack.c.b16 %v8275, %v8271
    %v8288 = vpack.c.b16 %v8276, %v8272
    %v8289 = vpack.c.b16 %v8281, %v8277
    %v8290 = vpack.c.b16 %v8282, %v8278
    %v8291 = vpack.c.b16 %v8283, %v8279
    %v8292 = vpack.c.b16 %v8284, %v8280
    %8301 = vmatpush.bf16.msra.mxu0 0
    %8302 = vmatpush.bf16.msra.mxu0 0
    %8303 = vmatpush.bf16.msra.mxu0 0
    %8304 = vmatpush.bf16.msra.mxu0 0
    %8305 = vmatpush.bf16.msra.mxu0 0
    %8306 = vmatpush.bf16.msra.mxu0 0
    %8307 = vmatpush.bf16.msra.mxu0 %v8289
    %8308 = vmatpush.bf16.msra.mxu0 %v8285
    %8309 = vmatmul.bf16.gmra.mxu0 %v8108
    %v8310 = vpop.f32.mrf.mxu0
    %v8311 = vadd.f32 %v8253, %v8310
    %v8312 = vpop.f32.mrf.mxu0
    %v8313 = vadd.f32 %v8253, %v8312
    %8314 = vdwg.mxu0
    %8315 = vmatpush.bf16.msra.mxu0 0
    %8316 = vmatpush.bf16.msra.mxu0 0
    %8317 = vmatpush.bf16.msra.mxu0 0
    %8318 = vmatpush.bf16.msra.mxu0 0
    %8319 = vmatpush.bf16.msra.mxu0 0
    %8320 = vmatpush.bf16.msra.mxu0 0
    %8321 = vmatpush.bf16.msra.mxu0 %v8290
    %8322 = vmatpush.bf16.msra.mxu0 %v8286
    %8323 = vmatmul.bf16.gmra.mxu0 %v8108
    %v8324 = vpop.f32.mrf.mxu0
    %v8325 = vadd.f32 %v8254, %v8324
    %v8326 = vpop.f32.mrf.mxu0
    %v8327 = vadd.f32 %v8254, %v8326
    %8328 = vdwg.mxu0
    %8329 = vmatpush.bf16.msra.mxu0 0
    %8330 = vmatpush.bf16.msra.mxu0 0
    %8331 = vmatpush.bf16.msra.mxu0 0
    %8332 = vmatpush.bf16.msra.mxu0 0
    %8333 = vmatpush.bf16.msra.mxu0 0
    %8334 = vmatpush.bf16.msra.mxu0 0
    %8335 = vmatpush.bf16.msra.mxu0 %v8291
    %8336 = vmatpush.bf16.msra.mxu0 %v8287
    %8337 = vmatmul.bf16.gmra.mxu0 %v8108
    %v8338 = vpop.f32.mrf.mxu0
    %v8339 = vadd.f32 %v8255, %v8338
    %v8340 = vpop.f32.mrf.mxu0
    %v8341 = vadd.f32 %v8255, %v8340
    %8342 = vdwg.mxu0
    %8343 = vmatpush.bf16.msra.mxu0 0
    %8344 = vmatpush.bf16.msra.mxu0 0
    %8345 = vmatpush.bf16.msra.mxu0 0
    %8346 = vmatpush.bf16.msra.mxu0 0
    %8347 = vmatpush.bf16.msra.mxu0 0
    %8348 = vmatpush.bf16.msra.mxu0 0
    %8349 = vmatpush.bf16.msra.mxu0 %v8292
    %8350 = vmatpush.bf16.msra.mxu0 %v8288
    %8351 = vmatmul.bf16.gmra.mxu0 %v8108
    %v8352 = vpop.f32.mrf.mxu0
    %v8353 = vadd.f32 %v8256, %v8352
    %v8354 = vpop.f32.mrf.mxu0
    %v8355 = vadd.f32 %v8256, %v8354
    %8356 = vdwg.mxu0
    %v8357 = vmax.f32 %v8311, 0.0
    %v8358 = vmax.f32 %v8325, 0.0
    %v8359 = vmax.f32 %v8339, 0.0
    %v8360 = vmax.f32 %v8353, 0.0
    %v8361 = vmax.f32 %v8313, 0.0
    %v8362 = vmax.f32 %v8327, 0.0
    %v8363 = vmax.f32 %v8341, 0.0
    %v8364 = vmax.f32 %v8355, 0.0
    %v8365 = vpack.c.bf16 %v8361, %v8357
    %v8366 = vpack.c.bf16 %v8362, %v8358
    %v8367 = vpack.c.bf16 %v8363, %v8359
    %v8368 = vpack.c.bf16 %v8364, %v8360
    %v8369 = vld [vmem:[%s8178 + $0x100] sm:$0xf]
    %v8370 = vld [vmem:[%s8178 + $0x104] sm:$0xf]
    %v8371 = vld [vmem:[%s8178 + $0x108] sm:$0xf]
    %v8372 = vld [vmem:[%s8178 + $0x10c] sm:$0xf]
    %v8373 = vld [vmem:[%s8178 + $0x110] sm:$0xf]
    %v8374 = vld [vmem:[%s8178 + $0x114] sm:$0xf]
    %v8375 = vld [vmem:[%s8178 + $0x118] sm:$0xf]
    %v8376 = vld [vmem:[%s8178 + $0x11c] sm:$0xf]
    %v8377 = vld [vmem:[%s8178 + $0x120] sm:$0xf]
    %v8378 = vld [vmem:[%s8178 + $0x124] sm:$0xf]
    %v8379 = vld [vmem:[%s8178 + $0x128] sm:$0xf]
    %v8380 = vld [vmem:[%s8178 + $0x12c] sm:$0xf]
    %v8381 = vld [vmem:[%s8178 + $0x130] sm:$0xf]
    %v8382 = vld [vmem:[%s8178 + $0x134] sm:$0xf]
    %v8383 = vld [vmem:[%s8178 + $0x138] sm:$0xf]
    %v8384 = vld [vmem:[%s8178 + $0x13c] sm:$0xf]
    %v8385 = vld [vmem:[%s8178 + $0x140] sm:$0xf]
    %v8386 = vld [vmem:[%s8178 + $0x144] sm:$0xf]
    %v8387 = vld [vmem:[%s8178 + $0x148] sm:$0xf]
    %v8388 = vld [vmem:[%s8178 + $0x14c] sm:$0xf]
    %v8389 = vld [vmem:[%s8178 + $0x150] sm:$0xf]
    %v8390 = vld [vmem:[%s8178 + $0x154] sm:$0xf]
    %v8391 = vld [vmem:[%s8178 + $0x158] sm:$0xf]
    %v8392 = vld [vmem:[%s8178 + $0x15c] sm:$0xf]
    %v8393 = vld [vmem:[%s8178 + $0x160] sm:$0xf]
    %v8394 = vld [vmem:[%s8178 + $0x164] sm:$0xf]
    %v8395 = vld [vmem:[%s8178 + $0x168] sm:$0xf]
    %v8396 = vld [vmem:[%s8178 + $0x16c] sm:$0xf]
    %v8397 = vld [vmem:[%s8178 + $0x170] sm:$0xf]
    %v8398 = vld [vmem:[%s8178 + $0x174] sm:$0xf]
    %v8399 = vld [vmem:[%s8178 + $0x178] sm:$0xf]
    %v8400 = vld [vmem:[%s8178 + $0x17c] sm:$0xf]
    %v8401 = vld [vmem:[%s8178 + $0x180] sm:$0xf]
    %v8402 = vld [vmem:[%s8178 + $0x184] sm:$0xf]
    %v8403 = vld [vmem:[%s8178 + $0x188] sm:$0xf]
    %v8404 = vld [vmem:[%s8178 + $0x18c] sm:$0xf]
    %v8405 = vld [vmem:[%s8178 + $0x190] sm:$0xf]
    %v8406 = vld [vmem:[%s8178 + $0x194] sm:$0xf]
    %v8407 = vld [vmem:[%s8178 + $0x198] sm:$0xf]
    %v8408 = vld [vmem:[%s8178 + $0x19c] sm:$0xf]
    %v8409 = vld [vmem:[%s8178 + $0x1a0] sm:$0xf]
    %v8410 = vld [vmem:[%s8178 + $0x1a4] sm:$0xf]
    %v8411 = vld [vmem:[%s8178 + $0x1a8] sm:$0xf]
    %v8412 = vld [vmem:[%s8178 + $0x1ac] sm:$0xf]
    %v8413 = vld [vmem:[%s8178 + $0x1b0] sm:$0xf]
    %v8414 = vld [vmem:[%s8178 + $0x1b4] sm:$0xf]
    %v8415 = vld [vmem:[%s8178 + $0x1b8] sm:$0xf]
    %v8416 = vld [vmem:[%s8178 + $0x1bc] sm:$0xf]
    %v8417 = vld [vmem:[%s8178 + $0x1c0] sm:$0xf]
    %v8418 = vld [vmem:[%s8178 + $0x1c4] sm:$0xf]
    %v8419 = vld [vmem:[%s8178 + $0x1c8] sm:$0xf]
    %v8420 = vld [vmem:[%s8178 + $0x1cc] sm:$0xf]
    %v8421 = vld [vmem:[%s8178 + $0x1d0] sm:$0xf]
    %v8422 = vld [vmem:[%s8178 + $0x1d4] sm:$0xf]
    %v8423 = vld [vmem:[%s8178 + $0x1d8] sm:$0xf]
    %v8424 = vld [vmem:[%s8178 + $0x1dc] sm:$0xf]
    %v8425 = vld [vmem:[%s8178 + $0x1e0] sm:$0xf]
    %v8426 = vld [vmem:[%s8178 + $0x1e4] sm:$0xf]
    %v8427 = vld [vmem:[%s8178 + $0x1e8] sm:$0xf]
    %v8428 = vld [vmem:[%s8178 + $0x1ec] sm:$0xf]
    %v8429 = vld [vmem:[%s8178 + $0x1f0] sm:$0xf]
    %v8430 = vld [vmem:[%s8178 + $0x1f4] sm:$0xf]
    %v8431 = vld [vmem:[%s8178 + $0x1f8] sm:$0xf]
    %v8432 = vld [vmem:[%s8178 + $0x1fc] sm:$0xf]
    %v8497 = vunpack.c.l.b16 %v8369
    %v8498 = vunpack.c.l.b16 %v8370
    %v8499 = vunpack.c.l.b16 %v8371
    %v8500 = vunpack.c.l.b16 %v8372
    %v8501 = vunpack.c.l.b16 %v8373
    %v8502 = vunpack.c.l.b16 %v8374
    %v8503 = vunpack.c.l.b16 %v8375
    %v8504 = vunpack.c.l.b16 %v8376
    %v8505 = vunpack.c.l.b16 %v8377
    %v8506 = vunpack.c.l.b16 %v8378
    %v8507 = vunpack.c.l.b16 %v8379
    %v8508 = vunpack.c.l.b16 %v8380
    %v8509 = vunpack.c.l.b16 %v8381
    %v8510 = vunpack.c.l.b16 %v8382
    %v8511 = vunpack.c.l.b16 %v8383
    %v8512 = vunpack.c.l.b16 %v8384
    %v8513 = vunpack.c.l.b16 %v8385
    %v8514 = vunpack.c.l.b16 %v8386
    %v8515 = vunpack.c.l.b16 %v8387
    %v8516 = vunpack.c.l.b16 %v8388
    %v8517 = vunpack.c.l.b16 %v8389
    %v8518 = vunpack.c.l.b16 %v8390
    %v8519 = vunpack.c.l.b16 %v8391
    %v8520 = vunpack.c.l.b16 %v8392
    %v8521 = vunpack.c.l.b16 %v8393
    %v8522 = vunpack.c.l.b16 %v8394
    %v8523 = vunpack.c.l.b16 %v8395
    %v8524 = vunpack.c.l.b16 %v8396
    %v8525 = vunpack.c.l.b16 %v8397
    %v8526 = vunpack.c.l.b16 %v8398
    %v8527 = vunpack.c.l.b16 %v8399
    %v8528 = vunpack.c.l.b16 %v8400
    %v8529 = vunpack.c.l.b16 %v8401
    %v8530 = vunpack.c.l.b16 %v8402
    %v8531 = vunpack.c.l.b16 %v8403
    %v8532 = vunpack.c.l.b16 %v8404
    %v8533 = vunpack.c.l.b16 %v8405
    %v8534 = vunpack.c.l.b16 %v8406
    %v8535 = vunpack.c.l.b16 %v8407
    %v8536 = vunpack.c.l.b16 %v8408
    %v8537 = vunpack.c.l.b16 %v8409
    %v8538 = vunpack.c.l.b16 %v8410
    %v8539 = vunpack.c.l.b16 %v8411
    %v8540 = vunpack.c.l.b16 %v8412
    %v8541 = vunpack.c.l.b16 %v8413
    %v8542 = vunpack.c.l.b16 %v8414
    %v8543 = vunpack.c.l.b16 %v8415
    %v8544 = vunpack.c.l.b16 %v8416
    %v8545 = vunpack.c.l.b16 %v8417
    %v8546 = vunpack.c.l.b16 %v8418
    %v8547 = vunpack.c.l.b16 %v8419
    %v8548 = vunpack.c.l.b16 %v8420
    %v8549 = vunpack.c.l.b16 %v8421
    %v8550 = vunpack.c.l.b16 %v8422
    %v8551 = vunpack.c.l.b16 %v8423
    %v8552 = vunpack.c.l.b16 %v8424
    %v8553 = vunpack.c.l.b16 %v8425
    %v8554 = vunpack.c.l.b16 %v8426
    %v8555 = vunpack.c.l.b16 %v8427
    %v8556 = vunpack.c.l.b16 %v8428
    %v8557 = vunpack.c.l.b16 %v8429
    %v8558 = vunpack.c.l.b16 %v8430
    %v8559 = vunpack.c.l.b16 %v8431
    %v8560 = vunpack.c.l.b16 %v8432
    %v8561 = vpack.c.b16 %v8498, %v8497
    %v8562 = vpack.c.b16 %v8500, %v8499
    %v8563 = vpack.c.b16 %v8502, %v8501
    %v8564 = vpack.c.b16 %v8504, %v8503
    %v8565 = vpack.c.b16 %v8506, %v8505
    %v8566 = vpack.c.b16 %v8508, %v8507
    %v8567 = vpack.c.b16 %v8510, %v8509
    %v8568 = vpack.c.b16 %v8512, %v8511
    %v8569 = vpack.c.b16 %v8514, %v8513
    %v8570 = vpack.c.b16 %v8516, %v8515
    %v8571 = vpack.c.b16 %v8518, %v8517
    %v8572 = vpack.c.b16 %v8520, %v8519
    %v8573 = vpack.c.b16 %v8522, %v8521
    %v8574 = vpack.c.b16 %v8524, %v8523
    %v8575 = vpack.c.b16 %v8526, %v8525
    %v8576 = vpack.c.b16 %v8528, %v8527
    %v8577 = vpack.c.b16 %v8530, %v8529
    %v8578 = vpack.c.b16 %v8532, %v8531
    %v8579 = vpack.c.b16 %v8534, %v8533
    %v8580 = vpack.c.b16 %v8536, %v8535
    %v8581 = vpack.c.b16 %v8538, %v8537
    %v8582 = vpack.c.b16 %v8540, %v8539
    %v8583 = vpack.c.b16 %v8542, %v8541
    %v8584 = vpack.c.b16 %v8544, %v8543
    %v8585 = vpack.c.b16 %v8546, %v8545
    %v8586 = vpack.c.b16 %v8548, %v8547
    %v8587 = vpack.c.b16 %v8550, %v8549
    %v8588 = vpack.c.b16 %v8552, %v8551
    %v8589 = vpack.c.b16 %v8554, %v8553
    %v8590 = vpack.c.b16 %v8556, %v8555
    %v8591 = vpack.c.b16 %v8558, %v8557
    %v8592 = vpack.c.b16 %v8560, %v8559
    %8625 = vmatpush.bf16.msra.mxu0 %v8568
    %8626 = vmatpush.bf16.msra.mxu0 %v8567
    %8627 = vmatpush.bf16.msra.mxu0 %v8566
    %8628 = vmatpush.bf16.msra.mxu0 %v8565
    %8629 = vmatpush.bf16.msra.mxu0 %v8564
    %8630 = vmatpush.bf16.msra.mxu0 %v8563
    %8631 = vmatpush.bf16.msra.mxu0 %v8562
    %8632 = vmatpush.bf16.msra.mxu0 %v8561
    %8633 = vmatmul.bf16.gmra.mxu0 %v8365
    %v8634 = vpop.f32.mrf.mxu0
    %v8635 = vadd.f32 0.0, %v8634
    %v8636 = vpop.f32.mrf.mxu0
    %v8637 = vadd.f32 0.0, %v8636
    %8638 = vdwg.mxu0
    %8639 = vmatpush.bf16.msra.mxu0 %v8576
    %8640 = vmatpush.bf16.msra.mxu0 %v8575
    %8641 = vmatpush.bf16.msra.mxu0 %v8574
    %8642 = vmatpush.bf16.msra.mxu0 %v8573
    %8643 = vmatpush.bf16.msra.mxu0 %v8572
    %8644 = vmatpush.bf16.msra.mxu0 %v8571
    %8645 = vmatpush.bf16.msra.mxu0 %v8570
    %8646 = vmatpush.bf16.msra.mxu0 %v8569
    %8647 = vmatmul.bf16.gmra.mxu0 %v8366
    %v8648 = vpop.f32.mrf.mxu0
    %v8649 = vadd.f32 %v8635, %v8648
    %v8650 = vpop.f32.mrf.mxu0
    %v8651 = vadd.f32 %v8637, %v8650
    %8652 = vdwg.mxu0
    %8653 = vmatpush.bf16.msra.mxu0 %v8584
    %8654 = vmatpush.bf16.msra.mxu0 %v8583
    %8655 = vmatpush.bf16.msra.mxu0 %v8582
    %8656 = vmatpush.bf16.msra.mxu0 %v8581
    %8657 = vmatpush.bf16.msra.mxu0 %v8580
    %8658 = vmatpush.bf16.msra.mxu0 %v8579
    %8659 = vmatpush.bf16.msra.mxu0 %v8578
    %8660 = vmatpush.bf16.msra.mxu0 %v8577
    %8661 = vmatmul.bf16.gmra.mxu0 %v8367
    %v8662 = vpop.f32.mrf.mxu0
    %v8663 = vadd.f32 %v8649, %v8662
    %v8664 = vpop.f32.mrf.mxu0
    %v8665 = vadd.f32 %v8651, %v8664
    %8666 = vdwg.mxu0
    %8667 = vmatpush.bf16.msra.mxu0 %v8592
    %8668 = vmatpush.bf16.msra.mxu0 %v8591
    %8669 = vmatpush.bf16.msra.mxu0 %v8590
    %8670 = vmatpush.bf16.msra.mxu0 %v8589
    %8671 = vmatpush.bf16.msra.mxu0 %v8588
    %8672 = vmatpush.bf16.msra.mxu0 %v8587
    %8673 = vmatpush.bf16.msra.mxu0 %v8586
    %8674 = vmatpush.bf16.msra.mxu0 %v8585
    %8675 = vmatmul.bf16.gmra.mxu0 %v8368
    %v8676 = vpop.f32.mrf.mxu0
    %v8677 = vadd.f32 %v8663, %v8676
    %v8678 = vpop.f32.mrf.mxu0
    %v8679 = vadd.f32 %v8665, %v8678
    %8680 = vdwg.mxu0
    %v8745 = vunpack.c.l.b16 %v8179
    %v8746 = vunpack.c.l.b16 %v8180
    %v8747 = vunpack.c.l.b16 %v8181
    %v8748 = vunpack.c.l.b16 %v8182
    %v8749 = vunpack.c.l.b16 %v8183
    %v8750 = vunpack.c.l.b16 %v8184
    %v8751 = vunpack.c.l.b16 %v8185
    %v8752 = vunpack.c.l.b16 %v8186
    %v8753 = vunpack.c.l.b16 %v8187
    %v8754 = vunpack.c.l.b16 %v8188
    %v8755 = vunpack.c.l.b16 %v8189
    %v8756 = vunpack.c.l.b16 %v8190
    %v8757 = vunpack.c.l.b16 %v8191
    %v8758 = vunpack.c.l.b16 %v8192
    %v8759 = vunpack.c.l.b16 %v8193
    %v8760 = vunpack.c.l.b16 %v8194
    %v8761 = vunpack.c.l.b16 %v8195
    %v8762 = vunpack.c.l.b16 %v8196
    %v8763 = vunpack.c.l.b16 %v8197
    %v8764 = vunpack.c.l.b16 %v8198
    %v8765 = vunpack.c.l.b16 %v8199
    %v8766 = vunpack.c.l.b16 %v8200
    %v8767 = vunpack.c.l.b16 %v8201
    %v8768 = vunpack.c.l.b16 %v8202
    %v8769 = vunpack.c.l.b16 %v8203
    %v8770 = vunpack.c.l.b16 %v8204
    %v8771 = vunpack.c.l.b16 %v8205
    %v8772 = vunpack.c.l.b16 %v8206
    %v8773 = vunpack.c.l.b16 %v8207
    %v8774 = vunpack.c.l.b16 %v8208
    %v8775 = vunpack.c.l.b16 %v8209
    %v8776 = vunpack.c.l.b16 %v8210
    %v8777 = vunpack.c.l.b16 %v8211
    %v8778 = vunpack.c.l.b16 %v8212
    %v8779 = vunpack.c.l.b16 %v8213
    %v8780 = vunpack.c.l.b16 %v8214
    %v8781 = vunpack.c.l.b16 %v8215
    %v8782 = vunpack.c.l.b16 %v8216
    %v8783 = vunpack.c.l.b16 %v8217
    %v8784 = vunpack.c.l.b16 %v8218
    %v8785 = vunpack.c.l.b16 %v8219
    %v8786 = vunpack.c.l.b16 %v8220
    %v8787 = vunpack.c.l.b16 %v8221
    %v8788 = vunpack.c.l.b16 %v8222
    %v8789 = vunpack.c.l.b16 %v8223
    %v8790 = vunpack.c.l.b16 %v8224
    %v8791 = vunpack.c.l.b16 %v8225
    %v8792 = vunpack.c.l.b16 %v8226
    %v8793 = vunpack.c.l.b16 %v8227
    %v8794 = vunpack.c.l.b16 %v8228
    %v8795 = vunpack.c.l.b16 %v8229
    %v8796 = vunpack.c.l.b16 %v8230
    %v8797 = vunpack.c.l.b16 %v8231
    %v8798 = vunpack.c.l.b16 %v8232
    %v8799 = vunpack.c.l.b16 %v8233
    %v8800 = vunpack.c.l.b16 %v8234
    %v8801 = vunpack.c.l.b16 %v8235
    %v8802 = vunpack.c.l.b16 %v8236
    %v8803 = vunpack.c.l.b16 %v8237
    %v8804 = vunpack.c.l.b16 %v8238
    %v8805 = vunpack.c.l.b16 %v8239
    %v8806 = vunpack.c.l.b16 %v8240
    %v8807 = vunpack.c.l.b16 %v8241
    %v8808 = vunpack.c.l.b16 %v8242
    %v8809 = vpack.c.b16 %v8746, %v8745
    %v8810 = vpack.c.b16 %v8748, %v8747
    %v8811 = vpack.c.b16 %v8750, %v8749
    %v8812 = vpack.c.b16 %v8752, %v8751
    %v8813 = vpack.c.b16 %v8754, %v8753
    %v8814 = vpack.c.b16 %v8756, %v8755
    %v8815 = vpack.c.b16 %v8758, %v8757
    %v8816 = vpack.c.b16 %v8760, %v8759
    %v8817 = vpack.c.b16 %v8762, %v8761
    %v8818 = vpack.c.b16 %v8764, %v8763
    %v8819 = vpack.c.b16 %v8766, %v8765
    %v8820 = vpack.c.b16 %v8768, %v8767
    %v8821 = vpack.c.b16 %v8770, %v8769
    %v8822 = vpack.c.b16 %v8772, %v8771
    %v8823 = vpack.c.b16 %v8774, %v8773
    %v8824 = vpack.c.b16 %v8776, %v8775
    %v8825 = vpack.c.b16 %v8778, %v8777
    %v8826 = vpack.c.b16 %v8780, %v8779
    %v8827 = vpack.c.b16 %v8782, %v8781
    %v8828 = vpack.c.b16 %v8784, %v8783
    %v8829 = vpack.c.b16 %v8786, %v8785
    %v8830 = vpack.c.b16 %v8788, %v8787
    %v8831 = vpack.c.b16 %v8790, %v8789
    %v8832 = vpack.c.b16 %v8792, %v8791
    %v8833 = vpack.c.b16 %v8794, %v8793
    %v8834 = vpack.c.b16 %v8796, %v8795
    %v8835 = vpack.c.b16 %v8798, %v8797
    %v8836 = vpack.c.b16 %v8800, %v8799
    %v8837 = vpack.c.b16 %v8802, %v8801
    %v8838 = vpack.c.b16 %v8804, %v8803
    %v8839 = vpack.c.b16 %v8806, %v8805
    %v8840 = vpack.c.b16 %v8808, %v8807
    %8873 = vmatpush.bf16.msra.mxu0 %v8816
    %8874 = vmatpush.bf16.msra.mxu0 %v8815
    %8875 = vmatpush.bf16.msra.mxu0 %v8814
    %8876 = vmatpush.bf16.msra.mxu0 %v8813
    %8877 = vmatpush.bf16.msra.mxu0 %v8812
    %8878 = vmatpush.bf16.msra.mxu0 %v8811
    %8879 = vmatpush.bf16.msra.mxu0 %v8810
    %8880 = vmatpush.bf16.msra.mxu0 %v8809
    %8881 = vmatmul.bf16.gmra.mxu0 %v8174
    %v8882 = vpop.f32.mrf.mxu0
    %v8883 = vadd.f32 %v8677, %v8882
    %v8884 = vpop.f32.mrf.mxu0
    %v8885 = vadd.f32 %v8679, %v8884
    %8886 = vdwg.mxu0
    %8887 = vmatpush.bf16.msra.mxu0 %v8824
    %8888 = vmatpush.bf16.msra.mxu0 %v8823
    %8889 = vmatpush.bf16.msra.mxu0 %v8822
    %8890 = vmatpush.bf16.msra.mxu0 %v8821
    %8891 = vmatpush.bf16.msra.mxu0 %v8820
    %8892 = vmatpush.bf16.msra.mxu0 %v8819
    %8893 = vmatpush.bf16.msra.mxu0 %v8818
    %8894 = vmatpush.bf16.msra.mxu0 %v8817
    %8895 = vmatmul.bf16.gmra.mxu0 %v8175
    %v8896 = vpop.f32.mrf.mxu0
    %v8897 = vadd.f32 %v8883, %v8896
    %v8898 = vpop.f32.mrf.mxu0
    %v8899 = vadd.f32 %v8885, %v8898
    %8900 = vdwg.mxu0
    %8901 = vmatpush.bf16.msra.mxu0 %v8832
    %8902 = vmatpush.bf16.msra.mxu0 %v8831
    %8903 = vmatpush.bf16.msra.mxu0 %v8830
    %8904 = vmatpush.bf16.msra.mxu0 %v8829
    %8905 = vmatpush.bf16.msra.mxu0 %v8828
    %8906 = vmatpush.bf16.msra.mxu0 %v8827
    %8907 = vmatpush.bf16.msra.mxu0 %v8826
    %8908 = vmatpush.bf16.msra.mxu0 %v8825
    %8909 = vmatmul.bf16.gmra.mxu0 %v8176
    %v8910 = vpop.f32.mrf.mxu0
    %v8911 = vadd.f32 %v8897, %v8910
    %v8912 = vpop.f32.mrf.mxu0
    %v8913 = vadd.f32 %v8899, %v8912
    %8914 = vdwg.mxu0
    %8915 = vmatpush.bf16.msra.mxu0 %v8840
    %8916 = vmatpush.bf16.msra.mxu0 %v8839
    %8917 = vmatpush.bf16.msra.mxu0 %v8838
    %8918 = vmatpush.bf16.msra.mxu0 %v8837
    %8919 = vmatpush.bf16.msra.mxu0 %v8836
    %8920 = vmatpush.bf16.msra.mxu0 %v8835
    %8921 = vmatpush.bf16.msra.mxu0 %v8834
    %8922 = vmatpush.bf16.msra.mxu0 %v8833
    %8923 = vmatmul.bf16.gmra.mxu0 %v8177
    %v8924 = vpop.f32.mrf.mxu0
    %v8925 = vadd.f32 %v8911, %v8924
    %v8926 = vpop.f32.mrf.mxu0
    %v8927 = vadd.f32 %v8913, %v8926
    %8928 = vdwg.mxu0
    %v8929 = vld [vmem:[%s8047 + $0x20] sm:$0xff]
    %v8930 = vld [vmem:[%s8047 + $0x28] sm:$0xff]
    %v8931 = vld [vmem:[%s8047 + $0x60] sm:$0xff]
    %v8932 = vld [vmem:[%s8047 + $0x68] sm:$0xff]
    %v8933 = vld [vmem:[%s8047 + $0xa0] sm:$0xff]
    %v8934 = vld [vmem:[%s8047 + $0xa8] sm:$0xff]
    %v8935 = vld [vmem:[%s8047 + $0xe0] sm:$0xff]
    %v8936 = vld [vmem:[%s8047 + $0xe8] sm:$0xff]
    %v8937 = vld [vmem:[%s8056 + $0x8] sm:$0xf]
    %v8939 = vperm.slane %v8937, 0
    %v8940 = vperm.slane %v8937, 1
    %v8941 = vperm.slane %v8937, 2
    %v8942 = vperm.slane %v8937, 3
    %v8955 = vunpack.c.l.b16 %v8929
    %v8956 = vunpack.c.h.b16 %v8929
    %v8957 = vunpack.c.l.b16 %v8930
    %v8958 = vunpack.c.h.b16 %v8930
    %v8959 = vunpack.c.l.b16 %v8931
    %v8960 = vunpack.c.h.b16 %v8931
    %v8961 = vunpack.c.l.b16 %v8932
    %v8962 = vunpack.c.h.b16 %v8932
    %v8963 = vunpack.c.l.b16 %v8933
    %v8964 = vunpack.c.h.b16 %v8933
    %v8965 = vunpack.c.l.b16 %v8934
    %v8966 = vunpack.c.h.b16 %v8934
    %v8967 = vunpack.c.l.b16 %v8935
    %v8968 = vunpack.c.h.b16 %v8935
    %v8969 = vunpack.c.l.b16 %v8936
    %v8970 = vunpack.c.h.b16 %v8936
    %v8971 = vpack.c.b16 %v8959, %v8955
    %v8972 = vpack.c.b16 %v8960, %v8956
    %v8973 = vpack.c.b16 %v8961, %v8957
    %v8974 = vpack.c.b16 %v8962, %v8958
    %v8975 = vpack.c.b16 %v8967, %v8963
    %v8976 = vpack.c.b16 %v8968, %v8964
    %v8977 = vpack.c.b16 %v8969, %v8965
    %v8978 = vpack.c.b16 %v8970, %v8966
    %8987 = vmatpush.bf16.msra.mxu0 0
    %8988 = vmatpush.bf16.msra.mxu0 0
    %8989 = vmatpush.bf16.msra.mxu0 0
    %8990 = vmatpush.bf16.msra.mxu0 0
    %8991 = vmatpush.bf16.msra.mxu0 0
    %8992 = vmatpush.bf16.msra.mxu0 0
    %8993 = vmatpush.bf16.msra.mxu0 %v8975
    %8994 = vmatpush.bf16.msra.mxu0 %v8971
    %8995 = vmatmul.bf16.gmra.mxu0 %v8108
    %v8996 = vpop.f32.mrf.mxu0
    %v8997 = vadd.f32 %v8939, %v8996
    %v8998 = vpop.f32.mrf.mxu0
    %v8999 = vadd.f32 %v8939, %v8998
    %9000 = vdwg.mxu0
    %9001 = vmatpush.bf16.msra.mxu0 0
    %9002 = vmatpush.bf16.msra.mxu0 0
    %9003 = vmatpush.bf16.msra.mxu0 0
    %9004 = vmatpush.bf16.msra.mxu0 0
    %9005 = vmatpush.bf16.msra.mxu0 0
    %9006 = vmatpush.bf16.msra.mxu0 0
    %9007 = vmatpush.bf16.msra.mxu0 %v8976
    %9008 = vmatpush.bf16.msra.mxu0 %v8972
    %9009 = vmatmul.bf16.gmra.mxu0 %v8108
    %v9010 = vpop.f32.mrf.mxu0
    %v9011 = vadd.f32 %v8940, %v9010
    %v9012 = vpop.f32.mrf.mxu0
    %v9013 = vadd.f32 %v8940, %v9012
    %9014 = vdwg.mxu0
    %9015 = vmatpush.bf16.msra.mxu0 0
    %9016 = vmatpush.bf16.msra.mxu0 0
    %9017 = vmatpush.bf16.msra.mxu0 0
    %9018 = vmatpush.bf16.msra.mxu0 0
    %9019 = vmatpush.bf16.msra.mxu0 0
    %9020 = vmatpush.bf16.msra.mxu0 0
    %9021 = vmatpush.bf16.msra.mxu0 %v8977
    %9022 = vmatpush.bf16.msra.mxu0 %v8973
    %9023 = vmatmul.bf16.gmra.mxu0 %v8108
    %v9024 = vpop.f32.mrf.mxu0
    %v9025 = vadd.f32 %v8941, %v9024
    %v9026 = vpop.f32.mrf.mxu0
    %v9027 = vadd.f32 %v8941, %v9026
    %9028 = vdwg.mxu0
    %9029 = vmatpush.bf16.msra.mxu0 0
    %9030 = vmatpush.bf16.msra.mxu0 0
    %9031 = vmatpush.bf16.msra.mxu0 0
    %9032 = vmatpush.bf16.msra.mxu0 0
    %9033 = vmatpush.bf16.msra.mxu0 0
    %9034 = vmatpush.bf16.msra.mxu0 0
    %9035 = vmatpush.bf16.msra.mxu0 %v8978
    %9036 = vmatpush.bf16.msra.mxu0 %v8974
    %9037 = vmatmul.bf16.gmra.mxu0 %v8108
    %v9038 = vpop.f32.mrf.mxu0
    %v9039 = vadd.f32 %v8942, %v9038
    %v9040 = vpop.f32.mrf.mxu0
    %v9041 = vadd.f32 %v8942, %v9040
    %9042 = vdwg.mxu0
    %v9043 = vmax.f32 %v8997, 0.0
    %v9044 = vmax.f32 %v9011, 0.0
    %v9045 = vmax.f32 %v9025, 0.0
    %v9046 = vmax.f32 %v9039, 0.0
    %v9047 = vmax.f32 %v8999, 0.0
    %v9048 = vmax.f32 %v9013, 0.0
    %v9049 = vmax.f32 %v9027, 0.0
    %v9050 = vmax.f32 %v9041, 0.0
    %v9051 = vpack.c.bf16 %v9047, %v9043
    %v9052 = vpack.c.bf16 %v9048, %v9044
    %v9053 = vpack.c.bf16 %v9049, %v9045
    %v9054 = vpack.c.bf16 %v9050, %v9046
    %v9055 = vld [vmem:[%s8178 + $0x200] sm:$0xf]
    %v9056 = vld [vmem:[%s8178 + $0x204] sm:$0xf]
    %v9057 = vld [vmem:[%s8178 + $0x208] sm:$0xf]
    %v9058 = vld [vmem:[%s8178 + $0x20c] sm:$0xf]
    %v9059 = vld [vmem:[%s8178 + $0x210] sm:$0xf]
    %v9060 = vld [vmem:[%s8178 + $0x214] sm:$0xf]
    %v9061 = vld [vmem:[%s8178 + $0x218] sm:$0xf]
    %v9062 = vld [vmem:[%s8178 + $0x21c] sm:$0xf]
    %v9063 = vld [vmem:[%s8178 + $0x220] sm:$0xf]
    %v9064 = vld [vmem:[%s8178 + $0x224] sm:$0xf]
    %v9065 = vld [vmem:[%s8178 + $0x228] sm:$0xf]
    %v9066 = vld [vmem:[%s8178 + $0x22c] sm:$0xf]
    %v9067 = vld [vmem:[%s8178 + $0x230] sm:$0xf]
    %v9068 = vld [vmem:[%s8178 + $0x234] sm:$0xf]
    %v9069 = vld [vmem:[%s8178 + $0x238] sm:$0xf]
    %v9070 = vld [vmem:[%s8178 + $0x23c] sm:$0xf]
    %v9071 = vld [vmem:[%s8178 + $0x240] sm:$0xf]
    %v9072 = vld [vmem:[%s8178 + $0x244] sm:$0xf]
    %v9073 = vld [vmem:[%s8178 + $0x248] sm:$0xf]
    %v9074 = vld [vmem:[%s8178 + $0x24c] sm:$0xf]
    %v9075 = vld [vmem:[%s8178 + $0x250] sm:$0xf]
    %v9076 = vld [vmem:[%s8178 + $0x254] sm:$0xf]
    %v9077 = vld [vmem:[%s8178 + $0x258] sm:$0xf]
    %v9078 = vld [vmem:[%s8178 + $0x25c] sm:$0xf]
    %v9079 = vld [vmem:[%s8178 + $0x260] sm:$0xf]
    %v9080 = vld [vmem:[%s8178 + $0x264] sm:$0xf]
    %v9081 = vld [vmem:[%s8178 + $0x268] sm:$0xf]
    %v9082 = vld [vmem:[%s8178 + $0x26c] sm:$0xf]
    %v9083 = vld [vmem:[%s8178 + $0x270] sm:$0xf]
    %v9084 = vld [vmem:[%s8178 + $0x274] sm:$0xf]
    %v9085 = vld [vmem:[%s8178 + $0x278] sm:$0xf]
    %v9086 = vld [vmem:[%s8178 + $0x27c] sm:$0xf]
    %v9087 = vld [vmem:[%s8178 + $0x280] sm:$0xf]
    %v9088 = vld [vmem:[%s8178 + $0x284] sm:$0xf]
    %v9089 = vld [vmem:[%s8178 + $0x288] sm:$0xf]
    %v9090 = vld [vmem:[%s8178 + $0x28c] sm:$0xf]
    %v9091 = vld [vmem:[%s8178 + $0x290] sm:$0xf]
    %v9092 = vld [vmem:[%s8178 + $0x294] sm:$0xf]
    %v9093 = vld [vmem:[%s8178 + $0x298] sm:$0xf]
    %v9094 = vld [vmem:[%s8178 + $0x29c] sm:$0xf]
    %v9095 = vld [vmem:[%s8178 + $0x2a0] sm:$0xf]
    %v9096 = vld [vmem:[%s8178 + $0x2a4] sm:$0xf]
    %v9097 = vld [vmem:[%s8178 + $0x2a8] sm:$0xf]
    %v9098 = vld [vmem:[%s8178 + $0x2ac] sm:$0xf]
    %v9099 = vld [vmem:[%s8178 + $0x2b0] sm:$0xf]
    %v9100 = vld [vmem:[%s8178 + $0x2b4] sm:$0xf]
    %v9101 = vld [vmem:[%s8178 + $0x2b8] sm:$0xf]
    %v9102 = vld [vmem:[%s8178 + $0x2bc] sm:$0xf]
    %v9103 = vld [vmem:[%s8178 + $0x2c0] sm:$0xf]
    %v9104 = vld [vmem:[%s8178 + $0x2c4] sm:$0xf]
    %v9105 = vld [vmem:[%s8178 + $0x2c8] sm:$0xf]
    %v9106 = vld [vmem:[%s8178 + $0x2cc] sm:$0xf]
    %v9107 = vld [vmem:[%s8178 + $0x2d0] sm:$0xf]
    %v9108 = vld [vmem:[%s8178 + $0x2d4] sm:$0xf]
    %v9109 = vld [vmem:[%s8178 + $0x2d8] sm:$0xf]
    %v9110 = vld [vmem:[%s8178 + $0x2dc] sm:$0xf]
    %v9111 = vld [vmem:[%s8178 + $0x2e0] sm:$0xf]
    %v9112 = vld [vmem:[%s8178 + $0x2e4] sm:$0xf]
    %v9113 = vld [vmem:[%s8178 + $0x2e8] sm:$0xf]
    %v9114 = vld [vmem:[%s8178 + $0x2ec] sm:$0xf]
    %v9115 = vld [vmem:[%s8178 + $0x2f0] sm:$0xf]
    %v9116 = vld [vmem:[%s8178 + $0x2f4] sm:$0xf]
    %v9117 = vld [vmem:[%s8178 + $0x2f8] sm:$0xf]
    %v9118 = vld [vmem:[%s8178 + $0x2fc] sm:$0xf]
    %v9183 = vunpack.c.l.b16 %v9055
    %v9184 = vunpack.c.l.b16 %v9056
    %v9185 = vunpack.c.l.b16 %v9057
    %v9186 = vunpack.c.l.b16 %v9058
    %v9187 = vunpack.c.l.b16 %v9059
    %v9188 = vunpack.c.l.b16 %v9060
    %v9189 = vunpack.c.l.b16 %v9061
    %v9190 = vunpack.c.l.b16 %v9062
    %v9191 = vunpack.c.l.b16 %v9063
    %v9192 = vunpack.c.l.b16 %v9064
    %v9193 = vunpack.c.l.b16 %v9065
    %v9194 = vunpack.c.l.b16 %v9066
    %v9195 = vunpack.c.l.b16 %v9067
    %v9196 = vunpack.c.l.b16 %v9068
    %v9197 = vunpack.c.l.b16 %v9069
    %v9198 = vunpack.c.l.b16 %v9070
    %v9199 = vunpack.c.l.b16 %v9071
    %v9200 = vunpack.c.l.b16 %v9072
    %v9201 = vunpack.c.l.b16 %v9073
    %v9202 = vunpack.c.l.b16 %v9074
    %v9203 = vunpack.c.l.b16 %v9075
    %v9204 = vunpack.c.l.b16 %v9076
    %v9205 = vunpack.c.l.b16 %v9077
    %v9206 = vunpack.c.l.b16 %v9078
    %v9207 = vunpack.c.l.b16 %v9079
    %v9208 = vunpack.c.l.b16 %v9080
    %v9209 = vunpack.c.l.b16 %v9081
    %v9210 = vunpack.c.l.b16 %v9082
    %v9211 = vunpack.c.l.b16 %v9083
    %v9212 = vunpack.c.l.b16 %v9084
    %v9213 = vunpack.c.l.b16 %v9085
    %v9214 = vunpack.c.l.b16 %v9086
    %v9215 = vunpack.c.l.b16 %v9087
    %v9216 = vunpack.c.l.b16 %v9088
    %v9217 = vunpack.c.l.b16 %v9089
    %v9218 = vunpack.c.l.b16 %v9090
    %v9219 = vunpack.c.l.b16 %v9091
    %v9220 = vunpack.c.l.b16 %v9092
    %v9221 = vunpack.c.l.b16 %v9093
    %v9222 = vunpack.c.l.b16 %v9094
    %v9223 = vunpack.c.l.b16 %v9095
    %v9224 = vunpack.c.l.b16 %v9096
    %v9225 = vunpack.c.l.b16 %v9097
    %v9226 = vunpack.c.l.b16 %v9098
    %v9227 = vunpack.c.l.b16 %v9099
    %v9228 = vunpack.c.l.b16 %v9100
    %v9229 = vunpack.c.l.b16 %v9101
    %v9230 = vunpack.c.l.b16 %v9102
    %v9231 = vunpack.c.l.b16 %v9103
    %v9232 = vunpack.c.l.b16 %v9104
    %v9233 = vunpack.c.l.b16 %v9105
    %v9234 = vunpack.c.l.b16 %v9106
    %v9235 = vunpack.c.l.b16 %v9107
    %v9236 = vunpack.c.l.b16 %v9108
    %v9237 = vunpack.c.l.b16 %v9109
    %v9238 = vunpack.c.l.b16 %v9110
    %v9239 = vunpack.c.l.b16 %v9111
    %v9240 = vunpack.c.l.b16 %v9112
    %v9241 = vunpack.c.l.b16 %v9113
    %v9242 = vunpack.c.l.b16 %v9114
    %v9243 = vunpack.c.l.b16 %v9115
    %v9244 = vunpack.c.l.b16 %v9116
    %v9245 = vunpack.c.l.b16 %v9117
    %v9246 = vunpack.c.l.b16 %v9118
    %v9247 = vpack.c.b16 %v9184, %v9183
    %v9248 = vpack.c.b16 %v9186, %v9185
    %v9249 = vpack.c.b16 %v9188, %v9187
    %v9250 = vpack.c.b16 %v9190, %v9189
    %v9251 = vpack.c.b16 %v9192, %v9191
    %v9252 = vpack.c.b16 %v9194, %v9193
    %v9253 = vpack.c.b16 %v9196, %v9195
    %v9254 = vpack.c.b16 %v9198, %v9197
    %v9255 = vpack.c.b16 %v9200, %v9199
    %v9256 = vpack.c.b16 %v9202, %v9201
    %v9257 = vpack.c.b16 %v9204, %v9203
    %v9258 = vpack.c.b16 %v9206, %v9205
    %v9259 = vpack.c.b16 %v9208, %v9207
    %v9260 = vpack.c.b16 %v9210, %v9209
    %v9261 = vpack.c.b16 %v9212, %v9211
    %v9262 = vpack.c.b16 %v9214, %v9213
    %v9263 = vpack.c.b16 %v9216, %v9215
    %v9264 = vpack.c.b16 %v9218, %v9217
    %v9265 = vpack.c.b16 %v9220, %v9219
    %v9266 = vpack.c.b16 %v9222, %v9221
    %v9267 = vpack.c.b16 %v9224, %v9223
    %v9268 = vpack.c.b16 %v9226, %v9225
    %v9269 = vpack.c.b16 %v9228, %v9227
    %v9270 = vpack.c.b16 %v9230, %v9229
    %v9271 = vpack.c.b16 %v9232, %v9231
    %v9272 = vpack.c.b16 %v9234, %v9233
    %v9273 = vpack.c.b16 %v9236, %v9235
    %v9274 = vpack.c.b16 %v9238, %v9237
    %v9275 = vpack.c.b16 %v9240, %v9239
    %v9276 = vpack.c.b16 %v9242, %v9241
    %v9277 = vpack.c.b16 %v9244, %v9243
    %v9278 = vpack.c.b16 %v9246, %v9245
    %9311 = vmatpush.bf16.msra.mxu0 %v9254
    %9312 = vmatpush.bf16.msra.mxu0 %v9253
    %9313 = vmatpush.bf16.msra.mxu0 %v9252
    %9314 = vmatpush.bf16.msra.mxu0 %v9251
    %9315 = vmatpush.bf16.msra.mxu0 %v9250
    %9316 = vmatpush.bf16.msra.mxu0 %v9249
    %9317 = vmatpush.bf16.msra.mxu0 %v9248
    %9318 = vmatpush.bf16.msra.mxu0 %v9247
    %9319 = vmatmul.bf16.gmra.mxu0 %v9051
    %v9320 = vpop.f32.mrf.mxu0
    %v9321 = vadd.f32 0.0, %v9320
    %v9322 = vpop.f32.mrf.mxu0
    %v9323 = vadd.f32 0.0, %v9322
    %9324 = vdwg.mxu0
    %9325 = vmatpush.bf16.msra.mxu0 %v9262
    %9326 = vmatpush.bf16.msra.mxu0 %v9261
    %9327 = vmatpush.bf16.msra.mxu0 %v9260
    %9328 = vmatpush.bf16.msra.mxu0 %v9259
    %9329 = vmatpush.bf16.msra.mxu0 %v9258
    %9330 = vmatpush.bf16.msra.mxu0 %v9257
    %9331 = vmatpush.bf16.msra.mxu0 %v9256
    %9332 = vmatpush.bf16.msra.mxu0 %v9255
    %9333 = vmatmul.bf16.gmra.mxu0 %v9052
    %v9334 = vpop.f32.mrf.mxu0
    %v9335 = vadd.f32 %v9321, %v9334
    %v9336 = vpop.f32.mrf.mxu0
    %v9337 = vadd.f32 %v9323, %v9336
    %9338 = vdwg.mxu0
    %9339 = vmatpush.bf16.msra.mxu0 %v9270
    %9340 = vmatpush.bf16.msra.mxu0 %v9269
    %9341 = vmatpush.bf16.msra.mxu0 %v9268
    %9342 = vmatpush.bf16.msra.mxu0 %v9267
    %9343 = vmatpush.bf16.msra.mxu0 %v9266
    %9344 = vmatpush.bf16.msra.mxu0 %v9265
    %9345 = vmatpush.bf16.msra.mxu0 %v9264
    %9346 = vmatpush.bf16.msra.mxu0 %v9263
    %9347 = vmatmul.bf16.gmra.mxu0 %v9053
    %v9348 = vpop.f32.mrf.mxu0
    %v9349 = vadd.f32 %v9335, %v9348
    %v9350 = vpop.f32.mrf.mxu0
    %v9351 = vadd.f32 %v9337, %v9350
    %9352 = vdwg.mxu0
    %9353 = vmatpush.bf16.msra.mxu0 %v9278
    %9354 = vmatpush.bf16.msra.mxu0 %v9277
    %9355 = vmatpush.bf16.msra.mxu0 %v9276
    %9356 = vmatpush.bf16.msra.mxu0 %v9275
    %9357 = vmatpush.bf16.msra.mxu0 %v9274
    %9358 = vmatpush.bf16.msra.mxu0 %v9273
    %9359 = vmatpush.bf16.msra.mxu0 %v9272
    %9360 = vmatpush.bf16.msra.mxu0 %v9271
    %9361 = vmatmul.bf16.gmra.mxu0 %v9054
    %v9362 = vpop.f32.mrf.mxu0
    %v9363 = vadd.f32 %v9349, %v9362
    %v9364 = vpop.f32.mrf.mxu0
    %v9365 = vadd.f32 %v9351, %v9364
    %9366 = vdwg.mxu0
    %v9367 = vadd.f32 %v8925, %v9363
    %v9368 = vadd.f32 %v8927, %v9365
    %v9369 = vld [vmem:[%s8047 + $0x30] sm:$0xff]
    %v9370 = vld [vmem:[%s8047 + $0x38] sm:$0xff]
    %v9371 = vld [vmem:[%s8047 + $0x70] sm:$0xff]
    %v9372 = vld [vmem:[%s8047 + $0x78] sm:$0xff]
    %v9373 = vld [vmem:[%s8047 + $0xb0] sm:$0xff]
    %v9374 = vld [vmem:[%s8047 + $0xb8] sm:$0xff]
    %v9375 = vld [vmem:[%s8047 + $0xf0] sm:$0xff]
    %v9376 = vld [vmem:[%s8047 + $0xf8] sm:$0xff]
    %v9377 = vld [vmem:[%s8056 + $0xc] sm:$0xf]
    %v9379 = vperm.slane %v9377, 0
    %v9380 = vperm.slane %v9377, 1
    %v9381 = vperm.slane %v9377, 2
    %v9382 = vperm.slane %v9377, 3
    %v9395 = vunpack.c.l.b16 %v9369
    %v9396 = vunpack.c.h.b16 %v9369
    %v9397 = vunpack.c.l.b16 %v9370
    %v9398 = vunpack.c.h.b16 %v9370
    %v9399 = vunpack.c.l.b16 %v9371
    %v9400 = vunpack.c.h.b16 %v9371
    %v9401 = vunpack.c.l.b16 %v9372
    %v9402 = vunpack.c.h.b16 %v9372
    %v9403 = vunpack.c.l.b16 %v9373
    %v9404 = vunpack.c.h.b16 %v9373
    %v9405 = vunpack.c.l.b16 %v9374
    %v9406 = vunpack.c.h.b16 %v9374
    %v9407 = vunpack.c.l.b16 %v9375
    %v9408 = vunpack.c.h.b16 %v9375
    %v9409 = vunpack.c.l.b16 %v9376
    %v9410 = vunpack.c.h.b16 %v9376
    %v9411 = vpack.c.b16 %v9399, %v9395
    %v9412 = vpack.c.b16 %v9400, %v9396
    %v9413 = vpack.c.b16 %v9401, %v9397
    %v9414 = vpack.c.b16 %v9402, %v9398
    %v9415 = vpack.c.b16 %v9407, %v9403
    %v9416 = vpack.c.b16 %v9408, %v9404
    %v9417 = vpack.c.b16 %v9409, %v9405
    %v9418 = vpack.c.b16 %v9410, %v9406
    %9427 = vmatpush.bf16.msra.mxu0 0
    %9428 = vmatpush.bf16.msra.mxu0 0
    %9429 = vmatpush.bf16.msra.mxu0 0
    %9430 = vmatpush.bf16.msra.mxu0 0
    %9431 = vmatpush.bf16.msra.mxu0 0
    %9432 = vmatpush.bf16.msra.mxu0 0
    %9433 = vmatpush.bf16.msra.mxu0 %v9415
    %9434 = vmatpush.bf16.msra.mxu0 %v9411
    %9435 = vmatmul.bf16.gmra.mxu0 %v8108
    %v9436 = vpop.f32.mrf.mxu0
    %v9437 = vadd.f32 %v9379, %v9436
    %v9438 = vpop.f32.mrf.mxu0
    %v9439 = vadd.f32 %v9379, %v9438
    %9440 = vdwg.mxu0
    %9441 = vmatpush.bf16.msra.mxu0 0
    %9442 = vmatpush.bf16.msra.mxu0 0
    %9443 = vmatpush.bf16.msra.mxu0 0
    %9444 = vmatpush.bf16.msra.mxu0 0
    %9445 = vmatpush.bf16.msra.mxu0 0
    %9446 = vmatpush.bf16.msra.mxu0 0
    %9447 = vmatpush.bf16.msra.mxu0 %v9416
    %9448 = vmatpush.bf16.msra.mxu0 %v9412
    %9449 = vmatmul.bf16.gmra.mxu0 %v8108
    %v9450 = vpop.f32.mrf.mxu0
    %v9451 = vadd.f32 %v9380, %v9450
    %v9452 = vpop.f32.mrf.mxu0
    %v9453 = vadd.f32 %v9380, %v9452
    %9454 = vdwg.mxu0
    %9455 = vmatpush.bf16.msra.mxu0 0
    %9456 = vmatpush.bf16.msra.mxu0 0
    %9457 = vmatpush.bf16.msra.mxu0 0
    %9458 = vmatpush.bf16.msra.mxu0 0
    %9459 = vmatpush.bf16.msra.mxu0 0
    %9460 = vmatpush.bf16.msra.mxu0 0
    %9461 = vmatpush.bf16.msra.mxu0 %v9417
    %9462 = vmatpush.bf16.msra.mxu0 %v9413
    %9463 = vmatmul.bf16.gmra.mxu0 %v8108
    %v9464 = vpop.f32.mrf.mxu0
    %v9465 = vadd.f32 %v9381, %v9464
    %v9466 = vpop.f32.mrf.mxu0
    %v9467 = vadd.f32 %v9381, %v9466
    %9468 = vdwg.mxu0
    %9469 = vmatpush.bf16.msra.mxu0 0
    %9470 = vmatpush.bf16.msra.mxu0 0
    %9471 = vmatpush.bf16.msra.mxu0 0
    %9472 = vmatpush.bf16.msra.mxu0 0
    %9473 = vmatpush.bf16.msra.mxu0 0
    %9474 = vmatpush.bf16.msra.mxu0 0
    %9475 = vmatpush.bf16.msra.mxu0 %v9418
    %9476 = vmatpush.bf16.msra.mxu0 %v9414
    %9477 = vmatmul.bf16.gmra.mxu0 %v8108
    %v9478 = vpop.f32.mrf.mxu0
    %v9479 = vadd.f32 %v9382, %v9478
    %v9480 = vpop.f32.mrf.mxu0
    %v9481 = vadd.f32 %v9382, %v9480
    %9482 = vdwg.mxu0
    %v9483 = vmax.f32 %v9437, 0.0
    %v9484 = vmax.f32 %v9451, 0.0
    %v9485 = vmax.f32 %v9465, 0.0
    %v9486 = vmax.f32 %v9479, 0.0
    %v9487 = vmax.f32 %v9439, 0.0
    %v9488 = vmax.f32 %v9453, 0.0
    %v9489 = vmax.f32 %v9467, 0.0
    %v9490 = vmax.f32 %v9481, 0.0
    %v9491 = vpack.c.bf16 %v9487, %v9483
    %v9492 = vpack.c.bf16 %v9488, %v9484
    %v9493 = vpack.c.bf16 %v9489, %v9485
    %v9494 = vpack.c.bf16 %v9490, %v9486
    %v9495 = vld [vmem:[%s8178 + $0x300] sm:$0xf]
    %v9496 = vld [vmem:[%s8178 + $0x304] sm:$0xf]
    %v9497 = vld [vmem:[%s8178 + $0x308] sm:$0xf]
    %v9498 = vld [vmem:[%s8178 + $0x30c] sm:$0xf]
    %v9499 = vld [vmem:[%s8178 + $0x310] sm:$0xf]
    %v9500 = vld [vmem:[%s8178 + $0x314] sm:$0xf]
    %v9501 = vld [vmem:[%s8178 + $0x318] sm:$0xf]
    %v9502 = vld [vmem:[%s8178 + $0x31c] sm:$0xf]
    %v9503 = vld [vmem:[%s8178 + $0x320] sm:$0xf]
    %v9504 = vld [vmem:[%s8178 + $0x324] sm:$0xf]
    %v9505 = vld [vmem:[%s8178 + $0x328] sm:$0xf]
    %v9506 = vld [vmem:[%s8178 + $0x32c] sm:$0xf]
    %v9507 = vld [vmem:[%s8178 + $0x330] sm:$0xf]
    %v9508 = vld [vmem:[%s8178 + $0x334] sm:$0xf]
    %v9509 = vld [vmem:[%s8178 + $0x338] sm:$0xf]
    %v9510 = vld [vmem:[%s8178 + $0x33c] sm:$0xf]
    %v9511 = vld [vmem:[%s8178 + $0x340] sm:$0xf]
    %v9512 = vld [vmem:[%s8178 + $0x344] sm:$0xf]
    %v9513 = vld [vmem:[%s8178 + $0x348] sm:$0xf]
    %v9514 = vld [vmem:[%s8178 + $0x34c] sm:$0xf]
    %v9515 = vld [vmem:[%s8178 + $0x350] sm:$0xf]
    %v9516 = vld [vmem:[%s8178 + $0x354] sm:$0xf]
    %v9517 = vld [vmem:[%s8178 + $0x358] sm:$0xf]
    %v9518 = vld [vmem:[%s8178 + $0x35c] sm:$0xf]
    %v9519 = vld [vmem:[%s8178 + $0x360] sm:$0xf]
    %v9520 = vld [vmem:[%s8178 + $0x364] sm:$0xf]
    %v9521 = vld [vmem:[%s8178 + $0x368] sm:$0xf]
    %v9522 = vld [vmem:[%s8178 + $0x36c] sm:$0xf]
    %v9523 = vld [vmem:[%s8178 + $0x370] sm:$0xf]
    %v9524 = vld [vmem:[%s8178 + $0x374] sm:$0xf]
    %v9525 = vld [vmem:[%s8178 + $0x378] sm:$0xf]
    %v9526 = vld [vmem:[%s8178 + $0x37c] sm:$0xf]
    %v9527 = vld [vmem:[%s8178 + $0x380] sm:$0xf]
    %v9528 = vld [vmem:[%s8178 + $0x384] sm:$0xf]
    %v9529 = vld [vmem:[%s8178 + $0x388] sm:$0xf]
    %v9530 = vld [vmem:[%s8178 + $0x38c] sm:$0xf]
    %v9531 = vld [vmem:[%s8178 + $0x390] sm:$0xf]
    %v9532 = vld [vmem:[%s8178 + $0x394] sm:$0xf]
    %v9533 = vld [vmem:[%s8178 + $0x398] sm:$0xf]
    %v9534 = vld [vmem:[%s8178 + $0x39c] sm:$0xf]
    %v9535 = vld [vmem:[%s8178 + $0x3a0] sm:$0xf]
    %v9536 = vld [vmem:[%s8178 + $0x3a4] sm:$0xf]
    %v9537 = vld [vmem:[%s8178 + $0x3a8] sm:$0xf]
    %v9538 = vld [vmem:[%s8178 + $0x3ac] sm:$0xf]
    %v9539 = vld [vmem:[%s8178 + $0x3b0] sm:$0xf]
    %v9540 = vld [vmem:[%s8178 + $0x3b4] sm:$0xf]
    %v9541 = vld [vmem:[%s8178 + $0x3b8] sm:$0xf]
    %v9542 = vld [vmem:[%s8178 + $0x3bc] sm:$0xf]
    %v9543 = vld [vmem:[%s8178 + $0x3c0] sm:$0xf]
    %v9544 = vld [vmem:[%s8178 + $0x3c4] sm:$0xf]
    %v9545 = vld [vmem:[%s8178 + $0x3c8] sm:$0xf]
    %v9546 = vld [vmem:[%s8178 + $0x3cc] sm:$0xf]
    %v9547 = vld [vmem:[%s8178 + $0x3d0] sm:$0xf]
    %v9548 = vld [vmem:[%s8178 + $0x3d4] sm:$0xf]
    %v9549 = vld [vmem:[%s8178 + $0x3d8] sm:$0xf]
    %v9550 = vld [vmem:[%s8178 + $0x3dc] sm:$0xf]
    %v9551 = vld [vmem:[%s8178 + $0x3e0] sm:$0xf]
    %v9552 = vld [vmem:[%s8178 + $0x3e4] sm:$0xf]
    %v9553 = vld [vmem:[%s8178 + $0x3e8] sm:$0xf]
    %v9554 = vld [vmem:[%s8178 + $0x3ec] sm:$0xf]
    %v9555 = vld [vmem:[%s8178 + $0x3f0] sm:$0xf]
    %v9556 = vld [vmem:[%s8178 + $0x3f4] sm:$0xf]
    %v9557 = vld [vmem:[%s8178 + $0x3f8] sm:$0xf]
    %v9558 = vld [vmem:[%s8178 + $0x3fc] sm:$0xf]
    %v9623 = vunpack.c.l.b16 %v9495
    %v9624 = vunpack.c.l.b16 %v9496
    %v9625 = vunpack.c.l.b16 %v9497
    %v9626 = vunpack.c.l.b16 %v9498
    %v9627 = vunpack.c.l.b16 %v9499
    %v9628 = vunpack.c.l.b16 %v9500
    %v9629 = vunpack.c.l.b16 %v9501
    %v9630 = vunpack.c.l.b16 %v9502
    %v9631 = vunpack.c.l.b16 %v9503
    %v9632 = vunpack.c.l.b16 %v9504
    %v9633 = vunpack.c.l.b16 %v9505
    %v9634 = vunpack.c.l.b16 %v9506
    %v9635 = vunpack.c.l.b16 %v9507
    %v9636 = vunpack.c.l.b16 %v9508
    %v9637 = vunpack.c.l.b16 %v9509
    %v9638 = vunpack.c.l.b16 %v9510
    %v9639 = vunpack.c.l.b16 %v9511
    %v9640 = vunpack.c.l.b16 %v9512
    %v9641 = vunpack.c.l.b16 %v9513
    %v9642 = vunpack.c.l.b16 %v9514
    %v9643 = vunpack.c.l.b16 %v9515
    %v9644 = vunpack.c.l.b16 %v9516
    %v9645 = vunpack.c.l.b16 %v9517
    %v9646 = vunpack.c.l.b16 %v9518
    %v9647 = vunpack.c.l.b16 %v9519
    %v9648 = vunpack.c.l.b16 %v9520
    %v9649 = vunpack.c.l.b16 %v9521
    %v9650 = vunpack.c.l.b16 %v9522
    %v9651 = vunpack.c.l.b16 %v9523
    %v9652 = vunpack.c.l.b16 %v9524
    %v9653 = vunpack.c.l.b16 %v9525
    %v9654 = vunpack.c.l.b16 %v9526
    %v9655 = vunpack.c.l.b16 %v9527
    %v9656 = vunpack.c.l.b16 %v9528
    %v9657 = vunpack.c.l.b16 %v9529
    %v9658 = vunpack.c.l.b16 %v9530
    %v9659 = vunpack.c.l.b16 %v9531
    %v9660 = vunpack.c.l.b16 %v9532
    %v9661 = vunpack.c.l.b16 %v9533
    %v9662 = vunpack.c.l.b16 %v9534
    %v9663 = vunpack.c.l.b16 %v9535
    %v9664 = vunpack.c.l.b16 %v9536
    %v9665 = vunpack.c.l.b16 %v9537
    %v9666 = vunpack.c.l.b16 %v9538
    %v9667 = vunpack.c.l.b16 %v9539
    %v9668 = vunpack.c.l.b16 %v9540
    %v9669 = vunpack.c.l.b16 %v9541
    %v9670 = vunpack.c.l.b16 %v9542
    %v9671 = vunpack.c.l.b16 %v9543
    %v9672 = vunpack.c.l.b16 %v9544
    %v9673 = vunpack.c.l.b16 %v9545
    %v9674 = vunpack.c.l.b16 %v9546
    %v9675 = vunpack.c.l.b16 %v9547
    %v9676 = vunpack.c.l.b16 %v9548
    %v9677 = vunpack.c.l.b16 %v9549
    %v9678 = vunpack.c.l.b16 %v9550
    %v9679 = vunpack.c.l.b16 %v9551
    %v9680 = vunpack.c.l.b16 %v9552
    %v9681 = vunpack.c.l.b16 %v9553
    %v9682 = vunpack.c.l.b16 %v9554
    %v9683 = vunpack.c.l.b16 %v9555
    %v9684 = vunpack.c.l.b16 %v9556
    %v9685 = vunpack.c.l.b16 %v9557
    %v9686 = vunpack.c.l.b16 %v9558
    %v9687 = vpack.c.b16 %v9624, %v9623
    %v9688 = vpack.c.b16 %v9626, %v9625
    %v9689 = vpack.c.b16 %v9628, %v9627
    %v9690 = vpack.c.b16 %v9630, %v9629
    %v9691 = vpack.c.b16 %v9632, %v9631
    %v9692 = vpack.c.b16 %v9634, %v9633
    %v9693 = vpack.c.b16 %v9636, %v9635
    %v9694 = vpack.c.b16 %v9638, %v9637
    %v9695 = vpack.c.b16 %v9640, %v9639
    %v9696 = vpack.c.b16 %v9642, %v9641
    %v9697 = vpack.c.b16 %v9644, %v9643
    %v9698 = vpack.c.b16 %v9646, %v9645
    %v9699 = vpack.c.b16 %v9648, %v9647
    %v9700 = vpack.c.b16 %v9650, %v9649
    %v9701 = vpack.c.b16 %v9652, %v9651
    %v9702 = vpack.c.b16 %v9654, %v9653
    %v9703 = vpack.c.b16 %v9656, %v9655
    %v9704 = vpack.c.b16 %v9658, %v9657
    %v9705 = vpack.c.b16 %v9660, %v9659
    %v9706 = vpack.c.b16 %v9662, %v9661
    %v9707 = vpack.c.b16 %v9664, %v9663
    %v9708 = vpack.c.b16 %v9666, %v9665
    %v9709 = vpack.c.b16 %v9668, %v9667
    %v9710 = vpack.c.b16 %v9670, %v9669
    %v9711 = vpack.c.b16 %v9672, %v9671
    %v9712 = vpack.c.b16 %v9674, %v9673
    %v9713 = vpack.c.b16 %v9676, %v9675
    %v9714 = vpack.c.b16 %v9678, %v9677
    %v9715 = vpack.c.b16 %v9680, %v9679
    %v9716 = vpack.c.b16 %v9682, %v9681
    %v9717 = vpack.c.b16 %v9684, %v9683
    %v9718 = vpack.c.b16 %v9686, %v9685
    %9751 = vmatpush.bf16.msra.mxu0 %v9694
    %9752 = vmatpush.bf16.msra.mxu0 %v9693
    %9753 = vmatpush.bf16.msra.mxu0 %v9692
    %9754 = vmatpush.bf16.msra.mxu0 %v9691
    %9755 = vmatpush.bf16.msra.mxu0 %v9690
    %9756 = vmatpush.bf16.msra.mxu0 %v9689
    %9757 = vmatpush.bf16.msra.mxu0 %v9688
    %9758 = vmatpush.bf16.msra.mxu0 %v9687
    %9759 = vmatmul.bf16.gmra.mxu0 %v9491
    %v9760 = vpop.f32.mrf.mxu0
    %v9761 = vadd.f32 0.0, %v9760
    %v9762 = vpop.f32.mrf.mxu0
    %v9763 = vadd.f32 0.0, %v9762
    %9764 = vdwg.mxu0
    %9765 = vmatpush.bf16.msra.mxu0 %v9702
    %9766 = vmatpush.bf16.msra.mxu0 %v9701
    %9767 = vmatpush.bf16.msra.mxu0 %v9700
    %9768 = vmatpush.bf16.msra.mxu0 %v9699
    %9769 = vmatpush.bf16.msra.mxu0 %v9698
    %9770 = vmatpush.bf16.msra.mxu0 %v9697
    %9771 = vmatpush.bf16.msra.mxu0 %v9696
    %9772 = vmatpush.bf16.msra.mxu0 %v9695
    %9773 = vmatmul.bf16.gmra.mxu0 %v9492
    %v9774 = vpop.f32.mrf.mxu0
    %v9775 = vadd.f32 %v9761, %v9774
    %v9776 = vpop.f32.mrf.mxu0
    %v9777 = vadd.f32 %v9763, %v9776
    %9778 = vdwg.mxu0
    %9779 = vmatpush.bf16.msra.mxu0 %v9710
    %9780 = vmatpush.bf16.msra.mxu0 %v9709
    %9781 = vmatpush.bf16.msra.mxu0 %v9708
    %9782 = vmatpush.bf16.msra.mxu0 %v9707
    %9783 = vmatpush.bf16.msra.mxu0 %v9706
    %9784 = vmatpush.bf16.msra.mxu0 %v9705
    %9785 = vmatpush.bf16.msra.mxu0 %v9704
    %9786 = vmatpush.bf16.msra.mxu0 %v9703
    %9787 = vmatmul.bf16.gmra.mxu0 %v9493
    %v9788 = vpop.f32.mrf.mxu0
    %v9789 = vadd.f32 %v9775, %v9788
    %v9790 = vpop.f32.mrf.mxu0
    %v9791 = vadd.f32 %v9777, %v9790
    %9792 = vdwg.mxu0
    %9793 = vmatpush.bf16.msra.mxu0 %v9718
    %9794 = vmatpush.bf16.msra.mxu0 %v9717
    %9795 = vmatpush.bf16.msra.mxu0 %v9716
    %9796 = vmatpush.bf16.msra.mxu0 %v9715
    %9797 = vmatpush.bf16.msra.mxu0 %v9714
    %9798 = vmatpush.bf16.msra.mxu0 %v9713
    %9799 = vmatpush.bf16.msra.mxu0 %v9712
    %9800 = vmatpush.bf16.msra.mxu0 %v9711
    %9801 = vmatmul.bf16.gmra.mxu0 %v9494
    %v9802 = vpop.f32.mrf.mxu0
    %v9803 = vadd.f32 %v9789, %v9802
    %v9804 = vpop.f32.mrf.mxu0
    %v9805 = vadd.f32 %v9791, %v9804
    %9806 = vdwg.mxu0
    %v9807 = vadd.f32 %v9367, %v9803
    %v9808 = vadd.f32 %v9368, %v9805
    %v9810 = vperm.slane %v5214, 0
    %v9812 = vadd.f32 %v9807, %v9810
    %v9813 = vadd.f32 %v9808, %v9810
    %v9816 = vrot.slane %v9812, 2
    %v9817 = vrot.slane %v9812, 4
    %v9818 = vrot.slane %v9812, 6
    %v9819 = vrot.slane %v9813, 2
    %v9820 = vrot.slane %v9813, 4
    %v9821 = vrot.slane %v9813, 6
    %v9828 = vadd.f32 %v8011, %v9812
    %v9829 = vadd.f32 %v8012, %v9816
    %v9830 = vadd.f32 %v8013, %v9817
    %v9831 = vadd.f32 %v8014, %v9818
    %v9832 = vadd.f32 %v8015, %v9813
    %v9833 = vadd.f32 %v8016, %v9819
    %v9834 = vadd.f32 %v8017, %v9820
    %v9835 = vadd.f32 %v8018, %v9821
    %9844 = vst [vmem:[#allocation1] ss:$4 sm:$0xff] %v9828
    %s9845 = scalar_lea.vmem [#allocation1], 1
    %9846 = vst [vmem:[%s9845] ss:$4 sm:$0xff] %v9829
    %s9847 = scalar_lea.vmem [#allocation1], 2
    %9848 = vst [vmem:[%s9847] ss:$4 sm:$0xff] %v9830
    %s9849 = scalar_lea.vmem [#allocation1], 3
    %9850 = vst [vmem:[%s9849] ss:$4 sm:$0xff] %v9831
    %s9851 = scalar_lea.vmem [#allocation1], 32
    %9852 = vst [vmem:[%s9851] ss:$4 sm:$0xff] %v9832
    %s9853 = scalar_lea.vmem [#allocation1], 33
    %9854 = vst [vmem:[%s9853] ss:$4 sm:$0xff] %v9833
    %s9855 = scalar_lea.vmem [#allocation1], 34
    %9856 = vst [vmem:[%s9855] ss:$4 sm:$0xff] %v9834
    %s9857 = scalar_lea.vmem [#allocation1], 35
    %9858 = vst [vmem:[%s9857] ss:$4 sm:$0xff] %v9835
    %v9859 = vld.sshfl [vmem:[#allocation1] sm:$0xff pattern:$0x73625140]
    %v9860 = vld.sshfl [vmem:[#allocation1 + $0x20] sm:$0xff pattern:$0x73625140]
    %v9863 = vsel %vm400, %v9859, 0.0
    %9864 = vadd.xlane.f32.xlu0 %v9863
    %v9865 = vpop.xlane.xlu0 %9864
    %v9866 = vsel %vm400, %v9860, 0.0
    %9867 = vadd.xlane.f32.xlu0 %v9866
    %v9868 = vpop.xlane.xlu0 %9867
    %v9869 = vmul.f32 %v9865, %v2959
    %v9870 = vmul.f32 %v9868, %v2959
    %v9874 = vunpack.c.l.s4 269488144
    %v9875 = vunpack.c.0.s8 %v9874
    %v9876 = vperm.slane %v9869, %v9875
    %v9878 = vunpack.c.l.s4 842150450
    %v9879 = vunpack.c.0.s8 %v9878
    %v9880 = vperm.slane %v9869, %v9879
    %v9882 = vunpack.c.l.s4 1414812756
    %v9883 = vunpack.c.0.s8 %v9882
    %v9884 = vperm.slane %v9869, %v9883
    %v9886 = vunpack.c.l.s4 1987475062
    %v9887 = vunpack.c.0.s8 %v9886
    %v9888 = vperm.slane %v9869, %v9887
    %v9890 = vunpack.c.l.s4 269488144
    %v9891 = vunpack.c.0.s8 %v9890
    %v9892 = vperm.slane %v9870, %v9891
    %v9894 = vunpack.c.l.s4 842150450
    %v9895 = vunpack.c.0.s8 %v9894
    %v9896 = vperm.slane %v9870, %v9895
    %v9898 = vunpack.c.l.s4 1414812756
    %v9899 = vunpack.c.0.s8 %v9898
    %v9900 = vperm.slane %v9870, %v9899
    %v9902 = vunpack.c.l.s4 1987475062
    %v9903 = vunpack.c.0.s8 %v9902
    %v9904 = vperm.slane %v9870, %v9903
    %v9913 = vsub.f32 %v9828, %v9876
    %v9914 = vsub.f32 %v9829, %v9880
    %v9915 = vsub.f32 %v9830, %v9884
    %v9916 = vsub.f32 %v9831, %v9888
    %v9917 = vsub.f32 %v9832, %v9892
    %v9918 = vsub.f32 %v9833, %v9896
    %v9919 = vsub.f32 %v9834, %v9900
    %v9920 = vsub.f32 %v9835, %v9904
    %v9921 = vmul.f32 %v9913, %v9913
    %v9922 = vmul.f32 %v9914, %v9914
    %v9923 = vmul.f32 %v9915, %v9915
    %v9924 = vmul.f32 %v9916, %v9916
    %v9925 = vmul.f32 %v9917, %v9917
    %v9926 = vmul.f32 %v9918, %v9918
    %v9927 = vmul.f32 %v9919, %v9919
    %v9928 = vmul.f32 %v9920, %v9920
    %9937 = vst [vmem:[#allocation1] ss:$4 sm:$0xff] %v9921
    %s9938 = scalar_lea.vmem [#allocation1], 1
    %9939 = vst [vmem:[%s9938] ss:$4 sm:$0xff] %v9922
    %s9940 = scalar_lea.vmem [#allocation1], 2
    %9941 = vst [vmem:[%s9940] ss:$4 sm:$0xff] %v9923
    %s9942 = scalar_lea.vmem [#allocation1], 3
    %9943 = vst [vmem:[%s9942] ss:$4 sm:$0xff] %v9924
    %s9944 = scalar_lea.vmem [#allocation1], 32
    %9945 = vst [vmem:[%s9944] ss:$4 sm:$0xff] %v9925
    %s9946 = scalar_lea.vmem [#allocation1], 33
    %9947 = vst [vmem:[%s9946] ss:$4 sm:$0xff] %v9926
    %s9948 = scalar_lea.vmem [#allocation1], 34
    %9949 = vst [vmem:[%s9948] ss:$4 sm:$0xff] %v9927
    %s9950 = scalar_lea.vmem [#allocation1], 35
    %9951 = vst [vmem:[%s9950] ss:$4 sm:$0xff] %v9928
    %v9952 = vld.sshfl [vmem:[#allocation1] sm:$0xff pattern:$0x73625140]
    %v9953 = vld.sshfl [vmem:[#allocation1 + $0x20] sm:$0xff pattern:$0x73625140]
    %v9956 = vsel %vm400, %v9952, 0.0
    %9957 = vadd.xlane.f32.xlu0 %v9956
    %v9958 = vpop.xlane.xlu0 %9957
    %v9959 = vsel %vm400, %v9953, 0.0
    %9960 = vadd.xlane.f32.xlu0 %v9959
    %v9961 = vpop.xlane.xlu0 %9960
    %v9962 = vmul.f32 %v9958, %v2959
    %v9963 = vmul.f32 %v9961, %v2959
    %v9964 = vadd.f32 %v9962, 1e-05
    %v9965 = vadd.f32 %v9963, 1e-05
    %v9966 = vrsqrt.pop %v9964
    %v9967 = vmul.f32 %v9966, %v9964
    %v9968 = vmul.f32 %v9967, %v9966
    %v9969 = vmul.f32 0.5, %v9968
    %v9970 = vsub.f32 1.5, %v9969
    %v9971 = vmul.f32 %v9966, %v9970
    %vm9972 = vweird.f32 %v9964
    %vm9973 = vweird.f32 %v9966
    %vm9974 = vmor %vm9972, %vm9973
    %v9975 = vsel %vm9974, %v9966, %v9971
    %v9976 = vrsqrt.pop %v9965
    %v9977 = vmul.f32 %v9976, %v9965
    %v9978 = vmul.f32 %v9977, %v9976
    %v9979 = vmul.f32 0.5, %v9978
    %v9980 = vsub.f32 1.5, %v9979
    %v9981 = vmul.f32 %v9976, %v9980
    %vm9982 = vweird.f32 %v9965
    %vm9983 = vweird.f32 %v9976
    %vm9984 = vmor %vm9982, %vm9983
    %v9985 = vsel %vm9984, %v9976, %v9981
    %v9989 = vunpack.c.l.s4 269488144
    %v9990 = vunpack.c.0.s8 %v9989
    %v9991 = vperm.slane %v9975, %v9990
    %v9993 = vunpack.c.l.s4 842150450
    %v9994 = vunpack.c.0.s8 %v9993
    %v9995 = vperm.slane %v9975, %v9994
    %v9997 = vunpack.c.l.s4 1414812756
    %v9998 = vunpack.c.0.s8 %v9997
    %v9999 = vperm.slane %v9975, %v9998
    %v10001 = vunpack.c.l.s4 1987475062
    %v10002 = vunpack.c.0.s8 %v10001
    %v10003 = vperm.slane %v9975, %v10002
    %v10005 = vunpack.c.l.s4 269488144
    %v10006 = vunpack.c.0.s8 %v10005
    %v10007 = vperm.slane %v9985, %v10006
    %v10009 = vunpack.c.l.s4 842150450
    %v10010 = vunpack.c.0.s8 %v10009
    %v10011 = vperm.slane %v9985, %v10010
    %v10013 = vunpack.c.l.s4 1414812756
    %v10014 = vunpack.c.0.s8 %v10013
    %v10015 = vperm.slane %v9985, %v10014
    %v10017 = vunpack.c.l.s4 1987475062
    %v10018 = vunpack.c.0.s8 %v10017
    %v10019 = vperm.slane %v9985, %v10018
    %v10028 = vmul.f32 %v9913, %v9991
    %v10029 = vmul.f32 %v9914, %v9995
    %v10030 = vmul.f32 %v9915, %v9999
    %v10031 = vmul.f32 %v9916, %v10003
    %v10032 = vmul.f32 %v9917, %v10007
    %v10033 = vmul.f32 %v9918, %v10011
    %v10034 = vmul.f32 %v9919, %v10015
    %v10035 = vmul.f32 %v9920, %v10019
    %v10037 = vperm.slane %v5220, 0
    %v10039 = vrot.slane %v10037, 2
    %v10040 = vrot.slane %v10037, 4
    %v10041 = vrot.slane %v10037, 6
    %v10045 = vmul.f32 %v10028, %v10037
    %v10046 = vmul.f32 %v10029, %v10039
    %v10047 = vmul.f32 %v10030, %v10040
    %v10048 = vmul.f32 %v10031, %v10041
    %v10049 = vmul.f32 %v10032, %v10037
    %v10050 = vmul.f32 %v10033, %v10039
    %v10051 = vmul.f32 %v10034, %v10040
    %v10052 = vmul.f32 %v10035, %v10041
    %v10054 = vperm.slane %v5222, 0
    %v10056 = vrot.slane %v10054, 2
    %v10057 = vrot.slane %v10054, 4
    %v10058 = vrot.slane %v10054, 6
    %v10062 = vadd.f32 %v10045, %v10054
    %v10063 = vadd.f32 %v10046, %v10056
    %v10064 = vadd.f32 %v10047, %v10057
    %v10065 = vadd.f32 %v10048, %v10058
    %v10066 = vadd.f32 %v10049, %v10054
    %v10067 = vadd.f32 %v10050, %v10056
    %v10068 = vadd.f32 %v10051, %v10057
    %v10069 = vadd.f32 %v10052, %v10058
    %v10070 = vld [vmem:[%s15] sm:$0xff]
    %v10071 = vld [vmem:[%s15 + $0x8] sm:$0xff]
    %v10072 = vld [vmem:[%s15 + $0x10] sm:$0xff]
    %v10073 = vld [vmem:[%s15 + $0x18] sm:$0xff]
    %v10074 = vld [vmem:[%s15 + $0x20] sm:$0xff]
    %v10075 = vld [vmem:[%s15 + $0x28] sm:$0xff]
    %v10076 = vld [vmem:[%s15 + $0x30] sm:$0xff]
    %v10077 = vld [vmem:[%s15 + $0x38] sm:$0xff]
    %v10078 = vld [vmem:[%s15 + $0x40] sm:$0xff]
    %v10079 = vld [vmem:[%s15 + $0x48] sm:$0xff]
    %v10080 = vld [vmem:[%s15 + $0x50] sm:$0xff]
    %v10081 = vld [vmem:[%s15 + $0x58] sm:$0xff]
    %v10082 = vld [vmem:[%s15 + $0x60] sm:$0xff]
    %v10083 = vld [vmem:[%s15 + $0x68] sm:$0xff]
    %v10084 = vld [vmem:[%s15 + $0x70] sm:$0xff]
    %v10085 = vld [vmem:[%s15 + $0x78] sm:$0xff]
    %v10086 = vld [vmem:[%s15 + $0x80] sm:$0xff]
    %v10087 = vld [vmem:[%s15 + $0x88] sm:$0xff]
    %v10088 = vld [vmem:[%s15 + $0x90] sm:$0xff]
    %v10089 = vld [vmem:[%s15 + $0x98] sm:$0xff]
    %v10090 = vld [vmem:[%s15 + $0xa0] sm:$0xff]
    %v10091 = vld [vmem:[%s15 + $0xa8] sm:$0xff]
    %v10092 = vld [vmem:[%s15 + $0xb0] sm:$0xff]
    %v10093 = vld [vmem:[%s15 + $0xb8] sm:$0xff]
    %v10094 = vld [vmem:[%s15 + $0xc0] sm:$0xff]
    %v10095 = vld [vmem:[%s15 + $0xc8] sm:$0xff]
    %v10096 = vld [vmem:[%s15 + $0xd0] sm:$0xff]
    %v10097 = vld [vmem:[%s15 + $0xd8] sm:$0xff]
    %v10098 = vld [vmem:[%s15 + $0xe0] sm:$0xff]
    %v10099 = vld [vmem:[%s15 + $0xe8] sm:$0xff]
    %v10100 = vld [vmem:[%s15 + $0xf0] sm:$0xff]
    %v10101 = vld [vmem:[%s15 + $0xf8] sm:$0xff]
    %v10103 = vsel %vm400, %v10062, 0
    %10105 = vmatpush.msra.mxu0 0.0
    %10106 = vmatpush.msra.mxu0 0.0
    %10107 = vmatpush.msra.mxu0 0.0
    %10108 = vmatpush.msra.mxu0 0.0
    %10109 = vmatpush.msra.mxu0 0.0
    %10110 = vmatpush.msra.mxu0 0.0
    %10111 = vmatpush.msra.mxu0 0.0
    %10112 = vmatpush.msra.mxu0 0.0
    %10113 = vmatpush.msra.mxu0 0.0
    %10114 = vmatpush.msra.mxu0 0.0
    %10115 = vmatpush.msra.mxu0 0.0
    %10116 = vmatpush.msra.mxu0 0.0
    %10117 = vmatpush.msra.mxu0 %v10073
    %10118 = vmatpush.msra.mxu0 %v10072
    %10119 = vmatpush.msra.mxu0 %v10071
    %10120 = vmatpush.msra.mxu0 %v10070
    %10121 = vmatmul.f32.gmra.mxu0 %v10103
    %v10122 = vpop.f32.mrf.mxu0
    %v10123 = vadd.f32 0.0, %v10122
    %10124 = vdwg.mxu0
    %v10126 = vsel %vm400, %v10063, 0
    %10128 = vmatpush.msra.mxu0 0.0
    %10129 = vmatpush.msra.mxu0 0.0
    %10130 = vmatpush.msra.mxu0 0.0
    %10131 = vmatpush.msra.mxu0 0.0
    %10132 = vmatpush.msra.mxu0 0.0
    %10133 = vmatpush.msra.mxu0 0.0
    %10134 = vmatpush.msra.mxu0 0.0
    %10135 = vmatpush.msra.mxu0 0.0
    %10136 = vmatpush.msra.mxu0 0.0
    %10137 = vmatpush.msra.mxu0 0.0
    %10138 = vmatpush.msra.mxu0 0.0
    %10139 = vmatpush.msra.mxu0 0.0
    %10140 = vmatpush.msra.mxu0 %v10077
    %10141 = vmatpush.msra.mxu0 %v10076
    %10142 = vmatpush.msra.mxu0 %v10075
    %10143 = vmatpush.msra.mxu0 %v10074
    %10144 = vmatmul.f32.gmra.mxu0 %v10126
    %v10145 = vpop.f32.mrf.mxu0
    %v10146 = vadd.f32 0.0, %v10145
    %10147 = vdwg.mxu0
    %v10149 = vsel %vm400, %v10064, 0
    %10151 = vmatpush.msra.mxu0 0.0
    %10152 = vmatpush.msra.mxu0 0.0
    %10153 = vmatpush.msra.mxu0 0.0
    %10154 = vmatpush.msra.mxu0 0.0
    %10155 = vmatpush.msra.mxu0 0.0
    %10156 = vmatpush.msra.mxu0 0.0
    %10157 = vmatpush.msra.mxu0 0.0
    %10158 = vmatpush.msra.mxu0 0.0
    %10159 = vmatpush.msra.mxu0 0.0
    %10160 = vmatpush.msra.mxu0 0.0
    %10161 = vmatpush.msra.mxu0 0.0
    %10162 = vmatpush.msra.mxu0 0.0
    %10163 = vmatpush.msra.mxu0 %v10081
    %10164 = vmatpush.msra.mxu0 %v10080
    %10165 = vmatpush.msra.mxu0 %v10079
    %10166 = vmatpush.msra.mxu0 %v10078
    %10167 = vmatmul.f32.gmra.mxu0 %v10149
    %v10168 = vpop.f32.mrf.mxu0
    %v10169 = vadd.f32 0.0, %v10168
    %10170 = vdwg.mxu0
    %v10172 = vsel %vm400, %v10065, 0
    %10174 = vmatpush.msra.mxu0 0.0
    %10175 = vmatpush.msra.mxu0 0.0
    %10176 = vmatpush.msra.mxu0 0.0
    %10177 = vmatpush.msra.mxu0 0.0
    %10178 = vmatpush.msra.mxu0 0.0
    %10179 = vmatpush.msra.mxu0 0.0
    %10180 = vmatpush.msra.mxu0 0.0
    %10181 = vmatpush.msra.mxu0 0.0
    %10182 = vmatpush.msra.mxu0 0.0
    %10183 = vmatpush.msra.mxu0 0.0
    %10184 = vmatpush.msra.mxu0 0.0
    %10185 = vmatpush.msra.mxu0 0.0
    %10186 = vmatpush.msra.mxu0 %v10085
    %10187 = vmatpush.msra.mxu0 %v10084
    %10188 = vmatpush.msra.mxu0 %v10083
    %10189 = vmatpush.msra.mxu0 %v10082
    %10190 = vmatmul.f32.gmra.mxu0 %v10172
    %v10191 = vpop.f32.mrf.mxu0
    %v10192 = vadd.f32 0.0, %v10191
    %10193 = vdwg.mxu0
    %v10195 = vsel %vm400, %v10066, 0
    %10197 = vmatpush.msra.mxu0 0.0
    %10198 = vmatpush.msra.mxu0 0.0
    %10199 = vmatpush.msra.mxu0 0.0
    %10200 = vmatpush.msra.mxu0 0.0
    %10201 = vmatpush.msra.mxu0 0.0
    %10202 = vmatpush.msra.mxu0 0.0
    %10203 = vmatpush.msra.mxu0 0.0
    %10204 = vmatpush.msra.mxu0 0.0
    %10205 = vmatpush.msra.mxu0 0.0
    %10206 = vmatpush.msra.mxu0 0.0
    %10207 = vmatpush.msra.mxu0 0.0
    %10208 = vmatpush.msra.mxu0 0.0
    %10209 = vmatpush.msra.mxu0 %v10089
    %10210 = vmatpush.msra.mxu0 %v10088
    %10211 = vmatpush.msra.mxu0 %v10087
    %10212 = vmatpush.msra.mxu0 %v10086
    %10213 = vmatmul.f32.gmra.mxu0 %v10195
    %v10214 = vpop.f32.mrf.mxu0
    %v10215 = vadd.f32 0.0, %v10214
    %10216 = vdwg.mxu0
    %v10218 = vsel %vm400, %v10067, 0
    %10220 = vmatpush.msra.mxu0 0.0
    %10221 = vmatpush.msra.mxu0 0.0
    %10222 = vmatpush.msra.mxu0 0.0
    %10223 = vmatpush.msra.mxu0 0.0
    %10224 = vmatpush.msra.mxu0 0.0
    %10225 = vmatpush.msra.mxu0 0.0
    %10226 = vmatpush.msra.mxu0 0.0
    %10227 = vmatpush.msra.mxu0 0.0
    %10228 = vmatpush.msra.mxu0 0.0
    %10229 = vmatpush.msra.mxu0 0.0
    %10230 = vmatpush.msra.mxu0 0.0
    %10231 = vmatpush.msra.mxu0 0.0
    %10232 = vmatpush.msra.mxu0 %v10093
    %10233 = vmatpush.msra.mxu0 %v10092
    %10234 = vmatpush.msra.mxu0 %v10091
    %10235 = vmatpush.msra.mxu0 %v10090
    %10236 = vmatmul.f32.gmra.mxu0 %v10218
    %v10237 = vpop.f32.mrf.mxu0
    %v10238 = vadd.f32 0.0, %v10237
    %10239 = vdwg.mxu0
    %v10241 = vsel %vm400, %v10068, 0
    %10243 = vmatpush.msra.mxu0 0.0
    %10244 = vmatpush.msra.mxu0 0.0
    %10245 = vmatpush.msra.mxu0 0.0
    %10246 = vmatpush.msra.mxu0 0.0
    %10247 = vmatpush.msra.mxu0 0.0
    %10248 = vmatpush.msra.mxu0 0.0
    %10249 = vmatpush.msra.mxu0 0.0
    %10250 = vmatpush.msra.mxu0 0.0
    %10251 = vmatpush.msra.mxu0 0.0
    %10252 = vmatpush.msra.mxu0 0.0
    %10253 = vmatpush.msra.mxu0 0.0
    %10254 = vmatpush.msra.mxu0 0.0
    %10255 = vmatpush.msra.mxu0 %v10097
    %10256 = vmatpush.msra.mxu0 %v10096
    %10257 = vmatpush.msra.mxu0 %v10095
    %10258 = vmatpush.msra.mxu0 %v10094
    %10259 = vmatmul.f32.gmra.mxu0 %v10241
    %v10260 = vpop.f32.mrf.mxu0
    %v10261 = vadd.f32 0.0, %v10260
    %10262 = vdwg.mxu0
    %v10264 = vsel %vm400, %v10069, 0
    %10266 = vmatpush.msra.mxu0 0.0
    %10267 = vmatpush.msra.mxu0 0.0
    %10268 = vmatpush.msra.mxu0 0.0
    %10269 = vmatpush.msra.mxu0 0.0
    %10270 = vmatpush.msra.mxu0 0.0
    %10271 = vmatpush.msra.mxu0 0.0
    %10272 = vmatpush.msra.mxu0 0.0
    %10273 = vmatpush.msra.mxu0 0.0
    %10274 = vmatpush.msra.mxu0 0.0
    %10275 = vmatpush.msra.mxu0 0.0
    %10276 = vmatpush.msra.mxu0 0.0
    %10277 = vmatpush.msra.mxu0 0.0
    %10278 = vmatpush.msra.mxu0 %v10101
    %10279 = vmatpush.msra.mxu0 %v10100
    %10280 = vmatpush.msra.mxu0 %v10099
    %10281 = vmatpush.msra.mxu0 %v10098
    %10282 = vmatmul.f32.gmra.mxu0 %v10264
    %v10283 = vpop.f32.mrf.mxu0
    %v10284 = vadd.f32 0.0, %v10283
    %10285 = vdwg.mxu0
    %vm10286 = vcmask 517120
    %v10287 = vsel %vm10286, %v10123, 0.0
    %v10288 = vsel %vm10286, %v10146, 0.0
    %v10289 = vadd.f32 %v10287, %v10288
    %v10290 = vsel %vm10286, %v10169, 0.0
    %v10291 = vadd.f32 %v10289, %v10290
    %v10292 = vsel %vm10286, %v10192, 0.0
    %v10293 = vadd.f32 %v10291, %v10292
    %v10294 = vsel %vm10286, %v10215, 0.0
    %v10295 = vadd.f32 %v10293, %v10294
    %v10296 = vsel %vm10286, %v10238, 0.0
    %v10297 = vadd.f32 %v10295, %v10296
    %v10298 = vsel %vm10286, %v10261, 0.0
    %v10299 = vadd.f32 %v10297, %v10298
    %v10300 = vsel %vm10286, %v10284, 0.0
    %v10301 = vadd.f32 %v10299, %v10300
    %v10302 = vld [vmem:[%s16] sm:$0x1]
    %v10304 = vperm.slane %v10302, 0
    %v10306 = vadd.f32 %v10301, %v10304
    %v10307 = vld [vmem:[%s17] sm:$0x1]
    %v10309 = vperm.slane %v10307, 0
    %v10311 = vmul.f32 %v10306, %v10309
    %v10312 = vld [vmem:[%s18] sm:$0x1]
    %v10314 = vperm.slane %v10312, 0
    %v10316 = vadd.f32 %v10311, %v10314
    %v10317 = vld [vmem:[%s19] sm:$0xff]
    %v10318 = vld [vmem:[%s19 + $0x8] sm:$0xff]
    %v10319 = vld [vmem:[%s19 + $0x10] sm:$0xff]
    %v10320 = vld [vmem:[%s19 + $0x18] sm:$0xff]
    %v10321 = vld [vmem:[%s19 + $0x20] sm:$0xff]
    %v10322 = vld [vmem:[%s19 + $0x28] sm:$0xff]
    %v10323 = vld [vmem:[%s19 + $0x30] sm:$0xff]
    %v10324 = vld [vmem:[%s19 + $0x38] sm:$0xff]
    %v10325 = vld [vmem:[%s20] sm:$0x1]
    %v10327 = vperm.slane %v10325, 0
    %vm10329 = vcmask 523264
    %v10331 = vsel %vm10329, %v10316, 0
    %10333 = vmatpush.msra.mxu0 0.0
    %10334 = vmatpush.msra.mxu0 0.0
    %10335 = vmatpush.msra.mxu0 0.0
    %10336 = vmatpush.msra.mxu0 0.0
    %10337 = vmatpush.msra.mxu0 0.0
    %10338 = vmatpush.msra.mxu0 0.0
    %10339 = vmatpush.msra.mxu0 0.0
    %10340 = vmatpush.msra.mxu0 0.0
    %10341 = vmatpush.msra.mxu0 %v10324
    %10342 = vmatpush.msra.mxu0 %v10323
    %10343 = vmatpush.msra.mxu0 %v10322
    %10344 = vmatpush.msra.mxu0 %v10321
    %10345 = vmatpush.msra.mxu0 %v10320
    %10346 = vmatpush.msra.mxu0 %v10319
    %10347 = vmatpush.msra.mxu0 %v10318
    %10348 = vmatpush.msra.mxu0 %v10317
    %10349 = vmatmul.f32.gmra.mxu0 %v10331
    %v10350 = vpop.f32.mrf.mxu0
    %v10351 = vadd.f32 %v10327, %v10350
    %10352 = vdwg.mxu0
    %v10353 = vmul.f32 %v10351, 0.5
    %v10354 = vmul.f32 %v10351, 0.70710677
    %v10355 = vmul.f32 %v10354, %v10354
    %v10356 = vmin.f32 16.0, %v10355
    %v10357 = vmul.f32 %v10356, 2.1237322e-06
    %v10358 = vadd.f32 %v10357, 0.00028619796
    %v10359 = vmul.f32 %v10356, %v10358
    %v10360 = vadd.f32 %v10359, 0.0036580483
    %v10361 = vmul.f32 %v10356, %v10360
    %v10362 = vadd.f32 %v10361, 0.05243302
    %v10363 = vmul.f32 %v10356, %v10362
    %v10364 = vadd.f32 %v10363, 0.18741608
    %v10365 = vmul.f32 %v10356, %v10364
    %v10366 = vadd.f32 %v10365, 1.1283791
    %v10367 = vmul.f32 %v10354, %v10366
    %v10368 = vmul.f32 %v10356, 3.8918573e-05
    %v10369 = vadd.f32 %v10368, 0.001143296
    %v10370 = vmul.f32 %v10356, %v10369
    %v10371 = vadd.f32 %v10370, 0.014752088
    %v10372 = vmul.f32 %v10356, %v10371
    %v10373 = vadd.f32 %v10372, 0.112945676
    %v10374 = vmul.f32 %v10356, %v10373
    %v10375 = vadd.f32 %v10374, 0.4994258
    %v10376 = vmul.f32 %v10356, %v10375
    %v10377 = vadd.f32 %v10376, 1.0
    %v10378 = vrcp.pop %v10377
    %v10379 = vmul.f32 %v10377, %v10378
    %v10380 = vsub.f32 1.0, %v10379
    %v10381 = vmul.f32 %v10378, %v10380
    %v10382 = vadd.f32 %v10378, %v10381
    %vm10383 = vweird.f32 %v10377
    %vm10384 = vweird.f32 %v10378
    %vm10385 = vmor %vm10383, %vm10384
    %v10386 = vsel %vm10385, %v10378, %v10382
    %v10387 = vand.u32 2147483647, %v10377
    %vm10388 = vcmp.eq.f32.partialorder %v10387, 8.507059e+37
    %v10389 = vand.u32 %v10377, 2147483648
    %v10390 = vor.u32 1.1754944e-38, %v10389
    %v10391 = vsel %vm10388, %v10390, %v10386
    %v10392 = vmul.f32 %v10367, %v10391
    %v10393 = vmin.f32 %v10392, 1.0
    %v10394 = vmax.f32 %v10393, -1.0
    %v10395 = vadd.f32 %v10394, 1.0
    %v10396 = vmul.f32 %v10353, %v10395
    %v10397 = vld [vmem:[%s21] sm:$0xff]
    %v10398 = vld [vmem:[%s21 + $0x8] sm:$0xff]
    %v10399 = vld [vmem:[%s21 + $0x10] sm:$0xff]
    %v10400 = vld [vmem:[%s21 + $0x18] sm:$0xff]
    %v10401 = vld [vmem:[%s22] sm:$0x1]
    %v10403 = vperm.slane %v10401, 0
    %v10406 = vsel %vm400, %v10396, 0
    %10408 = vmatpush.msra.mxu0 0.0
    %10409 = vmatpush.msra.mxu0 0.0
    %10410 = vmatpush.msra.mxu0 0.0
    %10411 = vmatpush.msra.mxu0 0.0
    %10412 = vmatpush.msra.mxu0 0.0
    %10413 = vmatpush.msra.mxu0 0.0
    %10414 = vmatpush.msra.mxu0 0.0
    %10415 = vmatpush.msra.mxu0 0.0
    %10416 = vmatpush.msra.mxu0 0.0
    %10417 = vmatpush.msra.mxu0 0.0
    %10418 = vmatpush.msra.mxu0 0.0
    %10419 = vmatpush.msra.mxu0 0.0
    %10420 = vmatpush.msra.mxu0 %v10400
    %10421 = vmatpush.msra.mxu0 %v10399
    %10422 = vmatpush.msra.mxu0 %v10398
    %10423 = vmatpush.msra.mxu0 %v10397
    %10424 = vmatmul.f32.gmra.mxu0 %v10406
    %v10425 = vpop.f32.mrf.mxu0
    %v10426 = vadd.f32 %v10403, %v10425
    %10427 = vdwg.mxu0
    %10428 = vst [vmem:[#allocation2] sm:$0x3] %v10426
    // Predicated region
    $region94: #{ctran_forward.1} parent=1 // pred_check
      _
    $region95: #{ctran_forward.1} parent=1 // pred_check_branch
      %10430 = sbr.rel (0) target = $region97
    $region96: #{ctran_forward.1} parent=1 // pred_region
      %10432 = vsyncadd [#allocation3], 0
      %s10434 = sshll.u32 [#allocation2], 4
      %s10435 = int_to_ptr.vmem [resolvable:$true] %s10434
      %s10436 = sshll.u32 %s23, 4
      %s10437 = int_to_ptr.hbm [resolvable:$true] %s10436
      %10439 = dma.vmem_to_hbm [thread:$0]  %s10435, 32, %s10437, [#allocation3]
    $region97: #{ctran_forward.1} parent=1 // pred_fallthru
      _
    // Predicated region
    $region98: #{ctran_forward.1} parent=1 // pred_check
      _
    $region99: #{ctran_forward.1} parent=1 // pred_check_branch
      %10441 = sbr.rel (0) target = $region101
    $region100: #{ctran_forward.1} parent=1 // pred_region
      %10443 = dma.done [#allocation3], 32
    $region101: #{ctran_forward.1} parent=1 // pred_fallthru
      _
    %10444 = vsyncpa [#allocation3], 1

</llo_original>
